<compile_context>
chip_gen: v5e
topology: v5e:2x2
jax: 0.10.0
libtpu: 0.0.40
codegen_flags: <defaults>
</compile_context>

<pallas_src>
import numpy as np

import jax
import jax.numpy as jnp
from jax import lax
from jax.experimental import pallas as pl
from jax.experimental.pallas import tpu as pltpu


_B = 2  # batch size fixed by the fused row layout


# ---------------------------------------------------------------------------
# One-time host-side weight repacking (PyTorch layouts -> kernel layouts).
# ---------------------------------------------------------------------------
def prepare_params(params):
    w1 = np.asarray(params["w1"], np.float32)   # (32, 1, 5, 5)   OIHW
    b1 = np.asarray(params["b1"], np.float32)
    w3 = np.asarray(params["w3"], np.float32)   # (64, 32, 3, 3)  OIHW
    b3 = np.asarray(params["b3"], np.float32)
    w5 = np.asarray(params["w5"], np.float32)   # (256, 1600)     (out, in)
    b5 = np.asarray(params["b5"], np.float32)
    w6 = np.asarray(params["w6"], np.float32)   # (128, 256)
    b6 = np.asarray(params["b6"], np.float32)
    wo = np.asarray(params["wo"], np.float32)   # (10, 128)
    bo = np.asarray(params["bo"], np.float32)

    # conv1 banded weights, one (28, 768) block per kh tap:
    #   rows = w_in (0..27), cols = (wp, j, co) with ow = 2*j + wp.
    t1 = np.zeros((5, 28, 2, 12, 32), np.float32)
    for kh in range(5):
        for kw in range(5):
            for wp in range(2):
                for j in range(12):
                    w_in = 2 * j + wp + kw                      # <= 27
                    t1[kh, w_in, wp, j, :] = w1[:, 0, kh, kw]
    t1 = t1.reshape(5, 28, 768)
    b1t = np.tile(b1, 24)[None, :]                              # (1, 768)

    # In-kernel im2col row selection: one-hot matrices sel[kh] such that
    # (sel[kh] @ img)[rr, :] = image row (b, oh + kh) where the fused conv1
    # row layout is rr = hp*40 + ip*16 + ih*2 + b, oh = 4*ih + 2*ip + hp
    # (valid only for ih < 6).  Invalid / tail-pad rows are all-zero, so
    # a1 there becomes relu(bias) exactly as in the previous version.
    sel = np.zeros((5, 80, 56), np.float32)
    for kh in range(5):
        for hp in range(2):
            for r in range(32):
                ip, t = divmod(r, 16)
                ih, b = divmod(t, 2)
                if ih < 6:
                    oh = 4 * ih + 2 * ip + hp
                    sel[kh, hp * 40 + r, b * 28 + oh + kh] = 1.0

    # conv2 banded weights (one per kh): rows = (j, cin), cols = (owp, j2, co).
    t3 = np.zeros((3, 12, 32, 2, 6, 64), np.float32)
    for kh in range(3):
        for kw in range(3):
            for owp in range(2):
                for j2 in range(5):                             # j2 == 5 stays 0 (pad)
                    j = 2 * j2 + owp + kw                       # <= 11
                    t3[kh, j, :, owp, j2, :] = w3[:, :, kh, kw].T
    t3 = t3.reshape(3, 384, 768)
    b3t = np.tile(b3, 12)[None, :]                              # (1, 768)

    # fc1: one (384, 256) block per pooled row pi; rows = (j2, co), cols = d.
    # PyTorch flattens (C, H, W): in-index = co * 25 + pi * 5 + pj.
    w5r = np.zeros((5, 6, 64, 256), np.float32)
    for pi in range(5):
        for pj in range(5):
            w5r[pi, pj, :, :] = w5[:, pi * 5 + pj::25].T        # (64, 256)
    w5r = w5r.reshape(5, 384, 256)

    wop = np.zeros((128, 128), np.float32)
    wop[:, :10] = wo.T
    bop = np.full((1, 128), -1e30, np.float32)  # padded logits -> effectively -inf
    bop[0, :10] = bo

    return {
        "sel": jnp.asarray(sel),
        "t1": jnp.asarray(t1), "b1": jnp.asarray(b1t),
        "t3": jnp.asarray(t3), "b3": jnp.asarray(b3t),
        "w5": jnp.asarray(w5r), "b5": jnp.asarray(b5[None, :]),
        "w6": jnp.asarray(w6.T.copy()), "b6": jnp.asarray(b6[None, :]),
        "wo": jnp.asarray(wop), "bo": jnp.asarray(bop),
    }


# ---------------------------------------------------------------------------
# The fused Pallas kernel.
# ---------------------------------------------------------------------------
def _lenet5_kernel(img_ref, sel_ref, t1_ref, b1_ref, t3_ref, b3_ref,
                   w5_ref, b5_ref, w6_ref, b6_ref, wo_ref, bo_ref,
                   out_ref, p1_ref, p2_ref):
    f32 = jnp.float32
    img = img_ref[...]                                            # (56, 28)

    # conv1 (5x5, 1->32) + ReLU.  Per kh tap: one-hot row-selection matmul
    # (in-kernel im2col) followed by a banded-weight matmul; accumulate.
    a1 = None
    for kh in range(5):
        xk = jnp.dot(sel_ref[kh], img, preferred_element_type=f32)   # (80, 28)
        pk = jnp.dot(xk, t1_ref[kh], preferred_element_type=f32)     # (80, 768)
        a1 = pk if a1 is None else a1 + pk
    a1 = jnp.maximum(a1 + b1_ref[...], 0.0)                       # (80, 768)

    # 2x2 max-pool #1: H = parity row slabs, W = parity lane halves.
    hp1 = jnp.maximum(a1[0:40, :], a1[40:80, :])                  # (40, 768)
    p1_ref[...] = jnp.maximum(hp1[:, 0:384], hp1[:, 384:768])     # (40, 384)

    # pool1 rows: ip*16 + ih*2 + b ; lanes: j*32 + cin
    s0 = p1_ref[0:16, :]     # even pooled rows  (i = 2*ih)
    s1 = p1_ref[16:32, :]    # odd pooled rows   (i = 2*ih + 1)
    s2 = p1_ref[2:18, :]     # even rows shifted by one pooled row
    s3 = p1_ref[18:34, :]    # odd rows shifted by one pooled row

    # conv2 (3x3, 32->64) + ReLU, split by output-row parity (fuses H-pool2).
    b3 = b3_ref[...]
    y2e = jnp.dot(s0, t3_ref[0], preferred_element_type=f32)
    y2e = y2e + jnp.dot(s1, t3_ref[1], preferred_element_type=f32)
    y2e = y2e + jnp.dot(s2, t3_ref[2], preferred_element_type=f32)
    y2e = jnp.maximum(y2e + b3, 0.0)                              # rows oh = 2*i2
    y2o = jnp.dot(s1, t3_ref[0], preferred_element_type=f32)
    y2o = y2o + jnp.dot(s2, t3_ref[1], preferred_element_type=f32)
    y2o = y2o + jnp.dot(s3, t3_ref[2], preferred_element_type=f32)
    y2o = jnp.maximum(y2o + b3, 0.0)                              # rows oh = 2*i2+1

    # 2x2 max-pool #2.
    hp2 = jnp.maximum(y2e, y2o)                                   # pool over H
    p2_ref[...] = jnp.maximum(hp2[:, 0:384], hp2[:, 384:768])     # pool over W
    # p2 rows: i2*2 + b (i2 <= 4 real); lanes: j2*64 + co (j2 <= 4 real)

    # fc1 (1600 -> 256) + ReLU: 5 accumulating (2,384)@(384,256) matmuls.
    h = jnp.dot(p2_ref[0:2, :], w5_ref[0], preferred_element_type=f32)
    for pi in range(1, 5):
        h = h + jnp.dot(p2_ref[2 * pi:2 * pi + 2, :], w5_ref[pi],
                        preferred_element_type=f32)
    h = jnp.maximum(h + b5_ref[...], 0.0)                         # (2, 256)

    # fc2 (256 -> 128) + ReLU.
    h = jnp.dot(h, w6_ref[...], preferred_element_type=f32)
    h = jnp.maximum(h + b6_ref[...], 0.0)                         # (2, 128)

    # fc3 (128 -> 10, padded to 128 lanes) + log_softmax (pads biased to -1e30).
    logits = jnp.dot(h, wo_ref[...], preferred_element_type=f32) + bo_ref[...]
    m = jnp.max(logits, axis=-1, keepdims=True)
    z = logits - m
    lse = jnp.log(jnp.sum(jnp.exp(z), axis=-1, keepdims=True))
    out_ref[...] = (z - lse)[:, :10]                              # (2, 10)


def _full_spec(shape):
    nd = len(shape)
    return pl.BlockSpec(shape, lambda *_: (0,) * nd)


@jax.jit
def lenet5_forward(x, prep):
    assert x.shape == (_B, 1, 28, 28)
    # The only per-call XLA glue: a contiguous reshape to rows=(b, h), lanes=w.
    img = x.reshape(_B * 28, 28).astype(jnp.float32)              # (56, 28)

    args = (img, prep["sel"], prep["t1"], prep["b1"], prep["t3"], prep["b3"],
            prep["w5"], prep["b5"], prep["w6"], prep["b6"],
            prep["wo"], prep["bo"])

    out = pl.pallas_call(
        _lenet5_kernel,
        out_shape=jax.ShapeDtypeStruct((_B, 10), jnp.float32),
        in_specs=[_full_spec(a.shape) for a in args],
        out_specs=_full_spec((_B, 10)),
        scratch_shapes=[pltpu.VMEM((40, 384), jnp.float32),
                        pltpu.VMEM((16, 384), jnp.float32)],
        compiler_params=pltpu.CompilerParams(
            vmem_limit_bytes=32 * 1024 * 1024),
    )(*args)
    return out


# ---------------------------------------------------------------------------
# Pure-JAX reference (PyTorch semantics) for numerical verification.
# ---------------------------------------------------------------------------
def lenet5_reference(x, params):
    def conv(x, w, b):
        y = lax.conv_general_dilated(
            x, w, (1, 1), "VALID", dimension_numbers=("NCHW", "OIHW", "NCHW"))
        return jax.nn.relu(y + b[None, :, None, None])

    def pool(x):
        B, C, H, W = x.shape
        return x.reshape(B, C, H // 2, 2, W // 2, 2).max(axis=(3, 5))

    x = pool(conv(x, params["w1"], params["b1"]))
    x = pool(conv(x, params["w3"], params["b3"]))
    x = x.reshape(x.shape[0], -1)
    x = jax.nn.relu(x @ params["w5"].T + params["b5"])
    x = jax.nn.relu(x @ params["w6"].T + params["b6"])
    x = x @ params["wo"].T + params["bo"]
    return jax.nn.log_softmax(x, axis=1)


def init_params(key):
    ks = jax.random.split(key, 10)
    s = 0.05
    f32 = jnp.float32
    return {
        "w1": s * jax.random.normal(ks[0], (32, 1, 5, 5), f32),    # Conv2d(1,32,5)
        "b1": s * jax.random.normal(ks[1], (32,), f32),
        "w3": s * jax.random.normal(ks[2], (64, 32, 3, 3), f32),   # Conv2d(32,64,3)
        "b3": s * jax.random.normal(ks[3], (64,), f32),
        "w5": s * jax.random.normal(ks[4], (256, 1600), f32),      # Linear(1600,256)
        "b5": s * jax.random.normal(ks[5], (256,), f32),
        "w6": s * jax.random.normal(ks[6], (128, 256), f32),       # Linear(256,128)
        "b6": s * jax.random.normal(ks[7], (128,), f32),
        "wo": s * jax.random.normal(ks[8], (10, 128), f32),        # Linear(128,10)
        "bo": s * jax.random.normal(ks[9], (10,), f32),
    }


if __name__ == "__main__":
    key = jax.random.PRNGKey(0)
    pkey, xkey = jax.random.split(key)
    params = init_params(pkey)
    prep = prepare_params(params)          # one-time host-side weight repack

    # FashionMNIST-shaped input: batch=2, 1x28x28 (the 1600-wide flatten).
    x = jax.random.normal(xkey, (_B, 1, 28, 28), jnp.float32)

    out = lenet5_forward(x, prep)
    out = jax.block_until_ready(out)

    ref = lenet5_reference(x, params)
    assert out.shape == (_B, 10), out.shape
    assert bool(jnp.all(jnp.isfinite(out)))
    max_err = float(jnp.max(jnp.abs(out - ref)))
    assert bool(jnp.allclose(out, ref, rtol=1e-4, atol=1e-4)), max_err
    assert bool(jnp.allclose(jnp.sum(jnp.exp(out), axis=1), 1.0, atol=1e-4))

    print("KERNEL_OK")
</pallas_src>

<mosaic_0001>
module attributes {stable_mosaic.version = 11 : i64} {
  func.func @_lenet5_kernel(%arg0: memref<56x28xf32, #tpu.memory_space<vmem>>, %arg1: memref<5x80x56xf32, #tpu.memory_space<vmem>>, %arg2: memref<5x28x768xf32, #tpu.memory_space<vmem>>, %arg3: memref<1x768xf32, #tpu.memory_space<vmem>>, %arg4: memref<3x384x768xf32, #tpu.memory_space<vmem>>, %arg5: memref<1x768xf32, #tpu.memory_space<vmem>>, %arg6: memref<5x384x256xf32, #tpu.memory_space<vmem>>, %arg7: memref<1x256xf32, #tpu.memory_space<vmem>>, %arg8: memref<256x128xf32, #tpu.memory_space<vmem>>, %arg9: memref<1x128xf32, #tpu.memory_space<vmem>>, %arg10: memref<128x128xf32, #tpu.memory_space<vmem>>, %arg11: memref<1x128xf32, #tpu.memory_space<vmem>>, %arg12: memref<2x10xf32, #tpu.memory_space<vmem>>, %arg13: memref<40x384xf32, #tpu.memory_space<vmem>>, %arg14: memref<16x384xf32, #tpu.memory_space<vmem>>) attributes {dimension_semantics = [], scalar_prefetch = 0 : i64, scratch_operands = 2 : i64, tpu.core_type = #tpu.core_type<tc>} {
    %c0 = arith.constant 0 : index
    %c0_0 = arith.constant 0 : index
    %0 = vector.load %arg0[%c0, %c0_0] : memref<56x28xf32, #tpu.memory_space<vmem>>, vector<56x28xf32>
    %c0_1 = arith.constant 0 : index
    %c0_2 = arith.constant 0 : index
    %c0_3 = arith.constant 0 : index
    %1 = vector.load %arg1[%c0_1, %c0_2, %c0_3] : memref<5x80x56xf32, #tpu.memory_space<vmem>>, vector<1x80x56xf32>
    %2 = vector.shape_cast %1 : vector<1x80x56xf32> to vector<80x56xf32>
    %cst = arith.constant dense<0.000000e+00> : vector<80x28xf32>
    %3 = tpu.matmul %2, %0, %cst {dimension_numbers = #tpu.dot_dimension_numbers<[1], [0], [0], [1], [0, 0, 1, 1], [], []>} : vector<80x56xf32>, vector<56x28xf32>, vector<80x28xf32> -> vector<80x28xf32>
    %c0_4 = arith.constant 0 : index
    %c0_5 = arith.constant 0 : index
    %c0_6 = arith.constant 0 : index
    %4 = vector.load %arg2[%c0_4, %c0_5, %c0_6] : memref<5x28x768xf32, #tpu.memory_space<vmem>>, vector<1x28x768xf32>
    %5 = vector.shape_cast %4 : vector<1x28x768xf32> to vector<28x768xf32>
    %cst_7 = arith.constant dense<0.000000e+00> : vector<80x768xf32>
    %6 = tpu.matmul %3, %5, %cst_7 {dimension_numbers = #tpu.dot_dimension_numbers<[1], [0], [0], [1], [0, 0, 1, 1], [], []>} : vector<80x28xf32>, vector<28x768xf32>, vector<80x768xf32> -> vector<80x768xf32>
    %c1 = arith.constant 1 : index
    %c0_8 = arith.constant 0 : index
    %c0_9 = arith.constant 0 : index
    %7 = vector.load %arg1[%c1, %c0_8, %c0_9] : memref<5x80x56xf32, #tpu.memory_space<vmem>>, vector<1x80x56xf32>
    %8 = vector.shape_cast %7 : vector<1x80x56xf32> to vector<80x56xf32>
    %cst_10 = arith.constant dense<0.000000e+00> : vector<80x28xf32>
    %9 = tpu.matmul %8, %0, %cst_10 {dimension_numbers = #tpu.dot_dimension_numbers<[1], [0], [0], [1], [0, 0, 1, 1], [], []>} : vector<80x56xf32>, vector<56x28xf32>, vector<80x28xf32> -> vector<80x28xf32>
    %c1_11 = arith.constant 1 : index
    %c0_12 = arith.constant 0 : index
    %c0_13 = arith.constant 0 : index
    %10 = vector.load %arg2[%c1_11, %c0_12, %c0_13] : memref<5x28x768xf32, #tpu.memory_space<vmem>>, vector<1x28x768xf32>
    %11 = vector.shape_cast %10 : vector<1x28x768xf32> to vector<28x768xf32>
    %cst_14 = arith.constant dense<0.000000e+00> : vector<80x768xf32>
    %12 = tpu.matmul %9, %11, %cst_14 {dimension_numbers = #tpu.dot_dimension_numbers<[1], [0], [0], [1], [0, 0, 1, 1], [], []>} : vector<80x28xf32>, vector<28x768xf32>, vector<80x768xf32> -> vector<80x768xf32>
    %13 = arith.addf %6, %12 : vector<80x768xf32>
    %c2 = arith.constant 2 : index
    %c0_15 = arith.constant 0 : index
    %c0_16 = arith.constant 0 : index
    %14 = vector.load %arg1[%c2, %c0_15, %c0_16] : memref<5x80x56xf32, #tpu.memory_space<vmem>>, vector<1x80x56xf32>
    %15 = vector.shape_cast %14 : vector<1x80x56xf32> to vector<80x56xf32>
    %cst_17 = arith.constant dense<0.000000e+00> : vector<80x28xf32>
    %16 = tpu.matmul %15, %0, %cst_17 {dimension_numbers = #tpu.dot_dimension_numbers<[1], [0], [0], [1], [0, 0, 1, 1], [], []>} : vector<80x56xf32>, vector<56x28xf32>, vector<80x28xf32> -> vector<80x28xf32>
    %c2_18 = arith.constant 2 : index
    %c0_19 = arith.constant 0 : index
    %c0_20 = arith.constant 0 : index
    %17 = vector.load %arg2[%c2_18, %c0_19, %c0_20] : memref<5x28x768xf32, #tpu.memory_space<vmem>>, vector<1x28x768xf32>
    %18 = vector.shape_cast %17 : vector<1x28x768xf32> to vector<28x768xf32>
    %cst_21 = arith.constant dense<0.000000e+00> : vector<80x768xf32>
    %19 = tpu.matmul %16, %18, %cst_21 {dimension_numbers = #tpu.dot_dimension_numbers<[1], [0], [0], [1], [0, 0, 1, 1], [], []>} : vector<80x28xf32>, vector<28x768xf32>, vector<80x768xf32> -> vector<80x768xf32>
    %20 = arith.addf %13, %19 : vector<80x768xf32>
    %c3 = arith.constant 3 : index
    %c0_22 = arith.constant 0 : index
    %c0_23 = arith.constant 0 : index
    %21 = vector.load %arg1[%c3, %c0_22, %c0_23] : memref<5x80x56xf32, #tpu.memory_space<vmem>>, vector<1x80x56xf32>
    %22 = vector.shape_cast %21 : vector<1x80x56xf32> to vector<80x56xf32>
    %cst_24 = arith.constant dense<0.000000e+00> : vector<80x28xf32>
    %23 = tpu.matmul %22, %0, %cst_24 {dimension_numbers = #tpu.dot_dimension_numbers<[1], [0], [0], [1], [0, 0, 1, 1], [], []>} : vector<80x56xf32>, vector<56x28xf32>, vector<80x28xf32> -> vector<80x28xf32>
    %c3_25 = arith.constant 3 : index
    %c0_26 = arith.constant 0 : index
    %c0_27 = arith.constant 0 : index
    %24 = vector.load %arg2[%c3_25, %c0_26, %c0_27] : memref<5x28x768xf32, #tpu.memory_space<vmem>>, vector<1x28x768xf32>
    %25 = vector.shape_cast %24 : vector<1x28x768xf32> to vector<28x768xf32>
    %cst_28 = arith.constant dense<0.000000e+00> : vector<80x768xf32>
    %26 = tpu.matmul %23, %25, %cst_28 {dimension_numbers = #tpu.dot_dimension_numbers<[1], [0], [0], [1], [0, 0, 1, 1], [], []>} : vector<80x28xf32>, vector<28x768xf32>, vector<80x768xf32> -> vector<80x768xf32>
    %27 = arith.addf %20, %26 : vector<80x768xf32>
    %c4 = arith.constant 4 : index
    %c0_29 = arith.constant 0 : index
    %c0_30 = arith.constant 0 : index
    %28 = vector.load %arg1[%c4, %c0_29, %c0_30] : memref<5x80x56xf32, #tpu.memory_space<vmem>>, vector<1x80x56xf32>
    %29 = vector.shape_cast %28 : vector<1x80x56xf32> to vector<80x56xf32>
    %cst_31 = arith.constant dense<0.000000e+00> : vector<80x28xf32>
    %30 = tpu.matmul %29, %0, %cst_31 {dimension_numbers = #tpu.dot_dimension_numbers<[1], [0], [0], [1], [0, 0, 1, 1], [], []>} : vector<80x56xf32>, vector<56x28xf32>, vector<80x28xf32> -> vector<80x28xf32>
    %c4_32 = arith.constant 4 : index
    %c0_33 = arith.constant 0 : index
    %c0_34 = arith.constant 0 : index
    %31 = vector.load %arg2[%c4_32, %c0_33, %c0_34] : memref<5x28x768xf32, #tpu.memory_space<vmem>>, vector<1x28x768xf32>
    %32 = vector.shape_cast %31 : vector<1x28x768xf32> to vector<28x768xf32>
    %cst_35 = arith.constant dense<0.000000e+00> : vector<80x768xf32>
    %33 = tpu.matmul %30, %32, %cst_35 {dimension_numbers = #tpu.dot_dimension_numbers<[1], [0], [0], [1], [0, 0, 1, 1], [], []>} : vector<80x28xf32>, vector<28x768xf32>, vector<80x768xf32> -> vector<80x768xf32>
    %34 = arith.addf %27, %33 : vector<80x768xf32>
    %c0_36 = arith.constant 0 : index
    %c0_37 = arith.constant 0 : index
    %35 = vector.load %arg3[%c0_36, %c0_37] : memref<1x768xf32, #tpu.memory_space<vmem>>, vector<1x768xf32>
    %36 = vector.broadcast %35 : vector<1x768xf32> to vector<80x768xf32>
    %37 = arith.addf %34, %36 : vector<80x768xf32>
    %cst_38 = arith.constant 0.000000e+00 : f32
    %38 = vector.broadcast %cst_38 : f32 to vector<80x768xf32>
    %39 = arith.maximumf %37, %38 : vector<80x768xf32>
    %40 = vector.extract_strided_slice %39 {offsets = [0, 0], sizes = [40, 768], strides = [1, 1]} : vector<80x768xf32> to vector<40x768xf32>
    %41 = vector.extract_strided_slice %39 {offsets = [40, 0], sizes = [40, 768], strides = [1, 1]} : vector<80x768xf32> to vector<40x768xf32>
    %42 = arith.maximumf %40, %41 : vector<40x768xf32>
    %43 = vector.extract_strided_slice %42 {offsets = [0, 0], sizes = [40, 384], strides = [1, 1]} : vector<40x768xf32> to vector<40x384xf32>
    %44 = vector.extract_strided_slice %42 {offsets = [0, 384], sizes = [40, 384], strides = [1, 1]} : vector<40x768xf32> to vector<40x384xf32>
    %45 = arith.maximumf %43, %44 : vector<40x384xf32>
    %c0_39 = arith.constant 0 : index
    %c0_40 = arith.constant 0 : index
    %46 = vector.load %arg13[%c0_39, %c0_40] : memref<40x384xf32, #tpu.memory_space<vmem>>, vector<40x384xf32>
    tpu.vector_store %arg13[%c0_39, %c0_40], %45 {strides = array<i32>} : memref<40x384xf32, #tpu.memory_space<vmem>>, vector<40x384xf32>,
    %c0_41 = arith.constant 0 : index
    %c0_42 = arith.constant 0 : index
    %47 = vector.load %arg13[%c0_41, %c0_42] : memref<40x384xf32, #tpu.memory_space<vmem>>, vector<16x384xf32>
    %c16 = arith.constant 16 : index
    %c0_43 = arith.constant 0 : index
    %48 = vector.load %arg13[%c16, %c0_43] : memref<40x384xf32, #tpu.memory_space<vmem>>, vector<16x384xf32>
    %c2_44 = arith.constant 2 : index
    %c0_45 = arith.constant 0 : index
    %49 = vector.load %arg13[%c2_44, %c0_45] : memref<40x384xf32, #tpu.memory_space<vmem>>, vector<16x384xf32>
    %c18 = arith.constant 18 : index
    %c0_46 = arith.constant 0 : index
    %50 = vector.load %arg13[%c18, %c0_46] : memref<40x384xf32, #tpu.memory_space<vmem>>, vector<16x384xf32>
    %c0_47 = arith.constant 0 : index
    %c0_48 = arith.constant 0 : index
    %51 = vector.load %arg5[%c0_47, %c0_48] : memref<1x768xf32, #tpu.memory_space<vmem>>, vector<1x768xf32>
    %c0_49 = arith.constant 0 : index
    %c0_50 = arith.constant 0 : index
    %c0_51 = arith.constant 0 : index
    %52 = vector.load %arg4[%c0_49, %c0_50, %c0_51] : memref<3x384x768xf32, #tpu.memory_space<vmem>>, vector<1x384x768xf32>
    %53 = vector.shape_cast %52 : vector<1x384x768xf32> to vector<384x768xf32>
    %cst_52 = arith.constant dense<0.000000e+00> : vector<16x768xf32>
    %54 = tpu.matmul %47, %53, %cst_52 {dimension_numbers = #tpu.dot_dimension_numbers<[1], [0], [0], [1], [0, 0, 1, 1], [], []>} : vector<16x384xf32>, vector<384x768xf32>, vector<16x768xf32> -> vector<16x768xf32>
    %c1_53 = arith.constant 1 : index
    %c0_54 = arith.constant 0 : index
    %c0_55 = arith.constant 0 : index
    %55 = vector.load %arg4[%c1_53, %c0_54, %c0_55] : memref<3x384x768xf32, #tpu.memory_space<vmem>>, vector<1x384x768xf32>
    %56 = vector.shape_cast %55 : vector<1x384x768xf32> to vector<384x768xf32>
    %cst_56 = arith.constant dense<0.000000e+00> : vector<16x768xf32>
    %57 = tpu.matmul %48, %56, %cst_56 {dimension_numbers = #tpu.dot_dimension_numbers<[1], [0], [0], [1], [0, 0, 1, 1], [], []>} : vector<16x384xf32>, vector<384x768xf32>, vector<16x768xf32> -> vector<16x768xf32>
    %58 = arith.addf %54, %57 : vector<16x768xf32>
    %c2_57 = arith.constant 2 : index
    %c0_58 = arith.constant 0 : index
    %c0_59 = arith.constant 0 : index
    %59 = vector.load %arg4[%c2_57, %c0_58, %c0_59] : memref<3x384x768xf32, #tpu.memory_space<vmem>>, vector<1x384x768xf32>
    %60 = vector.shape_cast %59 : vector<1x384x768xf32> to vector<384x768xf32>
    %cst_60 = arith.constant dense<0.000000e+00> : vector<16x768xf32>
    %61 = tpu.matmul %49, %60, %cst_60 {dimension_numbers = #tpu.dot_dimension_numbers<[1], [0], [0], [1], [0, 0, 1, 1], [], []>} : vector<16x384xf32>, vector<384x768xf32>, vector<16x768xf32> -> vector<16x768xf32>
    %62 = arith.addf %58, %61 : vector<16x768xf32>
    %63 = vector.broadcast %51 : vector<1x768xf32> to vector<16x768xf32>
    %64 = arith.addf %62, %63 : vector<16x768xf32>
    %cst_61 = arith.constant 0.000000e+00 : f32
    %65 = vector.broadcast %cst_61 : f32 to vector<16x768xf32>
    %66 = arith.maximumf %64, %65 : vector<16x768xf32>
    %c0_62 = arith.constant 0 : index
    %c0_63 = arith.constant 0 : index
    %c0_64 = arith.constant 0 : index
    %67 = vector.load %arg4[%c0_62, %c0_63, %c0_64] : memref<3x384x768xf32, #tpu.memory_space<vmem>>, vector<1x384x768xf32>
    %68 = vector.shape_cast %67 : vector<1x384x768xf32> to vector<384x768xf32>
    %cst_65 = arith.constant dense<0.000000e+00> : vector<16x768xf32>
    %69 = tpu.matmul %48, %68, %cst_65 {dimension_numbers = #tpu.dot_dimension_numbers<[1], [0], [0], [1], [0, 0, 1, 1], [], []>} : vector<16x384xf32>, vector<384x768xf32>, vector<16x768xf32> -> vector<16x768xf32>
    %c1_66 = arith.constant 1 : index
    %c0_67 = arith.constant 0 : index
    %c0_68 = arith.constant 0 : index
    %70 = vector.load %arg4[%c1_66, %c0_67, %c0_68] : memref<3x384x768xf32, #tpu.memory_space<vmem>>, vector<1x384x768xf32>
    %71 = vector.shape_cast %70 : vector<1x384x768xf32> to vector<384x768xf32>
    %cst_69 = arith.constant dense<0.000000e+00> : vector<16x768xf32>
    %72 = tpu.matmul %49, %71, %cst_69 {dimension_numbers = #tpu.dot_dimension_numbers<[1], [0], [0], [1], [0, 0, 1, 1], [], []>} : vector<16x384xf32>, vector<384x768xf32>, vector<16x768xf32> -> vector<16x768xf32>
    %73 = arith.addf %69, %72 : vector<16x768xf32>
    %c2_70 = arith.constant 2 : index
    %c0_71 = arith.constant 0 : index
    %c0_72 = arith.constant 0 : index
    %74 = vector.load %arg4[%c2_70, %c0_71, %c0_72] : memref<3x384x768xf32, #tpu.memory_space<vmem>>, vector<1x384x768xf32>
    %75 = vector.shape_cast %74 : vector<1x384x768xf32> to vector<384x768xf32>
    %cst_73 = arith.constant dense<0.000000e+00> : vector<16x768xf32>
    %76 = tpu.matmul %50, %75, %cst_73 {dimension_numbers = #tpu.dot_dimension_numbers<[1], [0], [0], [1], [0, 0, 1, 1], [], []>} : vector<16x384xf32>, vector<384x768xf32>, vector<16x768xf32> -> vector<16x768xf32>
    %77 = arith.addf %73, %76 : vector<16x768xf32>
    %78 = vector.broadcast %51 : vector<1x768xf32> to vector<16x768xf32>
    %79 = arith.addf %77, %78 : vector<16x768xf32>
    %cst_74 = arith.constant 0.000000e+00 : f32
    %80 = vector.broadcast %cst_74 : f32 to vector<16x768xf32>
    %81 = arith.maximumf %79, %80 : vector<16x768xf32>
    %82 = arith.maximumf %66, %81 : vector<16x768xf32>
    %83 = vector.extract_strided_slice %82 {offsets = [0, 0], sizes = [16, 384], strides = [1, 1]} : vector<16x768xf32> to vector<16x384xf32>
    %84 = vector.extract_strided_slice %82 {offsets = [0, 384], sizes = [16, 384], strides = [1, 1]} : vector<16x768xf32> to vector<16x384xf32>
    %85 = arith.maximumf %83, %84 : vector<16x384xf32>
    %c0_75 = arith.constant 0 : index
    %c0_76 = arith.constant 0 : index
    %86 = vector.load %arg14[%c0_75, %c0_76] : memref<16x384xf32, #tpu.memory_space<vmem>>, vector<16x384xf32>
    tpu.vector_store %arg14[%c0_75, %c0_76], %85 {strides = array<i32>} : memref<16x384xf32, #tpu.memory_space<vmem>>, vector<16x384xf32>,
    %c0_77 = arith.constant 0 : index
    %c0_78 = arith.constant 0 : index
    %87 = vector.load %arg14[%c0_77, %c0_78] : memref<16x384xf32, #tpu.memory_space<vmem>>, vector<2x384xf32>
    %c0_79 = arith.constant 0 : index
    %c0_80 = arith.constant 0 : index
    %c0_81 = arith.constant 0 : index
    %88 = vector.load %arg6[%c0_79, %c0_80, %c0_81] : memref<5x384x256xf32, #tpu.memory_space<vmem>>, vector<1x384x256xf32>
    %89 = vector.shape_cast %88 : vector<1x384x256xf32> to vector<384x256xf32>
    %cst_82 = arith.constant dense<0.000000e+00> : vector<2x256xf32>
    %90 = tpu.matmul %87, %89, %cst_82 {dimension_numbers = #tpu.dot_dimension_numbers<[1], [0], [0], [1], [0, 0, 1, 1], [], []>} : vector<2x384xf32>, vector<384x256xf32>, vector<2x256xf32> -> vector<2x256xf32>
    %c2_83 = arith.constant 2 : index
    %c0_84 = arith.constant 0 : index
    %91 = vector.load %arg14[%c2_83, %c0_84] : memref<16x384xf32, #tpu.memory_space<vmem>>, vector<2x384xf32>
    %c1_85 = arith.constant 1 : index
    %c0_86 = arith.constant 0 : index
    %c0_87 = arith.constant 0 : index
    %92 = vector.load %arg6[%c1_85, %c0_86, %c0_87] : memref<5x384x256xf32, #tpu.memory_space<vmem>>, vector<1x384x256xf32>
    %93 = vector.shape_cast %92 : vector<1x384x256xf32> to vector<384x256xf32>
    %cst_88 = arith.constant dense<0.000000e+00> : vector<2x256xf32>
    %94 = tpu.matmul %91, %93, %cst_88 {dimension_numbers = #tpu.dot_dimension_numbers<[1], [0], [0], [1], [0, 0, 1, 1], [], []>} : vector<2x384xf32>, vector<384x256xf32>, vector<2x256xf32> -> vector<2x256xf32>
    %95 = arith.addf %90, %94 : vector<2x256xf32>
    %c4_89 = arith.constant 4 : index
    %c0_90 = arith.constant 0 : index
    %96 = vector.load %arg14[%c4_89, %c0_90] : memref<16x384xf32, #tpu.memory_space<vmem>>, vector<2x384xf32>
    %c2_91 = arith.constant 2 : index
    %c0_92 = arith.constant 0 : index
    %c0_93 = arith.constant 0 : index
    %97 = vector.load %arg6[%c2_91, %c0_92, %c0_93] : memref<5x384x256xf32, #tpu.memory_space<vmem>>, vector<1x384x256xf32>
    %98 = vector.shape_cast %97 : vector<1x384x256xf32> to vector<384x256xf32>
    %cst_94 = arith.constant dense<0.000000e+00> : vector<2x256xf32>
    %99 = tpu.matmul %96, %98, %cst_94 {dimension_numbers = #tpu.dot_dimension_numbers<[1], [0], [0], [1], [0, 0, 1, 1], [], []>} : vector<2x384xf32>, vector<384x256xf32>, vector<2x256xf32> -> vector<2x256xf32>
    %100 = arith.addf %95, %99 : vector<2x256xf32>
    %c6 = arith.constant 6 : index
    %c0_95 = arith.constant 0 : index
    %101 = vector.load %arg14[%c6, %c0_95] : memref<16x384xf32, #tpu.memory_space<vmem>>, vector<2x384xf32>
    %c3_96 = arith.constant 3 : index
    %c0_97 = arith.constant 0 : index
    %c0_98 = arith.constant 0 : index
    %102 = vector.load %arg6[%c3_96, %c0_97, %c0_98] : memref<5x384x256xf32, #tpu.memory_space<vmem>>, vector<1x384x256xf32>
    %103 = vector.shape_cast %102 : vector<1x384x256xf32> to vector<384x256xf32>
    %cst_99 = arith.constant dense<0.000000e+00> : vector<2x256xf32>
    %104 = tpu.matmul %101, %103, %cst_99 {dimension_numbers = #tpu.dot_dimension_numbers<[1], [0], [0], [1], [0, 0, 1, 1], [], []>} : vector<2x384xf32>, vector<384x256xf32>, vector<2x256xf32> -> vector<2x256xf32>
    %105 = arith.addf %100, %104 : vector<2x256xf32>
    %c8 = arith.constant 8 : index
    %c0_100 = arith.constant 0 : index
    %106 = vector.load %arg14[%c8, %c0_100] : memref<16x384xf32, #tpu.memory_space<vmem>>, vector<2x384xf32>
    %c4_101 = arith.constant 4 : index
    %c0_102 = arith.constant 0 : index
    %c0_103 = arith.constant 0 : index
    %107 = vector.load %arg6[%c4_101, %c0_102, %c0_103] : memref<5x384x256xf32, #tpu.memory_space<vmem>>, vector<1x384x256xf32>
    %108 = vector.shape_cast %107 : vector<1x384x256xf32> to vector<384x256xf32>
    %cst_104 = arith.constant dense<0.000000e+00> : vector<2x256xf32>
    %109 = tpu.matmul %106, %108, %cst_104 {dimension_numbers = #tpu.dot_dimension_numbers<[1], [0], [0], [1], [0, 0, 1, 1], [], []>} : vector<2x384xf32>, vector<384x256xf32>, vector<2x256xf32> -> vector<2x256xf32>
    %110 = arith.addf %105, %109 : vector<2x256xf32>
    %c0_105 = arith.constant 0 : index
    %c0_106 = arith.constant 0 : index
    %111 = vector.load %arg7[%c0_105, %c0_106] : memref<1x256xf32, #tpu.memory_space<vmem>>, vector<1x256xf32>
    %112 = vector.broadcast %111 : vector<1x256xf32> to vector<2x256xf32>
    %113 = arith.addf %110, %112 : vector<2x256xf32>
    %cst_107 = arith.constant 0.000000e+00 : f32
    %114 = vector.broadcast %cst_107 : f32 to vector<2x256xf32>
    %115 = arith.maximumf %113, %114 : vector<2x256xf32>
    %c0_108 = arith.constant 0 : index
    %c0_109 = arith.constant 0 : index
    %116 = vector.load %arg8[%c0_108, %c0_109] : memref<256x128xf32, #tpu.memory_space<vmem>>, vector<256x128xf32>
    %cst_110 = arith.constant dense<0.000000e+00> : vector<2x128xf32>
    %117 = tpu.matmul %115, %116, %cst_110 {dimension_numbers = #tpu.dot_dimension_numbers<[1], [0], [0], [1], [0, 0, 1, 1], [], []>} : vector<2x256xf32>, vector<256x128xf32>, vector<2x128xf32> -> vector<2x128xf32>
    %c0_111 = arith.constant 0 : index
    %c0_112 = arith.constant 0 : index
    %118 = vector.load %arg9[%c0_111, %c0_112] : memref<1x128xf32, #tpu.memory_space<vmem>>, vector<1x128xf32>
    %119 = vector.broadcast %118 : vector<1x128xf32> to vector<2x128xf32>
    %120 = arith.addf %117, %119 : vector<2x128xf32>
    %cst_113 = arith.constant 0.000000e+00 : f32
    %121 = vector.broadcast %cst_113 : f32 to vector<2x128xf32>
    %122 = arith.maximumf %120, %121 : vector<2x128xf32>
    %c0_114 = arith.constant 0 : index
    %c0_115 = arith.constant 0 : index
    %123 = vector.load %arg10[%c0_114, %c0_115] : memref<128x128xf32, #tpu.memory_space<vmem>>, vector<128x128xf32>
    %cst_116 = arith.constant dense<0.000000e+00> : vector<2x128xf32>
    %124 = tpu.matmul %122, %123, %cst_116 {dimension_numbers = #tpu.dot_dimension_numbers<[1], [0], [0], [1], [0, 0, 1, 1], [], []>} : vector<2x128xf32>, vector<128x128xf32>, vector<2x128xf32> -> vector<2x128xf32>
    %c0_117 = arith.constant 0 : index
    %c0_118 = arith.constant 0 : index
    %125 = vector.load %arg11[%c0_117, %c0_118] : memref<1x128xf32, #tpu.memory_space<vmem>>, vector<1x128xf32>
    %126 = vector.broadcast %125 : vector<1x128xf32> to vector<2x128xf32>
    %127 = arith.addf %124, %126 : vector<2x128xf32>
    %cst_119 = arith.constant dense<0xFF800000> : vector<2xf32>
    %128 = vector.multi_reduction <maximumf>, %127, %cst_119 [1] : vector<2x128xf32> to vector<2xf32>
    %129 = vector.shape_cast %128 : vector<2xf32> to vector<2x1xf32>
    %130 = vector.broadcast %129 : vector<2x1xf32> to vector<2x128xf32>
    %131 = arith.subf %127, %130 : vector<2x128xf32>
    %132 = math.exp %131 : vector<2x128xf32>
    %cst_120 = arith.constant dense<0.000000e+00> : vector<2xf32>
    %133 = vector.multi_reduction <add>, %132, %cst_120 [1] : vector<2x128xf32> to vector<2xf32>
    %134 = vector.shape_cast %133 : vector<2xf32> to vector<2x1xf32>
    %135 = math.log %134 : vector<2x1xf32>
    %136 = vector.broadcast %135 : vector<2x1xf32> to vector<2x128xf32>
    %137 = arith.subf %131, %136 : vector<2x128xf32>
    %138 = vector.extract_strided_slice %137 {offsets = [0, 0], sizes = [2, 10], strides = [1, 1]} : vector<2x128xf32> to vector<2x10xf32>
    %c0_121 = arith.constant 0 : index
    %c0_122 = arith.constant 0 : index
    %139 = vector.load %arg12[%c0_121, %c0_122] : memref<2x10xf32, #tpu.memory_space<vmem>>, vector<2x10xf32>
    tpu.vector_store %arg12[%c0_121, %c0_122], %138 {strides = array<i32>} : memref<2x10xf32, #tpu.memory_space<vmem>>, vector<2x10xf32>,
    return
  }
}

</mosaic_0001>

<llo_original>
// kernel: lenet5_forward.1
$region0: #{lenet5_forward.1}
  #allocation0 [shape = 'u32[]', space=smem, size = 0x4, offset = 0x4, fixed_abs, tag = 'smem constant byte address 0x4 - core index']
  #allocation1 [shape = 'u32[72,128]{1,0:T(1,128)}', space=vmem, size = 0x9000, scoped, tag = 'internal scratch']
  #allocation2 [shape = 'f32[40,384]{1,0:T(8,128)}', space=vmem, size = 0xf000, scoped, tag = 'scratch operand']
  #allocation3 [shape = 'f32[16,384]{1,0:T(8,128)}', space=vmem, size = 0x6000, scoped, tag = 'scratch operand']
  %s0 = inlined_call_operand.hbm [shape: f32[56,28], index: 0, kind: input, shape index: {}]
  %s1 = inlined_call_operand.vmem [shape: f32[5,80,56], index: 1, kind: input, shape index: {}]
  %s2 = inlined_call_operand.hbm [shape: f32[5,28,768], index: 2, kind: input, shape index: {}]
  %s3 = inlined_call_operand.hbm [shape: f32[1,768], index: 3, kind: input, shape index: {}]
  %s4 = inlined_call_operand.hbm [shape: f32[3,384,768], index: 4, kind: input, shape index: {}]
  %s5 = inlined_call_operand.hbm [shape: f32[1,768], index: 5, kind: input, shape index: {}]
  %s6 = inlined_call_operand.hbm [shape: f32[5,384,256], index: 6, kind: input, shape index: {}]
  %s7 = inlined_call_operand.hbm [shape: f32[1,256], index: 7, kind: input, shape index: {}]
  %s8 = inlined_call_operand.hbm [shape: f32[256,128], index: 8, kind: input, shape index: {}]
  %s9 = inlined_call_operand.hbm [shape: f32[1,128], index: 9, kind: input, shape index: {}]
  %s10 = inlined_call_operand.hbm [shape: f32[128,128], index: 10, kind: input, shape index: {}]
  %s11 = inlined_call_operand.hbm [shape: f32[1,128], index: 11, kind: input, shape index: {}]
  %s12 = inlined_call_operand.hbm [shape: f32[2,10], index: 12, kind: output, shape index: {}]
  %s13 = sld [smem:[#allocation0]]
  $region102: #{lenet5_forward.1} parent=0
    _
  %s15 = ssub.s32 1, %s13
  %s16 = scalar_select 0, %s15, %s13
  $region1: #{lenet5_forward.1} parent=0
    #allocation4 [shape = 'u8[28672]{0}', space=vmem, size = 0x7000, scoped, tag = 'input window, operand 0, single buffered']
    #allocation5 [shape = 's32[1]{0}', space=sflag, size = 0x4, scoped, tag = 'scoped memory for lenet5_forward.1']
    #allocation6 [shape = 's32[1]{0}', space=sflag, size = 0x4, scoped, tag = 'scoped memory for lenet5_forward.1']
    #allocation7 [shape = 'u8[491520]{0}', space=vmem, size = 0x78000, scoped, tag = 'input window, operand 2, single buffered']
    #allocation8 [shape = 's32[1]{0}', space=sflag, size = 0x4, scoped, tag = 'scoped memory for lenet5_forward.1']
    #allocation9 [shape = 'u8[3072]{0}', space=vmem, size = 0xc00, scoped, tag = 'input window, operand 3, single buffered']
    #allocation10 [shape = 'u8[3538944]{0}', space=vmem, size = 0x360000, scoped, tag = 'input window, operand 4, single buffered']
    #allocation11 [shape = 's32[1]{0}', space=sflag, size = 0x4, scoped, tag = 'scoped memory for lenet5_forward.1']
    #allocation12 [shape = 'u8[3072]{0}', space=vmem, size = 0xc00, scoped, tag = 'input window, operand 5, single buffered']
    #allocation13 [shape = 'u8[1966080]{0}', space=vmem, size = 0x1e0000, scoped, tag = 'input window, operand 6, single buffered']
    #allocation14 [shape = 's32[1]{0}', space=sflag, size = 0x4, scoped, tag = 'scoped memory for lenet5_forward.1']
    #allocation15 [shape = 'u8[1024]{0}', space=vmem, size = 0x400, scoped, tag = 'input window, operand 7, single buffered']
    #allocation16 [shape = 'u8[131072]{0}', space=vmem, size = 0x20000, scoped, tag = 'input window, operand 8, single buffered']
    #allocation17 [shape = 's32[1]{0}', space=sflag, size = 0x4, scoped, tag = 'scoped memory for lenet5_forward.1']
    #allocation18 [shape = 'u8[512]{0}', space=vmem, size = 0x400, scoped, tag = 'input window, operand 9, single buffered']
    #allocation19 [shape = 'u8[65536]{0}', space=vmem, size = 0x10000, scoped, tag = 'input window, operand 10, single buffered']
    #allocation20 [shape = 's32[1]{0}', space=sflag, size = 0x4, scoped, tag = 'scoped memory for lenet5_forward.1']
    #allocation21 [shape = 'u8[512]{0}', space=vmem, size = 0x400, scoped, tag = 'input window, operand 11, single buffered']
    #allocation22 [shape = 'u8[1024]{0}', space=vmem, size = 0x400, scoped, tag = 'output window, operand 0, single buffered']
    %17 = vsyncpa [#allocation5], 0
    %18 = vsyncpa [#allocation8], 0
    %19 = vsyncpa [#allocation11], 0
    %20 = vsyncpa [#allocation14], 0
    %21 = vsyncpa [#allocation17], 0
    %22 = vsyncpa [#allocation20], 0
    %23 = vsyncpa [#allocation6], 0
    // Predicated region
    $region2: #{lenet5_forward.1} parent=1 // pred_check
      _
    $region3: #{lenet5_forward.1} parent=1 // pred_check_branch
      %25 = sbr.rel (0) target = $region5
    $region4: #{lenet5_forward.1} parent=1 // pred_region
      %27 = vsyncadd [#allocation5], 0
      %s28 = sshll.u32 %s0, 4
      %s29 = int_to_ptr.hbm [resolvable:$true] %s28
      %s30 = sshll.u32 [#allocation4], 4
      %s31 = int_to_ptr.vmem [resolvable:$true] %s30
      %36 = dma.hbm_to_vmem [thread:$0]  %s29, 896, %s31, [#allocation5], 128, 128, 8
    $region5: #{lenet5_forward.1} parent=1 // pred_fallthru
      _
    // Predicated region
    $region6: #{lenet5_forward.1} parent=1 // pred_check
      _
    $region7: #{lenet5_forward.1} parent=1 // pred_check_branch
      %38 = sbr.rel (0) target = $region9
    $region8: #{lenet5_forward.1} parent=1 // pred_region
      _
    $region9: #{lenet5_forward.1} parent=1 // pred_fallthru
      _
    // Predicated region
    $region10: #{lenet5_forward.1} parent=1 // pred_check
      _
    $region11: #{lenet5_forward.1} parent=1 // pred_check_branch
      %40 = sbr.rel (0) target = $region13
    $region12: #{lenet5_forward.1} parent=1 // pred_region
      %42 = vsyncadd [#allocation8], 0
      %s43 = sshll.u32 %s2, 4
      %s44 = int_to_ptr.hbm [resolvable:$true] %s43
      %s45 = sshll.u32 [#allocation7], 4
      %s46 = int_to_ptr.vmem [resolvable:$true] %s45
      %51 = dma.hbm_to_vmem [thread:$0]  %s44, 15360, %s46, [#allocation8], 768, 768, 48
    $region13: #{lenet5_forward.1} parent=1 // pred_fallthru
      _
    // Predicated region
    $region14: #{lenet5_forward.1} parent=1 // pred_check
      _
    $region15: #{lenet5_forward.1} parent=1 // pred_check_branch
      %53 = sbr.rel (0) target = $region17
    $region16: #{lenet5_forward.1} parent=1 // pred_region
      %55 = vsyncadd [#allocation8], 0
      %s57 = sshll.u32 %s3, 4
      %s58 = int_to_ptr.hbm [resolvable:$true] %s57
      %s59 = sshll.u32 [#allocation9], 4
      %s60 = int_to_ptr.vmem [resolvable:$true] %s59
      %62 = dma.hbm_to_vmem [thread:$0]  %s58, 96, %s60, [#allocation8]
    $region17: #{lenet5_forward.1} parent=1 // pred_fallthru
      _
    // Predicated region
    $region18: #{lenet5_forward.1} parent=1 // pred_check
      _
    $region19: #{lenet5_forward.1} parent=1 // pred_check_branch
      %64 = sbr.rel (0) target = $region21
    $region20: #{lenet5_forward.1} parent=1 // pred_region
      %66 = vsyncadd [#allocation11], 0
      %s67 = sshll.u32 %s4, 4
      %s68 = int_to_ptr.hbm [resolvable:$true] %s67
      %s69 = sshll.u32 [#allocation10], 4
      %s70 = int_to_ptr.vmem [resolvable:$true] %s69
      %75 = dma.hbm_to_vmem [thread:$0]  %s68, 110592, %s70, [#allocation11], 768, 768, 48
    $region21: #{lenet5_forward.1} parent=1 // pred_fallthru
      _
    // Predicated region
    $region22: #{lenet5_forward.1} parent=1 // pred_check
      _
    $region23: #{lenet5_forward.1} parent=1 // pred_check_branch
      %77 = sbr.rel (0) target = $region25
    $region24: #{lenet5_forward.1} parent=1 // pred_region
      %79 = vsyncadd [#allocation11], 0
      %s81 = sshll.u32 %s5, 4
      %s82 = int_to_ptr.hbm [resolvable:$true] %s81
      %s83 = sshll.u32 [#allocation12], 4
      %s84 = int_to_ptr.vmem [resolvable:$true] %s83
      %86 = dma.hbm_to_vmem [thread:$0]  %s82, 96, %s84, [#allocation11]
    $region25: #{lenet5_forward.1} parent=1 // pred_fallthru
      _
    // Predicated region
    $region26: #{lenet5_forward.1} parent=1 // pred_check
      _
    $region27: #{lenet5_forward.1} parent=1 // pred_check_branch
      %88 = sbr.rel (0) target = $region29
    $region28: #{lenet5_forward.1} parent=1 // pred_region
      %90 = vsyncadd [#allocation14], 0
      %s91 = sshll.u32 %s6, 4
      %s92 = int_to_ptr.hbm [resolvable:$true] %s91
      %s93 = sshll.u32 [#allocation13], 4
      %s94 = int_to_ptr.vmem [resolvable:$true] %s93
      %99 = dma.hbm_to_vmem [thread:$0]  %s92, 61440, %s94, [#allocation14], 256, 256, 16
    $region29: #{lenet5_forward.1} parent=1 // pred_fallthru
      _
    // Predicated region
    $region30: #{lenet5_forward.1} parent=1 // pred_check
      _
    $region31: #{lenet5_forward.1} parent=1 // pred_check_branch
      %101 = sbr.rel (0) target = $region33
    $region32: #{lenet5_forward.1} parent=1 // pred_region
      %103 = vsyncadd [#allocation14], 0
      %s105 = sshll.u32 %s7, 4
      %s106 = int_to_ptr.hbm [resolvable:$true] %s105
      %s107 = sshll.u32 [#allocation15], 4
      %s108 = int_to_ptr.vmem [resolvable:$true] %s107
      %110 = dma.hbm_to_vmem [thread:$0]  %s106, 32, %s108, [#allocation14]
    $region33: #{lenet5_forward.1} parent=1 // pred_fallthru
      _
    // Predicated region
    $region34: #{lenet5_forward.1} parent=1 // pred_check
      _
    $region35: #{lenet5_forward.1} parent=1 // pred_check_branch
      %112 = sbr.rel (0) target = $region37
    $region36: #{lenet5_forward.1} parent=1 // pred_region
      %114 = vsyncadd [#allocation17], 0
      %s115 = sshll.u32 %s8, 4
      %s116 = int_to_ptr.hbm [resolvable:$true] %s115
      %s117 = sshll.u32 [#allocation16], 4
      %s118 = int_to_ptr.vmem [resolvable:$true] %s117
      %123 = dma.hbm_to_vmem [thread:$0]  %s116, 4096, %s118, [#allocation17], 128, 128, 8
    $region37: #{lenet5_forward.1} parent=1 // pred_fallthru
      _
    // Predicated region
    $region38: #{lenet5_forward.1} parent=1 // pred_check
      _
    $region39: #{lenet5_forward.1} parent=1 // pred_check_branch
      %125 = sbr.rel (0) target = $region41
    $region40: #{lenet5_forward.1} parent=1 // pred_region
      %127 = vsyncadd [#allocation17], 0
      %s129 = sshll.u32 %s9, 4
      %s130 = int_to_ptr.hbm [resolvable:$true] %s129
      %s131 = sshll.u32 [#allocation18], 4
      %s132 = int_to_ptr.vmem [resolvable:$true] %s131
      %134 = dma.hbm_to_vmem [thread:$0]  %s130, 16, %s132, [#allocation17]
    $region41: #{lenet5_forward.1} parent=1 // pred_fallthru
      _
    // Predicated region
    $region42: #{lenet5_forward.1} parent=1 // pred_check
      _
    $region43: #{lenet5_forward.1} parent=1 // pred_check_branch
      %136 = sbr.rel (0) target = $region45
    $region44: #{lenet5_forward.1} parent=1 // pred_region
      %138 = vsyncadd [#allocation20], 0
      %s139 = sshll.u32 %s10, 4
      %s140 = int_to_ptr.hbm [resolvable:$true] %s139
      %s141 = sshll.u32 [#allocation19], 4
      %s142 = int_to_ptr.vmem [resolvable:$true] %s141
      %147 = dma.hbm_to_vmem [thread:$0]  %s140, 2048, %s142, [#allocation20], 128, 128, 8
    $region45: #{lenet5_forward.1} parent=1 // pred_fallthru
      _
    // Predicated region
    $region46: #{lenet5_forward.1} parent=1 // pred_check
      _
    $region47: #{lenet5_forward.1} parent=1 // pred_check_branch
      %149 = sbr.rel (0) target = $region49
    $region48: #{lenet5_forward.1} parent=1 // pred_region
      %151 = vsyncadd [#allocation20], 0
      %s153 = sshll.u32 %s11, 4
      %s154 = int_to_ptr.hbm [resolvable:$true] %s153
      %s155 = sshll.u32 [#allocation21], 4
      %s156 = int_to_ptr.vmem [resolvable:$true] %s155
      %158 = dma.hbm_to_vmem [thread:$0]  %s154, 16, %s156, [#allocation20]
    $region49: #{lenet5_forward.1} parent=1 // pred_fallthru
      _
    // Predicated region
    $region50: #{lenet5_forward.1} parent=1 // pred_check
      _
    $region51: #{lenet5_forward.1} parent=1 // pred_check_branch
      %160 = sbr.rel (0) target = $region53
    $region52: #{lenet5_forward.1} parent=1 // pred_region
      %162 = dma.done [#allocation5], 896
    $region53: #{lenet5_forward.1} parent=1 // pred_fallthru
      _
    // Predicated region
    $region54: #{lenet5_forward.1} parent=1 // pred_check
      _
    $region55: #{lenet5_forward.1} parent=1 // pred_check_branch
      %164 = sbr.rel (0) target = $region57
    $region56: #{lenet5_forward.1} parent=1 // pred_region
      %166 = dma.done [#allocation8], 15360
    $region57: #{lenet5_forward.1} parent=1 // pred_fallthru
      _
    // Predicated region
    $region58: #{lenet5_forward.1} parent=1 // pred_check
      _
    $region59: #{lenet5_forward.1} parent=1 // pred_check_branch
      %168 = sbr.rel (0) target = $region61
    $region60: #{lenet5_forward.1} parent=1 // pred_region
      %170 = dma.done [#allocation8], 96
    $region61: #{lenet5_forward.1} parent=1 // pred_fallthru
      _
    // Predicated region
    $region62: #{lenet5_forward.1} parent=1 // pred_check
      _
    $region63: #{lenet5_forward.1} parent=1 // pred_check_branch
      %172 = sbr.rel (0) target = $region65
    $region64: #{lenet5_forward.1} parent=1 // pred_region
      %174 = dma.done [#allocation11], 110592
    $region65: #{lenet5_forward.1} parent=1 // pred_fallthru
      _
    // Predicated region
    $region66: #{lenet5_forward.1} parent=1 // pred_check
      _
    $region67: #{lenet5_forward.1} parent=1 // pred_check_branch
      %176 = sbr.rel (0) target = $region69
    $region68: #{lenet5_forward.1} parent=1 // pred_region
      %178 = dma.done [#allocation11], 96
    $region69: #{lenet5_forward.1} parent=1 // pred_fallthru
      _
    // Predicated region
    $region70: #{lenet5_forward.1} parent=1 // pred_check
      _
    $region71: #{lenet5_forward.1} parent=1 // pred_check_branch
      %180 = sbr.rel (0) target = $region73
    $region72: #{lenet5_forward.1} parent=1 // pred_region
      %182 = dma.done [#allocation14], 61440
    $region73: #{lenet5_forward.1} parent=1 // pred_fallthru
      _
    // Predicated region
    $region74: #{lenet5_forward.1} parent=1 // pred_check
      _
    $region75: #{lenet5_forward.1} parent=1 // pred_check_branch
      %184 = sbr.rel (0) target = $region77
    $region76: #{lenet5_forward.1} parent=1 // pred_region
      %186 = dma.done [#allocation14], 32
    $region77: #{lenet5_forward.1} parent=1 // pred_fallthru
      _
    // Predicated region
    $region78: #{lenet5_forward.1} parent=1 // pred_check
      _
    $region79: #{lenet5_forward.1} parent=1 // pred_check_branch
      %188 = sbr.rel (0) target = $region81
    $region80: #{lenet5_forward.1} parent=1 // pred_region
      %190 = dma.done [#allocation17], 4096
    $region81: #{lenet5_forward.1} parent=1 // pred_fallthru
      _
    // Predicated region
    $region82: #{lenet5_forward.1} parent=1 // pred_check
      _
    $region83: #{lenet5_forward.1} parent=1 // pred_check_branch
      %192 = sbr.rel (0) target = $region85
    $region84: #{lenet5_forward.1} parent=1 // pred_region
      %194 = dma.done [#allocation17], 16
    $region85: #{lenet5_forward.1} parent=1 // pred_fallthru
      _
    // Predicated region
    $region86: #{lenet5_forward.1} parent=1 // pred_check
      _
    $region87: #{lenet5_forward.1} parent=1 // pred_check_branch
      %196 = sbr.rel (0) target = $region89
    $region88: #{lenet5_forward.1} parent=1 // pred_region
      %198 = dma.done [#allocation20], 2048
    $region89: #{lenet5_forward.1} parent=1 // pred_fallthru
      _
    // Predicated region
    $region90: #{lenet5_forward.1} parent=1 // pred_check
      _
    $region91: #{lenet5_forward.1} parent=1 // pred_check_branch
      %200 = sbr.rel (0) target = $region93
    $region92: #{lenet5_forward.1} parent=1 // pred_region
      %202 = dma.done [#allocation20], 16
    $region93: #{lenet5_forward.1} parent=1 // pred_fallthru
      _
    %v203 = vld [vmem:[#allocation4] sm:$0xff]
    %v204 = vld [vmem:[#allocation4 + $0x8] sm:$0xff]
    %v205 = vld [vmem:[#allocation4 + $0x10] sm:$0xff]
    %v206 = vld [vmem:[#allocation4 + $0x18] sm:$0xff]
    %v207 = vld [vmem:[#allocation4 + $0x20] sm:$0xff]
    %v208 = vld [vmem:[#allocation4 + $0x28] sm:$0xff]
    %v209 = vld [vmem:[#allocation4 + $0x30] sm:$0xff]
    %v210 = vld [vmem:[%s1] sm:$0xff]
    %v211 = vld [vmem:[%s1 + $0x8] sm:$0xff]
    %v212 = vld [vmem:[%s1 + $0x10] sm:$0xff]
    %v213 = vld [vmem:[%s1 + $0x18] sm:$0xff]
    %v214 = vld [vmem:[%s1 + $0x20] sm:$0xff]
    %v215 = vld [vmem:[%s1 + $0x28] sm:$0xff]
    %v216 = vld [vmem:[%s1 + $0x30] sm:$0xff]
    %v217 = vld [vmem:[%s1 + $0x38] sm:$0xff]
    %v218 = vld [vmem:[%s1 + $0x40] sm:$0xff]
    %v219 = vld [vmem:[%s1 + $0x48] sm:$0xff]
    %vm220 = vcmask 457728
    %v222 = vsel %vm220, %v210, 0
    %v225 = vsel %vm220, %v211, 0
    %v228 = vsel %vm220, %v212, 0
    %v231 = vsel %vm220, %v213, 0
    %v234 = vsel %vm220, %v214, 0
    %v237 = vsel %vm220, %v215, 0
    %v240 = vsel %vm220, %v216, 0
    %v243 = vsel %vm220, %v217, 0
    %v246 = vsel %vm220, %v218, 0
    %v249 = vsel %vm220, %v219, 0
    %251 = vmatpush.msra.mxu0 0.0
    %252 = vmatpush.msra.mxu0 0.0
    %253 = vmatpush.msra.mxu0 0.0
    %254 = vmatpush.msra.mxu0 0.0
    %255 = vmatpush.msra.mxu0 0.0
    %256 = vmatpush.msra.mxu0 0.0
    %257 = vmatpush.msra.mxu0 0.0
    %258 = vmatpush.msra.mxu0 0.0
    %259 = vmatpush.msra.mxu0 0.0
    %260 = vmatpush.msra.mxu0 %v209
    %261 = vmatpush.msra.mxu0 %v208
    %262 = vmatpush.msra.mxu0 %v207
    %263 = vmatpush.msra.mxu0 %v206
    %264 = vmatpush.msra.mxu0 %v205
    %265 = vmatpush.msra.mxu0 %v204
    %266 = vmatpush.msra.mxu0 %v203
    %267 = vmatmul.f32.gmra.mxu0 %v222
    %v268 = vpop.f32.mrf.mxu0
    %v269 = vadd.f32 0.0, %v268
    %270 = vmatmul.f32.gmra.mxu0 %v225
    %v271 = vpop.f32.mrf.mxu0
    %v272 = vadd.f32 0.0, %v271
    %273 = vmatmul.f32.gmra.mxu0 %v228
    %v274 = vpop.f32.mrf.mxu0
    %v275 = vadd.f32 0.0, %v274
    %276 = vmatmul.f32.gmra.mxu0 %v231
    %v277 = vpop.f32.mrf.mxu0
    %v278 = vadd.f32 0.0, %v277
    %279 = vmatmul.f32.gmra.mxu0 %v234
    %v280 = vpop.f32.mrf.mxu0
    %v281 = vadd.f32 0.0, %v280
    %282 = vmatmul.f32.gmra.mxu0 %v237
    %v283 = vpop.f32.mrf.mxu0
    %v284 = vadd.f32 0.0, %v283
    %285 = vmatmul.f32.gmra.mxu0 %v240
    %v286 = vpop.f32.mrf.mxu0
    %v287 = vadd.f32 0.0, %v286
    %288 = vmatmul.f32.gmra.mxu0 %v243
    %v289 = vpop.f32.mrf.mxu0
    %v290 = vadd.f32 0.0, %v289
    %291 = vmatmul.f32.gmra.mxu0 %v246
    %v292 = vpop.f32.mrf.mxu0
    %v293 = vadd.f32 0.0, %v292
    %294 = vmatmul.f32.gmra.mxu0 %v249
    %v295 = vpop.f32.mrf.mxu0
    %v296 = vadd.f32 0.0, %v295
    %297 = vdwg.mxu0
    %v298 = vld [vmem:[#allocation7] sm:$0xff]
    %v299 = vld [vmem:[#allocation7 + $0x8] sm:$0xff]
    %v300 = vld [vmem:[#allocation7 + $0x10] sm:$0xff]
    %v301 = vld [vmem:[#allocation7 + $0x18] sm:$0xff]
    %v302 = vld [vmem:[#allocation7 + $0x20] sm:$0xff]
    %v303 = vld [vmem:[#allocation7 + $0x28] sm:$0xff]
    %v304 = vld [vmem:[#allocation7 + $0x30] sm:$0xff]
    %v305 = vld [vmem:[#allocation7 + $0x38] sm:$0xff]
    %v306 = vld [vmem:[#allocation7 + $0x40] sm:$0xff]
    %v307 = vld [vmem:[#allocation7 + $0x48] sm:$0xff]
    %v308 = vld [vmem:[#allocation7 + $0x50] sm:$0xff]
    %v309 = vld [vmem:[#allocation7 + $0x58] sm:$0xff]
    %v310 = vld [vmem:[#allocation7 + $0x60] sm:$0xff]
    %v311 = vld [vmem:[#allocation7 + $0x68] sm:$0xff]
    %v312 = vld [vmem:[#allocation7 + $0x70] sm:$0xff]
    %v313 = vld [vmem:[#allocation7 + $0x78] sm:$0xff]
    %v314 = vld [vmem:[#allocation7 + $0x80] sm:$0xff]
    %v315 = vld [vmem:[#allocation7 + $0x88] sm:$0xff]
    %v316 = vld [vmem:[#allocation7 + $0x90] sm:$0xf]
    %v317 = vld [vmem:[#allocation7 + $0x98] sm:$0xf]
    %v318 = vld [vmem:[#allocation7 + $0xa0] sm:$0xf]
    %v319 = vld [vmem:[#allocation7 + $0xa8] sm:$0xf]
    %v320 = vld [vmem:[#allocation7 + $0xb0] sm:$0xf]
    %v321 = vld [vmem:[#allocation7 + $0xb8] sm:$0xf]
    %s322 = scalar_lea.vmem %s1, 80
    %v323 = vld [vmem:[%s322] sm:$0xff]
    %v324 = vld [vmem:[%s322 + $0x8] sm:$0xff]
    %v325 = vld [vmem:[%s322 + $0x10] sm:$0xff]
    %v326 = vld [vmem:[%s322 + $0x18] sm:$0xff]
    %v327 = vld [vmem:[%s322 + $0x20] sm:$0xff]
    %v328 = vld [vmem:[%s322 + $0x28] sm:$0xff]
    %v329 = vld [vmem:[%s322 + $0x30] sm:$0xff]
    %v330 = vld [vmem:[%s322 + $0x38] sm:$0xff]
    %v331 = vld [vmem:[%s322 + $0x40] sm:$0xff]
    %v332 = vld [vmem:[%s322 + $0x48] sm:$0xff]
    %v334 = vsel %vm220, %v323, 0
    %v337 = vsel %vm220, %v324, 0
    %v340 = vsel %vm220, %v325, 0
    %v343 = vsel %vm220, %v326, 0
    %v346 = vsel %vm220, %v327, 0
    %v349 = vsel %vm220, %v328, 0
    %v352 = vsel %vm220, %v329, 0
    %v355 = vsel %vm220, %v330, 0
    %v358 = vsel %vm220, %v331, 0
    %v361 = vsel %vm220, %v332, 0
    %363 = vmatpush.msra.mxu0 0.0
    %364 = vmatpush.msra.mxu0 0.0
    %365 = vmatpush.msra.mxu0 0.0
    %366 = vmatpush.msra.mxu0 0.0
    %367 = vmatpush.msra.mxu0 0.0
    %368 = vmatpush.msra.mxu0 0.0
    %369 = vmatpush.msra.mxu0 0.0
    %370 = vmatpush.msra.mxu0 0.0
    %371 = vmatpush.msra.mxu0 0.0
    %372 = vmatpush.msra.mxu0 %v209
    %373 = vmatpush.msra.mxu0 %v208
    %374 = vmatpush.msra.mxu0 %v207
    %375 = vmatpush.msra.mxu0 %v206
    %376 = vmatpush.msra.mxu0 %v205
    %377 = vmatpush.msra.mxu0 %v204
    %378 = vmatpush.msra.mxu0 %v203
    %379 = vmatmul.f32.gmra.mxu0 %v334
    %v380 = vpop.f32.mrf.mxu0
    %v381 = vadd.f32 0.0, %v380
    %382 = vmatmul.f32.gmra.mxu0 %v337
    %v383 = vpop.f32.mrf.mxu0
    %v384 = vadd.f32 0.0, %v383
    %385 = vmatmul.f32.gmra.mxu0 %v340
    %v386 = vpop.f32.mrf.mxu0
    %v387 = vadd.f32 0.0, %v386
    %388 = vmatmul.f32.gmra.mxu0 %v343
    %v389 = vpop.f32.mrf.mxu0
    %v390 = vadd.f32 0.0, %v389
    %391 = vmatmul.f32.gmra.mxu0 %v346
    %v392 = vpop.f32.mrf.mxu0
    %v393 = vadd.f32 0.0, %v392
    %394 = vmatmul.f32.gmra.mxu0 %v349
    %v395 = vpop.f32.mrf.mxu0
    %v396 = vadd.f32 0.0, %v395
    %397 = vmatmul.f32.gmra.mxu0 %v352
    %v398 = vpop.f32.mrf.mxu0
    %v399 = vadd.f32 0.0, %v398
    %400 = vmatmul.f32.gmra.mxu0 %v355
    %v401 = vpop.f32.mrf.mxu0
    %v402 = vadd.f32 0.0, %v401
    %403 = vmatmul.f32.gmra.mxu0 %v358
    %v404 = vpop.f32.mrf.mxu0
    %v405 = vadd.f32 0.0, %v404
    %406 = vmatmul.f32.gmra.mxu0 %v361
    %v407 = vpop.f32.mrf.mxu0
    %v408 = vadd.f32 0.0, %v407
    %409 = vdwg.mxu0
    %s410 = scalar_lea.vmem [#allocation7], 192
    %v411 = vld [vmem:[%s410] sm:$0xff]
    %v412 = vld [vmem:[%s410 + $0x8] sm:$0xff]
    %v413 = vld [vmem:[%s410 + $0x10] sm:$0xff]
    %v414 = vld [vmem:[%s410 + $0x18] sm:$0xff]
    %v415 = vld [vmem:[%s410 + $0x20] sm:$0xff]
    %v416 = vld [vmem:[%s410 + $0x28] sm:$0xff]
    %v417 = vld [vmem:[%s410 + $0x30] sm:$0xff]
    %v418 = vld [vmem:[%s410 + $0x38] sm:$0xff]
    %v419 = vld [vmem:[%s410 + $0x40] sm:$0xff]
    %v420 = vld [vmem:[%s410 + $0x48] sm:$0xff]
    %v421 = vld [vmem:[%s410 + $0x50] sm:$0xff]
    %v422 = vld [vmem:[%s410 + $0x58] sm:$0xff]
    %v423 = vld [vmem:[%s410 + $0x60] sm:$0xff]
    %v424 = vld [vmem:[%s410 + $0x68] sm:$0xff]
    %v425 = vld [vmem:[%s410 + $0x70] sm:$0xff]
    %v426 = vld [vmem:[%s410 + $0x78] sm:$0xff]
    %v427 = vld [vmem:[%s410 + $0x80] sm:$0xff]
    %v428 = vld [vmem:[%s410 + $0x88] sm:$0xff]
    %v429 = vld [vmem:[%s410 + $0x90] sm:$0xf]
    %v430 = vld [vmem:[%s410 + $0x98] sm:$0xf]
    %v431 = vld [vmem:[%s410 + $0xa0] sm:$0xf]
    %v432 = vld [vmem:[%s410 + $0xa8] sm:$0xf]
    %v433 = vld [vmem:[%s410 + $0xb0] sm:$0xf]
    %v434 = vld [vmem:[%s410 + $0xb8] sm:$0xf]
    %vm435 = vcmask 228352
    %v437 = vsel %vm435, %v381, 0
    %v440 = vsel %vm435, %v384, 0
    %v443 = vsel %vm435, %v387, 0
    %v446 = vsel %vm435, %v390, 0
    %v449 = vsel %vm435, %v393, 0
    %v452 = vsel %vm435, %v396, 0
    %v455 = vsel %vm435, %v399, 0
    %v458 = vsel %vm435, %v402, 0
    %v461 = vsel %vm435, %v405, 0
    %v464 = vsel %vm435, %v408, 0
    %vm466 = vcmask 1043456
    %v468 = vsel %vm466, %v429, 0
    %v471 = vsel %vm466, %v430, 0
    %v474 = vsel %vm466, %v431, 0
    %v477 = vsel %vm466, %v432, 0
    %v480 = vsel %vm466, %v433, 0
    %v483 = vsel %vm466, %v434, 0
    %485 = vmatpush.msra.mxu0 0.0
    %486 = vmatpush.msra.mxu0 0.0
    %487 = vmatpush.msra.mxu0 0.0
    %488 = vmatpush.msra.mxu0 0.0
    %489 = vmatpush.msra.mxu0 0.0
    %490 = vmatpush.msra.mxu0 0.0
    %491 = vmatpush.msra.mxu0 0.0
    %492 = vmatpush.msra.mxu0 0.0
    %493 = vmatpush.msra.mxu0 0.0
    %494 = vmatpush.msra.mxu0 0.0
    %495 = vmatpush.msra.mxu0 0.0
    %496 = vmatpush.msra.mxu0 0.0
    %497 = vmatpush.msra.mxu0 %v468
    %498 = vmatpush.msra.mxu0 %v423
    %499 = vmatpush.msra.mxu0 %v417
    %500 = vmatpush.msra.mxu0 %v411
    %501 = vmatmul.f32.gmra.mxu0 %v437
    %v502 = vpop.f32.mrf.mxu0
    %v503 = vadd.f32 0.0, %v502
    %504 = vmatmul.f32.gmra.mxu0 %v440
    %v505 = vpop.f32.mrf.mxu0
    %v506 = vadd.f32 0.0, %v505
    %507 = vmatmul.f32.gmra.mxu0 %v443
    %v508 = vpop.f32.mrf.mxu0
    %v509 = vadd.f32 0.0, %v508
    %510 = vmatmul.f32.gmra.mxu0 %v446
    %v511 = vpop.f32.mrf.mxu0
    %v512 = vadd.f32 0.0, %v511
    %513 = vmatmul.f32.gmra.mxu0 %v449
    %v514 = vpop.f32.mrf.mxu0
    %v515 = vadd.f32 0.0, %v514
    %516 = vmatmul.f32.gmra.mxu0 %v452
    %v517 = vpop.f32.mrf.mxu0
    %v518 = vadd.f32 0.0, %v517
    %519 = vmatmul.f32.gmra.mxu0 %v455
    %v520 = vpop.f32.mrf.mxu0
    %v521 = vadd.f32 0.0, %v520
    %522 = vmatmul.f32.gmra.mxu0 %v458
    %v523 = vpop.f32.mrf.mxu0
    %v524 = vadd.f32 0.0, %v523
    %525 = vmatmul.f32.gmra.mxu0 %v461
    %v526 = vpop.f32.mrf.mxu0
    %v527 = vadd.f32 0.0, %v526
    %528 = vmatmul.f32.gmra.mxu0 %v464
    %v529 = vpop.f32.mrf.mxu0
    %v530 = vadd.f32 0.0, %v529
    %531 = vdwg.mxu0
    %532 = vmatpush.msra.mxu0 0.0
    %533 = vmatpush.msra.mxu0 0.0
    %534 = vmatpush.msra.mxu0 0.0
    %535 = vmatpush.msra.mxu0 0.0
    %536 = vmatpush.msra.mxu0 0.0
    %537 = vmatpush.msra.mxu0 0.0
    %538 = vmatpush.msra.mxu0 0.0
    %539 = vmatpush.msra.mxu0 0.0
    %540 = vmatpush.msra.mxu0 0.0
    %541 = vmatpush.msra.mxu0 0.0
    %542 = vmatpush.msra.mxu0 0.0
    %543 = vmatpush.msra.mxu0 0.0
    %544 = vmatpush.msra.mxu0 %v471
    %545 = vmatpush.msra.mxu0 %v424
    %546 = vmatpush.msra.mxu0 %v418
    %547 = vmatpush.msra.mxu0 %v412
    %548 = vmatmul.f32.gmra.mxu0 %v437
    %v549 = vpop.f32.mrf.mxu0
    %v550 = vadd.f32 0.0, %v549
    %551 = vmatmul.f32.gmra.mxu0 %v440
    %v552 = vpop.f32.mrf.mxu0
    %v553 = vadd.f32 0.0, %v552
    %554 = vmatmul.f32.gmra.mxu0 %v443
    %v555 = vpop.f32.mrf.mxu0
    %v556 = vadd.f32 0.0, %v555
    %557 = vmatmul.f32.gmra.mxu0 %v446
    %v558 = vpop.f32.mrf.mxu0
    %v559 = vadd.f32 0.0, %v558
    %560 = vmatmul.f32.gmra.mxu0 %v449
    %v561 = vpop.f32.mrf.mxu0
    %v562 = vadd.f32 0.0, %v561
    %563 = vmatmul.f32.gmra.mxu0 %v452
    %v564 = vpop.f32.mrf.mxu0
    %v565 = vadd.f32 0.0, %v564
    %566 = vmatmul.f32.gmra.mxu0 %v455
    %v567 = vpop.f32.mrf.mxu0
    %v568 = vadd.f32 0.0, %v567
    %569 = vmatmul.f32.gmra.mxu0 %v458
    %v570 = vpop.f32.mrf.mxu0
    %v571 = vadd.f32 0.0, %v570
    %572 = vmatmul.f32.gmra.mxu0 %v461
    %v573 = vpop.f32.mrf.mxu0
    %v574 = vadd.f32 0.0, %v573
    %575 = vmatmul.f32.gmra.mxu0 %v464
    %v576 = vpop.f32.mrf.mxu0
    %v577 = vadd.f32 0.0, %v576
    %578 = vdwg.mxu0
    %579 = vmatpush.msra.mxu0 0.0
    %580 = vmatpush.msra.mxu0 0.0
    %581 = vmatpush.msra.mxu0 0.0
    %582 = vmatpush.msra.mxu0 0.0
    %583 = vmatpush.msra.mxu0 0.0
    %584 = vmatpush.msra.mxu0 0.0
    %585 = vmatpush.msra.mxu0 0.0
    %586 = vmatpush.msra.mxu0 0.0
    %587 = vmatpush.msra.mxu0 0.0
    %588 = vmatpush.msra.mxu0 0.0
    %589 = vmatpush.msra.mxu0 0.0
    %590 = vmatpush.msra.mxu0 0.0
    %591 = vmatpush.msra.mxu0 %v474
    %592 = vmatpush.msra.mxu0 %v425
    %593 = vmatpush.msra.mxu0 %v419
    %594 = vmatpush.msra.mxu0 %v413
    %595 = vmatmul.f32.gmra.mxu0 %v437
    %v596 = vpop.f32.mrf.mxu0
    %v597 = vadd.f32 0.0, %v596
    %598 = vmatmul.f32.gmra.mxu0 %v440
    %v599 = vpop.f32.mrf.mxu0
    %v600 = vadd.f32 0.0, %v599
    %601 = vmatmul.f32.gmra.mxu0 %v443
    %v602 = vpop.f32.mrf.mxu0
    %v603 = vadd.f32 0.0, %v602
    %604 = vmatmul.f32.gmra.mxu0 %v446
    %v605 = vpop.f32.mrf.mxu0
    %v606 = vadd.f32 0.0, %v605
    %607 = vmatmul.f32.gmra.mxu0 %v449
    %v608 = vpop.f32.mrf.mxu0
    %v609 = vadd.f32 0.0, %v608
    %610 = vmatmul.f32.gmra.mxu0 %v452
    %v611 = vpop.f32.mrf.mxu0
    %v612 = vadd.f32 0.0, %v611
    %613 = vmatmul.f32.gmra.mxu0 %v455
    %v614 = vpop.f32.mrf.mxu0
    %v615 = vadd.f32 0.0, %v614
    %616 = vmatmul.f32.gmra.mxu0 %v458
    %v617 = vpop.f32.mrf.mxu0
    %v618 = vadd.f32 0.0, %v617
    %619 = vmatmul.f32.gmra.mxu0 %v461
    %v620 = vpop.f32.mrf.mxu0
    %v621 = vadd.f32 0.0, %v620
    %622 = vmatmul.f32.gmra.mxu0 %v464
    %v623 = vpop.f32.mrf.mxu0
    %v624 = vadd.f32 0.0, %v623
    %625 = vdwg.mxu0
    %626 = vmatpush.msra.mxu0 0.0
    %627 = vmatpush.msra.mxu0 0.0
    %628 = vmatpush.msra.mxu0 0.0
    %629 = vmatpush.msra.mxu0 0.0
    %630 = vmatpush.msra.mxu0 0.0
    %631 = vmatpush.msra.mxu0 0.0
    %632 = vmatpush.msra.mxu0 0.0
    %633 = vmatpush.msra.mxu0 0.0
    %634 = vmatpush.msra.mxu0 0.0
    %635 = vmatpush.msra.mxu0 0.0
    %636 = vmatpush.msra.mxu0 0.0
    %637 = vmatpush.msra.mxu0 0.0
    %638 = vmatpush.msra.mxu0 %v477
    %639 = vmatpush.msra.mxu0 %v426
    %640 = vmatpush.msra.mxu0 %v420
    %641 = vmatpush.msra.mxu0 %v414
    %642 = vmatmul.f32.gmra.mxu0 %v437
    %v643 = vpop.f32.mrf.mxu0
    %v644 = vadd.f32 0.0, %v643
    %645 = vmatmul.f32.gmra.mxu0 %v440
    %v646 = vpop.f32.mrf.mxu0
    %v647 = vadd.f32 0.0, %v646
    %648 = vmatmul.f32.gmra.mxu0 %v443
    %v649 = vpop.f32.mrf.mxu0
    %v650 = vadd.f32 0.0, %v649
    %651 = vmatmul.f32.gmra.mxu0 %v446
    %v652 = vpop.f32.mrf.mxu0
    %v653 = vadd.f32 0.0, %v652
    %654 = vmatmul.f32.gmra.mxu0 %v449
    %v655 = vpop.f32.mrf.mxu0
    %v656 = vadd.f32 0.0, %v655
    %657 = vmatmul.f32.gmra.mxu0 %v452
    %v658 = vpop.f32.mrf.mxu0
    %v659 = vadd.f32 0.0, %v658
    %660 = vmatmul.f32.gmra.mxu0 %v455
    %v661 = vpop.f32.mrf.mxu0
    %v662 = vadd.f32 0.0, %v661
    %663 = vmatmul.f32.gmra.mxu0 %v458
    %v664 = vpop.f32.mrf.mxu0
    %v665 = vadd.f32 0.0, %v664
    %666 = vmatmul.f32.gmra.mxu0 %v461
    %v667 = vpop.f32.mrf.mxu0
    %v668 = vadd.f32 0.0, %v667
    %669 = vmatmul.f32.gmra.mxu0 %v464
    %v670 = vpop.f32.mrf.mxu0
    %v671 = vadd.f32 0.0, %v670
    %672 = vdwg.mxu0
    %673 = vmatpush.msra.mxu0 0.0
    %674 = vmatpush.msra.mxu0 0.0
    %675 = vmatpush.msra.mxu0 0.0
    %676 = vmatpush.msra.mxu0 0.0
    %677 = vmatpush.msra.mxu0 0.0
    %678 = vmatpush.msra.mxu0 0.0
    %679 = vmatpush.msra.mxu0 0.0
    %680 = vmatpush.msra.mxu0 0.0
    %681 = vmatpush.msra.mxu0 0.0
    %682 = vmatpush.msra.mxu0 0.0
    %683 = vmatpush.msra.mxu0 0.0
    %684 = vmatpush.msra.mxu0 0.0
    %685 = vmatpush.msra.mxu0 %v480
    %686 = vmatpush.msra.mxu0 %v427
    %687 = vmatpush.msra.mxu0 %v421
    %688 = vmatpush.msra.mxu0 %v415
    %689 = vmatmul.f32.gmra.mxu0 %v437
    %v690 = vpop.f32.mrf.mxu0
    %v691 = vadd.f32 0.0, %v690
    %692 = vmatmul.f32.gmra.mxu0 %v440
    %v693 = vpop.f32.mrf.mxu0
    %v694 = vadd.f32 0.0, %v693
    %695 = vmatmul.f32.gmra.mxu0 %v443
    %v696 = vpop.f32.mrf.mxu0
    %v697 = vadd.f32 0.0, %v696
    %698 = vmatmul.f32.gmra.mxu0 %v446
    %v699 = vpop.f32.mrf.mxu0
    %v700 = vadd.f32 0.0, %v699
    %701 = vmatmul.f32.gmra.mxu0 %v449
    %v702 = vpop.f32.mrf.mxu0
    %v703 = vadd.f32 0.0, %v702
    %704 = vmatmul.f32.gmra.mxu0 %v452
    %v705 = vpop.f32.mrf.mxu0
    %v706 = vadd.f32 0.0, %v705
    %707 = vmatmul.f32.gmra.mxu0 %v455
    %v708 = vpop.f32.mrf.mxu0
    %v709 = vadd.f32 0.0, %v708
    %710 = vmatmul.f32.gmra.mxu0 %v458
    %v711 = vpop.f32.mrf.mxu0
    %v712 = vadd.f32 0.0, %v711
    %713 = vmatmul.f32.gmra.mxu0 %v461
    %v714 = vpop.f32.mrf.mxu0
    %v715 = vadd.f32 0.0, %v714
    %716 = vmatmul.f32.gmra.mxu0 %v464
    %v717 = vpop.f32.mrf.mxu0
    %v718 = vadd.f32 0.0, %v717
    %719 = vdwg.mxu0
    %720 = vmatpush.msra.mxu0 0.0
    %721 = vmatpush.msra.mxu0 0.0
    %722 = vmatpush.msra.mxu0 0.0
    %723 = vmatpush.msra.mxu0 0.0
    %724 = vmatpush.msra.mxu0 0.0
    %725 = vmatpush.msra.mxu0 0.0
    %726 = vmatpush.msra.mxu0 0.0
    %727 = vmatpush.msra.mxu0 0.0
    %728 = vmatpush.msra.mxu0 0.0
    %729 = vmatpush.msra.mxu0 0.0
    %730 = vmatpush.msra.mxu0 0.0
    %731 = vmatpush.msra.mxu0 0.0
    %732 = vmatpush.msra.mxu0 %v483
    %733 = vmatpush.msra.mxu0 %v428
    %734 = vmatpush.msra.mxu0 %v422
    %735 = vmatpush.msra.mxu0 %v416
    %736 = vmatmul.f32.gmra.mxu0 %v437
    %v737 = vpop.f32.mrf.mxu0
    %v738 = vadd.f32 0.0, %v737
    %739 = vmatmul.f32.gmra.mxu0 %v440
    %v740 = vpop.f32.mrf.mxu0
    %v741 = vadd.f32 0.0, %v740
    %742 = vmatmul.f32.gmra.mxu0 %v443
    %v743 = vpop.f32.mrf.mxu0
    %v744 = vadd.f32 0.0, %v743
    %745 = vmatmul.f32.gmra.mxu0 %v446
    %v746 = vpop.f32.mrf.mxu0
    %v747 = vadd.f32 0.0, %v746
    %748 = vmatmul.f32.gmra.mxu0 %v449
    %v749 = vpop.f32.mrf.mxu0
    %v750 = vadd.f32 0.0, %v749
    %751 = vmatmul.f32.gmra.mxu0 %v452
    %v752 = vpop.f32.mrf.mxu0
    %v753 = vadd.f32 0.0, %v752
    %754 = vmatmul.f32.gmra.mxu0 %v455
    %v755 = vpop.f32.mrf.mxu0
    %v756 = vadd.f32 0.0, %v755
    %757 = vmatmul.f32.gmra.mxu0 %v458
    %v758 = vpop.f32.mrf.mxu0
    %v759 = vadd.f32 0.0, %v758
    %760 = vmatmul.f32.gmra.mxu0 %v461
    %v761 = vpop.f32.mrf.mxu0
    %v762 = vadd.f32 0.0, %v761
    %763 = vmatmul.f32.gmra.mxu0 %v464
    %v764 = vpop.f32.mrf.mxu0
    %v765 = vadd.f32 0.0, %v764
    %766 = vdwg.mxu0
    %v768 = vsel %vm435, %v269, 0
    %v771 = vsel %vm435, %v272, 0
    %v774 = vsel %vm435, %v275, 0
    %v777 = vsel %vm435, %v278, 0
    %v780 = vsel %vm435, %v281, 0
    %v783 = vsel %vm435, %v284, 0
    %v786 = vsel %vm435, %v287, 0
    %v789 = vsel %vm435, %v290, 0
    %v792 = vsel %vm435, %v293, 0
    %v795 = vsel %vm435, %v296, 0
    %v798 = vsel %vm466, %v316, 0
    %v801 = vsel %vm466, %v317, 0
    %v804 = vsel %vm466, %v318, 0
    %v807 = vsel %vm466, %v319, 0
    %v810 = vsel %vm466, %v320, 0
    %v813 = vsel %vm466, %v321, 0
    %815 = vmatpush.msra.mxu0 0.0
    %816 = vmatpush.msra.mxu0 0.0
    %817 = vmatpush.msra.mxu0 0.0
    %818 = vmatpush.msra.mxu0 0.0
    %819 = vmatpush.msra.mxu0 0.0
    %820 = vmatpush.msra.mxu0 0.0
    %821 = vmatpush.msra.mxu0 0.0
    %822 = vmatpush.msra.mxu0 0.0
    %823 = vmatpush.msra.mxu0 0.0
    %824 = vmatpush.msra.mxu0 0.0
    %825 = vmatpush.msra.mxu0 0.0
    %826 = vmatpush.msra.mxu0 0.0
    %827 = vmatpush.msra.mxu0 %v798
    %828 = vmatpush.msra.mxu0 %v310
    %829 = vmatpush.msra.mxu0 %v304
    %830 = vmatpush.msra.mxu0 %v298
    %831 = vmatmul.f32.gmra.mxu0 %v768
    %v832 = vpop.f32.mrf.mxu0
    %v833 = vadd.f32 %v503, %v832
    %834 = vmatmul.f32.gmra.mxu0 %v771
    %v835 = vpop.f32.mrf.mxu0
    %v836 = vadd.f32 %v506, %v835
    %837 = vmatmul.f32.gmra.mxu0 %v774
    %v838 = vpop.f32.mrf.mxu0
    %v839 = vadd.f32 %v509, %v838
    %840 = vmatmul.f32.gmra.mxu0 %v777
    %v841 = vpop.f32.mrf.mxu0
    %v842 = vadd.f32 %v512, %v841
    %843 = vmatmul.f32.gmra.mxu0 %v780
    %v844 = vpop.f32.mrf.mxu0
    %v845 = vadd.f32 %v515, %v844
    %846 = vmatmul.f32.gmra.mxu0 %v783
    %v847 = vpop.f32.mrf.mxu0
    %v848 = vadd.f32 %v518, %v847
    %849 = vmatmul.f32.gmra.mxu0 %v786
    %v850 = vpop.f32.mrf.mxu0
    %v851 = vadd.f32 %v521, %v850
    %852 = vmatmul.f32.gmra.mxu0 %v789
    %v853 = vpop.f32.mrf.mxu0
    %v854 = vadd.f32 %v524, %v853
    %855 = vmatmul.f32.gmra.mxu0 %v792
    %v856 = vpop.f32.mrf.mxu0
    %v857 = vadd.f32 %v527, %v856
    %858 = vmatmul.f32.gmra.mxu0 %v795
    %v859 = vpop.f32.mrf.mxu0
    %v860 = vadd.f32 %v530, %v859
    %861 = vdwg.mxu0
    %862 = vmatpush.msra.mxu0 0.0
    %863 = vmatpush.msra.mxu0 0.0
    %864 = vmatpush.msra.mxu0 0.0
    %865 = vmatpush.msra.mxu0 0.0
    %866 = vmatpush.msra.mxu0 0.0
    %867 = vmatpush.msra.mxu0 0.0
    %868 = vmatpush.msra.mxu0 0.0
    %869 = vmatpush.msra.mxu0 0.0
    %870 = vmatpush.msra.mxu0 0.0
    %871 = vmatpush.msra.mxu0 0.0
    %872 = vmatpush.msra.mxu0 0.0
    %873 = vmatpush.msra.mxu0 0.0
    %874 = vmatpush.msra.mxu0 %v801
    %875 = vmatpush.msra.mxu0 %v311
    %876 = vmatpush.msra.mxu0 %v305
    %877 = vmatpush.msra.mxu0 %v299
    %878 = vmatmul.f32.gmra.mxu0 %v768
    %v879 = vpop.f32.mrf.mxu0
    %v880 = vadd.f32 %v550, %v879
    %881 = vmatmul.f32.gmra.mxu0 %v771
    %v882 = vpop.f32.mrf.mxu0
    %v883 = vadd.f32 %v553, %v882
    %884 = vmatmul.f32.gmra.mxu0 %v774
    %v885 = vpop.f32.mrf.mxu0
    %v886 = vadd.f32 %v556, %v885
    %887 = vmatmul.f32.gmra.mxu0 %v777
    %v888 = vpop.f32.mrf.mxu0
    %v889 = vadd.f32 %v559, %v888
    %890 = vmatmul.f32.gmra.mxu0 %v780
    %v891 = vpop.f32.mrf.mxu0
    %v892 = vadd.f32 %v562, %v891
    %893 = vmatmul.f32.gmra.mxu0 %v783
    %v894 = vpop.f32.mrf.mxu0
    %v895 = vadd.f32 %v565, %v894
    %896 = vmatmul.f32.gmra.mxu0 %v786
    %v897 = vpop.f32.mrf.mxu0
    %v898 = vadd.f32 %v568, %v897
    %899 = vmatmul.f32.gmra.mxu0 %v789
    %v900 = vpop.f32.mrf.mxu0
    %v901 = vadd.f32 %v571, %v900
    %902 = vmatmul.f32.gmra.mxu0 %v792
    %v903 = vpop.f32.mrf.mxu0
    %v904 = vadd.f32 %v574, %v903
    %905 = vmatmul.f32.gmra.mxu0 %v795
    %v906 = vpop.f32.mrf.mxu0
    %v907 = vadd.f32 %v577, %v906
    %908 = vdwg.mxu0
    %909 = vmatpush.msra.mxu0 0.0
    %910 = vmatpush.msra.mxu0 0.0
    %911 = vmatpush.msra.mxu0 0.0
    %912 = vmatpush.msra.mxu0 0.0
    %913 = vmatpush.msra.mxu0 0.0
    %914 = vmatpush.msra.mxu0 0.0
    %915 = vmatpush.msra.mxu0 0.0
    %916 = vmatpush.msra.mxu0 0.0
    %917 = vmatpush.msra.mxu0 0.0
    %918 = vmatpush.msra.mxu0 0.0
    %919 = vmatpush.msra.mxu0 0.0
    %920 = vmatpush.msra.mxu0 0.0
    %921 = vmatpush.msra.mxu0 %v804
    %922 = vmatpush.msra.mxu0 %v312
    %923 = vmatpush.msra.mxu0 %v306
    %924 = vmatpush.msra.mxu0 %v300
    %925 = vmatmul.f32.gmra.mxu0 %v768
    %v926 = vpop.f32.mrf.mxu0
    %v927 = vadd.f32 %v597, %v926
    %928 = vmatmul.f32.gmra.mxu0 %v771
    %v929 = vpop.f32.mrf.mxu0
    %v930 = vadd.f32 %v600, %v929
    %931 = vmatmul.f32.gmra.mxu0 %v774
    %v932 = vpop.f32.mrf.mxu0
    %v933 = vadd.f32 %v603, %v932
    %934 = vmatmul.f32.gmra.mxu0 %v777
    %v935 = vpop.f32.mrf.mxu0
    %v936 = vadd.f32 %v606, %v935
    %937 = vmatmul.f32.gmra.mxu0 %v780
    %v938 = vpop.f32.mrf.mxu0
    %v939 = vadd.f32 %v609, %v938
    %940 = vmatmul.f32.gmra.mxu0 %v783
    %v941 = vpop.f32.mrf.mxu0
    %v942 = vadd.f32 %v612, %v941
    %943 = vmatmul.f32.gmra.mxu0 %v786
    %v944 = vpop.f32.mrf.mxu0
    %v945 = vadd.f32 %v615, %v944
    %946 = vmatmul.f32.gmra.mxu0 %v789
    %v947 = vpop.f32.mrf.mxu0
    %v948 = vadd.f32 %v618, %v947
    %949 = vmatmul.f32.gmra.mxu0 %v792
    %v950 = vpop.f32.mrf.mxu0
    %v951 = vadd.f32 %v621, %v950
    %952 = vmatmul.f32.gmra.mxu0 %v795
    %v953 = vpop.f32.mrf.mxu0
    %v954 = vadd.f32 %v624, %v953
    %955 = vdwg.mxu0
    %956 = vmatpush.msra.mxu0 0.0
    %957 = vmatpush.msra.mxu0 0.0
    %958 = vmatpush.msra.mxu0 0.0
    %959 = vmatpush.msra.mxu0 0.0
    %960 = vmatpush.msra.mxu0 0.0
    %961 = vmatpush.msra.mxu0 0.0
    %962 = vmatpush.msra.mxu0 0.0
    %963 = vmatpush.msra.mxu0 0.0
    %964 = vmatpush.msra.mxu0 0.0
    %965 = vmatpush.msra.mxu0 0.0
    %966 = vmatpush.msra.mxu0 0.0
    %967 = vmatpush.msra.mxu0 0.0
    %968 = vmatpush.msra.mxu0 %v807
    %969 = vmatpush.msra.mxu0 %v313
    %970 = vmatpush.msra.mxu0 %v307
    %971 = vmatpush.msra.mxu0 %v301
    %972 = vmatmul.f32.gmra.mxu0 %v768
    %v973 = vpop.f32.mrf.mxu0
    %v974 = vadd.f32 %v644, %v973
    %975 = vmatmul.f32.gmra.mxu0 %v771
    %v976 = vpop.f32.mrf.mxu0
    %v977 = vadd.f32 %v647, %v976
    %978 = vmatmul.f32.gmra.mxu0 %v774
    %v979 = vpop.f32.mrf.mxu0
    %v980 = vadd.f32 %v650, %v979
    %981 = vmatmul.f32.gmra.mxu0 %v777
    %v982 = vpop.f32.mrf.mxu0
    %v983 = vadd.f32 %v653, %v982
    %984 = vmatmul.f32.gmra.mxu0 %v780
    %v985 = vpop.f32.mrf.mxu0
    %v986 = vadd.f32 %v656, %v985
    %987 = vmatmul.f32.gmra.mxu0 %v783
    %v988 = vpop.f32.mrf.mxu0
    %v989 = vadd.f32 %v659, %v988
    %990 = vmatmul.f32.gmra.mxu0 %v786
    %v991 = vpop.f32.mrf.mxu0
    %v992 = vadd.f32 %v662, %v991
    %993 = vmatmul.f32.gmra.mxu0 %v789
    %v994 = vpop.f32.mrf.mxu0
    %v995 = vadd.f32 %v665, %v994
    %996 = vmatmul.f32.gmra.mxu0 %v792
    %v997 = vpop.f32.mrf.mxu0
    %v998 = vadd.f32 %v668, %v997
    %999 = vmatmul.f32.gmra.mxu0 %v795
    %v1000 = vpop.f32.mrf.mxu0
    %v1001 = vadd.f32 %v671, %v1000
    %1002 = vdwg.mxu0
    %1003 = vmatpush.msra.mxu0 0.0
    %1004 = vmatpush.msra.mxu0 0.0
    %1005 = vmatpush.msra.mxu0 0.0
    %1006 = vmatpush.msra.mxu0 0.0
    %1007 = vmatpush.msra.mxu0 0.0
    %1008 = vmatpush.msra.mxu0 0.0
    %1009 = vmatpush.msra.mxu0 0.0
    %1010 = vmatpush.msra.mxu0 0.0
    %1011 = vmatpush.msra.mxu0 0.0
    %1012 = vmatpush.msra.mxu0 0.0
    %1013 = vmatpush.msra.mxu0 0.0
    %1014 = vmatpush.msra.mxu0 0.0
    %1015 = vmatpush.msra.mxu0 %v810
    %1016 = vmatpush.msra.mxu0 %v314
    %1017 = vmatpush.msra.mxu0 %v308
    %1018 = vmatpush.msra.mxu0 %v302
    %1019 = vmatmul.f32.gmra.mxu0 %v768
    %v1020 = vpop.f32.mrf.mxu0
    %v1021 = vadd.f32 %v691, %v1020
    %1022 = vmatmul.f32.gmra.mxu0 %v771
    %v1023 = vpop.f32.mrf.mxu0
    %v1024 = vadd.f32 %v694, %v1023
    %1025 = vmatmul.f32.gmra.mxu0 %v774
    %v1026 = vpop.f32.mrf.mxu0
    %v1027 = vadd.f32 %v697, %v1026
    %1028 = vmatmul.f32.gmra.mxu0 %v777
    %v1029 = vpop.f32.mrf.mxu0
    %v1030 = vadd.f32 %v700, %v1029
    %1031 = vmatmul.f32.gmra.mxu0 %v780
    %v1032 = vpop.f32.mrf.mxu0
    %v1033 = vadd.f32 %v703, %v1032
    %1034 = vmatmul.f32.gmra.mxu0 %v783
    %v1035 = vpop.f32.mrf.mxu0
    %v1036 = vadd.f32 %v706, %v1035
    %1037 = vmatmul.f32.gmra.mxu0 %v786
    %v1038 = vpop.f32.mrf.mxu0
    %v1039 = vadd.f32 %v709, %v1038
    %1040 = vmatmul.f32.gmra.mxu0 %v789
    %v1041 = vpop.f32.mrf.mxu0
    %v1042 = vadd.f32 %v712, %v1041
    %1043 = vmatmul.f32.gmra.mxu0 %v792
    %v1044 = vpop.f32.mrf.mxu0
    %v1045 = vadd.f32 %v715, %v1044
    %1046 = vmatmul.f32.gmra.mxu0 %v795
    %v1047 = vpop.f32.mrf.mxu0
    %v1048 = vadd.f32 %v718, %v1047
    %1049 = vdwg.mxu0
    %1050 = vmatpush.msra.mxu0 0.0
    %1051 = vmatpush.msra.mxu0 0.0
    %1052 = vmatpush.msra.mxu0 0.0
    %1053 = vmatpush.msra.mxu0 0.0
    %1054 = vmatpush.msra.mxu0 0.0
    %1055 = vmatpush.msra.mxu0 0.0
    %1056 = vmatpush.msra.mxu0 0.0
    %1057 = vmatpush.msra.mxu0 0.0
    %1058 = vmatpush.msra.mxu0 0.0
    %1059 = vmatpush.msra.mxu0 0.0
    %1060 = vmatpush.msra.mxu0 0.0
    %1061 = vmatpush.msra.mxu0 0.0
    %1062 = vmatpush.msra.mxu0 %v813
    %1063 = vmatpush.msra.mxu0 %v315
    %1064 = vmatpush.msra.mxu0 %v309
    %1065 = vmatpush.msra.mxu0 %v303
    %1066 = vmatmul.f32.gmra.mxu0 %v768
    %v1067 = vpop.f32.mrf.mxu0
    %v1068 = vadd.f32 %v738, %v1067
    %1069 = vmatmul.f32.gmra.mxu0 %v771
    %v1070 = vpop.f32.mrf.mxu0
    %v1071 = vadd.f32 %v741, %v1070
    %1072 = vmatmul.f32.gmra.mxu0 %v774
    %v1073 = vpop.f32.mrf.mxu0
    %v1074 = vadd.f32 %v744, %v1073
    %1075 = vmatmul.f32.gmra.mxu0 %v777
    %v1076 = vpop.f32.mrf.mxu0
    %v1077 = vadd.f32 %v747, %v1076
    %1078 = vmatmul.f32.gmra.mxu0 %v780
    %v1079 = vpop.f32.mrf.mxu0
    %v1080 = vadd.f32 %v750, %v1079
    %1081 = vmatmul.f32.gmra.mxu0 %v783
    %v1082 = vpop.f32.mrf.mxu0
    %v1083 = vadd.f32 %v753, %v1082
    %1084 = vmatmul.f32.gmra.mxu0 %v786
    %v1085 = vpop.f32.mrf.mxu0
    %v1086 = vadd.f32 %v756, %v1085
    %1087 = vmatmul.f32.gmra.mxu0 %v789
    %v1088 = vpop.f32.mrf.mxu0
    %v1089 = vadd.f32 %v759, %v1088
    %1090 = vmatmul.f32.gmra.mxu0 %v792
    %v1091 = vpop.f32.mrf.mxu0
    %v1092 = vadd.f32 %v762, %v1091
    %1093 = vmatmul.f32.gmra.mxu0 %v795
    %v1094 = vpop.f32.mrf.mxu0
    %v1095 = vadd.f32 %v765, %v1094
    %1096 = vdwg.mxu0
    %s1097 = scalar_lea.vmem %s1, 160
    %v1098 = vld [vmem:[%s1097] sm:$0xff]
    %v1099 = vld [vmem:[%s1097 + $0x8] sm:$0xff]
    %v1100 = vld [vmem:[%s1097 + $0x10] sm:$0xff]
    %v1101 = vld [vmem:[%s1097 + $0x18] sm:$0xff]
    %v1102 = vld [vmem:[%s1097 + $0x20] sm:$0xff]
    %v1103 = vld [vmem:[%s1097 + $0x28] sm:$0xff]
    %v1104 = vld [vmem:[%s1097 + $0x30] sm:$0xff]
    %v1105 = vld [vmem:[%s1097 + $0x38] sm:$0xff]
    %v1106 = vld [vmem:[%s1097 + $0x40] sm:$0xff]
    %v1107 = vld [vmem:[%s1097 + $0x48] sm:$0xff]
    %v1109 = vsel %vm220, %v1098, 0
    %v1112 = vsel %vm220, %v1099, 0
    %v1115 = vsel %vm220, %v1100, 0
    %v1118 = vsel %vm220, %v1101, 0
    %v1121 = vsel %vm220, %v1102, 0
    %v1124 = vsel %vm220, %v1103, 0
    %v1127 = vsel %vm220, %v1104, 0
    %v1130 = vsel %vm220, %v1105, 0
    %v1133 = vsel %vm220, %v1106, 0
    %v1136 = vsel %vm220, %v1107, 0
    %1138 = vmatpush.msra.mxu0 0.0
    %1139 = vmatpush.msra.mxu0 0.0
    %1140 = vmatpush.msra.mxu0 0.0
    %1141 = vmatpush.msra.mxu0 0.0
    %1142 = vmatpush.msra.mxu0 0.0
    %1143 = vmatpush.msra.mxu0 0.0
    %1144 = vmatpush.msra.mxu0 0.0
    %1145 = vmatpush.msra.mxu0 0.0
    %1146 = vmatpush.msra.mxu0 0.0
    %1147 = vmatpush.msra.mxu0 %v209
    %1148 = vmatpush.msra.mxu0 %v208
    %1149 = vmatpush.msra.mxu0 %v207
    %1150 = vmatpush.msra.mxu0 %v206
    %1151 = vmatpush.msra.mxu0 %v205
    %1152 = vmatpush.msra.mxu0 %v204
    %1153 = vmatpush.msra.mxu0 %v203
    %1154 = vmatmul.f32.gmra.mxu0 %v1109
    %v1155 = vpop.f32.mrf.mxu0
    %v1156 = vadd.f32 0.0, %v1155
    %1157 = vmatmul.f32.gmra.mxu0 %v1112
    %v1158 = vpop.f32.mrf.mxu0
    %v1159 = vadd.f32 0.0, %v1158
    %1160 = vmatmul.f32.gmra.mxu0 %v1115
    %v1161 = vpop.f32.mrf.mxu0
    %v1162 = vadd.f32 0.0, %v1161
    %1163 = vmatmul.f32.gmra.mxu0 %v1118
    %v1164 = vpop.f32.mrf.mxu0
    %v1165 = vadd.f32 0.0, %v1164
    %1166 = vmatmul.f32.gmra.mxu0 %v1121
    %v1167 = vpop.f32.mrf.mxu0
    %v1168 = vadd.f32 0.0, %v1167
    %1169 = vmatmul.f32.gmra.mxu0 %v1124
    %v1170 = vpop.f32.mrf.mxu0
    %v1171 = vadd.f32 0.0, %v1170
    %1172 = vmatmul.f32.gmra.mxu0 %v1127
    %v1173 = vpop.f32.mrf.mxu0
    %v1174 = vadd.f32 0.0, %v1173
    %1175 = vmatmul.f32.gmra.mxu0 %v1130
    %v1176 = vpop.f32.mrf.mxu0
    %v1177 = vadd.f32 0.0, %v1176
    %1178 = vmatmul.f32.gmra.mxu0 %v1133
    %v1179 = vpop.f32.mrf.mxu0
    %v1180 = vadd.f32 0.0, %v1179
    %1181 = vmatmul.f32.gmra.mxu0 %v1136
    %v1182 = vpop.f32.mrf.mxu0
    %v1183 = vadd.f32 0.0, %v1182
    %1184 = vdwg.mxu0
    %s1185 = scalar_lea.vmem [#allocation7], 384
    %v1186 = vld [vmem:[%s1185] sm:$0xff]
    %v1187 = vld [vmem:[%s1185 + $0x8] sm:$0xff]
    %v1188 = vld [vmem:[%s1185 + $0x10] sm:$0xff]
    %v1189 = vld [vmem:[%s1185 + $0x18] sm:$0xff]
    %v1190 = vld [vmem:[%s1185 + $0x20] sm:$0xff]
    %v1191 = vld [vmem:[%s1185 + $0x28] sm:$0xff]
    %v1192 = vld [vmem:[%s1185 + $0x30] sm:$0xff]
    %v1193 = vld [vmem:[%s1185 + $0x38] sm:$0xff]
    %v1194 = vld [vmem:[%s1185 + $0x40] sm:$0xff]
    %v1195 = vld [vmem:[%s1185 + $0x48] sm:$0xff]
    %v1196 = vld [vmem:[%s1185 + $0x50] sm:$0xff]
    %v1197 = vld [vmem:[%s1185 + $0x58] sm:$0xff]
    %v1198 = vld [vmem:[%s1185 + $0x60] sm:$0xff]
    %v1199 = vld [vmem:[%s1185 + $0x68] sm:$0xff]
    %v1200 = vld [vmem:[%s1185 + $0x70] sm:$0xff]
    %v1201 = vld [vmem:[%s1185 + $0x78] sm:$0xff]
    %v1202 = vld [vmem:[%s1185 + $0x80] sm:$0xff]
    %v1203 = vld [vmem:[%s1185 + $0x88] sm:$0xff]
    %v1204 = vld [vmem:[%s1185 + $0x90] sm:$0xf]
    %v1205 = vld [vmem:[%s1185 + $0x98] sm:$0xf]
    %v1206 = vld [vmem:[%s1185 + $0xa0] sm:$0xf]
    %v1207 = vld [vmem:[%s1185 + $0xa8] sm:$0xf]
    %v1208 = vld [vmem:[%s1185 + $0xb0] sm:$0xf]
    %v1209 = vld [vmem:[%s1185 + $0xb8] sm:$0xf]
    %v1211 = vsel %vm435, %v1156, 0
    %v1214 = vsel %vm435, %v1159, 0
    %v1217 = vsel %vm435, %v1162, 0
    %v1220 = vsel %vm435, %v1165, 0
    %v1223 = vsel %vm435, %v1168, 0
    %v1226 = vsel %vm435, %v1171, 0
    %v1229 = vsel %vm435, %v1174, 0
    %v1232 = vsel %vm435, %v1177, 0
    %v1235 = vsel %vm435, %v1180, 0
    %v1238 = vsel %vm435, %v1183, 0
    %v1241 = vsel %vm466, %v1204, 0
    %v1244 = vsel %vm466, %v1205, 0
    %v1247 = vsel %vm466, %v1206, 0
    %v1250 = vsel %vm466, %v1207, 0
    %v1253 = vsel %vm466, %v1208, 0
    %v1256 = vsel %vm466, %v1209, 0
    %1258 = vmatpush.msra.mxu0 0.0
    %1259 = vmatpush.msra.mxu0 0.0
    %1260 = vmatpush.msra.mxu0 0.0
    %1261 = vmatpush.msra.mxu0 0.0
    %1262 = vmatpush.msra.mxu0 0.0
    %1263 = vmatpush.msra.mxu0 0.0
    %1264 = vmatpush.msra.mxu0 0.0
    %1265 = vmatpush.msra.mxu0 0.0
    %1266 = vmatpush.msra.mxu0 0.0
    %1267 = vmatpush.msra.mxu0 0.0
    %1268 = vmatpush.msra.mxu0 0.0
    %1269 = vmatpush.msra.mxu0 0.0
    %1270 = vmatpush.msra.mxu0 %v1241
    %1271 = vmatpush.msra.mxu0 %v1198
    %1272 = vmatpush.msra.mxu0 %v1192
    %1273 = vmatpush.msra.mxu0 %v1186
    %1274 = vmatmul.f32.gmra.mxu0 %v1211
    %v1275 = vpop.f32.mrf.mxu0
    %v1276 = vadd.f32 0.0, %v1275
    %1277 = vmatmul.f32.gmra.mxu0 %v1214
    %v1278 = vpop.f32.mrf.mxu0
    %v1279 = vadd.f32 0.0, %v1278
    %1280 = vmatmul.f32.gmra.mxu0 %v1217
    %v1281 = vpop.f32.mrf.mxu0
    %v1282 = vadd.f32 0.0, %v1281
    %1283 = vmatmul.f32.gmra.mxu0 %v1220
    %v1284 = vpop.f32.mrf.mxu0
    %v1285 = vadd.f32 0.0, %v1284
    %1286 = vmatmul.f32.gmra.mxu0 %v1223
    %v1287 = vpop.f32.mrf.mxu0
    %v1288 = vadd.f32 0.0, %v1287
    %1289 = vmatmul.f32.gmra.mxu0 %v1226
    %v1290 = vpop.f32.mrf.mxu0
    %v1291 = vadd.f32 0.0, %v1290
    %1292 = vmatmul.f32.gmra.mxu0 %v1229
    %v1293 = vpop.f32.mrf.mxu0
    %v1294 = vadd.f32 0.0, %v1293
    %1295 = vmatmul.f32.gmra.mxu0 %v1232
    %v1296 = vpop.f32.mrf.mxu0
    %v1297 = vadd.f32 0.0, %v1296
    %1298 = vmatmul.f32.gmra.mxu0 %v1235
    %v1299 = vpop.f32.mrf.mxu0
    %v1300 = vadd.f32 0.0, %v1299
    %1301 = vmatmul.f32.gmra.mxu0 %v1238
    %v1302 = vpop.f32.mrf.mxu0
    %v1303 = vadd.f32 0.0, %v1302
    %1304 = vdwg.mxu0
    %1305 = vmatpush.msra.mxu0 0.0
    %1306 = vmatpush.msra.mxu0 0.0
    %1307 = vmatpush.msra.mxu0 0.0
    %1308 = vmatpush.msra.mxu0 0.0
    %1309 = vmatpush.msra.mxu0 0.0
    %1310 = vmatpush.msra.mxu0 0.0
    %1311 = vmatpush.msra.mxu0 0.0
    %1312 = vmatpush.msra.mxu0 0.0
    %1313 = vmatpush.msra.mxu0 0.0
    %1314 = vmatpush.msra.mxu0 0.0
    %1315 = vmatpush.msra.mxu0 0.0
    %1316 = vmatpush.msra.mxu0 0.0
    %1317 = vmatpush.msra.mxu0 %v1244
    %1318 = vmatpush.msra.mxu0 %v1199
    %1319 = vmatpush.msra.mxu0 %v1193
    %1320 = vmatpush.msra.mxu0 %v1187
    %1321 = vmatmul.f32.gmra.mxu0 %v1211
    %v1322 = vpop.f32.mrf.mxu0
    %v1323 = vadd.f32 0.0, %v1322
    %1324 = vmatmul.f32.gmra.mxu0 %v1214
    %v1325 = vpop.f32.mrf.mxu0
    %v1326 = vadd.f32 0.0, %v1325
    %1327 = vmatmul.f32.gmra.mxu0 %v1217
    %v1328 = vpop.f32.mrf.mxu0
    %v1329 = vadd.f32 0.0, %v1328
    %1330 = vmatmul.f32.gmra.mxu0 %v1220
    %v1331 = vpop.f32.mrf.mxu0
    %v1332 = vadd.f32 0.0, %v1331
    %1333 = vmatmul.f32.gmra.mxu0 %v1223
    %v1334 = vpop.f32.mrf.mxu0
    %v1335 = vadd.f32 0.0, %v1334
    %1336 = vmatmul.f32.gmra.mxu0 %v1226
    %v1337 = vpop.f32.mrf.mxu0
    %v1338 = vadd.f32 0.0, %v1337
    %1339 = vmatmul.f32.gmra.mxu0 %v1229
    %v1340 = vpop.f32.mrf.mxu0
    %v1341 = vadd.f32 0.0, %v1340
    %1342 = vmatmul.f32.gmra.mxu0 %v1232
    %v1343 = vpop.f32.mrf.mxu0
    %v1344 = vadd.f32 0.0, %v1343
    %1345 = vmatmul.f32.gmra.mxu0 %v1235
    %v1346 = vpop.f32.mrf.mxu0
    %v1347 = vadd.f32 0.0, %v1346
    %1348 = vmatmul.f32.gmra.mxu0 %v1238
    %v1349 = vpop.f32.mrf.mxu0
    %v1350 = vadd.f32 0.0, %v1349
    %1351 = vdwg.mxu0
    %1352 = vmatpush.msra.mxu0 0.0
    %1353 = vmatpush.msra.mxu0 0.0
    %1354 = vmatpush.msra.mxu0 0.0
    %1355 = vmatpush.msra.mxu0 0.0
    %1356 = vmatpush.msra.mxu0 0.0
    %1357 = vmatpush.msra.mxu0 0.0
    %1358 = vmatpush.msra.mxu0 0.0
    %1359 = vmatpush.msra.mxu0 0.0
    %1360 = vmatpush.msra.mxu0 0.0
    %1361 = vmatpush.msra.mxu0 0.0
    %1362 = vmatpush.msra.mxu0 0.0
    %1363 = vmatpush.msra.mxu0 0.0
    %1364 = vmatpush.msra.mxu0 %v1247
    %1365 = vmatpush.msra.mxu0 %v1200
    %1366 = vmatpush.msra.mxu0 %v1194
    %1367 = vmatpush.msra.mxu0 %v1188
    %1368 = vmatmul.f32.gmra.mxu0 %v1211
    %v1369 = vpop.f32.mrf.mxu0
    %v1370 = vadd.f32 0.0, %v1369
    %1371 = vmatmul.f32.gmra.mxu0 %v1214
    %v1372 = vpop.f32.mrf.mxu0
    %v1373 = vadd.f32 0.0, %v1372
    %1374 = vmatmul.f32.gmra.mxu0 %v1217
    %v1375 = vpop.f32.mrf.mxu0
    %v1376 = vadd.f32 0.0, %v1375
    %1377 = vmatmul.f32.gmra.mxu0 %v1220
    %v1378 = vpop.f32.mrf.mxu0
    %v1379 = vadd.f32 0.0, %v1378
    %1380 = vmatmul.f32.gmra.mxu0 %v1223
    %v1381 = vpop.f32.mrf.mxu0
    %v1382 = vadd.f32 0.0, %v1381
    %1383 = vmatmul.f32.gmra.mxu0 %v1226
    %v1384 = vpop.f32.mrf.mxu0
    %v1385 = vadd.f32 0.0, %v1384
    %1386 = vmatmul.f32.gmra.mxu0 %v1229
    %v1387 = vpop.f32.mrf.mxu0
    %v1388 = vadd.f32 0.0, %v1387
    %1389 = vmatmul.f32.gmra.mxu0 %v1232
    %v1390 = vpop.f32.mrf.mxu0
    %v1391 = vadd.f32 0.0, %v1390
    %1392 = vmatmul.f32.gmra.mxu0 %v1235
    %v1393 = vpop.f32.mrf.mxu0
    %v1394 = vadd.f32 0.0, %v1393
    %1395 = vmatmul.f32.gmra.mxu0 %v1238
    %v1396 = vpop.f32.mrf.mxu0
    %v1397 = vadd.f32 0.0, %v1396
    %1398 = vdwg.mxu0
    %1399 = vmatpush.msra.mxu0 0.0
    %1400 = vmatpush.msra.mxu0 0.0
    %1401 = vmatpush.msra.mxu0 0.0
    %1402 = vmatpush.msra.mxu0 0.0
    %1403 = vmatpush.msra.mxu0 0.0
    %1404 = vmatpush.msra.mxu0 0.0
    %1405 = vmatpush.msra.mxu0 0.0
    %1406 = vmatpush.msra.mxu0 0.0
    %1407 = vmatpush.msra.mxu0 0.0
    %1408 = vmatpush.msra.mxu0 0.0
    %1409 = vmatpush.msra.mxu0 0.0
    %1410 = vmatpush.msra.mxu0 0.0
    %1411 = vmatpush.msra.mxu0 %v1250
    %1412 = vmatpush.msra.mxu0 %v1201
    %1413 = vmatpush.msra.mxu0 %v1195
    %1414 = vmatpush.msra.mxu0 %v1189
    %1415 = vmatmul.f32.gmra.mxu0 %v1211
    %v1416 = vpop.f32.mrf.mxu0
    %v1417 = vadd.f32 0.0, %v1416
    %1418 = vmatmul.f32.gmra.mxu0 %v1214
    %v1419 = vpop.f32.mrf.mxu0
    %v1420 = vadd.f32 0.0, %v1419
    %1421 = vmatmul.f32.gmra.mxu0 %v1217
    %v1422 = vpop.f32.mrf.mxu0
    %v1423 = vadd.f32 0.0, %v1422
    %1424 = vmatmul.f32.gmra.mxu0 %v1220
    %v1425 = vpop.f32.mrf.mxu0
    %v1426 = vadd.f32 0.0, %v1425
    %1427 = vmatmul.f32.gmra.mxu0 %v1223
    %v1428 = vpop.f32.mrf.mxu0
    %v1429 = vadd.f32 0.0, %v1428
    %1430 = vmatmul.f32.gmra.mxu0 %v1226
    %v1431 = vpop.f32.mrf.mxu0
    %v1432 = vadd.f32 0.0, %v1431
    %1433 = vmatmul.f32.gmra.mxu0 %v1229
    %v1434 = vpop.f32.mrf.mxu0
    %v1435 = vadd.f32 0.0, %v1434
    %1436 = vmatmul.f32.gmra.mxu0 %v1232
    %v1437 = vpop.f32.mrf.mxu0
    %v1438 = vadd.f32 0.0, %v1437
    %1439 = vmatmul.f32.gmra.mxu0 %v1235
    %v1440 = vpop.f32.mrf.mxu0
    %v1441 = vadd.f32 0.0, %v1440
    %1442 = vmatmul.f32.gmra.mxu0 %v1238
    %v1443 = vpop.f32.mrf.mxu0
    %v1444 = vadd.f32 0.0, %v1443
    %1445 = vdwg.mxu0
    %1446 = vmatpush.msra.mxu0 0.0
    %1447 = vmatpush.msra.mxu0 0.0
    %1448 = vmatpush.msra.mxu0 0.0
    %1449 = vmatpush.msra.mxu0 0.0
    %1450 = vmatpush.msra.mxu0 0.0
    %1451 = vmatpush.msra.mxu0 0.0
    %1452 = vmatpush.msra.mxu0 0.0
    %1453 = vmatpush.msra.mxu0 0.0
    %1454 = vmatpush.msra.mxu0 0.0
    %1455 = vmatpush.msra.mxu0 0.0
    %1456 = vmatpush.msra.mxu0 0.0
    %1457 = vmatpush.msra.mxu0 0.0
    %1458 = vmatpush.msra.mxu0 %v1253
    %1459 = vmatpush.msra.mxu0 %v1202
    %1460 = vmatpush.msra.mxu0 %v1196
    %1461 = vmatpush.msra.mxu0 %v1190
    %1462 = vmatmul.f32.gmra.mxu0 %v1211
    %v1463 = vpop.f32.mrf.mxu0
    %v1464 = vadd.f32 0.0, %v1463
    %1465 = vmatmul.f32.gmra.mxu0 %v1214
    %v1466 = vpop.f32.mrf.mxu0
    %v1467 = vadd.f32 0.0, %v1466
    %1468 = vmatmul.f32.gmra.mxu0 %v1217
    %v1469 = vpop.f32.mrf.mxu0
    %v1470 = vadd.f32 0.0, %v1469
    %1471 = vmatmul.f32.gmra.mxu0 %v1220
    %v1472 = vpop.f32.mrf.mxu0
    %v1473 = vadd.f32 0.0, %v1472
    %1474 = vmatmul.f32.gmra.mxu0 %v1223
    %v1475 = vpop.f32.mrf.mxu0
    %v1476 = vadd.f32 0.0, %v1475
    %1477 = vmatmul.f32.gmra.mxu0 %v1226
    %v1478 = vpop.f32.mrf.mxu0
    %v1479 = vadd.f32 0.0, %v1478
    %1480 = vmatmul.f32.gmra.mxu0 %v1229
    %v1481 = vpop.f32.mrf.mxu0
    %v1482 = vadd.f32 0.0, %v1481
    %1483 = vmatmul.f32.gmra.mxu0 %v1232
    %v1484 = vpop.f32.mrf.mxu0
    %v1485 = vadd.f32 0.0, %v1484
    %1486 = vmatmul.f32.gmra.mxu0 %v1235
    %v1487 = vpop.f32.mrf.mxu0
    %v1488 = vadd.f32 0.0, %v1487
    %1489 = vmatmul.f32.gmra.mxu0 %v1238
    %v1490 = vpop.f32.mrf.mxu0
    %v1491 = vadd.f32 0.0, %v1490
    %1492 = vdwg.mxu0
    %1493 = vmatpush.msra.mxu0 0.0
    %1494 = vmatpush.msra.mxu0 0.0
    %1495 = vmatpush.msra.mxu0 0.0
    %1496 = vmatpush.msra.mxu0 0.0
    %1497 = vmatpush.msra.mxu0 0.0
    %1498 = vmatpush.msra.mxu0 0.0
    %1499 = vmatpush.msra.mxu0 0.0
    %1500 = vmatpush.msra.mxu0 0.0
    %1501 = vmatpush.msra.mxu0 0.0
    %1502 = vmatpush.msra.mxu0 0.0
    %1503 = vmatpush.msra.mxu0 0.0
    %1504 = vmatpush.msra.mxu0 0.0
    %1505 = vmatpush.msra.mxu0 %v1256
    %1506 = vmatpush.msra.mxu0 %v1203
    %1507 = vmatpush.msra.mxu0 %v1197
    %1508 = vmatpush.msra.mxu0 %v1191
    %1509 = vmatmul.f32.gmra.mxu0 %v1211
    %v1510 = vpop.f32.mrf.mxu0
    %v1511 = vadd.f32 0.0, %v1510
    %1512 = vmatmul.f32.gmra.mxu0 %v1214
    %v1513 = vpop.f32.mrf.mxu0
    %v1514 = vadd.f32 0.0, %v1513
    %1515 = vmatmul.f32.gmra.mxu0 %v1217
    %v1516 = vpop.f32.mrf.mxu0
    %v1517 = vadd.f32 0.0, %v1516
    %1518 = vmatmul.f32.gmra.mxu0 %v1220
    %v1519 = vpop.f32.mrf.mxu0
    %v1520 = vadd.f32 0.0, %v1519
    %1521 = vmatmul.f32.gmra.mxu0 %v1223
    %v1522 = vpop.f32.mrf.mxu0
    %v1523 = vadd.f32 0.0, %v1522
    %1524 = vmatmul.f32.gmra.mxu0 %v1226
    %v1525 = vpop.f32.mrf.mxu0
    %v1526 = vadd.f32 0.0, %v1525
    %1527 = vmatmul.f32.gmra.mxu0 %v1229
    %v1528 = vpop.f32.mrf.mxu0
    %v1529 = vadd.f32 0.0, %v1528
    %1530 = vmatmul.f32.gmra.mxu0 %v1232
    %v1531 = vpop.f32.mrf.mxu0
    %v1532 = vadd.f32 0.0, %v1531
    %1533 = vmatmul.f32.gmra.mxu0 %v1235
    %v1534 = vpop.f32.mrf.mxu0
    %v1535 = vadd.f32 0.0, %v1534
    %1536 = vmatmul.f32.gmra.mxu0 %v1238
    %v1537 = vpop.f32.mrf.mxu0
    %v1538 = vadd.f32 0.0, %v1537
    %1539 = vdwg.mxu0
    %v1540 = vadd.f32 %v833, %v1276
    %v1541 = vadd.f32 %v880, %v1323
    %v1542 = vadd.f32 %v927, %v1370
    %v1543 = vadd.f32 %v974, %v1417
    %v1544 = vadd.f32 %v1021, %v1464
    %v1545 = vadd.f32 %v1068, %v1511
    %v1546 = vadd.f32 %v836, %v1279
    %v1547 = vadd.f32 %v883, %v1326
    %v1548 = vadd.f32 %v930, %v1373
    %v1549 = vadd.f32 %v977, %v1420
    %v1550 = vadd.f32 %v1024, %v1467
    %v1551 = vadd.f32 %v1071, %v1514
    %v1552 = vadd.f32 %v839, %v1282
    %v1553 = vadd.f32 %v886, %v1329
    %v1554 = vadd.f32 %v933, %v1376
    %v1555 = vadd.f32 %v980, %v1423
    %v1556 = vadd.f32 %v1027, %v1470
    %v1557 = vadd.f32 %v1074, %v1517
    %v1558 = vadd.f32 %v842, %v1285
    %v1559 = vadd.f32 %v889, %v1332
    %v1560 = vadd.f32 %v936, %v1379
    %v1561 = vadd.f32 %v983, %v1426
    %v1562 = vadd.f32 %v1030, %v1473
    %v1563 = vadd.f32 %v1077, %v1520
    %v1564 = vadd.f32 %v845, %v1288
    %v1565 = vadd.f32 %v892, %v1335
    %v1566 = vadd.f32 %v939, %v1382
    %v1567 = vadd.f32 %v986, %v1429
    %v1568 = vadd.f32 %v1033, %v1476
    %v1569 = vadd.f32 %v1080, %v1523
    %v1570 = vadd.f32 %v848, %v1291
    %v1571 = vadd.f32 %v895, %v1338
    %v1572 = vadd.f32 %v942, %v1385
    %v1573 = vadd.f32 %v989, %v1432
    %v1574 = vadd.f32 %v1036, %v1479
    %v1575 = vadd.f32 %v1083, %v1526
    %v1576 = vadd.f32 %v851, %v1294
    %v1577 = vadd.f32 %v898, %v1341
    %v1578 = vadd.f32 %v945, %v1388
    %v1579 = vadd.f32 %v992, %v1435
    %v1580 = vadd.f32 %v1039, %v1482
    %v1581 = vadd.f32 %v1086, %v1529
    %v1582 = vadd.f32 %v854, %v1297
    %v1583 = vadd.f32 %v901, %v1344
    %v1584 = vadd.f32 %v948, %v1391
    %v1585 = vadd.f32 %v995, %v1438
    %v1586 = vadd.f32 %v1042, %v1485
    %v1587 = vadd.f32 %v1089, %v1532
    %v1588 = vadd.f32 %v857, %v1300
    %v1589 = vadd.f32 %v904, %v1347
    %v1590 = vadd.f32 %v951, %v1394
    %v1591 = vadd.f32 %v998, %v1441
    %v1592 = vadd.f32 %v1045, %v1488
    %v1593 = vadd.f32 %v1092, %v1535
    %v1594 = vadd.f32 %v860, %v1303
    %v1595 = vadd.f32 %v907, %v1350
    %v1596 = vadd.f32 %v954, %v1397
    %v1597 = vadd.f32 %v1001, %v1444
    %v1598 = vadd.f32 %v1048, %v1491
    %v1599 = vadd.f32 %v1095, %v1538
    %s1600 = scalar_lea.vmem %s1, 240
    %v1601 = vld [vmem:[%s1600] sm:$0xff]
    %v1602 = vld [vmem:[%s1600 + $0x8] sm:$0xff]
    %v1603 = vld [vmem:[%s1600 + $0x10] sm:$0xff]
    %v1604 = vld [vmem:[%s1600 + $0x18] sm:$0xff]
    %v1605 = vld [vmem:[%s1600 + $0x20] sm:$0xff]
    %v1606 = vld [vmem:[%s1600 + $0x28] sm:$0xff]
    %v1607 = vld [vmem:[%s1600 + $0x30] sm:$0xff]
    %v1608 = vld [vmem:[%s1600 + $0x38] sm:$0xff]
    %v1609 = vld [vmem:[%s1600 + $0x40] sm:$0xff]
    %v1610 = vld [vmem:[%s1600 + $0x48] sm:$0xff]
    %v1612 = vsel %vm220, %v1601, 0
    %v1615 = vsel %vm220, %v1602, 0
    %v1618 = vsel %vm220, %v1603, 0
    %v1621 = vsel %vm220, %v1604, 0
    %v1624 = vsel %vm220, %v1605, 0
    %v1627 = vsel %vm220, %v1606, 0
    %v1630 = vsel %vm220, %v1607, 0
    %v1633 = vsel %vm220, %v1608, 0
    %v1636 = vsel %vm220, %v1609, 0
    %v1639 = vsel %vm220, %v1610, 0
    %1641 = vmatpush.msra.mxu0 0.0
    %1642 = vmatpush.msra.mxu0 0.0
    %1643 = vmatpush.msra.mxu0 0.0
    %1644 = vmatpush.msra.mxu0 0.0
    %1645 = vmatpush.msra.mxu0 0.0
    %1646 = vmatpush.msra.mxu0 0.0
    %1647 = vmatpush.msra.mxu0 0.0
    %1648 = vmatpush.msra.mxu0 0.0
    %1649 = vmatpush.msra.mxu0 0.0
    %1650 = vmatpush.msra.mxu0 %v209
    %1651 = vmatpush.msra.mxu0 %v208
    %1652 = vmatpush.msra.mxu0 %v207
    %1653 = vmatpush.msra.mxu0 %v206
    %1654 = vmatpush.msra.mxu0 %v205
    %1655 = vmatpush.msra.mxu0 %v204
    %1656 = vmatpush.msra.mxu0 %v203
    %1657 = vmatmul.f32.gmra.mxu0 %v1612
    %v1658 = vpop.f32.mrf.mxu0
    %v1659 = vadd.f32 0.0, %v1658
    %1660 = vmatmul.f32.gmra.mxu0 %v1615
    %v1661 = vpop.f32.mrf.mxu0
    %v1662 = vadd.f32 0.0, %v1661
    %1663 = vmatmul.f32.gmra.mxu0 %v1618
    %v1664 = vpop.f32.mrf.mxu0
    %v1665 = vadd.f32 0.0, %v1664
    %1666 = vmatmul.f32.gmra.mxu0 %v1621
    %v1667 = vpop.f32.mrf.mxu0
    %v1668 = vadd.f32 0.0, %v1667
    %1669 = vmatmul.f32.gmra.mxu0 %v1624
    %v1670 = vpop.f32.mrf.mxu0
    %v1671 = vadd.f32 0.0, %v1670
    %1672 = vmatmul.f32.gmra.mxu0 %v1627
    %v1673 = vpop.f32.mrf.mxu0
    %v1674 = vadd.f32 0.0, %v1673
    %1675 = vmatmul.f32.gmra.mxu0 %v1630
    %v1676 = vpop.f32.mrf.mxu0
    %v1677 = vadd.f32 0.0, %v1676
    %1678 = vmatmul.f32.gmra.mxu0 %v1633
    %v1679 = vpop.f32.mrf.mxu0
    %v1680 = vadd.f32 0.0, %v1679
    %1681 = vmatmul.f32.gmra.mxu0 %v1636
    %v1682 = vpop.f32.mrf.mxu0
    %v1683 = vadd.f32 0.0, %v1682
    %1684 = vmatmul.f32.gmra.mxu0 %v1639
    %v1685 = vpop.f32.mrf.mxu0
    %v1686 = vadd.f32 0.0, %v1685
    %1687 = vdwg.mxu0
    %s1688 = scalar_lea.vmem [#allocation7], 576
    %v1689 = vld [vmem:[%s1688] sm:$0xff]
    %v1690 = vld [vmem:[%s1688 + $0x8] sm:$0xff]
    %v1691 = vld [vmem:[%s1688 + $0x10] sm:$0xff]
    %v1692 = vld [vmem:[%s1688 + $0x18] sm:$0xff]
    %v1693 = vld [vmem:[%s1688 + $0x20] sm:$0xff]
    %v1694 = vld [vmem:[%s1688 + $0x28] sm:$0xff]
    %v1695 = vld [vmem:[%s1688 + $0x30] sm:$0xff]
    %v1696 = vld [vmem:[%s1688 + $0x38] sm:$0xff]
    %v1697 = vld [vmem:[%s1688 + $0x40] sm:$0xff]
    %v1698 = vld [vmem:[%s1688 + $0x48] sm:$0xff]
    %v1699 = vld [vmem:[%s1688 + $0x50] sm:$0xff]
    %v1700 = vld [vmem:[%s1688 + $0x58] sm:$0xff]
    %v1701 = vld [vmem:[%s1688 + $0x60] sm:$0xff]
    %v1702 = vld [vmem:[%s1688 + $0x68] sm:$0xff]
    %v1703 = vld [vmem:[%s1688 + $0x70] sm:$0xff]
    %v1704 = vld [vmem:[%s1688 + $0x78] sm:$0xff]
    %v1705 = vld [vmem:[%s1688 + $0x80] sm:$0xff]
    %v1706 = vld [vmem:[%s1688 + $0x88] sm:$0xff]
    %v1707 = vld [vmem:[%s1688 + $0x90] sm:$0xf]
    %v1708 = vld [vmem:[%s1688 + $0x98] sm:$0xf]
    %v1709 = vld [vmem:[%s1688 + $0xa0] sm:$0xf]
    %v1710 = vld [vmem:[%s1688 + $0xa8] sm:$0xf]
    %v1711 = vld [vmem:[%s1688 + $0xb0] sm:$0xf]
    %v1712 = vld [vmem:[%s1688 + $0xb8] sm:$0xf]
    %v1714 = vsel %vm435, %v1659, 0
    %v1717 = vsel %vm435, %v1662, 0
    %v1720 = vsel %vm435, %v1665, 0
    %v1723 = vsel %vm435, %v1668, 0
    %v1726 = vsel %vm435, %v1671, 0
    %v1729 = vsel %vm435, %v1674, 0
    %v1732 = vsel %vm435, %v1677, 0
    %v1735 = vsel %vm435, %v1680, 0
    %v1738 = vsel %vm435, %v1683, 0
    %v1741 = vsel %vm435, %v1686, 0
    %v1744 = vsel %vm466, %v1707, 0
    %v1747 = vsel %vm466, %v1708, 0
    %v1750 = vsel %vm466, %v1709, 0
    %v1753 = vsel %vm466, %v1710, 0
    %v1756 = vsel %vm466, %v1711, 0
    %v1759 = vsel %vm466, %v1712, 0
    %1761 = vmatpush.msra.mxu0 0.0
    %1762 = vmatpush.msra.mxu0 0.0
    %1763 = vmatpush.msra.mxu0 0.0
    %1764 = vmatpush.msra.mxu0 0.0
    %1765 = vmatpush.msra.mxu0 0.0
    %1766 = vmatpush.msra.mxu0 0.0
    %1767 = vmatpush.msra.mxu0 0.0
    %1768 = vmatpush.msra.mxu0 0.0
    %1769 = vmatpush.msra.mxu0 0.0
    %1770 = vmatpush.msra.mxu0 0.0
    %1771 = vmatpush.msra.mxu0 0.0
    %1772 = vmatpush.msra.mxu0 0.0
    %1773 = vmatpush.msra.mxu0 %v1744
    %1774 = vmatpush.msra.mxu0 %v1701
    %1775 = vmatpush.msra.mxu0 %v1695
    %1776 = vmatpush.msra.mxu0 %v1689
    %1777 = vmatmul.f32.gmra.mxu0 %v1714
    %v1778 = vpop.f32.mrf.mxu0
    %v1779 = vadd.f32 0.0, %v1778
    %1780 = vmatmul.f32.gmra.mxu0 %v1717
    %v1781 = vpop.f32.mrf.mxu0
    %v1782 = vadd.f32 0.0, %v1781
    %1783 = vmatmul.f32.gmra.mxu0 %v1720
    %v1784 = vpop.f32.mrf.mxu0
    %v1785 = vadd.f32 0.0, %v1784
    %1786 = vmatmul.f32.gmra.mxu0 %v1723
    %v1787 = vpop.f32.mrf.mxu0
    %v1788 = vadd.f32 0.0, %v1787
    %1789 = vmatmul.f32.gmra.mxu0 %v1726
    %v1790 = vpop.f32.mrf.mxu0
    %v1791 = vadd.f32 0.0, %v1790
    %1792 = vmatmul.f32.gmra.mxu0 %v1729
    %v1793 = vpop.f32.mrf.mxu0
    %v1794 = vadd.f32 0.0, %v1793
    %1795 = vmatmul.f32.gmra.mxu0 %v1732
    %v1796 = vpop.f32.mrf.mxu0
    %v1797 = vadd.f32 0.0, %v1796
    %1798 = vmatmul.f32.gmra.mxu0 %v1735
    %v1799 = vpop.f32.mrf.mxu0
    %v1800 = vadd.f32 0.0, %v1799
    %1801 = vmatmul.f32.gmra.mxu0 %v1738
    %v1802 = vpop.f32.mrf.mxu0
    %v1803 = vadd.f32 0.0, %v1802
    %1804 = vmatmul.f32.gmra.mxu0 %v1741
    %v1805 = vpop.f32.mrf.mxu0
    %v1806 = vadd.f32 0.0, %v1805
    %1807 = vdwg.mxu0
    %1808 = vmatpush.msra.mxu0 0.0
    %1809 = vmatpush.msra.mxu0 0.0
    %1810 = vmatpush.msra.mxu0 0.0
    %1811 = vmatpush.msra.mxu0 0.0
    %1812 = vmatpush.msra.mxu0 0.0
    %1813 = vmatpush.msra.mxu0 0.0
    %1814 = vmatpush.msra.mxu0 0.0
    %1815 = vmatpush.msra.mxu0 0.0
    %1816 = vmatpush.msra.mxu0 0.0
    %1817 = vmatpush.msra.mxu0 0.0
    %1818 = vmatpush.msra.mxu0 0.0
    %1819 = vmatpush.msra.mxu0 0.0
    %1820 = vmatpush.msra.mxu0 %v1747
    %1821 = vmatpush.msra.mxu0 %v1702
    %1822 = vmatpush.msra.mxu0 %v1696
    %1823 = vmatpush.msra.mxu0 %v1690
    %1824 = vmatmul.f32.gmra.mxu0 %v1714
    %v1825 = vpop.f32.mrf.mxu0
    %v1826 = vadd.f32 0.0, %v1825
    %1827 = vmatmul.f32.gmra.mxu0 %v1717
    %v1828 = vpop.f32.mrf.mxu0
    %v1829 = vadd.f32 0.0, %v1828
    %1830 = vmatmul.f32.gmra.mxu0 %v1720
    %v1831 = vpop.f32.mrf.mxu0
    %v1832 = vadd.f32 0.0, %v1831
    %1833 = vmatmul.f32.gmra.mxu0 %v1723
    %v1834 = vpop.f32.mrf.mxu0
    %v1835 = vadd.f32 0.0, %v1834
    %1836 = vmatmul.f32.gmra.mxu0 %v1726
    %v1837 = vpop.f32.mrf.mxu0
    %v1838 = vadd.f32 0.0, %v1837
    %1839 = vmatmul.f32.gmra.mxu0 %v1729
    %v1840 = vpop.f32.mrf.mxu0
    %v1841 = vadd.f32 0.0, %v1840
    %1842 = vmatmul.f32.gmra.mxu0 %v1732
    %v1843 = vpop.f32.mrf.mxu0
    %v1844 = vadd.f32 0.0, %v1843
    %1845 = vmatmul.f32.gmra.mxu0 %v1735
    %v1846 = vpop.f32.mrf.mxu0
    %v1847 = vadd.f32 0.0, %v1846
    %1848 = vmatmul.f32.gmra.mxu0 %v1738
    %v1849 = vpop.f32.mrf.mxu0
    %v1850 = vadd.f32 0.0, %v1849
    %1851 = vmatmul.f32.gmra.mxu0 %v1741
    %v1852 = vpop.f32.mrf.mxu0
    %v1853 = vadd.f32 0.0, %v1852
    %1854 = vdwg.mxu0
    %1855 = vmatpush.msra.mxu0 0.0
    %1856 = vmatpush.msra.mxu0 0.0
    %1857 = vmatpush.msra.mxu0 0.0
    %1858 = vmatpush.msra.mxu0 0.0
    %1859 = vmatpush.msra.mxu0 0.0
    %1860 = vmatpush.msra.mxu0 0.0
    %1861 = vmatpush.msra.mxu0 0.0
    %1862 = vmatpush.msra.mxu0 0.0
    %1863 = vmatpush.msra.mxu0 0.0
    %1864 = vmatpush.msra.mxu0 0.0
    %1865 = vmatpush.msra.mxu0 0.0
    %1866 = vmatpush.msra.mxu0 0.0
    %1867 = vmatpush.msra.mxu0 %v1750
    %1868 = vmatpush.msra.mxu0 %v1703
    %1869 = vmatpush.msra.mxu0 %v1697
    %1870 = vmatpush.msra.mxu0 %v1691
    %1871 = vmatmul.f32.gmra.mxu0 %v1714
    %v1872 = vpop.f32.mrf.mxu0
    %v1873 = vadd.f32 0.0, %v1872
    %1874 = vmatmul.f32.gmra.mxu0 %v1717
    %v1875 = vpop.f32.mrf.mxu0
    %v1876 = vadd.f32 0.0, %v1875
    %1877 = vmatmul.f32.gmra.mxu0 %v1720
    %v1878 = vpop.f32.mrf.mxu0
    %v1879 = vadd.f32 0.0, %v1878
    %1880 = vmatmul.f32.gmra.mxu0 %v1723
    %v1881 = vpop.f32.mrf.mxu0
    %v1882 = vadd.f32 0.0, %v1881
    %1883 = vmatmul.f32.gmra.mxu0 %v1726
    %v1884 = vpop.f32.mrf.mxu0
    %v1885 = vadd.f32 0.0, %v1884
    %1886 = vmatmul.f32.gmra.mxu0 %v1729
    %v1887 = vpop.f32.mrf.mxu0
    %v1888 = vadd.f32 0.0, %v1887
    %1889 = vmatmul.f32.gmra.mxu0 %v1732
    %v1890 = vpop.f32.mrf.mxu0
    %v1891 = vadd.f32 0.0, %v1890
    %1892 = vmatmul.f32.gmra.mxu0 %v1735
    %v1893 = vpop.f32.mrf.mxu0
    %v1894 = vadd.f32 0.0, %v1893
    %1895 = vmatmul.f32.gmra.mxu0 %v1738
    %v1896 = vpop.f32.mrf.mxu0
    %v1897 = vadd.f32 0.0, %v1896
    %1898 = vmatmul.f32.gmra.mxu0 %v1741
    %v1899 = vpop.f32.mrf.mxu0
    %v1900 = vadd.f32 0.0, %v1899
    %1901 = vdwg.mxu0
    %1902 = vmatpush.msra.mxu0 0.0
    %1903 = vmatpush.msra.mxu0 0.0
    %1904 = vmatpush.msra.mxu0 0.0
    %1905 = vmatpush.msra.mxu0 0.0
    %1906 = vmatpush.msra.mxu0 0.0
    %1907 = vmatpush.msra.mxu0 0.0
    %1908 = vmatpush.msra.mxu0 0.0
    %1909 = vmatpush.msra.mxu0 0.0
    %1910 = vmatpush.msra.mxu0 0.0
    %1911 = vmatpush.msra.mxu0 0.0
    %1912 = vmatpush.msra.mxu0 0.0
    %1913 = vmatpush.msra.mxu0 0.0
    %1914 = vmatpush.msra.mxu0 %v1753
    %1915 = vmatpush.msra.mxu0 %v1704
    %1916 = vmatpush.msra.mxu0 %v1698
    %1917 = vmatpush.msra.mxu0 %v1692
    %1918 = vmatmul.f32.gmra.mxu0 %v1714
    %v1919 = vpop.f32.mrf.mxu0
    %v1920 = vadd.f32 0.0, %v1919
    %1921 = vmatmul.f32.gmra.mxu0 %v1717
    %v1922 = vpop.f32.mrf.mxu0
    %v1923 = vadd.f32 0.0, %v1922
    %1924 = vmatmul.f32.gmra.mxu0 %v1720
    %v1925 = vpop.f32.mrf.mxu0
    %v1926 = vadd.f32 0.0, %v1925
    %1927 = vmatmul.f32.gmra.mxu0 %v1723
    %v1928 = vpop.f32.mrf.mxu0
    %v1929 = vadd.f32 0.0, %v1928
    %1930 = vmatmul.f32.gmra.mxu0 %v1726
    %v1931 = vpop.f32.mrf.mxu0
    %v1932 = vadd.f32 0.0, %v1931
    %1933 = vmatmul.f32.gmra.mxu0 %v1729
    %v1934 = vpop.f32.mrf.mxu0
    %v1935 = vadd.f32 0.0, %v1934
    %1936 = vmatmul.f32.gmra.mxu0 %v1732
    %v1937 = vpop.f32.mrf.mxu0
    %v1938 = vadd.f32 0.0, %v1937
    %1939 = vmatmul.f32.gmra.mxu0 %v1735
    %v1940 = vpop.f32.mrf.mxu0
    %v1941 = vadd.f32 0.0, %v1940
    %1942 = vmatmul.f32.gmra.mxu0 %v1738
    %v1943 = vpop.f32.mrf.mxu0
    %v1944 = vadd.f32 0.0, %v1943
    %1945 = vmatmul.f32.gmra.mxu0 %v1741
    %v1946 = vpop.f32.mrf.mxu0
    %v1947 = vadd.f32 0.0, %v1946
    %1948 = vdwg.mxu0
    %1949 = vmatpush.msra.mxu0 0.0
    %1950 = vmatpush.msra.mxu0 0.0
    %1951 = vmatpush.msra.mxu0 0.0
    %1952 = vmatpush.msra.mxu0 0.0
    %1953 = vmatpush.msra.mxu0 0.0
    %1954 = vmatpush.msra.mxu0 0.0
    %1955 = vmatpush.msra.mxu0 0.0
    %1956 = vmatpush.msra.mxu0 0.0
    %1957 = vmatpush.msra.mxu0 0.0
    %1958 = vmatpush.msra.mxu0 0.0
    %1959 = vmatpush.msra.mxu0 0.0
    %1960 = vmatpush.msra.mxu0 0.0
    %1961 = vmatpush.msra.mxu0 %v1756
    %1962 = vmatpush.msra.mxu0 %v1705
    %1963 = vmatpush.msra.mxu0 %v1699
    %1964 = vmatpush.msra.mxu0 %v1693
    %1965 = vmatmul.f32.gmra.mxu0 %v1714
    %v1966 = vpop.f32.mrf.mxu0
    %v1967 = vadd.f32 0.0, %v1966
    %1968 = vmatmul.f32.gmra.mxu0 %v1717
    %v1969 = vpop.f32.mrf.mxu0
    %v1970 = vadd.f32 0.0, %v1969
    %1971 = vmatmul.f32.gmra.mxu0 %v1720
    %v1972 = vpop.f32.mrf.mxu0
    %v1973 = vadd.f32 0.0, %v1972
    %1974 = vmatmul.f32.gmra.mxu0 %v1723
    %v1975 = vpop.f32.mrf.mxu0
    %v1976 = vadd.f32 0.0, %v1975
    %1977 = vmatmul.f32.gmra.mxu0 %v1726
    %v1978 = vpop.f32.mrf.mxu0
    %v1979 = vadd.f32 0.0, %v1978
    %1980 = vmatmul.f32.gmra.mxu0 %v1729
    %v1981 = vpop.f32.mrf.mxu0
    %v1982 = vadd.f32 0.0, %v1981
    %1983 = vmatmul.f32.gmra.mxu0 %v1732
    %v1984 = vpop.f32.mrf.mxu0
    %v1985 = vadd.f32 0.0, %v1984
    %1986 = vmatmul.f32.gmra.mxu0 %v1735
    %v1987 = vpop.f32.mrf.mxu0
    %v1988 = vadd.f32 0.0, %v1987
    %1989 = vmatmul.f32.gmra.mxu0 %v1738
    %v1990 = vpop.f32.mrf.mxu0
    %v1991 = vadd.f32 0.0, %v1990
    %1992 = vmatmul.f32.gmra.mxu0 %v1741
    %v1993 = vpop.f32.mrf.mxu0
    %v1994 = vadd.f32 0.0, %v1993
    %1995 = vdwg.mxu0
    %1996 = vmatpush.msra.mxu0 0.0
    %1997 = vmatpush.msra.mxu0 0.0
    %1998 = vmatpush.msra.mxu0 0.0
    %1999 = vmatpush.msra.mxu0 0.0
    %2000 = vmatpush.msra.mxu0 0.0
    %2001 = vmatpush.msra.mxu0 0.0
    %2002 = vmatpush.msra.mxu0 0.0
    %2003 = vmatpush.msra.mxu0 0.0
    %2004 = vmatpush.msra.mxu0 0.0
    %2005 = vmatpush.msra.mxu0 0.0
    %2006 = vmatpush.msra.mxu0 0.0
    %2007 = vmatpush.msra.mxu0 0.0
    %2008 = vmatpush.msra.mxu0 %v1759
    %2009 = vmatpush.msra.mxu0 %v1706
    %2010 = vmatpush.msra.mxu0 %v1700
    %2011 = vmatpush.msra.mxu0 %v1694
    %2012 = vmatmul.f32.gmra.mxu0 %v1714
    %v2013 = vpop.f32.mrf.mxu0
    %v2014 = vadd.f32 0.0, %v2013
    %2015 = vmatmul.f32.gmra.mxu0 %v1717
    %v2016 = vpop.f32.mrf.mxu0
    %v2017 = vadd.f32 0.0, %v2016
    %2018 = vmatmul.f32.gmra.mxu0 %v1720
    %v2019 = vpop.f32.mrf.mxu0
    %v2020 = vadd.f32 0.0, %v2019
    %2021 = vmatmul.f32.gmra.mxu0 %v1723
    %v2022 = vpop.f32.mrf.mxu0
    %v2023 = vadd.f32 0.0, %v2022
    %2024 = vmatmul.f32.gmra.mxu0 %v1726
    %v2025 = vpop.f32.mrf.mxu0
    %v2026 = vadd.f32 0.0, %v2025
    %2027 = vmatmul.f32.gmra.mxu0 %v1729
    %v2028 = vpop.f32.mrf.mxu0
    %v2029 = vadd.f32 0.0, %v2028
    %2030 = vmatmul.f32.gmra.mxu0 %v1732
    %v2031 = vpop.f32.mrf.mxu0
    %v2032 = vadd.f32 0.0, %v2031
    %2033 = vmatmul.f32.gmra.mxu0 %v1735
    %v2034 = vpop.f32.mrf.mxu0
    %v2035 = vadd.f32 0.0, %v2034
    %2036 = vmatmul.f32.gmra.mxu0 %v1738
    %v2037 = vpop.f32.mrf.mxu0
    %v2038 = vadd.f32 0.0, %v2037
    %2039 = vmatmul.f32.gmra.mxu0 %v1741
    %v2040 = vpop.f32.mrf.mxu0
    %v2041 = vadd.f32 0.0, %v2040
    %2042 = vdwg.mxu0
    %v2043 = vadd.f32 %v1540, %v1779
    %v2044 = vadd.f32 %v1541, %v1826
    %v2045 = vadd.f32 %v1542, %v1873
    %v2046 = vadd.f32 %v1543, %v1920
    %v2047 = vadd.f32 %v1544, %v1967
    %v2048 = vadd.f32 %v1545, %v2014
    %v2049 = vadd.f32 %v1546, %v1782
    %v2050 = vadd.f32 %v1547, %v1829
    %v2051 = vadd.f32 %v1548, %v1876
    %v2052 = vadd.f32 %v1549, %v1923
    %v2053 = vadd.f32 %v1550, %v1970
    %v2054 = vadd.f32 %v1551, %v2017
    %v2055 = vadd.f32 %v1552, %v1785
    %v2056 = vadd.f32 %v1553, %v1832
    %v2057 = vadd.f32 %v1554, %v1879
    %v2058 = vadd.f32 %v1555, %v1926
    %v2059 = vadd.f32 %v1556, %v1973
    %v2060 = vadd.f32 %v1557, %v2020
    %v2061 = vadd.f32 %v1558, %v1788
    %v2062 = vadd.f32 %v1559, %v1835
    %v2063 = vadd.f32 %v1560, %v1882
    %v2064 = vadd.f32 %v1561, %v1929
    %v2065 = vadd.f32 %v1562, %v1976
    %v2066 = vadd.f32 %v1563, %v2023
    %v2067 = vadd.f32 %v1564, %v1791
    %v2068 = vadd.f32 %v1565, %v1838
    %v2069 = vadd.f32 %v1566, %v1885
    %v2070 = vadd.f32 %v1567, %v1932
    %v2071 = vadd.f32 %v1568, %v1979
    %v2072 = vadd.f32 %v1569, %v2026
    %v2073 = vadd.f32 %v1570, %v1794
    %v2074 = vadd.f32 %v1571, %v1841
    %v2075 = vadd.f32 %v1572, %v1888
    %v2076 = vadd.f32 %v1573, %v1935
    %v2077 = vadd.f32 %v1574, %v1982
    %v2078 = vadd.f32 %v1575, %v2029
    %v2079 = vadd.f32 %v1576, %v1797
    %v2080 = vadd.f32 %v1577, %v1844
    %v2081 = vadd.f32 %v1578, %v1891
    %v2082 = vadd.f32 %v1579, %v1938
    %v2083 = vadd.f32 %v1580, %v1985
    %v2084 = vadd.f32 %v1581, %v2032
    %v2085 = vadd.f32 %v1582, %v1800
    %v2086 = vadd.f32 %v1583, %v1847
    %v2087 = vadd.f32 %v1584, %v1894
    %v2088 = vadd.f32 %v1585, %v1941
    %v2089 = vadd.f32 %v1586, %v1988
    %v2090 = vadd.f32 %v1587, %v2035
    %v2091 = vadd.f32 %v1588, %v1803
    %v2092 = vadd.f32 %v1589, %v1850
    %v2093 = vadd.f32 %v1590, %v1897
    %v2094 = vadd.f32 %v1591, %v1944
    %v2095 = vadd.f32 %v1592, %v1991
    %v2096 = vadd.f32 %v1593, %v2038
    %v2097 = vadd.f32 %v1594, %v1806
    %v2098 = vadd.f32 %v1595, %v1853
    %v2099 = vadd.f32 %v1596, %v1900
    %v2100 = vadd.f32 %v1597, %v1947
    %v2101 = vadd.f32 %v1598, %v1994
    %v2102 = vadd.f32 %v1599, %v2041
    %s2103 = scalar_lea.vmem %s1, 320
    %v2104 = vld [vmem:[%s2103] sm:$0xff]
    %v2105 = vld [vmem:[%s2103 + $0x8] sm:$0xff]
    %v2106 = vld [vmem:[%s2103 + $0x10] sm:$0xff]
    %v2107 = vld [vmem:[%s2103 + $0x18] sm:$0xff]
    %v2108 = vld [vmem:[%s2103 + $0x20] sm:$0xff]
    %v2109 = vld [vmem:[%s2103 + $0x28] sm:$0xff]
    %v2110 = vld [vmem:[%s2103 + $0x30] sm:$0xff]
    %v2111 = vld [vmem:[%s2103 + $0x38] sm:$0xff]
    %v2112 = vld [vmem:[%s2103 + $0x40] sm:$0xff]
    %v2113 = vld [vmem:[%s2103 + $0x48] sm:$0xff]
    %v2115 = vsel %vm220, %v2104, 0
    %v2118 = vsel %vm220, %v2105, 0
    %v2121 = vsel %vm220, %v2106, 0
    %v2124 = vsel %vm220, %v2107, 0
    %v2127 = vsel %vm220, %v2108, 0
    %v2130 = vsel %vm220, %v2109, 0
    %v2133 = vsel %vm220, %v2110, 0
    %v2136 = vsel %vm220, %v2111, 0
    %v2139 = vsel %vm220, %v2112, 0
    %v2142 = vsel %vm220, %v2113, 0
    %2144 = vmatpush.msra.mxu0 0.0
    %2145 = vmatpush.msra.mxu0 0.0
    %2146 = vmatpush.msra.mxu0 0.0
    %2147 = vmatpush.msra.mxu0 0.0
    %2148 = vmatpush.msra.mxu0 0.0
    %2149 = vmatpush.msra.mxu0 0.0
    %2150 = vmatpush.msra.mxu0 0.0
    %2151 = vmatpush.msra.mxu0 0.0
    %2152 = vmatpush.msra.mxu0 0.0
    %2153 = vmatpush.msra.mxu0 %v209
    %2154 = vmatpush.msra.mxu0 %v208
    %2155 = vmatpush.msra.mxu0 %v207
    %2156 = vmatpush.msra.mxu0 %v206
    %2157 = vmatpush.msra.mxu0 %v205
    %2158 = vmatpush.msra.mxu0 %v204
    %2159 = vmatpush.msra.mxu0 %v203
    %2160 = vmatmul.f32.gmra.mxu0 %v2115
    %v2161 = vpop.f32.mrf.mxu0
    %v2162 = vadd.f32 0.0, %v2161
    %2163 = vmatmul.f32.gmra.mxu0 %v2118
    %v2164 = vpop.f32.mrf.mxu0
    %v2165 = vadd.f32 0.0, %v2164
    %2166 = vmatmul.f32.gmra.mxu0 %v2121
    %v2167 = vpop.f32.mrf.mxu0
    %v2168 = vadd.f32 0.0, %v2167
    %2169 = vmatmul.f32.gmra.mxu0 %v2124
    %v2170 = vpop.f32.mrf.mxu0
    %v2171 = vadd.f32 0.0, %v2170
    %2172 = vmatmul.f32.gmra.mxu0 %v2127
    %v2173 = vpop.f32.mrf.mxu0
    %v2174 = vadd.f32 0.0, %v2173
    %2175 = vmatmul.f32.gmra.mxu0 %v2130
    %v2176 = vpop.f32.mrf.mxu0
    %v2177 = vadd.f32 0.0, %v2176
    %2178 = vmatmul.f32.gmra.mxu0 %v2133
    %v2179 = vpop.f32.mrf.mxu0
    %v2180 = vadd.f32 0.0, %v2179
    %2181 = vmatmul.f32.gmra.mxu0 %v2136
    %v2182 = vpop.f32.mrf.mxu0
    %v2183 = vadd.f32 0.0, %v2182
    %2184 = vmatmul.f32.gmra.mxu0 %v2139
    %v2185 = vpop.f32.mrf.mxu0
    %v2186 = vadd.f32 0.0, %v2185
    %2187 = vmatmul.f32.gmra.mxu0 %v2142
    %v2188 = vpop.f32.mrf.mxu0
    %v2189 = vadd.f32 0.0, %v2188
    %2190 = vdwg.mxu0
    %s2191 = scalar_lea.vmem [#allocation7], 768
    %v2192 = vld [vmem:[%s2191] sm:$0xff]
    %v2193 = vld [vmem:[%s2191 + $0x8] sm:$0xff]
    %v2194 = vld [vmem:[%s2191 + $0x10] sm:$0xff]
    %v2195 = vld [vmem:[%s2191 + $0x18] sm:$0xff]
    %v2196 = vld [vmem:[%s2191 + $0x20] sm:$0xff]
    %v2197 = vld [vmem:[%s2191 + $0x28] sm:$0xff]
    %v2198 = vld [vmem:[%s2191 + $0x30] sm:$0xff]
    %v2199 = vld [vmem:[%s2191 + $0x38] sm:$0xff]
    %v2200 = vld [vmem:[%s2191 + $0x40] sm:$0xff]
    %v2201 = vld [vmem:[%s2191 + $0x48] sm:$0xff]
    %v2202 = vld [vmem:[%s2191 + $0x50] sm:$0xff]
    %v2203 = vld [vmem:[%s2191 + $0x58] sm:$0xff]
    %v2204 = vld [vmem:[%s2191 + $0x60] sm:$0xff]
    %v2205 = vld [vmem:[%s2191 + $0x68] sm:$0xff]
    %v2206 = vld [vmem:[%s2191 + $0x70] sm:$0xff]
    %v2207 = vld [vmem:[%s2191 + $0x78] sm:$0xff]
    %v2208 = vld [vmem:[%s2191 + $0x80] sm:$0xff]
    %v2209 = vld [vmem:[%s2191 + $0x88] sm:$0xff]
    %v2210 = vld [vmem:[%s2191 + $0x90] sm:$0xf]
    %v2211 = vld [vmem:[%s2191 + $0x98] sm:$0xf]
    %v2212 = vld [vmem:[%s2191 + $0xa0] sm:$0xf]
    %v2213 = vld [vmem:[%s2191 + $0xa8] sm:$0xf]
    %v2214 = vld [vmem:[%s2191 + $0xb0] sm:$0xf]
    %v2215 = vld [vmem:[%s2191 + $0xb8] sm:$0xf]
    %v2217 = vsel %vm435, %v2162, 0
    %v2220 = vsel %vm435, %v2165, 0
    %v2223 = vsel %vm435, %v2168, 0
    %v2226 = vsel %vm435, %v2171, 0
    %v2229 = vsel %vm435, %v2174, 0
    %v2232 = vsel %vm435, %v2177, 0
    %v2235 = vsel %vm435, %v2180, 0
    %v2238 = vsel %vm435, %v2183, 0
    %v2241 = vsel %vm435, %v2186, 0
    %v2244 = vsel %vm435, %v2189, 0
    %v2247 = vsel %vm466, %v2210, 0
    %v2250 = vsel %vm466, %v2211, 0
    %v2253 = vsel %vm466, %v2212, 0
    %v2256 = vsel %vm466, %v2213, 0
    %v2259 = vsel %vm466, %v2214, 0
    %v2262 = vsel %vm466, %v2215, 0
    %2264 = vmatpush.msra.mxu0 0.0
    %2265 = vmatpush.msra.mxu0 0.0
    %2266 = vmatpush.msra.mxu0 0.0
    %2267 = vmatpush.msra.mxu0 0.0
    %2268 = vmatpush.msra.mxu0 0.0
    %2269 = vmatpush.msra.mxu0 0.0
    %2270 = vmatpush.msra.mxu0 0.0
    %2271 = vmatpush.msra.mxu0 0.0
    %2272 = vmatpush.msra.mxu0 0.0
    %2273 = vmatpush.msra.mxu0 0.0
    %2274 = vmatpush.msra.mxu0 0.0
    %2275 = vmatpush.msra.mxu0 0.0
    %2276 = vmatpush.msra.mxu0 %v2247
    %2277 = vmatpush.msra.mxu0 %v2204
    %2278 = vmatpush.msra.mxu0 %v2198
    %2279 = vmatpush.msra.mxu0 %v2192
    %2280 = vmatmul.f32.gmra.mxu0 %v2217
    %v2281 = vpop.f32.mrf.mxu0
    %v2282 = vadd.f32 0.0, %v2281
    %2283 = vmatmul.f32.gmra.mxu0 %v2220
    %v2284 = vpop.f32.mrf.mxu0
    %v2285 = vadd.f32 0.0, %v2284
    %2286 = vmatmul.f32.gmra.mxu0 %v2223
    %v2287 = vpop.f32.mrf.mxu0
    %v2288 = vadd.f32 0.0, %v2287
    %2289 = vmatmul.f32.gmra.mxu0 %v2226
    %v2290 = vpop.f32.mrf.mxu0
    %v2291 = vadd.f32 0.0, %v2290
    %2292 = vmatmul.f32.gmra.mxu0 %v2229
    %v2293 = vpop.f32.mrf.mxu0
    %v2294 = vadd.f32 0.0, %v2293
    %2295 = vmatmul.f32.gmra.mxu0 %v2232
    %v2296 = vpop.f32.mrf.mxu0
    %v2297 = vadd.f32 0.0, %v2296
    %2298 = vmatmul.f32.gmra.mxu0 %v2235
    %v2299 = vpop.f32.mrf.mxu0
    %v2300 = vadd.f32 0.0, %v2299
    %2301 = vmatmul.f32.gmra.mxu0 %v2238
    %v2302 = vpop.f32.mrf.mxu0
    %v2303 = vadd.f32 0.0, %v2302
    %2304 = vmatmul.f32.gmra.mxu0 %v2241
    %v2305 = vpop.f32.mrf.mxu0
    %v2306 = vadd.f32 0.0, %v2305
    %2307 = vmatmul.f32.gmra.mxu0 %v2244
    %v2308 = vpop.f32.mrf.mxu0
    %v2309 = vadd.f32 0.0, %v2308
    %2310 = vdwg.mxu0
    %2311 = vmatpush.msra.mxu0 0.0
    %2312 = vmatpush.msra.mxu0 0.0
    %2313 = vmatpush.msra.mxu0 0.0
    %2314 = vmatpush.msra.mxu0 0.0
    %2315 = vmatpush.msra.mxu0 0.0
    %2316 = vmatpush.msra.mxu0 0.0
    %2317 = vmatpush.msra.mxu0 0.0
    %2318 = vmatpush.msra.mxu0 0.0
    %2319 = vmatpush.msra.mxu0 0.0
    %2320 = vmatpush.msra.mxu0 0.0
    %2321 = vmatpush.msra.mxu0 0.0
    %2322 = vmatpush.msra.mxu0 0.0
    %2323 = vmatpush.msra.mxu0 %v2250
    %2324 = vmatpush.msra.mxu0 %v2205
    %2325 = vmatpush.msra.mxu0 %v2199
    %2326 = vmatpush.msra.mxu0 %v2193
    %2327 = vmatmul.f32.gmra.mxu0 %v2217
    %v2328 = vpop.f32.mrf.mxu0
    %v2329 = vadd.f32 0.0, %v2328
    %2330 = vmatmul.f32.gmra.mxu0 %v2220
    %v2331 = vpop.f32.mrf.mxu0
    %v2332 = vadd.f32 0.0, %v2331
    %2333 = vmatmul.f32.gmra.mxu0 %v2223
    %v2334 = vpop.f32.mrf.mxu0
    %v2335 = vadd.f32 0.0, %v2334
    %2336 = vmatmul.f32.gmra.mxu0 %v2226
    %v2337 = vpop.f32.mrf.mxu0
    %v2338 = vadd.f32 0.0, %v2337
    %2339 = vmatmul.f32.gmra.mxu0 %v2229
    %v2340 = vpop.f32.mrf.mxu0
    %v2341 = vadd.f32 0.0, %v2340
    %2342 = vmatmul.f32.gmra.mxu0 %v2232
    %v2343 = vpop.f32.mrf.mxu0
    %v2344 = vadd.f32 0.0, %v2343
    %2345 = vmatmul.f32.gmra.mxu0 %v2235
    %v2346 = vpop.f32.mrf.mxu0
    %v2347 = vadd.f32 0.0, %v2346
    %2348 = vmatmul.f32.gmra.mxu0 %v2238
    %v2349 = vpop.f32.mrf.mxu0
    %v2350 = vadd.f32 0.0, %v2349
    %2351 = vmatmul.f32.gmra.mxu0 %v2241
    %v2352 = vpop.f32.mrf.mxu0
    %v2353 = vadd.f32 0.0, %v2352
    %2354 = vmatmul.f32.gmra.mxu0 %v2244
    %v2355 = vpop.f32.mrf.mxu0
    %v2356 = vadd.f32 0.0, %v2355
    %2357 = vdwg.mxu0
    %2358 = vmatpush.msra.mxu0 0.0
    %2359 = vmatpush.msra.mxu0 0.0
    %2360 = vmatpush.msra.mxu0 0.0
    %2361 = vmatpush.msra.mxu0 0.0
    %2362 = vmatpush.msra.mxu0 0.0
    %2363 = vmatpush.msra.mxu0 0.0
    %2364 = vmatpush.msra.mxu0 0.0
    %2365 = vmatpush.msra.mxu0 0.0
    %2366 = vmatpush.msra.mxu0 0.0
    %2367 = vmatpush.msra.mxu0 0.0
    %2368 = vmatpush.msra.mxu0 0.0
    %2369 = vmatpush.msra.mxu0 0.0
    %2370 = vmatpush.msra.mxu0 %v2253
    %2371 = vmatpush.msra.mxu0 %v2206
    %2372 = vmatpush.msra.mxu0 %v2200
    %2373 = vmatpush.msra.mxu0 %v2194
    %2374 = vmatmul.f32.gmra.mxu0 %v2217
    %v2375 = vpop.f32.mrf.mxu0
    %v2376 = vadd.f32 0.0, %v2375
    %2377 = vmatmul.f32.gmra.mxu0 %v2220
    %v2378 = vpop.f32.mrf.mxu0
    %v2379 = vadd.f32 0.0, %v2378
    %2380 = vmatmul.f32.gmra.mxu0 %v2223
    %v2381 = vpop.f32.mrf.mxu0
    %v2382 = vadd.f32 0.0, %v2381
    %2383 = vmatmul.f32.gmra.mxu0 %v2226
    %v2384 = vpop.f32.mrf.mxu0
    %v2385 = vadd.f32 0.0, %v2384
    %2386 = vmatmul.f32.gmra.mxu0 %v2229
    %v2387 = vpop.f32.mrf.mxu0
    %v2388 = vadd.f32 0.0, %v2387
    %2389 = vmatmul.f32.gmra.mxu0 %v2232
    %v2390 = vpop.f32.mrf.mxu0
    %v2391 = vadd.f32 0.0, %v2390
    %2392 = vmatmul.f32.gmra.mxu0 %v2235
    %v2393 = vpop.f32.mrf.mxu0
    %v2394 = vadd.f32 0.0, %v2393
    %2395 = vmatmul.f32.gmra.mxu0 %v2238
    %v2396 = vpop.f32.mrf.mxu0
    %v2397 = vadd.f32 0.0, %v2396
    %2398 = vmatmul.f32.gmra.mxu0 %v2241
    %v2399 = vpop.f32.mrf.mxu0
    %v2400 = vadd.f32 0.0, %v2399
    %2401 = vmatmul.f32.gmra.mxu0 %v2244
    %v2402 = vpop.f32.mrf.mxu0
    %v2403 = vadd.f32 0.0, %v2402
    %2404 = vdwg.mxu0
    %2405 = vmatpush.msra.mxu0 0.0
    %2406 = vmatpush.msra.mxu0 0.0
    %2407 = vmatpush.msra.mxu0 0.0
    %2408 = vmatpush.msra.mxu0 0.0
    %2409 = vmatpush.msra.mxu0 0.0
    %2410 = vmatpush.msra.mxu0 0.0
    %2411 = vmatpush.msra.mxu0 0.0
    %2412 = vmatpush.msra.mxu0 0.0
    %2413 = vmatpush.msra.mxu0 0.0
    %2414 = vmatpush.msra.mxu0 0.0
    %2415 = vmatpush.msra.mxu0 0.0
    %2416 = vmatpush.msra.mxu0 0.0
    %2417 = vmatpush.msra.mxu0 %v2256
    %2418 = vmatpush.msra.mxu0 %v2207
    %2419 = vmatpush.msra.mxu0 %v2201
    %2420 = vmatpush.msra.mxu0 %v2195
    %2421 = vmatmul.f32.gmra.mxu0 %v2217
    %v2422 = vpop.f32.mrf.mxu0
    %v2423 = vadd.f32 0.0, %v2422
    %2424 = vmatmul.f32.gmra.mxu0 %v2220
    %v2425 = vpop.f32.mrf.mxu0
    %v2426 = vadd.f32 0.0, %v2425
    %2427 = vmatmul.f32.gmra.mxu0 %v2223
    %v2428 = vpop.f32.mrf.mxu0
    %v2429 = vadd.f32 0.0, %v2428
    %2430 = vmatmul.f32.gmra.mxu0 %v2226
    %v2431 = vpop.f32.mrf.mxu0
    %v2432 = vadd.f32 0.0, %v2431
    %2433 = vmatmul.f32.gmra.mxu0 %v2229
    %v2434 = vpop.f32.mrf.mxu0
    %v2435 = vadd.f32 0.0, %v2434
    %2436 = vmatmul.f32.gmra.mxu0 %v2232
    %v2437 = vpop.f32.mrf.mxu0
    %v2438 = vadd.f32 0.0, %v2437
    %2439 = vmatmul.f32.gmra.mxu0 %v2235
    %v2440 = vpop.f32.mrf.mxu0
    %v2441 = vadd.f32 0.0, %v2440
    %2442 = vmatmul.f32.gmra.mxu0 %v2238
    %v2443 = vpop.f32.mrf.mxu0
    %v2444 = vadd.f32 0.0, %v2443
    %2445 = vmatmul.f32.gmra.mxu0 %v2241
    %v2446 = vpop.f32.mrf.mxu0
    %v2447 = vadd.f32 0.0, %v2446
    %2448 = vmatmul.f32.gmra.mxu0 %v2244
    %v2449 = vpop.f32.mrf.mxu0
    %v2450 = vadd.f32 0.0, %v2449
    %2451 = vdwg.mxu0
    %2452 = vmatpush.msra.mxu0 0.0
    %2453 = vmatpush.msra.mxu0 0.0
    %2454 = vmatpush.msra.mxu0 0.0
    %2455 = vmatpush.msra.mxu0 0.0
    %2456 = vmatpush.msra.mxu0 0.0
    %2457 = vmatpush.msra.mxu0 0.0
    %2458 = vmatpush.msra.mxu0 0.0
    %2459 = vmatpush.msra.mxu0 0.0
    %2460 = vmatpush.msra.mxu0 0.0
    %2461 = vmatpush.msra.mxu0 0.0
    %2462 = vmatpush.msra.mxu0 0.0
    %2463 = vmatpush.msra.mxu0 0.0
    %2464 = vmatpush.msra.mxu0 %v2259
    %2465 = vmatpush.msra.mxu0 %v2208
    %2466 = vmatpush.msra.mxu0 %v2202
    %2467 = vmatpush.msra.mxu0 %v2196
    %2468 = vmatmul.f32.gmra.mxu0 %v2217
    %v2469 = vpop.f32.mrf.mxu0
    %v2470 = vadd.f32 0.0, %v2469
    %2471 = vmatmul.f32.gmra.mxu0 %v2220
    %v2472 = vpop.f32.mrf.mxu0
    %v2473 = vadd.f32 0.0, %v2472
    %2474 = vmatmul.f32.gmra.mxu0 %v2223
    %v2475 = vpop.f32.mrf.mxu0
    %v2476 = vadd.f32 0.0, %v2475
    %2477 = vmatmul.f32.gmra.mxu0 %v2226
    %v2478 = vpop.f32.mrf.mxu0
    %v2479 = vadd.f32 0.0, %v2478
    %2480 = vmatmul.f32.gmra.mxu0 %v2229
    %v2481 = vpop.f32.mrf.mxu0
    %v2482 = vadd.f32 0.0, %v2481
    %2483 = vmatmul.f32.gmra.mxu0 %v2232
    %v2484 = vpop.f32.mrf.mxu0
    %v2485 = vadd.f32 0.0, %v2484
    %2486 = vmatmul.f32.gmra.mxu0 %v2235
    %v2487 = vpop.f32.mrf.mxu0
    %v2488 = vadd.f32 0.0, %v2487
    %2489 = vmatmul.f32.gmra.mxu0 %v2238
    %v2490 = vpop.f32.mrf.mxu0
    %v2491 = vadd.f32 0.0, %v2490
    %2492 = vmatmul.f32.gmra.mxu0 %v2241
    %v2493 = vpop.f32.mrf.mxu0
    %v2494 = vadd.f32 0.0, %v2493
    %2495 = vmatmul.f32.gmra.mxu0 %v2244
    %v2496 = vpop.f32.mrf.mxu0
    %v2497 = vadd.f32 0.0, %v2496
    %2498 = vdwg.mxu0
    %2499 = vmatpush.msra.mxu0 0.0
    %2500 = vmatpush.msra.mxu0 0.0
    %2501 = vmatpush.msra.mxu0 0.0
    %2502 = vmatpush.msra.mxu0 0.0
    %2503 = vmatpush.msra.mxu0 0.0
    %2504 = vmatpush.msra.mxu0 0.0
    %2505 = vmatpush.msra.mxu0 0.0
    %2506 = vmatpush.msra.mxu0 0.0
    %2507 = vmatpush.msra.mxu0 0.0
    %2508 = vmatpush.msra.mxu0 0.0
    %2509 = vmatpush.msra.mxu0 0.0
    %2510 = vmatpush.msra.mxu0 0.0
    %2511 = vmatpush.msra.mxu0 %v2262
    %2512 = vmatpush.msra.mxu0 %v2209
    %2513 = vmatpush.msra.mxu0 %v2203
    %2514 = vmatpush.msra.mxu0 %v2197
    %2515 = vmatmul.f32.gmra.mxu0 %v2217
    %v2516 = vpop.f32.mrf.mxu0
    %v2517 = vadd.f32 0.0, %v2516
    %2518 = vmatmul.f32.gmra.mxu0 %v2220
    %v2519 = vpop.f32.mrf.mxu0
    %v2520 = vadd.f32 0.0, %v2519
    %2521 = vmatmul.f32.gmra.mxu0 %v2223
    %v2522 = vpop.f32.mrf.mxu0
    %v2523 = vadd.f32 0.0, %v2522
    %2524 = vmatmul.f32.gmra.mxu0 %v2226
    %v2525 = vpop.f32.mrf.mxu0
    %v2526 = vadd.f32 0.0, %v2525
    %2527 = vmatmul.f32.gmra.mxu0 %v2229
    %v2528 = vpop.f32.mrf.mxu0
    %v2529 = vadd.f32 0.0, %v2528
    %2530 = vmatmul.f32.gmra.mxu0 %v2232
    %v2531 = vpop.f32.mrf.mxu0
    %v2532 = vadd.f32 0.0, %v2531
    %2533 = vmatmul.f32.gmra.mxu0 %v2235
    %v2534 = vpop.f32.mrf.mxu0
    %v2535 = vadd.f32 0.0, %v2534
    %2536 = vmatmul.f32.gmra.mxu0 %v2238
    %v2537 = vpop.f32.mrf.mxu0
    %v2538 = vadd.f32 0.0, %v2537
    %2539 = vmatmul.f32.gmra.mxu0 %v2241
    %v2540 = vpop.f32.mrf.mxu0
    %v2541 = vadd.f32 0.0, %v2540
    %2542 = vmatmul.f32.gmra.mxu0 %v2244
    %v2543 = vpop.f32.mrf.mxu0
    %v2544 = vadd.f32 0.0, %v2543
    %2545 = vdwg.mxu0
    %v2546 = vadd.f32 %v2043, %v2282
    %v2547 = vadd.f32 %v2044, %v2329
    %v2548 = vadd.f32 %v2045, %v2376
    %v2549 = vadd.f32 %v2046, %v2423
    %v2550 = vadd.f32 %v2047, %v2470
    %v2551 = vadd.f32 %v2048, %v2517
    %v2552 = vadd.f32 %v2049, %v2285
    %v2553 = vadd.f32 %v2050, %v2332
    %v2554 = vadd.f32 %v2051, %v2379
    %v2555 = vadd.f32 %v2052, %v2426
    %v2556 = vadd.f32 %v2053, %v2473
    %v2557 = vadd.f32 %v2054, %v2520
    %v2558 = vadd.f32 %v2055, %v2288
    %v2559 = vadd.f32 %v2056, %v2335
    %v2560 = vadd.f32 %v2057, %v2382
    %v2561 = vadd.f32 %v2058, %v2429
    %v2562 = vadd.f32 %v2059, %v2476
    %v2563 = vadd.f32 %v2060, %v2523
    %v2564 = vadd.f32 %v2061, %v2291
    %v2565 = vadd.f32 %v2062, %v2338
    %v2566 = vadd.f32 %v2063, %v2385
    %v2567 = vadd.f32 %v2064, %v2432
    %v2568 = vadd.f32 %v2065, %v2479
    %v2569 = vadd.f32 %v2066, %v2526
    %v2570 = vadd.f32 %v2067, %v2294
    %v2571 = vadd.f32 %v2068, %v2341
    %v2572 = vadd.f32 %v2069, %v2388
    %v2573 = vadd.f32 %v2070, %v2435
    %v2574 = vadd.f32 %v2071, %v2482
    %v2575 = vadd.f32 %v2072, %v2529
    %v2576 = vadd.f32 %v2073, %v2297
    %v2577 = vadd.f32 %v2074, %v2344
    %v2578 = vadd.f32 %v2075, %v2391
    %v2579 = vadd.f32 %v2076, %v2438
    %v2580 = vadd.f32 %v2077, %v2485
    %v2581 = vadd.f32 %v2078, %v2532
    %v2582 = vadd.f32 %v2079, %v2300
    %v2583 = vadd.f32 %v2080, %v2347
    %v2584 = vadd.f32 %v2081, %v2394
    %v2585 = vadd.f32 %v2082, %v2441
    %v2586 = vadd.f32 %v2083, %v2488
    %v2587 = vadd.f32 %v2084, %v2535
    %v2588 = vadd.f32 %v2085, %v2303
    %v2589 = vadd.f32 %v2086, %v2350
    %v2590 = vadd.f32 %v2087, %v2397
    %v2591 = vadd.f32 %v2088, %v2444
    %v2592 = vadd.f32 %v2089, %v2491
    %v2593 = vadd.f32 %v2090, %v2538
    %v2594 = vadd.f32 %v2091, %v2306
    %v2595 = vadd.f32 %v2092, %v2353
    %v2596 = vadd.f32 %v2093, %v2400
    %v2597 = vadd.f32 %v2094, %v2447
    %v2598 = vadd.f32 %v2095, %v2494
    %v2599 = vadd.f32 %v2096, %v2541
    %v2600 = vadd.f32 %v2097, %v2309
    %v2601 = vadd.f32 %v2098, %v2356
    %v2602 = vadd.f32 %v2099, %v2403
    %v2603 = vadd.f32 %v2100, %v2450
    %v2604 = vadd.f32 %v2101, %v2497
    %v2605 = vadd.f32 %v2102, %v2544
    %v2606 = vld [vmem:[#allocation9] sm:$0x3f]
    %v2608 = vperm.slane %v2606, 0
    %v2609 = vperm.slane %v2606, 1
    %v2610 = vperm.slane %v2606, 2
    %v2611 = vperm.slane %v2606, 3
    %v2612 = vperm.slane %v2606, 4
    %v2613 = vperm.slane %v2606, 5
    %v2620 = vadd.f32 %v2546, %v2608
    %v2621 = vadd.f32 %v2547, %v2609
    %v2622 = vadd.f32 %v2548, %v2610
    %v2623 = vadd.f32 %v2549, %v2611
    %v2624 = vadd.f32 %v2550, %v2612
    %v2625 = vadd.f32 %v2551, %v2613
    %v2626 = vadd.f32 %v2552, %v2608
    %v2627 = vadd.f32 %v2553, %v2609
    %v2628 = vadd.f32 %v2554, %v2610
    %v2629 = vadd.f32 %v2555, %v2611
    %v2630 = vadd.f32 %v2556, %v2612
    %v2631 = vadd.f32 %v2557, %v2613
    %v2632 = vadd.f32 %v2558, %v2608
    %v2633 = vadd.f32 %v2559, %v2609
    %v2634 = vadd.f32 %v2560, %v2610
    %v2635 = vadd.f32 %v2561, %v2611
    %v2636 = vadd.f32 %v2562, %v2612
    %v2637 = vadd.f32 %v2563, %v2613
    %v2638 = vadd.f32 %v2564, %v2608
    %v2639 = vadd.f32 %v2565, %v2609
    %v2640 = vadd.f32 %v2566, %v2610
    %v2641 = vadd.f32 %v2567, %v2611
    %v2642 = vadd.f32 %v2568, %v2612
    %v2643 = vadd.f32 %v2569, %v2613
    %v2644 = vadd.f32 %v2570, %v2608
    %v2645 = vadd.f32 %v2571, %v2609
    %v2646 = vadd.f32 %v2572, %v2610
    %v2647 = vadd.f32 %v2573, %v2611
    %v2648 = vadd.f32 %v2574, %v2612
    %v2649 = vadd.f32 %v2575, %v2613
    %v2650 = vadd.f32 %v2576, %v2608
    %v2651 = vadd.f32 %v2577, %v2609
    %v2652 = vadd.f32 %v2578, %v2610
    %v2653 = vadd.f32 %v2579, %v2611
    %v2654 = vadd.f32 %v2580, %v2612
    %v2655 = vadd.f32 %v2581, %v2613
    %v2656 = vadd.f32 %v2582, %v2608
    %v2657 = vadd.f32 %v2583, %v2609
    %v2658 = vadd.f32 %v2584, %v2610
    %v2659 = vadd.f32 %v2585, %v2611
    %v2660 = vadd.f32 %v2586, %v2612
    %v2661 = vadd.f32 %v2587, %v2613
    %v2662 = vadd.f32 %v2588, %v2608
    %v2663 = vadd.f32 %v2589, %v2609
    %v2664 = vadd.f32 %v2590, %v2610
    %v2665 = vadd.f32 %v2591, %v2611
    %v2666 = vadd.f32 %v2592, %v2612
    %v2667 = vadd.f32 %v2593, %v2613
    %v2668 = vadd.f32 %v2594, %v2608
    %v2669 = vadd.f32 %v2595, %v2609
    %v2670 = vadd.f32 %v2596, %v2610
    %v2671 = vadd.f32 %v2597, %v2611
    %v2672 = vadd.f32 %v2598, %v2612
    %v2673 = vadd.f32 %v2599, %v2613
    %v2674 = vadd.f32 %v2600, %v2608
    %v2675 = vadd.f32 %v2601, %v2609
    %v2676 = vadd.f32 %v2602, %v2610
    %v2677 = vadd.f32 %v2603, %v2611
    %v2678 = vadd.f32 %v2604, %v2612
    %v2679 = vadd.f32 %v2605, %v2613
    %v2680 = vmax.f32 %v2620, 0.0
    %v2681 = vmax.f32 %v2621, 0.0
    %v2682 = vmax.f32 %v2622, 0.0
    %v2683 = vmax.f32 %v2623, 0.0
    %v2684 = vmax.f32 %v2624, 0.0
    %v2685 = vmax.f32 %v2625, 0.0
    %v2686 = vmax.f32 %v2626, 0.0
    %v2687 = vmax.f32 %v2627, 0.0
    %v2688 = vmax.f32 %v2628, 0.0
    %v2689 = vmax.f32 %v2629, 0.0
    %v2690 = vmax.f32 %v2630, 0.0
    %v2691 = vmax.f32 %v2631, 0.0
    %v2692 = vmax.f32 %v2632, 0.0
    %v2693 = vmax.f32 %v2633, 0.0
    %v2694 = vmax.f32 %v2634, 0.0
    %v2695 = vmax.f32 %v2635, 0.0
    %v2696 = vmax.f32 %v2636, 0.0
    %v2697 = vmax.f32 %v2637, 0.0
    %v2698 = vmax.f32 %v2638, 0.0
    %v2699 = vmax.f32 %v2639, 0.0
    %v2700 = vmax.f32 %v2640, 0.0
    %v2701 = vmax.f32 %v2641, 0.0
    %v2702 = vmax.f32 %v2642, 0.0
    %v2703 = vmax.f32 %v2643, 0.0
    %v2704 = vmax.f32 %v2644, 0.0
    %v2705 = vmax.f32 %v2645, 0.0
    %v2706 = vmax.f32 %v2646, 0.0
    %v2707 = vmax.f32 %v2647, 0.0
    %v2708 = vmax.f32 %v2648, 0.0
    %v2709 = vmax.f32 %v2649, 0.0
    %v2710 = vmax.f32 %v2650, 0.0
    %v2711 = vmax.f32 %v2651, 0.0
    %v2712 = vmax.f32 %v2652, 0.0
    %v2713 = vmax.f32 %v2653, 0.0
    %v2714 = vmax.f32 %v2654, 0.0
    %v2715 = vmax.f32 %v2655, 0.0
    %v2716 = vmax.f32 %v2656, 0.0
    %v2717 = vmax.f32 %v2657, 0.0
    %v2718 = vmax.f32 %v2658, 0.0
    %v2719 = vmax.f32 %v2659, 0.0
    %v2720 = vmax.f32 %v2660, 0.0
    %v2721 = vmax.f32 %v2661, 0.0
    %v2722 = vmax.f32 %v2662, 0.0
    %v2723 = vmax.f32 %v2663, 0.0
    %v2724 = vmax.f32 %v2664, 0.0
    %v2725 = vmax.f32 %v2665, 0.0
    %v2726 = vmax.f32 %v2666, 0.0
    %v2727 = vmax.f32 %v2667, 0.0
    %v2728 = vmax.f32 %v2668, 0.0
    %v2729 = vmax.f32 %v2669, 0.0
    %v2730 = vmax.f32 %v2670, 0.0
    %v2731 = vmax.f32 %v2671, 0.0
    %v2732 = vmax.f32 %v2672, 0.0
    %v2733 = vmax.f32 %v2673, 0.0
    %v2734 = vmax.f32 %v2674, 0.0
    %v2735 = vmax.f32 %v2675, 0.0
    %v2736 = vmax.f32 %v2676, 0.0
    %v2737 = vmax.f32 %v2677, 0.0
    %v2738 = vmax.f32 %v2678, 0.0
    %v2739 = vmax.f32 %v2679, 0.0
    %v2740 = vmax.f32 %v2680, %v2710
    %v2741 = vmax.f32 %v2681, %v2711
    %v2742 = vmax.f32 %v2682, %v2712
    %v2743 = vmax.f32 %v2683, %v2713
    %v2744 = vmax.f32 %v2684, %v2714
    %v2745 = vmax.f32 %v2685, %v2715
    %v2746 = vmax.f32 %v2686, %v2716
    %v2747 = vmax.f32 %v2687, %v2717
    %v2748 = vmax.f32 %v2688, %v2718
    %v2749 = vmax.f32 %v2689, %v2719
    %v2750 = vmax.f32 %v2690, %v2720
    %v2751 = vmax.f32 %v2691, %v2721
    %v2752 = vmax.f32 %v2692, %v2722
    %v2753 = vmax.f32 %v2693, %v2723
    %v2754 = vmax.f32 %v2694, %v2724
    %v2755 = vmax.f32 %v2695, %v2725
    %v2756 = vmax.f32 %v2696, %v2726
    %v2757 = vmax.f32 %v2697, %v2727
    %v2758 = vmax.f32 %v2698, %v2728
    %v2759 = vmax.f32 %v2699, %v2729
    %v2760 = vmax.f32 %v2700, %v2730
    %v2761 = vmax.f32 %v2701, %v2731
    %v2762 = vmax.f32 %v2702, %v2732
    %v2763 = vmax.f32 %v2703, %v2733
    %v2764 = vmax.f32 %v2704, %v2734
    %v2765 = vmax.f32 %v2705, %v2735
    %v2766 = vmax.f32 %v2706, %v2736
    %v2767 = vmax.f32 %v2707, %v2737
    %v2768 = vmax.f32 %v2708, %v2738
    %v2769 = vmax.f32 %v2709, %v2739
    %v2770 = vmax.f32 %v2740, %v2743
    %v2771 = vmax.f32 %v2741, %v2744
    %v2772 = vmax.f32 %v2742, %v2745
    %v2773 = vmax.f32 %v2746, %v2749
    %v2774 = vmax.f32 %v2747, %v2750
    %v2775 = vmax.f32 %v2748, %v2751
    %v2776 = vmax.f32 %v2752, %v2755
    %v2777 = vmax.f32 %v2753, %v2756
    %v2778 = vmax.f32 %v2754, %v2757
    %v2779 = vmax.f32 %v2758, %v2761
    %v2780 = vmax.f32 %v2759, %v2762
    %v2781 = vmax.f32 %v2760, %v2763
    %v2782 = vmax.f32 %v2764, %v2767
    %v2783 = vmax.f32 %v2765, %v2768
    %v2784 = vmax.f32 %v2766, %v2769
    %2785 = vst [vmem:[#allocation2] sm:$0xff] %v2770
    %2786 = vst [vmem:[#allocation2 + $0x8] sm:$0xff] %v2771
    %2787 = vst [vmem:[#allocation2 + $0x10] sm:$0xff] %v2772
    %2788 = vst [vmem:[#allocation2 + $0x18] sm:$0xff] %v2773
    %2789 = vst [vmem:[#allocation2 + $0x20] sm:$0xff] %v2774
    %2790 = vst [vmem:[#allocation2 + $0x28] sm:$0xff] %v2775
    %2791 = vst [vmem:[#allocation2 + $0x30] sm:$0xff] %v2776
    %2792 = vst [vmem:[#allocation2 + $0x38] sm:$0xff] %v2777
    %2793 = vst [vmem:[#allocation2 + $0x40] sm:$0xff] %v2778
    %2794 = vst [vmem:[#allocation2 + $0x48] sm:$0xff] %v2779
    %2795 = vst [vmem:[#allocation2 + $0x50] sm:$0xff] %v2780
    %2796 = vst [vmem:[#allocation2 + $0x58] sm:$0xff] %v2781
    %2797 = vst [vmem:[#allocation2 + $0x60] sm:$0xff] %v2782
    %2798 = vst [vmem:[#allocation2 + $0x68] sm:$0xff] %v2783
    %2799 = vst [vmem:[#allocation2 + $0x70] sm:$0xff] %v2784
    %v2800 = vld [vmem:[#allocation2] sm:$0xff]
    %v2801 = vld [vmem:[#allocation2 + $0x8] sm:$0xff]
    %v2802 = vld [vmem:[#allocation2 + $0x10] sm:$0xff]
    %v2803 = vld [vmem:[#allocation2 + $0x18] sm:$0xff]
    %v2804 = vld [vmem:[#allocation2 + $0x20] sm:$0xff]
    %v2805 = vld [vmem:[#allocation2 + $0x28] sm:$0xff]
    %v2806 = vld [vmem:[#allocation2 + $0x30] sm:$0xff]
    %v2807 = vld [vmem:[#allocation2 + $0x38] sm:$0xff]
    %v2808 = vld [vmem:[#allocation2 + $0x40] sm:$0xff]
    %v2809 = vld [vmem:[#allocation2 + $0x48] sm:$0xff]
    %v2810 = vld [vmem:[#allocation2 + $0x50] sm:$0xff]
    %v2811 = vld [vmem:[#allocation2 + $0x58] sm:$0xff]
    %v2812 = vld [vmem:[#allocation2] sm:$0xfc]
    %v2813 = vld [vmem:[#allocation2 + $0x8] sm:$0xfc]
    %v2814 = vld [vmem:[#allocation2 + $0x10] sm:$0xfc]
    %v2815 = vld [vmem:[#allocation2 + $0x30] sm:$0x3]
    %v2816 = vld [vmem:[#allocation2 + $0x38] sm:$0x3]
    %v2817 = vld [vmem:[#allocation2 + $0x40] sm:$0x3]
    %v2818 = vld [vmem:[#allocation2 + $0x30] sm:$0xfc]
    %v2819 = vld [vmem:[#allocation2 + $0x38] sm:$0xfc]
    %v2820 = vld [vmem:[#allocation2 + $0x40] sm:$0xfc]
    %v2821 = vld [vmem:[#allocation2 + $0x48] sm:$0xff]
    %v2822 = vld [vmem:[#allocation2 + $0x50] sm:$0xff]
    %v2823 = vld [vmem:[#allocation2 + $0x58] sm:$0xff]
    %v2824 = vld [vmem:[#allocation2 + $0x60] sm:$0x3]
    %v2825 = vld [vmem:[#allocation2 + $0x68] sm:$0x3]
    %v2826 = vld [vmem:[#allocation2 + $0x70] sm:$0x3]
    %v2827 = vld [vmem:[#allocation12] sm:$0x3f]
    %v2828 = vld [vmem:[#allocation10] sm:$0xff]
    %v2829 = vld [vmem:[#allocation10 + $0x8] sm:$0xff]
    %v2830 = vld [vmem:[#allocation10 + $0x10] sm:$0xff]
    %v2831 = vld [vmem:[#allocation10 + $0x18] sm:$0xff]
    %v2832 = vld [vmem:[#allocation10 + $0x20] sm:$0xff]
    %v2833 = vld [vmem:[#allocation10 + $0x28] sm:$0xff]
    %v2834 = vld [vmem:[#allocation10 + $0x30] sm:$0xff]
    %v2835 = vld [vmem:[#allocation10 + $0x38] sm:$0xff]
    %v2836 = vld [vmem:[#allocation10 + $0x40] sm:$0xff]
    %v2837 = vld [vmem:[#allocation10 + $0x48] sm:$0xff]
    %v2838 = vld [vmem:[#allocation10 + $0x50] sm:$0xff]
    %v2839 = vld [vmem:[#allocation10 + $0x58] sm:$0xff]
    %v2840 = vld [vmem:[#allocation10 + $0x60] sm:$0xff]
    %v2841 = vld [vmem:[#allocation10 + $0x68] sm:$0xff]
    %v2842 = vld [vmem:[#allocation10 + $0x70] sm:$0xff]
    %v2843 = vld [vmem:[#allocation10 + $0x78] sm:$0xff]
    %v2844 = vld [vmem:[#allocation10 + $0x80] sm:$0xff]
    %v2845 = vld [vmem:[#allocation10 + $0x88] sm:$0xff]
    %v2846 = vld [vmem:[#allocation10 + $0x90] sm:$0xff]
    %v2847 = vld [vmem:[#allocation10 + $0x98] sm:$0xff]
    %v2848 = vld [vmem:[#allocation10 + $0xa0] sm:$0xff]
    %v2849 = vld [vmem:[#allocation10 + $0xa8] sm:$0xff]
    %v2850 = vld [vmem:[#allocation10 + $0xb0] sm:$0xff]
    %v2851 = vld [vmem:[#allocation10 + $0xb8] sm:$0xff]
    %v2852 = vld [vmem:[#allocation10 + $0xc0] sm:$0xff]
    %v2853 = vld [vmem:[#allocation10 + $0xc8] sm:$0xff]
    %v2854 = vld [vmem:[#allocation10 + $0xd0] sm:$0xff]
    %v2855 = vld [vmem:[#allocation10 + $0xd8] sm:$0xff]
    %v2856 = vld [vmem:[#allocation10 + $0xe0] sm:$0xff]
    %v2857 = vld [vmem:[#allocation10 + $0xe8] sm:$0xff]
    %v2858 = vld [vmem:[#allocation10 + $0xf0] sm:$0xff]
    %v2859 = vld [vmem:[#allocation10 + $0xf8] sm:$0xff]
    %v2860 = vld [vmem:[#allocation10 + $0x100] sm:$0xff]
    %v2861 = vld [vmem:[#allocation10 + $0x108] sm:$0xff]
    %v2862 = vld [vmem:[#allocation10 + $0x110] sm:$0xff]
    %v2863 = vld [vmem:[#allocation10 + $0x118] sm:$0xff]
    %v2864 = vld [vmem:[#allocation10 + $0x120] sm:$0xff]
    %v2865 = vld [vmem:[#allocation10 + $0x128] sm:$0xff]
    %v2866 = vld [vmem:[#allocation10 + $0x130] sm:$0xff]
    %v2867 = vld [vmem:[#allocation10 + $0x138] sm:$0xff]
    %v2868 = vld [vmem:[#allocation10 + $0x140] sm:$0xff]
    %v2869 = vld [vmem:[#allocation10 + $0x148] sm:$0xff]
    %v2870 = vld [vmem:[#allocation10 + $0x150] sm:$0xff]
    %v2871 = vld [vmem:[#allocation10 + $0x158] sm:$0xff]
    %v2872 = vld [vmem:[#allocation10 + $0x160] sm:$0xff]
    %v2873 = vld [vmem:[#allocation10 + $0x168] sm:$0xff]
    %v2874 = vld [vmem:[#allocation10 + $0x170] sm:$0xff]
    %v2875 = vld [vmem:[#allocation10 + $0x178] sm:$0xff]
    %v2876 = vld [vmem:[#allocation10 + $0x180] sm:$0xff]
    %v2877 = vld [vmem:[#allocation10 + $0x188] sm:$0xff]
    %v2878 = vld [vmem:[#allocation10 + $0x190] sm:$0xff]
    %v2879 = vld [vmem:[#allocation10 + $0x198] sm:$0xff]
    %v2880 = vld [vmem:[#allocation10 + $0x1a0] sm:$0xff]
    %v2881 = vld [vmem:[#allocation10 + $0x1a8] sm:$0xff]
    %v2882 = vld [vmem:[#allocation10 + $0x1b0] sm:$0xff]
    %v2883 = vld [vmem:[#allocation10 + $0x1b8] sm:$0xff]
    %v2884 = vld [vmem:[#allocation10 + $0x1c0] sm:$0xff]
    %v2885 = vld [vmem:[#allocation10 + $0x1c8] sm:$0xff]
    %v2886 = vld [vmem:[#allocation10 + $0x1d0] sm:$0xff]
    %v2887 = vld [vmem:[#allocation10 + $0x1d8] sm:$0xff]
    %v2888 = vld [vmem:[#allocation10 + $0x1e0] sm:$0xff]
    %v2889 = vld [vmem:[#allocation10 + $0x1e8] sm:$0xff]
    %v2890 = vld [vmem:[#allocation10 + $0x1f0] sm:$0xff]
    %v2891 = vld [vmem:[#allocation10 + $0x1f8] sm:$0xff]
    %v2892 = vld [vmem:[#allocation10 + $0x200] sm:$0xff]
    %v2893 = vld [vmem:[#allocation10 + $0x208] sm:$0xff]
    %v2894 = vld [vmem:[#allocation10 + $0x210] sm:$0xff]
    %v2895 = vld [vmem:[#allocation10 + $0x218] sm:$0xff]
    %v2896 = vld [vmem:[#allocation10 + $0x220] sm:$0xff]
    %v2897 = vld [vmem:[#allocation10 + $0x228] sm:$0xff]
    %v2898 = vld [vmem:[#allocation10 + $0x230] sm:$0xff]
    %v2899 = vld [vmem:[#allocation10 + $0x238] sm:$0xff]
    %v2900 = vld [vmem:[#allocation10 + $0x240] sm:$0xff]
    %v2901 = vld [vmem:[#allocation10 + $0x248] sm:$0xff]
    %v2902 = vld [vmem:[#allocation10 + $0x250] sm:$0xff]
    %v2903 = vld [vmem:[#allocation10 + $0x258] sm:$0xff]
    %v2904 = vld [vmem:[#allocation10 + $0x260] sm:$0xff]
    %v2905 = vld [vmem:[#allocation10 + $0x268] sm:$0xff]
    %v2906 = vld [vmem:[#allocation10 + $0x270] sm:$0xff]
    %v2907 = vld [vmem:[#allocation10 + $0x278] sm:$0xff]
    %v2908 = vld [vmem:[#allocation10 + $0x280] sm:$0xff]
    %v2909 = vld [vmem:[#allocation10 + $0x288] sm:$0xff]
    %v2910 = vld [vmem:[#allocation10 + $0x290] sm:$0xff]
    %v2911 = vld [vmem:[#allocation10 + $0x298] sm:$0xff]
    %v2912 = vld [vmem:[#allocation10 + $0x2a0] sm:$0xff]
    %v2913 = vld [vmem:[#allocation10 + $0x2a8] sm:$0xff]
    %v2914 = vld [vmem:[#allocation10 + $0x2b0] sm:$0xff]
    %v2915 = vld [vmem:[#allocation10 + $0x2b8] sm:$0xff]
    %v2916 = vld [vmem:[#allocation10 + $0x2c0] sm:$0xff]
    %v2917 = vld [vmem:[#allocation10 + $0x2c8] sm:$0xff]
    %v2918 = vld [vmem:[#allocation10 + $0x2d0] sm:$0xff]
    %v2919 = vld [vmem:[#allocation10 + $0x2d8] sm:$0xff]
    %v2920 = vld [vmem:[#allocation10 + $0x2e0] sm:$0xff]
    %v2921 = vld [vmem:[#allocation10 + $0x2e8] sm:$0xff]
    %v2922 = vld [vmem:[#allocation10 + $0x2f0] sm:$0xff]
    %v2923 = vld [vmem:[#allocation10 + $0x2f8] sm:$0xff]
    %v2924 = vld [vmem:[#allocation10 + $0x300] sm:$0xff]
    %v2925 = vld [vmem:[#allocation10 + $0x308] sm:$0xff]
    %v2926 = vld [vmem:[#allocation10 + $0x310] sm:$0xff]
    %v2927 = vld [vmem:[#allocation10 + $0x318] sm:$0xff]
    %v2928 = vld [vmem:[#allocation10 + $0x320] sm:$0xff]
    %v2929 = vld [vmem:[#allocation10 + $0x328] sm:$0xff]
    %v2930 = vld [vmem:[#allocation10 + $0x330] sm:$0xff]
    %v2931 = vld [vmem:[#allocation10 + $0x338] sm:$0xff]
    %v2932 = vld [vmem:[#allocation10 + $0x340] sm:$0xff]
    %v2933 = vld [vmem:[#allocation10 + $0x348] sm:$0xff]
    %v2934 = vld [vmem:[#allocation10 + $0x350] sm:$0xff]
    %v2935 = vld [vmem:[#allocation10 + $0x358] sm:$0xff]
    %v2936 = vld [vmem:[#allocation10 + $0x360] sm:$0xff]
    %v2937 = vld [vmem:[#allocation10 + $0x368] sm:$0xff]
    %v2938 = vld [vmem:[#allocation10 + $0x370] sm:$0xff]
    %v2939 = vld [vmem:[#allocation10 + $0x378] sm:$0xff]
    %v2940 = vld [vmem:[#allocation10 + $0x380] sm:$0xff]
    %v2941 = vld [vmem:[#allocation10 + $0x388] sm:$0xff]
    %v2942 = vld [vmem:[#allocation10 + $0x390] sm:$0xff]
    %v2943 = vld [vmem:[#allocation10 + $0x398] sm:$0xff]
    %v2944 = vld [vmem:[#allocation10 + $0x3a0] sm:$0xff]
    %v2945 = vld [vmem:[#allocation10 + $0x3a8] sm:$0xff]
    %v2946 = vld [vmem:[#allocation10 + $0x3b0] sm:$0xff]
    %v2947 = vld [vmem:[#allocation10 + $0x3b8] sm:$0xff]
    %v2948 = vld [vmem:[#allocation10 + $0x3c0] sm:$0xff]
    %v2949 = vld [vmem:[#allocation10 + $0x3c8] sm:$0xff]
    %v2950 = vld [vmem:[#allocation10 + $0x3d0] sm:$0xff]
    %v2951 = vld [vmem:[#allocation10 + $0x3d8] sm:$0xff]
    %v2952 = vld [vmem:[#allocation10 + $0x3e0] sm:$0xff]
    %v2953 = vld [vmem:[#allocation10 + $0x3e8] sm:$0xff]
    %v2954 = vld [vmem:[#allocation10 + $0x3f0] sm:$0xff]
    %v2955 = vld [vmem:[#allocation10 + $0x3f8] sm:$0xff]
    %v2956 = vld [vmem:[#allocation10 + $0x400] sm:$0xff]
    %v2957 = vld [vmem:[#allocation10 + $0x408] sm:$0xff]
    %v2958 = vld [vmem:[#allocation10 + $0x410] sm:$0xff]
    %v2959 = vld [vmem:[#allocation10 + $0x418] sm:$0xff]
    %v2960 = vld [vmem:[#allocation10 + $0x420] sm:$0xff]
    %v2961 = vld [vmem:[#allocation10 + $0x428] sm:$0xff]
    %v2962 = vld [vmem:[#allocation10 + $0x430] sm:$0xff]
    %v2963 = vld [vmem:[#allocation10 + $0x438] sm:$0xff]
    %v2964 = vld [vmem:[#allocation10 + $0x440] sm:$0xff]
    %v2965 = vld [vmem:[#allocation10 + $0x448] sm:$0xff]
    %v2966 = vld [vmem:[#allocation10 + $0x450] sm:$0xff]
    %v2967 = vld [vmem:[#allocation10 + $0x458] sm:$0xff]
    %v2968 = vld [vmem:[#allocation10 + $0x460] sm:$0xff]
    %v2969 = vld [vmem:[#allocation10 + $0x468] sm:$0xff]
    %v2970 = vld [vmem:[#allocation10 + $0x470] sm:$0xff]
    %v2971 = vld [vmem:[#allocation10 + $0x478] sm:$0xff]
    %v2972 = vld [vmem:[#allocation10 + $0x480] sm:$0xff]
    %v2973 = vld [vmem:[#allocation10 + $0x488] sm:$0xff]
    %v2974 = vld [vmem:[#allocation10 + $0x490] sm:$0xff]
    %v2975 = vld [vmem:[#allocation10 + $0x498] sm:$0xff]
    %v2976 = vld [vmem:[#allocation10 + $0x4a0] sm:$0xff]
    %v2977 = vld [vmem:[#allocation10 + $0x4a8] sm:$0xff]
    %v2978 = vld [vmem:[#allocation10 + $0x4b0] sm:$0xff]
    %v2979 = vld [vmem:[#allocation10 + $0x4b8] sm:$0xff]
    %v2980 = vld [vmem:[#allocation10 + $0x4c0] sm:$0xff]
    %v2981 = vld [vmem:[#allocation10 + $0x4c8] sm:$0xff]
    %v2982 = vld [vmem:[#allocation10 + $0x4d0] sm:$0xff]
    %v2983 = vld [vmem:[#allocation10 + $0x4d8] sm:$0xff]
    %v2984 = vld [vmem:[#allocation10 + $0x4e0] sm:$0xff]
    %v2985 = vld [vmem:[#allocation10 + $0x4e8] sm:$0xff]
    %v2986 = vld [vmem:[#allocation10 + $0x4f0] sm:$0xff]
    %v2987 = vld [vmem:[#allocation10 + $0x4f8] sm:$0xff]
    %v2988 = vld [vmem:[#allocation10 + $0x500] sm:$0xff]
    %v2989 = vld [vmem:[#allocation10 + $0x508] sm:$0xff]
    %v2990 = vld [vmem:[#allocation10 + $0x510] sm:$0xff]
    %v2991 = vld [vmem:[#allocation10 + $0x518] sm:$0xff]
    %v2992 = vld [vmem:[#allocation10 + $0x520] sm:$0xff]
    %v2993 = vld [vmem:[#allocation10 + $0x528] sm:$0xff]
    %v2994 = vld [vmem:[#allocation10 + $0x530] sm:$0xff]
    %v2995 = vld [vmem:[#allocation10 + $0x538] sm:$0xff]
    %v2996 = vld [vmem:[#allocation10 + $0x540] sm:$0xff]
    %v2997 = vld [vmem:[#allocation10 + $0x548] sm:$0xff]
    %v2998 = vld [vmem:[#allocation10 + $0x550] sm:$0xff]
    %v2999 = vld [vmem:[#allocation10 + $0x558] sm:$0xff]
    %v3000 = vld [vmem:[#allocation10 + $0x560] sm:$0xff]
    %v3001 = vld [vmem:[#allocation10 + $0x568] sm:$0xff]
    %v3002 = vld [vmem:[#allocation10 + $0x570] sm:$0xff]
    %v3003 = vld [vmem:[#allocation10 + $0x578] sm:$0xff]
    %v3004 = vld [vmem:[#allocation10 + $0x580] sm:$0xff]
    %v3005 = vld [vmem:[#allocation10 + $0x588] sm:$0xff]
    %v3006 = vld [vmem:[#allocation10 + $0x590] sm:$0xff]
    %v3007 = vld [vmem:[#allocation10 + $0x598] sm:$0xff]
    %v3008 = vld [vmem:[#allocation10 + $0x5a0] sm:$0xff]
    %v3009 = vld [vmem:[#allocation10 + $0x5a8] sm:$0xff]
    %v3010 = vld [vmem:[#allocation10 + $0x5b0] sm:$0xff]
    %v3011 = vld [vmem:[#allocation10 + $0x5b8] sm:$0xff]
    %v3012 = vld [vmem:[#allocation10 + $0x5c0] sm:$0xff]
    %v3013 = vld [vmem:[#allocation10 + $0x5c8] sm:$0xff]
    %v3014 = vld [vmem:[#allocation10 + $0x5d0] sm:$0xff]
    %v3015 = vld [vmem:[#allocation10 + $0x5d8] sm:$0xff]
    %v3016 = vld [vmem:[#allocation10 + $0x5e0] sm:$0xff]
    %v3017 = vld [vmem:[#allocation10 + $0x5e8] sm:$0xff]
    %v3018 = vld [vmem:[#allocation10 + $0x5f0] sm:$0xff]
    %v3019 = vld [vmem:[#allocation10 + $0x5f8] sm:$0xff]
    %v3020 = vld [vmem:[#allocation10 + $0x600] sm:$0xff]
    %v3021 = vld [vmem:[#allocation10 + $0x608] sm:$0xff]
    %v3022 = vld [vmem:[#allocation10 + $0x610] sm:$0xff]
    %v3023 = vld [vmem:[#allocation10 + $0x618] sm:$0xff]
    %v3024 = vld [vmem:[#allocation10 + $0x620] sm:$0xff]
    %v3025 = vld [vmem:[#allocation10 + $0x628] sm:$0xff]
    %v3026 = vld [vmem:[#allocation10 + $0x630] sm:$0xff]
    %v3027 = vld [vmem:[#allocation10 + $0x638] sm:$0xff]
    %v3028 = vld [vmem:[#allocation10 + $0x640] sm:$0xff]
    %v3029 = vld [vmem:[#allocation10 + $0x648] sm:$0xff]
    %v3030 = vld [vmem:[#allocation10 + $0x650] sm:$0xff]
    %v3031 = vld [vmem:[#allocation10 + $0x658] sm:$0xff]
    %v3032 = vld [vmem:[#allocation10 + $0x660] sm:$0xff]
    %v3033 = vld [vmem:[#allocation10 + $0x668] sm:$0xff]
    %v3034 = vld [vmem:[#allocation10 + $0x670] sm:$0xff]
    %v3035 = vld [vmem:[#allocation10 + $0x678] sm:$0xff]
    %v3036 = vld [vmem:[#allocation10 + $0x680] sm:$0xff]
    %v3037 = vld [vmem:[#allocation10 + $0x688] sm:$0xff]
    %v3038 = vld [vmem:[#allocation10 + $0x690] sm:$0xff]
    %v3039 = vld [vmem:[#allocation10 + $0x698] sm:$0xff]
    %v3040 = vld [vmem:[#allocation10 + $0x6a0] sm:$0xff]
    %v3041 = vld [vmem:[#allocation10 + $0x6a8] sm:$0xff]
    %v3042 = vld [vmem:[#allocation10 + $0x6b0] sm:$0xff]
    %v3043 = vld [vmem:[#allocation10 + $0x6b8] sm:$0xff]
    %v3044 = vld [vmem:[#allocation10 + $0x6c0] sm:$0xff]
    %v3045 = vld [vmem:[#allocation10 + $0x6c8] sm:$0xff]
    %v3046 = vld [vmem:[#allocation10 + $0x6d0] sm:$0xff]
    %v3047 = vld [vmem:[#allocation10 + $0x6d8] sm:$0xff]
    %v3048 = vld [vmem:[#allocation10 + $0x6e0] sm:$0xff]
    %v3049 = vld [vmem:[#allocation10 + $0x6e8] sm:$0xff]
    %v3050 = vld [vmem:[#allocation10 + $0x6f0] sm:$0xff]
    %v3051 = vld [vmem:[#allocation10 + $0x6f8] sm:$0xff]
    %v3052 = vld [vmem:[#allocation10 + $0x700] sm:$0xff]
    %v3053 = vld [vmem:[#allocation10 + $0x708] sm:$0xff]
    %v3054 = vld [vmem:[#allocation10 + $0x710] sm:$0xff]
    %v3055 = vld [vmem:[#allocation10 + $0x718] sm:$0xff]
    %v3056 = vld [vmem:[#allocation10 + $0x720] sm:$0xff]
    %v3057 = vld [vmem:[#allocation10 + $0x728] sm:$0xff]
    %v3058 = vld [vmem:[#allocation10 + $0x730] sm:$0xff]
    %v3059 = vld [vmem:[#allocation10 + $0x738] sm:$0xff]
    %v3060 = vld [vmem:[#allocation10 + $0x740] sm:$0xff]
    %v3061 = vld [vmem:[#allocation10 + $0x748] sm:$0xff]
    %v3062 = vld [vmem:[#allocation10 + $0x750] sm:$0xff]
    %v3063 = vld [vmem:[#allocation10 + $0x758] sm:$0xff]
    %v3064 = vld [vmem:[#allocation10 + $0x760] sm:$0xff]
    %v3065 = vld [vmem:[#allocation10 + $0x768] sm:$0xff]
    %v3066 = vld [vmem:[#allocation10 + $0x770] sm:$0xff]
    %v3067 = vld [vmem:[#allocation10 + $0x778] sm:$0xff]
    %v3068 = vld [vmem:[#allocation10 + $0x780] sm:$0xff]
    %v3069 = vld [vmem:[#allocation10 + $0x788] sm:$0xff]
    %v3070 = vld [vmem:[#allocation10 + $0x790] sm:$0xff]
    %v3071 = vld [vmem:[#allocation10 + $0x798] sm:$0xff]
    %v3072 = vld [vmem:[#allocation10 + $0x7a0] sm:$0xff]
    %v3073 = vld [vmem:[#allocation10 + $0x7a8] sm:$0xff]
    %v3074 = vld [vmem:[#allocation10 + $0x7b0] sm:$0xff]
    %v3075 = vld [vmem:[#allocation10 + $0x7b8] sm:$0xff]
    %v3076 = vld [vmem:[#allocation10 + $0x7c0] sm:$0xff]
    %v3077 = vld [vmem:[#allocation10 + $0x7c8] sm:$0xff]
    %v3078 = vld [vmem:[#allocation10 + $0x7d0] sm:$0xff]
    %v3079 = vld [vmem:[#allocation10 + $0x7d8] sm:$0xff]
    %v3080 = vld [vmem:[#allocation10 + $0x7e0] sm:$0xff]
    %v3081 = vld [vmem:[#allocation10 + $0x7e8] sm:$0xff]
    %v3082 = vld [vmem:[#allocation10 + $0x7f0] sm:$0xff]
    %v3083 = vld [vmem:[#allocation10 + $0x7f8] sm:$0xff]
    %v3084 = vld [vmem:[#allocation10 + $0x800] sm:$0xff]
    %v3085 = vld [vmem:[#allocation10 + $0x808] sm:$0xff]
    %v3086 = vld [vmem:[#allocation10 + $0x810] sm:$0xff]
    %v3087 = vld [vmem:[#allocation10 + $0x818] sm:$0xff]
    %v3088 = vld [vmem:[#allocation10 + $0x820] sm:$0xff]
    %v3089 = vld [vmem:[#allocation10 + $0x828] sm:$0xff]
    %v3090 = vld [vmem:[#allocation10 + $0x830] sm:$0xff]
    %v3091 = vld [vmem:[#allocation10 + $0x838] sm:$0xff]
    %v3092 = vld [vmem:[#allocation10 + $0x840] sm:$0xff]
    %v3093 = vld [vmem:[#allocation10 + $0x848] sm:$0xff]
    %v3094 = vld [vmem:[#allocation10 + $0x850] sm:$0xff]
    %v3095 = vld [vmem:[#allocation10 + $0x858] sm:$0xff]
    %v3096 = vld [vmem:[#allocation10 + $0x860] sm:$0xff]
    %v3097 = vld [vmem:[#allocation10 + $0x868] sm:$0xff]
    %v3098 = vld [vmem:[#allocation10 + $0x870] sm:$0xff]
    %v3099 = vld [vmem:[#allocation10 + $0x878] sm:$0xff]
    %v3100 = vld [vmem:[#allocation10 + $0x880] sm:$0xff]
    %v3101 = vld [vmem:[#allocation10 + $0x888] sm:$0xff]
    %v3102 = vld [vmem:[#allocation10 + $0x890] sm:$0xff]
    %v3103 = vld [vmem:[#allocation10 + $0x898] sm:$0xff]
    %v3104 = vld [vmem:[#allocation10 + $0x8a0] sm:$0xff]
    %v3105 = vld [vmem:[#allocation10 + $0x8a8] sm:$0xff]
    %v3106 = vld [vmem:[#allocation10 + $0x8b0] sm:$0xff]
    %v3107 = vld [vmem:[#allocation10 + $0x8b8] sm:$0xff]
    %v3108 = vld [vmem:[#allocation10 + $0x8c0] sm:$0xff]
    %v3109 = vld [vmem:[#allocation10 + $0x8c8] sm:$0xff]
    %v3110 = vld [vmem:[#allocation10 + $0x8d0] sm:$0xff]
    %v3111 = vld [vmem:[#allocation10 + $0x8d8] sm:$0xff]
    %v3112 = vld [vmem:[#allocation10 + $0x8e0] sm:$0xff]
    %v3113 = vld [vmem:[#allocation10 + $0x8e8] sm:$0xff]
    %v3114 = vld [vmem:[#allocation10 + $0x8f0] sm:$0xff]
    %v3115 = vld [vmem:[#allocation10 + $0x8f8] sm:$0xff]
    %s3116 = scalar_lea.vmem [#allocation10], 2304
    %v3117 = vld [vmem:[%s3116] sm:$0xff]
    %v3118 = vld [vmem:[%s3116 + $0x8] sm:$0xff]
    %v3119 = vld [vmem:[%s3116 + $0x10] sm:$0xff]
    %v3120 = vld [vmem:[%s3116 + $0x18] sm:$0xff]
    %v3121 = vld [vmem:[%s3116 + $0x20] sm:$0xff]
    %v3122 = vld [vmem:[%s3116 + $0x28] sm:$0xff]
    %v3123 = vld [vmem:[%s3116 + $0x30] sm:$0xff]
    %v3124 = vld [vmem:[%s3116 + $0x38] sm:$0xff]
    %v3125 = vld [vmem:[%s3116 + $0x40] sm:$0xff]
    %v3126 = vld [vmem:[%s3116 + $0x48] sm:$0xff]
    %v3127 = vld [vmem:[%s3116 + $0x50] sm:$0xff]
    %v3128 = vld [vmem:[%s3116 + $0x58] sm:$0xff]
    %v3129 = vld [vmem:[%s3116 + $0x60] sm:$0xff]
    %v3130 = vld [vmem:[%s3116 + $0x68] sm:$0xff]
    %v3131 = vld [vmem:[%s3116 + $0x70] sm:$0xff]
    %v3132 = vld [vmem:[%s3116 + $0x78] sm:$0xff]
    %v3133 = vld [vmem:[%s3116 + $0x80] sm:$0xff]
    %v3134 = vld [vmem:[%s3116 + $0x88] sm:$0xff]
    %v3135 = vld [vmem:[%s3116 + $0x90] sm:$0xff]
    %v3136 = vld [vmem:[%s3116 + $0x98] sm:$0xff]
    %v3137 = vld [vmem:[%s3116 + $0xa0] sm:$0xff]
    %v3138 = vld [vmem:[%s3116 + $0xa8] sm:$0xff]
    %v3139 = vld [vmem:[%s3116 + $0xb0] sm:$0xff]
    %v3140 = vld [vmem:[%s3116 + $0xb8] sm:$0xff]
    %v3141 = vld [vmem:[%s3116 + $0xc0] sm:$0xff]
    %v3142 = vld [vmem:[%s3116 + $0xc8] sm:$0xff]
    %v3143 = vld [vmem:[%s3116 + $0xd0] sm:$0xff]
    %v3144 = vld [vmem:[%s3116 + $0xd8] sm:$0xff]
    %v3145 = vld [vmem:[%s3116 + $0xe0] sm:$0xff]
    %v3146 = vld [vmem:[%s3116 + $0xe8] sm:$0xff]
    %v3147 = vld [vmem:[%s3116 + $0xf0] sm:$0xff]
    %v3148 = vld [vmem:[%s3116 + $0xf8] sm:$0xff]
    %v3149 = vld [vmem:[%s3116 + $0x100] sm:$0xff]
    %v3150 = vld [vmem:[%s3116 + $0x108] sm:$0xff]
    %v3151 = vld [vmem:[%s3116 + $0x110] sm:$0xff]
    %v3152 = vld [vmem:[%s3116 + $0x118] sm:$0xff]
    %v3153 = vld [vmem:[%s3116 + $0x120] sm:$0xff]
    %v3154 = vld [vmem:[%s3116 + $0x128] sm:$0xff]
    %v3155 = vld [vmem:[%s3116 + $0x130] sm:$0xff]
    %v3156 = vld [vmem:[%s3116 + $0x138] sm:$0xff]
    %v3157 = vld [vmem:[%s3116 + $0x140] sm:$0xff]
    %v3158 = vld [vmem:[%s3116 + $0x148] sm:$0xff]
    %v3159 = vld [vmem:[%s3116 + $0x150] sm:$0xff]
    %v3160 = vld [vmem:[%s3116 + $0x158] sm:$0xff]
    %v3161 = vld [vmem:[%s3116 + $0x160] sm:$0xff]
    %v3162 = vld [vmem:[%s3116 + $0x168] sm:$0xff]
    %v3163 = vld [vmem:[%s3116 + $0x170] sm:$0xff]
    %v3164 = vld [vmem:[%s3116 + $0x178] sm:$0xff]
    %v3165 = vld [vmem:[%s3116 + $0x180] sm:$0xff]
    %v3166 = vld [vmem:[%s3116 + $0x188] sm:$0xff]
    %v3167 = vld [vmem:[%s3116 + $0x190] sm:$0xff]
    %v3168 = vld [vmem:[%s3116 + $0x198] sm:$0xff]
    %v3169 = vld [vmem:[%s3116 + $0x1a0] sm:$0xff]
    %v3170 = vld [vmem:[%s3116 + $0x1a8] sm:$0xff]
    %v3171 = vld [vmem:[%s3116 + $0x1b0] sm:$0xff]
    %v3172 = vld [vmem:[%s3116 + $0x1b8] sm:$0xff]
    %v3173 = vld [vmem:[%s3116 + $0x1c0] sm:$0xff]
    %v3174 = vld [vmem:[%s3116 + $0x1c8] sm:$0xff]
    %v3175 = vld [vmem:[%s3116 + $0x1d0] sm:$0xff]
    %v3176 = vld [vmem:[%s3116 + $0x1d8] sm:$0xff]
    %v3177 = vld [vmem:[%s3116 + $0x1e0] sm:$0xff]
    %v3178 = vld [vmem:[%s3116 + $0x1e8] sm:$0xff]
    %v3179 = vld [vmem:[%s3116 + $0x1f0] sm:$0xff]
    %v3180 = vld [vmem:[%s3116 + $0x1f8] sm:$0xff]
    %v3181 = vld [vmem:[%s3116 + $0x200] sm:$0xff]
    %v3182 = vld [vmem:[%s3116 + $0x208] sm:$0xff]
    %v3183 = vld [vmem:[%s3116 + $0x210] sm:$0xff]
    %v3184 = vld [vmem:[%s3116 + $0x218] sm:$0xff]
    %v3185 = vld [vmem:[%s3116 + $0x220] sm:$0xff]
    %v3186 = vld [vmem:[%s3116 + $0x228] sm:$0xff]
    %v3187 = vld [vmem:[%s3116 + $0x230] sm:$0xff]
    %v3188 = vld [vmem:[%s3116 + $0x238] sm:$0xff]
    %v3189 = vld [vmem:[%s3116 + $0x240] sm:$0xff]
    %v3190 = vld [vmem:[%s3116 + $0x248] sm:$0xff]
    %v3191 = vld [vmem:[%s3116 + $0x250] sm:$0xff]
    %v3192 = vld [vmem:[%s3116 + $0x258] sm:$0xff]
    %v3193 = vld [vmem:[%s3116 + $0x260] sm:$0xff]
    %v3194 = vld [vmem:[%s3116 + $0x268] sm:$0xff]
    %v3195 = vld [vmem:[%s3116 + $0x270] sm:$0xff]
    %v3196 = vld [vmem:[%s3116 + $0x278] sm:$0xff]
    %v3197 = vld [vmem:[%s3116 + $0x280] sm:$0xff]
    %v3198 = vld [vmem:[%s3116 + $0x288] sm:$0xff]
    %v3199 = vld [vmem:[%s3116 + $0x290] sm:$0xff]
    %v3200 = vld [vmem:[%s3116 + $0x298] sm:$0xff]
    %v3201 = vld [vmem:[%s3116 + $0x2a0] sm:$0xff]
    %v3202 = vld [vmem:[%s3116 + $0x2a8] sm:$0xff]
    %v3203 = vld [vmem:[%s3116 + $0x2b0] sm:$0xff]
    %v3204 = vld [vmem:[%s3116 + $0x2b8] sm:$0xff]
    %v3205 = vld [vmem:[%s3116 + $0x2c0] sm:$0xff]
    %v3206 = vld [vmem:[%s3116 + $0x2c8] sm:$0xff]
    %v3207 = vld [vmem:[%s3116 + $0x2d0] sm:$0xff]
    %v3208 = vld [vmem:[%s3116 + $0x2d8] sm:$0xff]
    %v3209 = vld [vmem:[%s3116 + $0x2e0] sm:$0xff]
    %v3210 = vld [vmem:[%s3116 + $0x2e8] sm:$0xff]
    %v3211 = vld [vmem:[%s3116 + $0x2f0] sm:$0xff]
    %v3212 = vld [vmem:[%s3116 + $0x2f8] sm:$0xff]
    %v3213 = vld [vmem:[%s3116 + $0x300] sm:$0xff]
    %v3214 = vld [vmem:[%s3116 + $0x308] sm:$0xff]
    %v3215 = vld [vmem:[%s3116 + $0x310] sm:$0xff]
    %v3216 = vld [vmem:[%s3116 + $0x318] sm:$0xff]
    %v3217 = vld [vmem:[%s3116 + $0x320] sm:$0xff]
    %v3218 = vld [vmem:[%s3116 + $0x328] sm:$0xff]
    %v3219 = vld [vmem:[%s3116 + $0x330] sm:$0xff]
    %v3220 = vld [vmem:[%s3116 + $0x338] sm:$0xff]
    %v3221 = vld [vmem:[%s3116 + $0x340] sm:$0xff]
    %v3222 = vld [vmem:[%s3116 + $0x348] sm:$0xff]
    %v3223 = vld [vmem:[%s3116 + $0x350] sm:$0xff]
    %v3224 = vld [vmem:[%s3116 + $0x358] sm:$0xff]
    %v3225 = vld [vmem:[%s3116 + $0x360] sm:$0xff]
    %v3226 = vld [vmem:[%s3116 + $0x368] sm:$0xff]
    %v3227 = vld [vmem:[%s3116 + $0x370] sm:$0xff]
    %v3228 = vld [vmem:[%s3116 + $0x378] sm:$0xff]
    %v3229 = vld [vmem:[%s3116 + $0x380] sm:$0xff]
    %v3230 = vld [vmem:[%s3116 + $0x388] sm:$0xff]
    %v3231 = vld [vmem:[%s3116 + $0x390] sm:$0xff]
    %v3232 = vld [vmem:[%s3116 + $0x398] sm:$0xff]
    %v3233 = vld [vmem:[%s3116 + $0x3a0] sm:$0xff]
    %v3234 = vld [vmem:[%s3116 + $0x3a8] sm:$0xff]
    %v3235 = vld [vmem:[%s3116 + $0x3b0] sm:$0xff]
    %v3236 = vld [vmem:[%s3116 + $0x3b8] sm:$0xff]
    %v3237 = vld [vmem:[%s3116 + $0x3c0] sm:$0xff]
    %v3238 = vld [vmem:[%s3116 + $0x3c8] sm:$0xff]
    %v3239 = vld [vmem:[%s3116 + $0x3d0] sm:$0xff]
    %v3240 = vld [vmem:[%s3116 + $0x3d8] sm:$0xff]
    %v3241 = vld [vmem:[%s3116 + $0x3e0] sm:$0xff]
    %v3242 = vld [vmem:[%s3116 + $0x3e8] sm:$0xff]
    %v3243 = vld [vmem:[%s3116 + $0x3f0] sm:$0xff]
    %v3244 = vld [vmem:[%s3116 + $0x3f8] sm:$0xff]
    %v3245 = vld [vmem:[%s3116 + $0x400] sm:$0xff]
    %v3246 = vld [vmem:[%s3116 + $0x408] sm:$0xff]
    %v3247 = vld [vmem:[%s3116 + $0x410] sm:$0xff]
    %v3248 = vld [vmem:[%s3116 + $0x418] sm:$0xff]
    %v3249 = vld [vmem:[%s3116 + $0x420] sm:$0xff]
    %v3250 = vld [vmem:[%s3116 + $0x428] sm:$0xff]
    %v3251 = vld [vmem:[%s3116 + $0x430] sm:$0xff]
    %v3252 = vld [vmem:[%s3116 + $0x438] sm:$0xff]
    %v3253 = vld [vmem:[%s3116 + $0x440] sm:$0xff]
    %v3254 = vld [vmem:[%s3116 + $0x448] sm:$0xff]
    %v3255 = vld [vmem:[%s3116 + $0x450] sm:$0xff]
    %v3256 = vld [vmem:[%s3116 + $0x458] sm:$0xff]
    %v3257 = vld [vmem:[%s3116 + $0x460] sm:$0xff]
    %v3258 = vld [vmem:[%s3116 + $0x468] sm:$0xff]
    %v3259 = vld [vmem:[%s3116 + $0x470] sm:$0xff]
    %v3260 = vld [vmem:[%s3116 + $0x478] sm:$0xff]
    %v3261 = vld [vmem:[%s3116 + $0x480] sm:$0xff]
    %v3262 = vld [vmem:[%s3116 + $0x488] sm:$0xff]
    %v3263 = vld [vmem:[%s3116 + $0x490] sm:$0xff]
    %v3264 = vld [vmem:[%s3116 + $0x498] sm:$0xff]
    %v3265 = vld [vmem:[%s3116 + $0x4a0] sm:$0xff]
    %v3266 = vld [vmem:[%s3116 + $0x4a8] sm:$0xff]
    %v3267 = vld [vmem:[%s3116 + $0x4b0] sm:$0xff]
    %v3268 = vld [vmem:[%s3116 + $0x4b8] sm:$0xff]
    %v3269 = vld [vmem:[%s3116 + $0x4c0] sm:$0xff]
    %v3270 = vld [vmem:[%s3116 + $0x4c8] sm:$0xff]
    %v3271 = vld [vmem:[%s3116 + $0x4d0] sm:$0xff]
    %v3272 = vld [vmem:[%s3116 + $0x4d8] sm:$0xff]
    %v3273 = vld [vmem:[%s3116 + $0x4e0] sm:$0xff]
    %v3274 = vld [vmem:[%s3116 + $0x4e8] sm:$0xff]
    %v3275 = vld [vmem:[%s3116 + $0x4f0] sm:$0xff]
    %v3276 = vld [vmem:[%s3116 + $0x4f8] sm:$0xff]
    %v3277 = vld [vmem:[%s3116 + $0x500] sm:$0xff]
    %v3278 = vld [vmem:[%s3116 + $0x508] sm:$0xff]
    %v3279 = vld [vmem:[%s3116 + $0x510] sm:$0xff]
    %v3280 = vld [vmem:[%s3116 + $0x518] sm:$0xff]
    %v3281 = vld [vmem:[%s3116 + $0x520] sm:$0xff]
    %v3282 = vld [vmem:[%s3116 + $0x528] sm:$0xff]
    %v3283 = vld [vmem:[%s3116 + $0x530] sm:$0xff]
    %v3284 = vld [vmem:[%s3116 + $0x538] sm:$0xff]
    %v3285 = vld [vmem:[%s3116 + $0x540] sm:$0xff]
    %v3286 = vld [vmem:[%s3116 + $0x548] sm:$0xff]
    %v3287 = vld [vmem:[%s3116 + $0x550] sm:$0xff]
    %v3288 = vld [vmem:[%s3116 + $0x558] sm:$0xff]
    %v3289 = vld [vmem:[%s3116 + $0x560] sm:$0xff]
    %v3290 = vld [vmem:[%s3116 + $0x568] sm:$0xff]
    %v3291 = vld [vmem:[%s3116 + $0x570] sm:$0xff]
    %v3292 = vld [vmem:[%s3116 + $0x578] sm:$0xff]
    %v3293 = vld [vmem:[%s3116 + $0x580] sm:$0xff]
    %v3294 = vld [vmem:[%s3116 + $0x588] sm:$0xff]
    %v3295 = vld [vmem:[%s3116 + $0x590] sm:$0xff]
    %v3296 = vld [vmem:[%s3116 + $0x598] sm:$0xff]
    %v3297 = vld [vmem:[%s3116 + $0x5a0] sm:$0xff]
    %v3298 = vld [vmem:[%s3116 + $0x5a8] sm:$0xff]
    %v3299 = vld [vmem:[%s3116 + $0x5b0] sm:$0xff]
    %v3300 = vld [vmem:[%s3116 + $0x5b8] sm:$0xff]
    %v3301 = vld [vmem:[%s3116 + $0x5c0] sm:$0xff]
    %v3302 = vld [vmem:[%s3116 + $0x5c8] sm:$0xff]
    %v3303 = vld [vmem:[%s3116 + $0x5d0] sm:$0xff]
    %v3304 = vld [vmem:[%s3116 + $0x5d8] sm:$0xff]
    %v3305 = vld [vmem:[%s3116 + $0x5e0] sm:$0xff]
    %v3306 = vld [vmem:[%s3116 + $0x5e8] sm:$0xff]
    %v3307 = vld [vmem:[%s3116 + $0x5f0] sm:$0xff]
    %v3308 = vld [vmem:[%s3116 + $0x5f8] sm:$0xff]
    %v3309 = vld [vmem:[%s3116 + $0x600] sm:$0xff]
    %v3310 = vld [vmem:[%s3116 + $0x608] sm:$0xff]
    %v3311 = vld [vmem:[%s3116 + $0x610] sm:$0xff]
    %v3312 = vld [vmem:[%s3116 + $0x618] sm:$0xff]
    %v3313 = vld [vmem:[%s3116 + $0x620] sm:$0xff]
    %v3314 = vld [vmem:[%s3116 + $0x628] sm:$0xff]
    %v3315 = vld [vmem:[%s3116 + $0x630] sm:$0xff]
    %v3316 = vld [vmem:[%s3116 + $0x638] sm:$0xff]
    %v3317 = vld [vmem:[%s3116 + $0x640] sm:$0xff]
    %v3318 = vld [vmem:[%s3116 + $0x648] sm:$0xff]
    %v3319 = vld [vmem:[%s3116 + $0x650] sm:$0xff]
    %v3320 = vld [vmem:[%s3116 + $0x658] sm:$0xff]
    %v3321 = vld [vmem:[%s3116 + $0x660] sm:$0xff]
    %v3322 = vld [vmem:[%s3116 + $0x668] sm:$0xff]
    %v3323 = vld [vmem:[%s3116 + $0x670] sm:$0xff]
    %v3324 = vld [vmem:[%s3116 + $0x678] sm:$0xff]
    %v3325 = vld [vmem:[%s3116 + $0x680] sm:$0xff]
    %v3326 = vld [vmem:[%s3116 + $0x688] sm:$0xff]
    %v3327 = vld [vmem:[%s3116 + $0x690] sm:$0xff]
    %v3328 = vld [vmem:[%s3116 + $0x698] sm:$0xff]
    %v3329 = vld [vmem:[%s3116 + $0x6a0] sm:$0xff]
    %v3330 = vld [vmem:[%s3116 + $0x6a8] sm:$0xff]
    %v3331 = vld [vmem:[%s3116 + $0x6b0] sm:$0xff]
    %v3332 = vld [vmem:[%s3116 + $0x6b8] sm:$0xff]
    %v3333 = vld [vmem:[%s3116 + $0x6c0] sm:$0xff]
    %v3334 = vld [vmem:[%s3116 + $0x6c8] sm:$0xff]
    %v3335 = vld [vmem:[%s3116 + $0x6d0] sm:$0xff]
    %v3336 = vld [vmem:[%s3116 + $0x6d8] sm:$0xff]
    %v3337 = vld [vmem:[%s3116 + $0x6e0] sm:$0xff]
    %v3338 = vld [vmem:[%s3116 + $0x6e8] sm:$0xff]
    %v3339 = vld [vmem:[%s3116 + $0x6f0] sm:$0xff]
    %v3340 = vld [vmem:[%s3116 + $0x6f8] sm:$0xff]
    %v3341 = vld [vmem:[%s3116 + $0x700] sm:$0xff]
    %v3342 = vld [vmem:[%s3116 + $0x708] sm:$0xff]
    %v3343 = vld [vmem:[%s3116 + $0x710] sm:$0xff]
    %v3344 = vld [vmem:[%s3116 + $0x718] sm:$0xff]
    %v3345 = vld [vmem:[%s3116 + $0x720] sm:$0xff]
    %v3346 = vld [vmem:[%s3116 + $0x728] sm:$0xff]
    %v3347 = vld [vmem:[%s3116 + $0x730] sm:$0xff]
    %v3348 = vld [vmem:[%s3116 + $0x738] sm:$0xff]
    %v3349 = vld [vmem:[%s3116 + $0x740] sm:$0xff]
    %v3350 = vld [vmem:[%s3116 + $0x748] sm:$0xff]
    %v3351 = vld [vmem:[%s3116 + $0x750] sm:$0xff]
    %v3352 = vld [vmem:[%s3116 + $0x758] sm:$0xff]
    %v3353 = vld [vmem:[%s3116 + $0x760] sm:$0xff]
    %v3354 = vld [vmem:[%s3116 + $0x768] sm:$0xff]
    %v3355 = vld [vmem:[%s3116 + $0x770] sm:$0xff]
    %v3356 = vld [vmem:[%s3116 + $0x778] sm:$0xff]
    %v3357 = vld [vmem:[%s3116 + $0x780] sm:$0xff]
    %v3358 = vld [vmem:[%s3116 + $0x788] sm:$0xff]
    %v3359 = vld [vmem:[%s3116 + $0x790] sm:$0xff]
    %v3360 = vld [vmem:[%s3116 + $0x798] sm:$0xff]
    %v3361 = vld [vmem:[%s3116 + $0x7a0] sm:$0xff]
    %v3362 = vld [vmem:[%s3116 + $0x7a8] sm:$0xff]
    %v3363 = vld [vmem:[%s3116 + $0x7b0] sm:$0xff]
    %v3364 = vld [vmem:[%s3116 + $0x7b8] sm:$0xff]
    %v3365 = vld [vmem:[%s3116 + $0x7c0] sm:$0xff]
    %v3366 = vld [vmem:[%s3116 + $0x7c8] sm:$0xff]
    %v3367 = vld [vmem:[%s3116 + $0x7d0] sm:$0xff]
    %v3368 = vld [vmem:[%s3116 + $0x7d8] sm:$0xff]
    %v3369 = vld [vmem:[%s3116 + $0x7e0] sm:$0xff]
    %v3370 = vld [vmem:[%s3116 + $0x7e8] sm:$0xff]
    %v3371 = vld [vmem:[%s3116 + $0x7f0] sm:$0xff]
    %v3372 = vld [vmem:[%s3116 + $0x7f8] sm:$0xff]
    %v3373 = vld [vmem:[%s3116 + $0x800] sm:$0xff]
    %v3374 = vld [vmem:[%s3116 + $0x808] sm:$0xff]
    %v3375 = vld [vmem:[%s3116 + $0x810] sm:$0xff]
    %v3376 = vld [vmem:[%s3116 + $0x818] sm:$0xff]
    %v3377 = vld [vmem:[%s3116 + $0x820] sm:$0xff]
    %v3378 = vld [vmem:[%s3116 + $0x828] sm:$0xff]
    %v3379 = vld [vmem:[%s3116 + $0x830] sm:$0xff]
    %v3380 = vld [vmem:[%s3116 + $0x838] sm:$0xff]
    %v3381 = vld [vmem:[%s3116 + $0x840] sm:$0xff]
    %v3382 = vld [vmem:[%s3116 + $0x848] sm:$0xff]
    %v3383 = vld [vmem:[%s3116 + $0x850] sm:$0xff]
    %v3384 = vld [vmem:[%s3116 + $0x858] sm:$0xff]
    %v3385 = vld [vmem:[%s3116 + $0x860] sm:$0xff]
    %v3386 = vld [vmem:[%s3116 + $0x868] sm:$0xff]
    %v3387 = vld [vmem:[%s3116 + $0x870] sm:$0xff]
    %v3388 = vld [vmem:[%s3116 + $0x878] sm:$0xff]
    %v3389 = vld [vmem:[%s3116 + $0x880] sm:$0xff]
    %v3390 = vld [vmem:[%s3116 + $0x888] sm:$0xff]
    %v3391 = vld [vmem:[%s3116 + $0x890] sm:$0xff]
    %v3392 = vld [vmem:[%s3116 + $0x898] sm:$0xff]
    %v3393 = vld [vmem:[%s3116 + $0x8a0] sm:$0xff]
    %v3394 = vld [vmem:[%s3116 + $0x8a8] sm:$0xff]
    %v3395 = vld [vmem:[%s3116 + $0x8b0] sm:$0xff]
    %v3396 = vld [vmem:[%s3116 + $0x8b8] sm:$0xff]
    %v3397 = vld [vmem:[%s3116 + $0x8c0] sm:$0xff]
    %v3398 = vld [vmem:[%s3116 + $0x8c8] sm:$0xff]
    %v3399 = vld [vmem:[%s3116 + $0x8d0] sm:$0xff]
    %v3400 = vld [vmem:[%s3116 + $0x8d8] sm:$0xff]
    %v3401 = vld [vmem:[%s3116 + $0x8e0] sm:$0xff]
    %v3402 = vld [vmem:[%s3116 + $0x8e8] sm:$0xff]
    %v3403 = vld [vmem:[%s3116 + $0x8f0] sm:$0xff]
    %v3404 = vld [vmem:[%s3116 + $0x8f8] sm:$0xff]
    %3405 = vmatpush.msra.mxu0 %v3207
    %3406 = vmatpush.msra.mxu0 %v3201
    %3407 = vmatpush.msra.mxu0 %v3195
    %3408 = vmatpush.msra.mxu0 %v3189
    %3409 = vmatpush.msra.mxu0 %v3183
    %3410 = vmatpush.msra.mxu0 %v3177
    %3411 = vmatpush.msra.mxu0 %v3171
    %3412 = vmatpush.msra.mxu0 %v3165
    %3413 = vmatpush.msra.mxu0 %v3159
    %3414 = vmatpush.msra.mxu0 %v3153
    %3415 = vmatpush.msra.mxu0 %v3147
    %3416 = vmatpush.msra.mxu0 %v3141
    %3417 = vmatpush.msra.mxu0 %v3135
    %3418 = vmatpush.msra.mxu0 %v3129
    %3419 = vmatpush.msra.mxu0 %v3123
    %3420 = vmatpush.msra.mxu0 %v3117
    %3421 = vmatmul.f32.gmra.mxu0 %v2806
    %v3422 = vpop.f32.mrf.mxu0
    %v3423 = vadd.f32 0.0, %v3422
    %3424 = vmatmul.f32.gmra.mxu0 %v2809
    %v3425 = vpop.f32.mrf.mxu0
    %v3426 = vadd.f32 0.0, %v3425
    %3427 = vdwg.mxu0
    %3428 = vmatpush.msra.mxu0 %v3303
    %3429 = vmatpush.msra.mxu0 %v3297
    %3430 = vmatpush.msra.mxu0 %v3291
    %3431 = vmatpush.msra.mxu0 %v3285
    %3432 = vmatpush.msra.mxu0 %v3279
    %3433 = vmatpush.msra.mxu0 %v3273
    %3434 = vmatpush.msra.mxu0 %v3267
    %3435 = vmatpush.msra.mxu0 %v3261
    %3436 = vmatpush.msra.mxu0 %v3255
    %3437 = vmatpush.msra.mxu0 %v3249
    %3438 = vmatpush.msra.mxu0 %v3243
    %3439 = vmatpush.msra.mxu0 %v3237
    %3440 = vmatpush.msra.mxu0 %v3231
    %3441 = vmatpush.msra.mxu0 %v3225
    %3442 = vmatpush.msra.mxu0 %v3219
    %3443 = vmatpush.msra.mxu0 %v3213
    %3444 = vmatmul.f32.gmra.mxu0 %v2807
    %v3445 = vpop.f32.mrf.mxu0
    %v3446 = vadd.f32 %v3423, %v3445
    %3447 = vmatmul.f32.gmra.mxu0 %v2810
    %v3448 = vpop.f32.mrf.mxu0
    %v3449 = vadd.f32 %v3426, %v3448
    %3450 = vdwg.mxu0
    %3451 = vmatpush.msra.mxu0 %v3399
    %3452 = vmatpush.msra.mxu0 %v3393
    %3453 = vmatpush.msra.mxu0 %v3387
    %3454 = vmatpush.msra.mxu0 %v3381
    %3455 = vmatpush.msra.mxu0 %v3375
    %3456 = vmatpush.msra.mxu0 %v3369
    %3457 = vmatpush.msra.mxu0 %v3363
    %3458 = vmatpush.msra.mxu0 %v3357
    %3459 = vmatpush.msra.mxu0 %v3351
    %3460 = vmatpush.msra.mxu0 %v3345
    %3461 = vmatpush.msra.mxu0 %v3339
    %3462 = vmatpush.msra.mxu0 %v3333
    %3463 = vmatpush.msra.mxu0 %v3327
    %3464 = vmatpush.msra.mxu0 %v3321
    %3465 = vmatpush.msra.mxu0 %v3315
    %3466 = vmatpush.msra.mxu0 %v3309
    %3467 = vmatmul.f32.gmra.mxu0 %v2808
    %v3468 = vpop.f32.mrf.mxu0
    %v3469 = vadd.f32 %v3446, %v3468
    %3470 = vmatmul.f32.gmra.mxu0 %v2811
    %v3471 = vpop.f32.mrf.mxu0
    %v3472 = vadd.f32 %v3449, %v3471
    %3473 = vdwg.mxu0
    %3474 = vmatpush.msra.mxu0 %v3208
    %3475 = vmatpush.msra.mxu0 %v3202
    %3476 = vmatpush.msra.mxu0 %v3196
    %3477 = vmatpush.msra.mxu0 %v3190
    %3478 = vmatpush.msra.mxu0 %v3184
    %3479 = vmatpush.msra.mxu0 %v3178
    %3480 = vmatpush.msra.mxu0 %v3172
    %3481 = vmatpush.msra.mxu0 %v3166
    %3482 = vmatpush.msra.mxu0 %v3160
    %3483 = vmatpush.msra.mxu0 %v3154
    %3484 = vmatpush.msra.mxu0 %v3148
    %3485 = vmatpush.msra.mxu0 %v3142
    %3486 = vmatpush.msra.mxu0 %v3136
    %3487 = vmatpush.msra.mxu0 %v3130
    %3488 = vmatpush.msra.mxu0 %v3124
    %3489 = vmatpush.msra.mxu0 %v3118
    %3490 = vmatmul.f32.gmra.mxu0 %v2806
    %v3491 = vpop.f32.mrf.mxu0
    %v3492 = vadd.f32 0.0, %v3491
    %3493 = vmatmul.f32.gmra.mxu0 %v2809
    %v3494 = vpop.f32.mrf.mxu0
    %v3495 = vadd.f32 0.0, %v3494
    %3496 = vdwg.mxu0
    %3497 = vmatpush.msra.mxu0 %v3304
    %3498 = vmatpush.msra.mxu0 %v3298
    %3499 = vmatpush.msra.mxu0 %v3292
    %3500 = vmatpush.msra.mxu0 %v3286
    %3501 = vmatpush.msra.mxu0 %v3280
    %3502 = vmatpush.msra.mxu0 %v3274
    %3503 = vmatpush.msra.mxu0 %v3268
    %3504 = vmatpush.msra.mxu0 %v3262
    %3505 = vmatpush.msra.mxu0 %v3256
    %3506 = vmatpush.msra.mxu0 %v3250
    %3507 = vmatpush.msra.mxu0 %v3244
    %3508 = vmatpush.msra.mxu0 %v3238
    %3509 = vmatpush.msra.mxu0 %v3232
    %3510 = vmatpush.msra.mxu0 %v3226
    %3511 = vmatpush.msra.mxu0 %v3220
    %3512 = vmatpush.msra.mxu0 %v3214
    %3513 = vmatmul.f32.gmra.mxu0 %v2807
    %v3514 = vpop.f32.mrf.mxu0
    %v3515 = vadd.f32 %v3492, %v3514
    %3516 = vmatmul.f32.gmra.mxu0 %v2810
    %v3517 = vpop.f32.mrf.mxu0
    %v3518 = vadd.f32 %v3495, %v3517
    %3519 = vdwg.mxu0
    %3520 = vmatpush.msra.mxu0 %v3400
    %3521 = vmatpush.msra.mxu0 %v3394
    %3522 = vmatpush.msra.mxu0 %v3388
    %3523 = vmatpush.msra.mxu0 %v3382
    %3524 = vmatpush.msra.mxu0 %v3376
    %3525 = vmatpush.msra.mxu0 %v3370
    %3526 = vmatpush.msra.mxu0 %v3364
    %3527 = vmatpush.msra.mxu0 %v3358
    %3528 = vmatpush.msra.mxu0 %v3352
    %3529 = vmatpush.msra.mxu0 %v3346
    %3530 = vmatpush.msra.mxu0 %v3340
    %3531 = vmatpush.msra.mxu0 %v3334
    %3532 = vmatpush.msra.mxu0 %v3328
    %3533 = vmatpush.msra.mxu0 %v3322
    %3534 = vmatpush.msra.mxu0 %v3316
    %3535 = vmatpush.msra.mxu0 %v3310
    %3536 = vmatmul.f32.gmra.mxu0 %v2808
    %v3537 = vpop.f32.mrf.mxu0
    %v3538 = vadd.f32 %v3515, %v3537
    %3539 = vmatmul.f32.gmra.mxu0 %v2811
    %v3540 = vpop.f32.mrf.mxu0
    %v3541 = vadd.f32 %v3518, %v3540
    %3542 = vdwg.mxu0
    %3543 = vmatpush.msra.mxu0 %v3209
    %3544 = vmatpush.msra.mxu0 %v3203
    %3545 = vmatpush.msra.mxu0 %v3197
    %3546 = vmatpush.msra.mxu0 %v3191
    %3547 = vmatpush.msra.mxu0 %v3185
    %3548 = vmatpush.msra.mxu0 %v3179
    %3549 = vmatpush.msra.mxu0 %v3173
    %3550 = vmatpush.msra.mxu0 %v3167
    %3551 = vmatpush.msra.mxu0 %v3161
    %3552 = vmatpush.msra.mxu0 %v3155
    %3553 = vmatpush.msra.mxu0 %v3149
    %3554 = vmatpush.msra.mxu0 %v3143
    %3555 = vmatpush.msra.mxu0 %v3137
    %3556 = vmatpush.msra.mxu0 %v3131
    %3557 = vmatpush.msra.mxu0 %v3125
    %3558 = vmatpush.msra.mxu0 %v3119
    %3559 = vmatmul.f32.gmra.mxu0 %v2806
    %v3560 = vpop.f32.mrf.mxu0
    %v3561 = vadd.f32 0.0, %v3560
    %3562 = vmatmul.f32.gmra.mxu0 %v2809
    %v3563 = vpop.f32.mrf.mxu0
    %v3564 = vadd.f32 0.0, %v3563
    %3565 = vdwg.mxu0
    %3566 = vmatpush.msra.mxu0 %v3305
    %3567 = vmatpush.msra.mxu0 %v3299
    %3568 = vmatpush.msra.mxu0 %v3293
    %3569 = vmatpush.msra.mxu0 %v3287
    %3570 = vmatpush.msra.mxu0 %v3281
    %3571 = vmatpush.msra.mxu0 %v3275
    %3572 = vmatpush.msra.mxu0 %v3269
    %3573 = vmatpush.msra.mxu0 %v3263
    %3574 = vmatpush.msra.mxu0 %v3257
    %3575 = vmatpush.msra.mxu0 %v3251
    %3576 = vmatpush.msra.mxu0 %v3245
    %3577 = vmatpush.msra.mxu0 %v3239
    %3578 = vmatpush.msra.mxu0 %v3233
    %3579 = vmatpush.msra.mxu0 %v3227
    %3580 = vmatpush.msra.mxu0 %v3221
    %3581 = vmatpush.msra.mxu0 %v3215
    %3582 = vmatmul.f32.gmra.mxu0 %v2807
    %v3583 = vpop.f32.mrf.mxu0
    %v3584 = vadd.f32 %v3561, %v3583
    %3585 = vmatmul.f32.gmra.mxu0 %v2810
    %v3586 = vpop.f32.mrf.mxu0
    %v3587 = vadd.f32 %v3564, %v3586
    %3588 = vdwg.mxu0
    %3589 = vmatpush.msra.mxu0 %v3401
    %3590 = vmatpush.msra.mxu0 %v3395
    %3591 = vmatpush.msra.mxu0 %v3389
    %3592 = vmatpush.msra.mxu0 %v3383
    %3593 = vmatpush.msra.mxu0 %v3377
    %3594 = vmatpush.msra.mxu0 %v3371
    %3595 = vmatpush.msra.mxu0 %v3365
    %3596 = vmatpush.msra.mxu0 %v3359
    %3597 = vmatpush.msra.mxu0 %v3353
    %3598 = vmatpush.msra.mxu0 %v3347
    %3599 = vmatpush.msra.mxu0 %v3341
    %3600 = vmatpush.msra.mxu0 %v3335
    %3601 = vmatpush.msra.mxu0 %v3329
    %3602 = vmatpush.msra.mxu0 %v3323
    %3603 = vmatpush.msra.mxu0 %v3317
    %3604 = vmatpush.msra.mxu0 %v3311
    %3605 = vmatmul.f32.gmra.mxu0 %v2808
    %v3606 = vpop.f32.mrf.mxu0
    %v3607 = vadd.f32 %v3584, %v3606
    %3608 = vmatmul.f32.gmra.mxu0 %v2811
    %v3609 = vpop.f32.mrf.mxu0
    %v3610 = vadd.f32 %v3587, %v3609
    %3611 = vdwg.mxu0
    %3612 = vmatpush.msra.mxu0 %v3210
    %3613 = vmatpush.msra.mxu0 %v3204
    %3614 = vmatpush.msra.mxu0 %v3198
    %3615 = vmatpush.msra.mxu0 %v3192
    %3616 = vmatpush.msra.mxu0 %v3186
    %3617 = vmatpush.msra.mxu0 %v3180
    %3618 = vmatpush.msra.mxu0 %v3174
    %3619 = vmatpush.msra.mxu0 %v3168
    %3620 = vmatpush.msra.mxu0 %v3162
    %3621 = vmatpush.msra.mxu0 %v3156
    %3622 = vmatpush.msra.mxu0 %v3150
    %3623 = vmatpush.msra.mxu0 %v3144
    %3624 = vmatpush.msra.mxu0 %v3138
    %3625 = vmatpush.msra.mxu0 %v3132
    %3626 = vmatpush.msra.mxu0 %v3126
    %3627 = vmatpush.msra.mxu0 %v3120
    %3628 = vmatmul.f32.gmra.mxu0 %v2806
    %v3629 = vpop.f32.mrf.mxu0
    %v3630 = vadd.f32 0.0, %v3629
    %3631 = vmatmul.f32.gmra.mxu0 %v2809
    %v3632 = vpop.f32.mrf.mxu0
    %v3633 = vadd.f32 0.0, %v3632
    %3634 = vdwg.mxu0
    %3635 = vmatpush.msra.mxu0 %v3306
    %3636 = vmatpush.msra.mxu0 %v3300
    %3637 = vmatpush.msra.mxu0 %v3294
    %3638 = vmatpush.msra.mxu0 %v3288
    %3639 = vmatpush.msra.mxu0 %v3282
    %3640 = vmatpush.msra.mxu0 %v3276
    %3641 = vmatpush.msra.mxu0 %v3270
    %3642 = vmatpush.msra.mxu0 %v3264
    %3643 = vmatpush.msra.mxu0 %v3258
    %3644 = vmatpush.msra.mxu0 %v3252
    %3645 = vmatpush.msra.mxu0 %v3246
    %3646 = vmatpush.msra.mxu0 %v3240
    %3647 = vmatpush.msra.mxu0 %v3234
    %3648 = vmatpush.msra.mxu0 %v3228
    %3649 = vmatpush.msra.mxu0 %v3222
    %3650 = vmatpush.msra.mxu0 %v3216
    %3651 = vmatmul.f32.gmra.mxu0 %v2807
    %v3652 = vpop.f32.mrf.mxu0
    %v3653 = vadd.f32 %v3630, %v3652
    %3654 = vmatmul.f32.gmra.mxu0 %v2810
    %v3655 = vpop.f32.mrf.mxu0
    %v3656 = vadd.f32 %v3633, %v3655
    %3657 = vdwg.mxu0
    %3658 = vmatpush.msra.mxu0 %v3402
    %3659 = vmatpush.msra.mxu0 %v3396
    %3660 = vmatpush.msra.mxu0 %v3390
    %3661 = vmatpush.msra.mxu0 %v3384
    %3662 = vmatpush.msra.mxu0 %v3378
    %3663 = vmatpush.msra.mxu0 %v3372
    %3664 = vmatpush.msra.mxu0 %v3366
    %3665 = vmatpush.msra.mxu0 %v3360
    %3666 = vmatpush.msra.mxu0 %v3354
    %3667 = vmatpush.msra.mxu0 %v3348
    %3668 = vmatpush.msra.mxu0 %v3342
    %3669 = vmatpush.msra.mxu0 %v3336
    %3670 = vmatpush.msra.mxu0 %v3330
    %3671 = vmatpush.msra.mxu0 %v3324
    %3672 = vmatpush.msra.mxu0 %v3318
    %3673 = vmatpush.msra.mxu0 %v3312
    %3674 = vmatmul.f32.gmra.mxu0 %v2808
    %v3675 = vpop.f32.mrf.mxu0
    %v3676 = vadd.f32 %v3653, %v3675
    %3677 = vmatmul.f32.gmra.mxu0 %v2811
    %v3678 = vpop.f32.mrf.mxu0
    %v3679 = vadd.f32 %v3656, %v3678
    %3680 = vdwg.mxu0
    %3681 = vmatpush.msra.mxu0 %v3211
    %3682 = vmatpush.msra.mxu0 %v3205
    %3683 = vmatpush.msra.mxu0 %v3199
    %3684 = vmatpush.msra.mxu0 %v3193
    %3685 = vmatpush.msra.mxu0 %v3187
    %3686 = vmatpush.msra.mxu0 %v3181
    %3687 = vmatpush.msra.mxu0 %v3175
    %3688 = vmatpush.msra.mxu0 %v3169
    %3689 = vmatpush.msra.mxu0 %v3163
    %3690 = vmatpush.msra.mxu0 %v3157
    %3691 = vmatpush.msra.mxu0 %v3151
    %3692 = vmatpush.msra.mxu0 %v3145
    %3693 = vmatpush.msra.mxu0 %v3139
    %3694 = vmatpush.msra.mxu0 %v3133
    %3695 = vmatpush.msra.mxu0 %v3127
    %3696 = vmatpush.msra.mxu0 %v3121
    %3697 = vmatmul.f32.gmra.mxu0 %v2806
    %v3698 = vpop.f32.mrf.mxu0
    %v3699 = vadd.f32 0.0, %v3698
    %3700 = vmatmul.f32.gmra.mxu0 %v2809
    %v3701 = vpop.f32.mrf.mxu0
    %v3702 = vadd.f32 0.0, %v3701
    %3703 = vdwg.mxu0
    %3704 = vmatpush.msra.mxu0 %v3307
    %3705 = vmatpush.msra.mxu0 %v3301
    %3706 = vmatpush.msra.mxu0 %v3295
    %3707 = vmatpush.msra.mxu0 %v3289
    %3708 = vmatpush.msra.mxu0 %v3283
    %3709 = vmatpush.msra.mxu0 %v3277
    %3710 = vmatpush.msra.mxu0 %v3271
    %3711 = vmatpush.msra.mxu0 %v3265
    %3712 = vmatpush.msra.mxu0 %v3259
    %3713 = vmatpush.msra.mxu0 %v3253
    %3714 = vmatpush.msra.mxu0 %v3247
    %3715 = vmatpush.msra.mxu0 %v3241
    %3716 = vmatpush.msra.mxu0 %v3235
    %3717 = vmatpush.msra.mxu0 %v3229
    %3718 = vmatpush.msra.mxu0 %v3223
    %3719 = vmatpush.msra.mxu0 %v3217
    %3720 = vmatmul.f32.gmra.mxu0 %v2807
    %v3721 = vpop.f32.mrf.mxu0
    %v3722 = vadd.f32 %v3699, %v3721
    %3723 = vmatmul.f32.gmra.mxu0 %v2810
    %v3724 = vpop.f32.mrf.mxu0
    %v3725 = vadd.f32 %v3702, %v3724
    %3726 = vdwg.mxu0
    %3727 = vmatpush.msra.mxu0 %v3403
    %3728 = vmatpush.msra.mxu0 %v3397
    %3729 = vmatpush.msra.mxu0 %v3391
    %3730 = vmatpush.msra.mxu0 %v3385
    %3731 = vmatpush.msra.mxu0 %v3379
    %3732 = vmatpush.msra.mxu0 %v3373
    %3733 = vmatpush.msra.mxu0 %v3367
    %3734 = vmatpush.msra.mxu0 %v3361
    %3735 = vmatpush.msra.mxu0 %v3355
    %3736 = vmatpush.msra.mxu0 %v3349
    %3737 = vmatpush.msra.mxu0 %v3343
    %3738 = vmatpush.msra.mxu0 %v3337
    %3739 = vmatpush.msra.mxu0 %v3331
    %3740 = vmatpush.msra.mxu0 %v3325
    %3741 = vmatpush.msra.mxu0 %v3319
    %3742 = vmatpush.msra.mxu0 %v3313
    %3743 = vmatmul.f32.gmra.mxu0 %v2808
    %v3744 = vpop.f32.mrf.mxu0
    %v3745 = vadd.f32 %v3722, %v3744
    %3746 = vmatmul.f32.gmra.mxu0 %v2811
    %v3747 = vpop.f32.mrf.mxu0
    %v3748 = vadd.f32 %v3725, %v3747
    %3749 = vdwg.mxu0
    %3750 = vmatpush.msra.mxu0 %v3212
    %3751 = vmatpush.msra.mxu0 %v3206
    %3752 = vmatpush.msra.mxu0 %v3200
    %3753 = vmatpush.msra.mxu0 %v3194
    %3754 = vmatpush.msra.mxu0 %v3188
    %3755 = vmatpush.msra.mxu0 %v3182
    %3756 = vmatpush.msra.mxu0 %v3176
    %3757 = vmatpush.msra.mxu0 %v3170
    %3758 = vmatpush.msra.mxu0 %v3164
    %3759 = vmatpush.msra.mxu0 %v3158
    %3760 = vmatpush.msra.mxu0 %v3152
    %3761 = vmatpush.msra.mxu0 %v3146
    %3762 = vmatpush.msra.mxu0 %v3140
    %3763 = vmatpush.msra.mxu0 %v3134
    %3764 = vmatpush.msra.mxu0 %v3128
    %3765 = vmatpush.msra.mxu0 %v3122
    %3766 = vmatmul.f32.gmra.mxu0 %v2806
    %v3767 = vpop.f32.mrf.mxu0
    %v3768 = vadd.f32 0.0, %v3767
    %3769 = vmatmul.f32.gmra.mxu0 %v2809
    %v3770 = vpop.f32.mrf.mxu0
    %v3771 = vadd.f32 0.0, %v3770
    %3772 = vdwg.mxu0
    %3773 = vmatpush.msra.mxu0 %v3308
    %3774 = vmatpush.msra.mxu0 %v3302
    %3775 = vmatpush.msra.mxu0 %v3296
    %3776 = vmatpush.msra.mxu0 %v3290
    %3777 = vmatpush.msra.mxu0 %v3284
    %3778 = vmatpush.msra.mxu0 %v3278
    %3779 = vmatpush.msra.mxu0 %v3272
    %3780 = vmatpush.msra.mxu0 %v3266
    %3781 = vmatpush.msra.mxu0 %v3260
    %3782 = vmatpush.msra.mxu0 %v3254
    %3783 = vmatpush.msra.mxu0 %v3248
    %3784 = vmatpush.msra.mxu0 %v3242
    %3785 = vmatpush.msra.mxu0 %v3236
    %3786 = vmatpush.msra.mxu0 %v3230
    %3787 = vmatpush.msra.mxu0 %v3224
    %3788 = vmatpush.msra.mxu0 %v3218
    %3789 = vmatmul.f32.gmra.mxu0 %v2807
    %v3790 = vpop.f32.mrf.mxu0
    %v3791 = vadd.f32 %v3768, %v3790
    %3792 = vmatmul.f32.gmra.mxu0 %v2810
    %v3793 = vpop.f32.mrf.mxu0
    %v3794 = vadd.f32 %v3771, %v3793
    %3795 = vdwg.mxu0
    %3796 = vmatpush.msra.mxu0 %v3404
    %3797 = vmatpush.msra.mxu0 %v3398
    %3798 = vmatpush.msra.mxu0 %v3392
    %3799 = vmatpush.msra.mxu0 %v3386
    %3800 = vmatpush.msra.mxu0 %v3380
    %3801 = vmatpush.msra.mxu0 %v3374
    %3802 = vmatpush.msra.mxu0 %v3368
    %3803 = vmatpush.msra.mxu0 %v3362
    %3804 = vmatpush.msra.mxu0 %v3356
    %3805 = vmatpush.msra.mxu0 %v3350
    %3806 = vmatpush.msra.mxu0 %v3344
    %3807 = vmatpush.msra.mxu0 %v3338
    %3808 = vmatpush.msra.mxu0 %v3332
    %3809 = vmatpush.msra.mxu0 %v3326
    %3810 = vmatpush.msra.mxu0 %v3320
    %3811 = vmatpush.msra.mxu0 %v3314
    %3812 = vmatmul.f32.gmra.mxu0 %v2808
    %v3813 = vpop.f32.mrf.mxu0
    %v3814 = vadd.f32 %v3791, %v3813
    %3815 = vmatmul.f32.gmra.mxu0 %v2811
    %v3816 = vpop.f32.mrf.mxu0
    %v3817 = vadd.f32 %v3794, %v3816
    %3818 = vdwg.mxu0
    %3819 = vmatpush.msra.mxu0 %v2918
    %3820 = vmatpush.msra.mxu0 %v2912
    %3821 = vmatpush.msra.mxu0 %v2906
    %3822 = vmatpush.msra.mxu0 %v2900
    %3823 = vmatpush.msra.mxu0 %v2894
    %3824 = vmatpush.msra.mxu0 %v2888
    %3825 = vmatpush.msra.mxu0 %v2882
    %3826 = vmatpush.msra.mxu0 %v2876
    %3827 = vmatpush.msra.mxu0 %v2870
    %3828 = vmatpush.msra.mxu0 %v2864
    %3829 = vmatpush.msra.mxu0 %v2858
    %3830 = vmatpush.msra.mxu0 %v2852
    %3831 = vmatpush.msra.mxu0 %v2846
    %3832 = vmatpush.msra.mxu0 %v2840
    %3833 = vmatpush.msra.mxu0 %v2834
    %3834 = vmatpush.msra.mxu0 %v2828
    %3835 = vmatmul.f32.gmra.mxu0 %v2800
    %v3836 = vpop.f32.mrf.mxu0
    %v3837 = vadd.f32 %v3469, %v3836
    %3838 = vmatmul.f32.gmra.mxu0 %v2803
    %v3839 = vpop.f32.mrf.mxu0
    %v3840 = vadd.f32 %v3472, %v3839
    %3841 = vdwg.mxu0
    %3842 = vmatpush.msra.mxu0 %v3014
    %3843 = vmatpush.msra.mxu0 %v3008
    %3844 = vmatpush.msra.mxu0 %v3002
    %3845 = vmatpush.msra.mxu0 %v2996
    %3846 = vmatpush.msra.mxu0 %v2990
    %3847 = vmatpush.msra.mxu0 %v2984
    %3848 = vmatpush.msra.mxu0 %v2978
    %3849 = vmatpush.msra.mxu0 %v2972
    %3850 = vmatpush.msra.mxu0 %v2966
    %3851 = vmatpush.msra.mxu0 %v2960
    %3852 = vmatpush.msra.mxu0 %v2954
    %3853 = vmatpush.msra.mxu0 %v2948
    %3854 = vmatpush.msra.mxu0 %v2942
    %3855 = vmatpush.msra.mxu0 %v2936
    %3856 = vmatpush.msra.mxu0 %v2930
    %3857 = vmatpush.msra.mxu0 %v2924
    %3858 = vmatmul.f32.gmra.mxu0 %v2801
    %v3859 = vpop.f32.mrf.mxu0
    %v3860 = vadd.f32 %v3837, %v3859
    %3861 = vmatmul.f32.gmra.mxu0 %v2804
    %v3862 = vpop.f32.mrf.mxu0
    %v3863 = vadd.f32 %v3840, %v3862
    %3864 = vdwg.mxu0
    %3865 = vmatpush.msra.mxu0 %v3110
    %3866 = vmatpush.msra.mxu0 %v3104
    %3867 = vmatpush.msra.mxu0 %v3098
    %3868 = vmatpush.msra.mxu0 %v3092
    %3869 = vmatpush.msra.mxu0 %v3086
    %3870 = vmatpush.msra.mxu0 %v3080
    %3871 = vmatpush.msra.mxu0 %v3074
    %3872 = vmatpush.msra.mxu0 %v3068
    %3873 = vmatpush.msra.mxu0 %v3062
    %3874 = vmatpush.msra.mxu0 %v3056
    %3875 = vmatpush.msra.mxu0 %v3050
    %3876 = vmatpush.msra.mxu0 %v3044
    %3877 = vmatpush.msra.mxu0 %v3038
    %3878 = vmatpush.msra.mxu0 %v3032
    %3879 = vmatpush.msra.mxu0 %v3026
    %3880 = vmatpush.msra.mxu0 %v3020
    %3881 = vmatmul.f32.gmra.mxu0 %v2802
    %v3882 = vpop.f32.mrf.mxu0
    %v3883 = vadd.f32 %v3860, %v3882
    %3884 = vmatmul.f32.gmra.mxu0 %v2805
    %v3885 = vpop.f32.mrf.mxu0
    %v3886 = vadd.f32 %v3863, %v3885
    %3887 = vdwg.mxu0
    %3888 = vmatpush.msra.mxu0 %v2919
    %3889 = vmatpush.msra.mxu0 %v2913
    %3890 = vmatpush.msra.mxu0 %v2907
    %3891 = vmatpush.msra.mxu0 %v2901
    %3892 = vmatpush.msra.mxu0 %v2895
    %3893 = vmatpush.msra.mxu0 %v2889
    %3894 = vmatpush.msra.mxu0 %v2883
    %3895 = vmatpush.msra.mxu0 %v2877
    %3896 = vmatpush.msra.mxu0 %v2871
    %3897 = vmatpush.msra.mxu0 %v2865
    %3898 = vmatpush.msra.mxu0 %v2859
    %3899 = vmatpush.msra.mxu0 %v2853
    %3900 = vmatpush.msra.mxu0 %v2847
    %3901 = vmatpush.msra.mxu0 %v2841
    %3902 = vmatpush.msra.mxu0 %v2835
    %3903 = vmatpush.msra.mxu0 %v2829
    %3904 = vmatmul.f32.gmra.mxu0 %v2800
    %v3905 = vpop.f32.mrf.mxu0
    %v3906 = vadd.f32 %v3538, %v3905
    %3907 = vmatmul.f32.gmra.mxu0 %v2803
    %v3908 = vpop.f32.mrf.mxu0
    %v3909 = vadd.f32 %v3541, %v3908
    %3910 = vdwg.mxu0
    %3911 = vmatpush.msra.mxu0 %v3015
    %3912 = vmatpush.msra.mxu0 %v3009
    %3913 = vmatpush.msra.mxu0 %v3003
    %3914 = vmatpush.msra.mxu0 %v2997
    %3915 = vmatpush.msra.mxu0 %v2991
    %3916 = vmatpush.msra.mxu0 %v2985
    %3917 = vmatpush.msra.mxu0 %v2979
    %3918 = vmatpush.msra.mxu0 %v2973
    %3919 = vmatpush.msra.mxu0 %v2967
    %3920 = vmatpush.msra.mxu0 %v2961
    %3921 = vmatpush.msra.mxu0 %v2955
    %3922 = vmatpush.msra.mxu0 %v2949
    %3923 = vmatpush.msra.mxu0 %v2943
    %3924 = vmatpush.msra.mxu0 %v2937
    %3925 = vmatpush.msra.mxu0 %v2931
    %3926 = vmatpush.msra.mxu0 %v2925
    %3927 = vmatmul.f32.gmra.mxu0 %v2801
    %v3928 = vpop.f32.mrf.mxu0
    %v3929 = vadd.f32 %v3906, %v3928
    %3930 = vmatmul.f32.gmra.mxu0 %v2804
    %v3931 = vpop.f32.mrf.mxu0
    %v3932 = vadd.f32 %v3909, %v3931
    %3933 = vdwg.mxu0
    %3934 = vmatpush.msra.mxu0 %v3111
    %3935 = vmatpush.msra.mxu0 %v3105
    %3936 = vmatpush.msra.mxu0 %v3099
    %3937 = vmatpush.msra.mxu0 %v3093
    %3938 = vmatpush.msra.mxu0 %v3087
    %3939 = vmatpush.msra.mxu0 %v3081
    %3940 = vmatpush.msra.mxu0 %v3075
    %3941 = vmatpush.msra.mxu0 %v3069
    %3942 = vmatpush.msra.mxu0 %v3063
    %3943 = vmatpush.msra.mxu0 %v3057
    %3944 = vmatpush.msra.mxu0 %v3051
    %3945 = vmatpush.msra.mxu0 %v3045
    %3946 = vmatpush.msra.mxu0 %v3039
    %3947 = vmatpush.msra.mxu0 %v3033
    %3948 = vmatpush.msra.mxu0 %v3027
    %3949 = vmatpush.msra.mxu0 %v3021
    %3950 = vmatmul.f32.gmra.mxu0 %v2802
    %v3951 = vpop.f32.mrf.mxu0
    %v3952 = vadd.f32 %v3929, %v3951
    %3953 = vmatmul.f32.gmra.mxu0 %v2805
    %v3954 = vpop.f32.mrf.mxu0
    %v3955 = vadd.f32 %v3932, %v3954
    %3956 = vdwg.mxu0
    %3957 = vmatpush.msra.mxu0 %v2920
    %3958 = vmatpush.msra.mxu0 %v2914
    %3959 = vmatpush.msra.mxu0 %v2908
    %3960 = vmatpush.msra.mxu0 %v2902
    %3961 = vmatpush.msra.mxu0 %v2896
    %3962 = vmatpush.msra.mxu0 %v2890
    %3963 = vmatpush.msra.mxu0 %v2884
    %3964 = vmatpush.msra.mxu0 %v2878
    %3965 = vmatpush.msra.mxu0 %v2872
    %3966 = vmatpush.msra.mxu0 %v2866
    %3967 = vmatpush.msra.mxu0 %v2860
    %3968 = vmatpush.msra.mxu0 %v2854
    %3969 = vmatpush.msra.mxu0 %v2848
    %3970 = vmatpush.msra.mxu0 %v2842
    %3971 = vmatpush.msra.mxu0 %v2836
    %3972 = vmatpush.msra.mxu0 %v2830
    %3973 = vmatmul.f32.gmra.mxu0 %v2800
    %v3974 = vpop.f32.mrf.mxu0
    %v3975 = vadd.f32 %v3607, %v3974
    %3976 = vmatmul.f32.gmra.mxu0 %v2803
    %v3977 = vpop.f32.mrf.mxu0
    %v3978 = vadd.f32 %v3610, %v3977
    %3979 = vdwg.mxu0
    %3980 = vmatpush.msra.mxu0 %v3016
    %3981 = vmatpush.msra.mxu0 %v3010
    %3982 = vmatpush.msra.mxu0 %v3004
    %3983 = vmatpush.msra.mxu0 %v2998
    %3984 = vmatpush.msra.mxu0 %v2992
    %3985 = vmatpush.msra.mxu0 %v2986
    %3986 = vmatpush.msra.mxu0 %v2980
    %3987 = vmatpush.msra.mxu0 %v2974
    %3988 = vmatpush.msra.mxu0 %v2968
    %3989 = vmatpush.msra.mxu0 %v2962
    %3990 = vmatpush.msra.mxu0 %v2956
    %3991 = vmatpush.msra.mxu0 %v2950
    %3992 = vmatpush.msra.mxu0 %v2944
    %3993 = vmatpush.msra.mxu0 %v2938
    %3994 = vmatpush.msra.mxu0 %v2932
    %3995 = vmatpush.msra.mxu0 %v2926
    %3996 = vmatmul.f32.gmra.mxu0 %v2801
    %v3997 = vpop.f32.mrf.mxu0
    %v3998 = vadd.f32 %v3975, %v3997
    %3999 = vmatmul.f32.gmra.mxu0 %v2804
    %v4000 = vpop.f32.mrf.mxu0
    %v4001 = vadd.f32 %v3978, %v4000
    %4002 = vdwg.mxu0
    %4003 = vmatpush.msra.mxu0 %v3112
    %4004 = vmatpush.msra.mxu0 %v3106
    %4005 = vmatpush.msra.mxu0 %v3100
    %4006 = vmatpush.msra.mxu0 %v3094
    %4007 = vmatpush.msra.mxu0 %v3088
    %4008 = vmatpush.msra.mxu0 %v3082
    %4009 = vmatpush.msra.mxu0 %v3076
    %4010 = vmatpush.msra.mxu0 %v3070
    %4011 = vmatpush.msra.mxu0 %v3064
    %4012 = vmatpush.msra.mxu0 %v3058
    %4013 = vmatpush.msra.mxu0 %v3052
    %4014 = vmatpush.msra.mxu0 %v3046
    %4015 = vmatpush.msra.mxu0 %v3040
    %4016 = vmatpush.msra.mxu0 %v3034
    %4017 = vmatpush.msra.mxu0 %v3028
    %4018 = vmatpush.msra.mxu0 %v3022
    %4019 = vmatmul.f32.gmra.mxu0 %v2802
    %v4020 = vpop.f32.mrf.mxu0
    %v4021 = vadd.f32 %v3998, %v4020
    %4022 = vmatmul.f32.gmra.mxu0 %v2805
    %v4023 = vpop.f32.mrf.mxu0
    %v4024 = vadd.f32 %v4001, %v4023
    %4025 = vdwg.mxu0
    %4026 = vmatpush.msra.mxu0 %v2921
    %4027 = vmatpush.msra.mxu0 %v2915
    %4028 = vmatpush.msra.mxu0 %v2909
    %4029 = vmatpush.msra.mxu0 %v2903
    %4030 = vmatpush.msra.mxu0 %v2897
    %4031 = vmatpush.msra.mxu0 %v2891
    %4032 = vmatpush.msra.mxu0 %v2885
    %4033 = vmatpush.msra.mxu0 %v2879
    %4034 = vmatpush.msra.mxu0 %v2873
    %4035 = vmatpush.msra.mxu0 %v2867
    %4036 = vmatpush.msra.mxu0 %v2861
    %4037 = vmatpush.msra.mxu0 %v2855
    %4038 = vmatpush.msra.mxu0 %v2849
    %4039 = vmatpush.msra.mxu0 %v2843
    %4040 = vmatpush.msra.mxu0 %v2837
    %4041 = vmatpush.msra.mxu0 %v2831
    %4042 = vmatmul.f32.gmra.mxu0 %v2800
    %v4043 = vpop.f32.mrf.mxu0
    %v4044 = vadd.f32 %v3676, %v4043
    %4045 = vmatmul.f32.gmra.mxu0 %v2803
    %v4046 = vpop.f32.mrf.mxu0
    %v4047 = vadd.f32 %v3679, %v4046
    %4048 = vdwg.mxu0
    %4049 = vmatpush.msra.mxu0 %v3017
    %4050 = vmatpush.msra.mxu0 %v3011
    %4051 = vmatpush.msra.mxu0 %v3005
    %4052 = vmatpush.msra.mxu0 %v2999
    %4053 = vmatpush.msra.mxu0 %v2993
    %4054 = vmatpush.msra.mxu0 %v2987
    %4055 = vmatpush.msra.mxu0 %v2981
    %4056 = vmatpush.msra.mxu0 %v2975
    %4057 = vmatpush.msra.mxu0 %v2969
    %4058 = vmatpush.msra.mxu0 %v2963
    %4059 = vmatpush.msra.mxu0 %v2957
    %4060 = vmatpush.msra.mxu0 %v2951
    %4061 = vmatpush.msra.mxu0 %v2945
    %4062 = vmatpush.msra.mxu0 %v2939
    %4063 = vmatpush.msra.mxu0 %v2933
    %4064 = vmatpush.msra.mxu0 %v2927
    %4065 = vmatmul.f32.gmra.mxu0 %v2801
    %v4066 = vpop.f32.mrf.mxu0
    %v4067 = vadd.f32 %v4044, %v4066
    %4068 = vmatmul.f32.gmra.mxu0 %v2804
    %v4069 = vpop.f32.mrf.mxu0
    %v4070 = vadd.f32 %v4047, %v4069
    %4071 = vdwg.mxu0
    %4072 = vmatpush.msra.mxu0 %v3113
    %4073 = vmatpush.msra.mxu0 %v3107
    %4074 = vmatpush.msra.mxu0 %v3101
    %4075 = vmatpush.msra.mxu0 %v3095
    %4076 = vmatpush.msra.mxu0 %v3089
    %4077 = vmatpush.msra.mxu0 %v3083
    %4078 = vmatpush.msra.mxu0 %v3077
    %4079 = vmatpush.msra.mxu0 %v3071
    %4080 = vmatpush.msra.mxu0 %v3065
    %4081 = vmatpush.msra.mxu0 %v3059
    %4082 = vmatpush.msra.mxu0 %v3053
    %4083 = vmatpush.msra.mxu0 %v3047
    %4084 = vmatpush.msra.mxu0 %v3041
    %4085 = vmatpush.msra.mxu0 %v3035
    %4086 = vmatpush.msra.mxu0 %v3029
    %4087 = vmatpush.msra.mxu0 %v3023
    %4088 = vmatmul.f32.gmra.mxu0 %v2802
    %v4089 = vpop.f32.mrf.mxu0
    %v4090 = vadd.f32 %v4067, %v4089
    %4091 = vmatmul.f32.gmra.mxu0 %v2805
    %v4092 = vpop.f32.mrf.mxu0
    %v4093 = vadd.f32 %v4070, %v4092
    %4094 = vdwg.mxu0
    %4095 = vmatpush.msra.mxu0 %v2922
    %4096 = vmatpush.msra.mxu0 %v2916
    %4097 = vmatpush.msra.mxu0 %v2910
    %4098 = vmatpush.msra.mxu0 %v2904
    %4099 = vmatpush.msra.mxu0 %v2898
    %4100 = vmatpush.msra.mxu0 %v2892
    %4101 = vmatpush.msra.mxu0 %v2886
    %4102 = vmatpush.msra.mxu0 %v2880
    %4103 = vmatpush.msra.mxu0 %v2874
    %4104 = vmatpush.msra.mxu0 %v2868
    %4105 = vmatpush.msra.mxu0 %v2862
    %4106 = vmatpush.msra.mxu0 %v2856
    %4107 = vmatpush.msra.mxu0 %v2850
    %4108 = vmatpush.msra.mxu0 %v2844
    %4109 = vmatpush.msra.mxu0 %v2838
    %4110 = vmatpush.msra.mxu0 %v2832
    %4111 = vmatmul.f32.gmra.mxu0 %v2800
    %v4112 = vpop.f32.mrf.mxu0
    %v4113 = vadd.f32 %v3745, %v4112
    %4114 = vmatmul.f32.gmra.mxu0 %v2803
    %v4115 = vpop.f32.mrf.mxu0
    %v4116 = vadd.f32 %v3748, %v4115
    %4117 = vdwg.mxu0
    %4118 = vmatpush.msra.mxu0 %v3018
    %4119 = vmatpush.msra.mxu0 %v3012
    %4120 = vmatpush.msra.mxu0 %v3006
    %4121 = vmatpush.msra.mxu0 %v3000
    %4122 = vmatpush.msra.mxu0 %v2994
    %4123 = vmatpush.msra.mxu0 %v2988
    %4124 = vmatpush.msra.mxu0 %v2982
    %4125 = vmatpush.msra.mxu0 %v2976
    %4126 = vmatpush.msra.mxu0 %v2970
    %4127 = vmatpush.msra.mxu0 %v2964
    %4128 = vmatpush.msra.mxu0 %v2958
    %4129 = vmatpush.msra.mxu0 %v2952
    %4130 = vmatpush.msra.mxu0 %v2946
    %4131 = vmatpush.msra.mxu0 %v2940
    %4132 = vmatpush.msra.mxu0 %v2934
    %4133 = vmatpush.msra.mxu0 %v2928
    %4134 = vmatmul.f32.gmra.mxu0 %v2801
    %v4135 = vpop.f32.mrf.mxu0
    %v4136 = vadd.f32 %v4113, %v4135
    %4137 = vmatmul.f32.gmra.mxu0 %v2804
    %v4138 = vpop.f32.mrf.mxu0
    %v4139 = vadd.f32 %v4116, %v4138
    %4140 = vdwg.mxu0
    %4141 = vmatpush.msra.mxu0 %v3114
    %4142 = vmatpush.msra.mxu0 %v3108
    %4143 = vmatpush.msra.mxu0 %v3102
    %4144 = vmatpush.msra.mxu0 %v3096
    %4145 = vmatpush.msra.mxu0 %v3090
    %4146 = vmatpush.msra.mxu0 %v3084
    %4147 = vmatpush.msra.mxu0 %v3078
    %4148 = vmatpush.msra.mxu0 %v3072
    %4149 = vmatpush.msra.mxu0 %v3066
    %4150 = vmatpush.msra.mxu0 %v3060
    %4151 = vmatpush.msra.mxu0 %v3054
    %4152 = vmatpush.msra.mxu0 %v3048
    %4153 = vmatpush.msra.mxu0 %v3042
    %4154 = vmatpush.msra.mxu0 %v3036
    %4155 = vmatpush.msra.mxu0 %v3030
    %4156 = vmatpush.msra.mxu0 %v3024
    %4157 = vmatmul.f32.gmra.mxu0 %v2802
    %v4158 = vpop.f32.mrf.mxu0
    %v4159 = vadd.f32 %v4136, %v4158
    %4160 = vmatmul.f32.gmra.mxu0 %v2805
    %v4161 = vpop.f32.mrf.mxu0
    %v4162 = vadd.f32 %v4139, %v4161
    %4163 = vdwg.mxu0
    %4164 = vmatpush.msra.mxu0 %v2923
    %4165 = vmatpush.msra.mxu0 %v2917
    %4166 = vmatpush.msra.mxu0 %v2911
    %4167 = vmatpush.msra.mxu0 %v2905
    %4168 = vmatpush.msra.mxu0 %v2899
    %4169 = vmatpush.msra.mxu0 %v2893
    %4170 = vmatpush.msra.mxu0 %v2887
    %4171 = vmatpush.msra.mxu0 %v2881
    %4172 = vmatpush.msra.mxu0 %v2875
    %4173 = vmatpush.msra.mxu0 %v2869
    %4174 = vmatpush.msra.mxu0 %v2863
    %4175 = vmatpush.msra.mxu0 %v2857
    %4176 = vmatpush.msra.mxu0 %v2851
    %4177 = vmatpush.msra.mxu0 %v2845
    %4178 = vmatpush.msra.mxu0 %v2839
    %4179 = vmatpush.msra.mxu0 %v2833
    %4180 = vmatmul.f32.gmra.mxu0 %v2800
    %v4181 = vpop.f32.mrf.mxu0
    %v4182 = vadd.f32 %v3814, %v4181
    %4183 = vmatmul.f32.gmra.mxu0 %v2803
    %v4184 = vpop.f32.mrf.mxu0
    %v4185 = vadd.f32 %v3817, %v4184
    %4186 = vdwg.mxu0
    %4187 = vmatpush.msra.mxu0 %v3019
    %4188 = vmatpush.msra.mxu0 %v3013
    %4189 = vmatpush.msra.mxu0 %v3007
    %4190 = vmatpush.msra.mxu0 %v3001
    %4191 = vmatpush.msra.mxu0 %v2995
    %4192 = vmatpush.msra.mxu0 %v2989
    %4193 = vmatpush.msra.mxu0 %v2983
    %4194 = vmatpush.msra.mxu0 %v2977
    %4195 = vmatpush.msra.mxu0 %v2971
    %4196 = vmatpush.msra.mxu0 %v2965
    %4197 = vmatpush.msra.mxu0 %v2959
    %4198 = vmatpush.msra.mxu0 %v2953
    %4199 = vmatpush.msra.mxu0 %v2947
    %4200 = vmatpush.msra.mxu0 %v2941
    %4201 = vmatpush.msra.mxu0 %v2935
    %4202 = vmatpush.msra.mxu0 %v2929
    %4203 = vmatmul.f32.gmra.mxu0 %v2801
    %v4204 = vpop.f32.mrf.mxu0
    %v4205 = vadd.f32 %v4182, %v4204
    %4206 = vmatmul.f32.gmra.mxu0 %v2804
    %v4207 = vpop.f32.mrf.mxu0
    %v4208 = vadd.f32 %v4185, %v4207
    %4209 = vdwg.mxu0
    %4210 = vmatpush.msra.mxu0 %v3115
    %4211 = vmatpush.msra.mxu0 %v3109
    %4212 = vmatpush.msra.mxu0 %v3103
    %4213 = vmatpush.msra.mxu0 %v3097
    %4214 = vmatpush.msra.mxu0 %v3091
    %4215 = vmatpush.msra.mxu0 %v3085
    %4216 = vmatpush.msra.mxu0 %v3079
    %4217 = vmatpush.msra.mxu0 %v3073
    %4218 = vmatpush.msra.mxu0 %v3067
    %4219 = vmatpush.msra.mxu0 %v3061
    %4220 = vmatpush.msra.mxu0 %v3055
    %4221 = vmatpush.msra.mxu0 %v3049
    %4222 = vmatpush.msra.mxu0 %v3043
    %4223 = vmatpush.msra.mxu0 %v3037
    %4224 = vmatpush.msra.mxu0 %v3031
    %4225 = vmatpush.msra.mxu0 %v3025
    %4226 = vmatmul.f32.gmra.mxu0 %v2802
    %v4227 = vpop.f32.mrf.mxu0
    %v4228 = vadd.f32 %v4205, %v4227
    %4229 = vmatmul.f32.gmra.mxu0 %v2805
    %v4230 = vpop.f32.mrf.mxu0
    %v4231 = vadd.f32 %v4208, %v4230
    %4232 = vdwg.mxu0
    %s4233 = scalar_lea.vmem [#allocation10], 4608
    %v4234 = vld [vmem:[%s4233] sm:$0xff]
    %v4235 = vld [vmem:[%s4233 + $0x8] sm:$0xff]
    %v4236 = vld [vmem:[%s4233 + $0x10] sm:$0xff]
    %v4237 = vld [vmem:[%s4233 + $0x18] sm:$0xff]
    %v4238 = vld [vmem:[%s4233 + $0x20] sm:$0xff]
    %v4239 = vld [vmem:[%s4233 + $0x28] sm:$0xff]
    %v4240 = vld [vmem:[%s4233 + $0x30] sm:$0xff]
    %v4241 = vld [vmem:[%s4233 + $0x38] sm:$0xff]
    %v4242 = vld [vmem:[%s4233 + $0x40] sm:$0xff]
    %v4243 = vld [vmem:[%s4233 + $0x48] sm:$0xff]
    %v4244 = vld [vmem:[%s4233 + $0x50] sm:$0xff]
    %v4245 = vld [vmem:[%s4233 + $0x58] sm:$0xff]
    %v4246 = vld [vmem:[%s4233 + $0x60] sm:$0xff]
    %v4247 = vld [vmem:[%s4233 + $0x68] sm:$0xff]
    %v4248 = vld [vmem:[%s4233 + $0x70] sm:$0xff]
    %v4249 = vld [vmem:[%s4233 + $0x78] sm:$0xff]
    %v4250 = vld [vmem:[%s4233 + $0x80] sm:$0xff]
    %v4251 = vld [vmem:[%s4233 + $0x88] sm:$0xff]
    %v4252 = vld [vmem:[%s4233 + $0x90] sm:$0xff]
    %v4253 = vld [vmem:[%s4233 + $0x98] sm:$0xff]
    %v4254 = vld [vmem:[%s4233 + $0xa0] sm:$0xff]
    %v4255 = vld [vmem:[%s4233 + $0xa8] sm:$0xff]
    %v4256 = vld [vmem:[%s4233 + $0xb0] sm:$0xff]
    %v4257 = vld [vmem:[%s4233 + $0xb8] sm:$0xff]
    %v4258 = vld [vmem:[%s4233 + $0xc0] sm:$0xff]
    %v4259 = vld [vmem:[%s4233 + $0xc8] sm:$0xff]
    %v4260 = vld [vmem:[%s4233 + $0xd0] sm:$0xff]
    %v4261 = vld [vmem:[%s4233 + $0xd8] sm:$0xff]
    %v4262 = vld [vmem:[%s4233 + $0xe0] sm:$0xff]
    %v4263 = vld [vmem:[%s4233 + $0xe8] sm:$0xff]
    %v4264 = vld [vmem:[%s4233 + $0xf0] sm:$0xff]
    %v4265 = vld [vmem:[%s4233 + $0xf8] sm:$0xff]
    %v4266 = vld [vmem:[%s4233 + $0x100] sm:$0xff]
    %v4267 = vld [vmem:[%s4233 + $0x108] sm:$0xff]
    %v4268 = vld [vmem:[%s4233 + $0x110] sm:$0xff]
    %v4269 = vld [vmem:[%s4233 + $0x118] sm:$0xff]
    %v4270 = vld [vmem:[%s4233 + $0x120] sm:$0xff]
    %v4271 = vld [vmem:[%s4233 + $0x128] sm:$0xff]
    %v4272 = vld [vmem:[%s4233 + $0x130] sm:$0xff]
    %v4273 = vld [vmem:[%s4233 + $0x138] sm:$0xff]
    %v4274 = vld [vmem:[%s4233 + $0x140] sm:$0xff]
    %v4275 = vld [vmem:[%s4233 + $0x148] sm:$0xff]
    %v4276 = vld [vmem:[%s4233 + $0x150] sm:$0xff]
    %v4277 = vld [vmem:[%s4233 + $0x158] sm:$0xff]
    %v4278 = vld [vmem:[%s4233 + $0x160] sm:$0xff]
    %v4279 = vld [vmem:[%s4233 + $0x168] sm:$0xff]
    %v4280 = vld [vmem:[%s4233 + $0x170] sm:$0xff]
    %v4281 = vld [vmem:[%s4233 + $0x178] sm:$0xff]
    %v4282 = vld [vmem:[%s4233 + $0x180] sm:$0xff]
    %v4283 = vld [vmem:[%s4233 + $0x188] sm:$0xff]
    %v4284 = vld [vmem:[%s4233 + $0x190] sm:$0xff]
    %v4285 = vld [vmem:[%s4233 + $0x198] sm:$0xff]
    %v4286 = vld [vmem:[%s4233 + $0x1a0] sm:$0xff]
    %v4287 = vld [vmem:[%s4233 + $0x1a8] sm:$0xff]
    %v4288 = vld [vmem:[%s4233 + $0x1b0] sm:$0xff]
    %v4289 = vld [vmem:[%s4233 + $0x1b8] sm:$0xff]
    %v4290 = vld [vmem:[%s4233 + $0x1c0] sm:$0xff]
    %v4291 = vld [vmem:[%s4233 + $0x1c8] sm:$0xff]
    %v4292 = vld [vmem:[%s4233 + $0x1d0] sm:$0xff]
    %v4293 = vld [vmem:[%s4233 + $0x1d8] sm:$0xff]
    %v4294 = vld [vmem:[%s4233 + $0x1e0] sm:$0xff]
    %v4295 = vld [vmem:[%s4233 + $0x1e8] sm:$0xff]
    %v4296 = vld [vmem:[%s4233 + $0x1f0] sm:$0xff]
    %v4297 = vld [vmem:[%s4233 + $0x1f8] sm:$0xff]
    %v4298 = vld [vmem:[%s4233 + $0x200] sm:$0xff]
    %v4299 = vld [vmem:[%s4233 + $0x208] sm:$0xff]
    %v4300 = vld [vmem:[%s4233 + $0x210] sm:$0xff]
    %v4301 = vld [vmem:[%s4233 + $0x218] sm:$0xff]
    %v4302 = vld [vmem:[%s4233 + $0x220] sm:$0xff]
    %v4303 = vld [vmem:[%s4233 + $0x228] sm:$0xff]
    %v4304 = vld [vmem:[%s4233 + $0x230] sm:$0xff]
    %v4305 = vld [vmem:[%s4233 + $0x238] sm:$0xff]
    %v4306 = vld [vmem:[%s4233 + $0x240] sm:$0xff]
    %v4307 = vld [vmem:[%s4233 + $0x248] sm:$0xff]
    %v4308 = vld [vmem:[%s4233 + $0x250] sm:$0xff]
    %v4309 = vld [vmem:[%s4233 + $0x258] sm:$0xff]
    %v4310 = vld [vmem:[%s4233 + $0x260] sm:$0xff]
    %v4311 = vld [vmem:[%s4233 + $0x268] sm:$0xff]
    %v4312 = vld [vmem:[%s4233 + $0x270] sm:$0xff]
    %v4313 = vld [vmem:[%s4233 + $0x278] sm:$0xff]
    %v4314 = vld [vmem:[%s4233 + $0x280] sm:$0xff]
    %v4315 = vld [vmem:[%s4233 + $0x288] sm:$0xff]
    %v4316 = vld [vmem:[%s4233 + $0x290] sm:$0xff]
    %v4317 = vld [vmem:[%s4233 + $0x298] sm:$0xff]
    %v4318 = vld [vmem:[%s4233 + $0x2a0] sm:$0xff]
    %v4319 = vld [vmem:[%s4233 + $0x2a8] sm:$0xff]
    %v4320 = vld [vmem:[%s4233 + $0x2b0] sm:$0xff]
    %v4321 = vld [vmem:[%s4233 + $0x2b8] sm:$0xff]
    %v4322 = vld [vmem:[%s4233 + $0x2c0] sm:$0xff]
    %v4323 = vld [vmem:[%s4233 + $0x2c8] sm:$0xff]
    %v4324 = vld [vmem:[%s4233 + $0x2d0] sm:$0xff]
    %v4325 = vld [vmem:[%s4233 + $0x2d8] sm:$0xff]
    %v4326 = vld [vmem:[%s4233 + $0x2e0] sm:$0xff]
    %v4327 = vld [vmem:[%s4233 + $0x2e8] sm:$0xff]
    %v4328 = vld [vmem:[%s4233 + $0x2f0] sm:$0xff]
    %v4329 = vld [vmem:[%s4233 + $0x2f8] sm:$0xff]
    %v4330 = vld [vmem:[%s4233 + $0x300] sm:$0xff]
    %v4331 = vld [vmem:[%s4233 + $0x308] sm:$0xff]
    %v4332 = vld [vmem:[%s4233 + $0x310] sm:$0xff]
    %v4333 = vld [vmem:[%s4233 + $0x318] sm:$0xff]
    %v4334 = vld [vmem:[%s4233 + $0x320] sm:$0xff]
    %v4335 = vld [vmem:[%s4233 + $0x328] sm:$0xff]
    %v4336 = vld [vmem:[%s4233 + $0x330] sm:$0xff]
    %v4337 = vld [vmem:[%s4233 + $0x338] sm:$0xff]
    %v4338 = vld [vmem:[%s4233 + $0x340] sm:$0xff]
    %v4339 = vld [vmem:[%s4233 + $0x348] sm:$0xff]
    %v4340 = vld [vmem:[%s4233 + $0x350] sm:$0xff]
    %v4341 = vld [vmem:[%s4233 + $0x358] sm:$0xff]
    %v4342 = vld [vmem:[%s4233 + $0x360] sm:$0xff]
    %v4343 = vld [vmem:[%s4233 + $0x368] sm:$0xff]
    %v4344 = vld [vmem:[%s4233 + $0x370] sm:$0xff]
    %v4345 = vld [vmem:[%s4233 + $0x378] sm:$0xff]
    %v4346 = vld [vmem:[%s4233 + $0x380] sm:$0xff]
    %v4347 = vld [vmem:[%s4233 + $0x388] sm:$0xff]
    %v4348 = vld [vmem:[%s4233 + $0x390] sm:$0xff]
    %v4349 = vld [vmem:[%s4233 + $0x398] sm:$0xff]
    %v4350 = vld [vmem:[%s4233 + $0x3a0] sm:$0xff]
    %v4351 = vld [vmem:[%s4233 + $0x3a8] sm:$0xff]
    %v4352 = vld [vmem:[%s4233 + $0x3b0] sm:$0xff]
    %v4353 = vld [vmem:[%s4233 + $0x3b8] sm:$0xff]
    %v4354 = vld [vmem:[%s4233 + $0x3c0] sm:$0xff]
    %v4355 = vld [vmem:[%s4233 + $0x3c8] sm:$0xff]
    %v4356 = vld [vmem:[%s4233 + $0x3d0] sm:$0xff]
    %v4357 = vld [vmem:[%s4233 + $0x3d8] sm:$0xff]
    %v4358 = vld [vmem:[%s4233 + $0x3e0] sm:$0xff]
    %v4359 = vld [vmem:[%s4233 + $0x3e8] sm:$0xff]
    %v4360 = vld [vmem:[%s4233 + $0x3f0] sm:$0xff]
    %v4361 = vld [vmem:[%s4233 + $0x3f8] sm:$0xff]
    %v4362 = vld [vmem:[%s4233 + $0x400] sm:$0xff]
    %v4363 = vld [vmem:[%s4233 + $0x408] sm:$0xff]
    %v4364 = vld [vmem:[%s4233 + $0x410] sm:$0xff]
    %v4365 = vld [vmem:[%s4233 + $0x418] sm:$0xff]
    %v4366 = vld [vmem:[%s4233 + $0x420] sm:$0xff]
    %v4367 = vld [vmem:[%s4233 + $0x428] sm:$0xff]
    %v4368 = vld [vmem:[%s4233 + $0x430] sm:$0xff]
    %v4369 = vld [vmem:[%s4233 + $0x438] sm:$0xff]
    %v4370 = vld [vmem:[%s4233 + $0x440] sm:$0xff]
    %v4371 = vld [vmem:[%s4233 + $0x448] sm:$0xff]
    %v4372 = vld [vmem:[%s4233 + $0x450] sm:$0xff]
    %v4373 = vld [vmem:[%s4233 + $0x458] sm:$0xff]
    %v4374 = vld [vmem:[%s4233 + $0x460] sm:$0xff]
    %v4375 = vld [vmem:[%s4233 + $0x468] sm:$0xff]
    %v4376 = vld [vmem:[%s4233 + $0x470] sm:$0xff]
    %v4377 = vld [vmem:[%s4233 + $0x478] sm:$0xff]
    %v4378 = vld [vmem:[%s4233 + $0x480] sm:$0xff]
    %v4379 = vld [vmem:[%s4233 + $0x488] sm:$0xff]
    %v4380 = vld [vmem:[%s4233 + $0x490] sm:$0xff]
    %v4381 = vld [vmem:[%s4233 + $0x498] sm:$0xff]
    %v4382 = vld [vmem:[%s4233 + $0x4a0] sm:$0xff]
    %v4383 = vld [vmem:[%s4233 + $0x4a8] sm:$0xff]
    %v4384 = vld [vmem:[%s4233 + $0x4b0] sm:$0xff]
    %v4385 = vld [vmem:[%s4233 + $0x4b8] sm:$0xff]
    %v4386 = vld [vmem:[%s4233 + $0x4c0] sm:$0xff]
    %v4387 = vld [vmem:[%s4233 + $0x4c8] sm:$0xff]
    %v4388 = vld [vmem:[%s4233 + $0x4d0] sm:$0xff]
    %v4389 = vld [vmem:[%s4233 + $0x4d8] sm:$0xff]
    %v4390 = vld [vmem:[%s4233 + $0x4e0] sm:$0xff]
    %v4391 = vld [vmem:[%s4233 + $0x4e8] sm:$0xff]
    %v4392 = vld [vmem:[%s4233 + $0x4f0] sm:$0xff]
    %v4393 = vld [vmem:[%s4233 + $0x4f8] sm:$0xff]
    %v4394 = vld [vmem:[%s4233 + $0x500] sm:$0xff]
    %v4395 = vld [vmem:[%s4233 + $0x508] sm:$0xff]
    %v4396 = vld [vmem:[%s4233 + $0x510] sm:$0xff]
    %v4397 = vld [vmem:[%s4233 + $0x518] sm:$0xff]
    %v4398 = vld [vmem:[%s4233 + $0x520] sm:$0xff]
    %v4399 = vld [vmem:[%s4233 + $0x528] sm:$0xff]
    %v4400 = vld [vmem:[%s4233 + $0x530] sm:$0xff]
    %v4401 = vld [vmem:[%s4233 + $0x538] sm:$0xff]
    %v4402 = vld [vmem:[%s4233 + $0x540] sm:$0xff]
    %v4403 = vld [vmem:[%s4233 + $0x548] sm:$0xff]
    %v4404 = vld [vmem:[%s4233 + $0x550] sm:$0xff]
    %v4405 = vld [vmem:[%s4233 + $0x558] sm:$0xff]
    %v4406 = vld [vmem:[%s4233 + $0x560] sm:$0xff]
    %v4407 = vld [vmem:[%s4233 + $0x568] sm:$0xff]
    %v4408 = vld [vmem:[%s4233 + $0x570] sm:$0xff]
    %v4409 = vld [vmem:[%s4233 + $0x578] sm:$0xff]
    %v4410 = vld [vmem:[%s4233 + $0x580] sm:$0xff]
    %v4411 = vld [vmem:[%s4233 + $0x588] sm:$0xff]
    %v4412 = vld [vmem:[%s4233 + $0x590] sm:$0xff]
    %v4413 = vld [vmem:[%s4233 + $0x598] sm:$0xff]
    %v4414 = vld [vmem:[%s4233 + $0x5a0] sm:$0xff]
    %v4415 = vld [vmem:[%s4233 + $0x5a8] sm:$0xff]
    %v4416 = vld [vmem:[%s4233 + $0x5b0] sm:$0xff]
    %v4417 = vld [vmem:[%s4233 + $0x5b8] sm:$0xff]
    %v4418 = vld [vmem:[%s4233 + $0x5c0] sm:$0xff]
    %v4419 = vld [vmem:[%s4233 + $0x5c8] sm:$0xff]
    %v4420 = vld [vmem:[%s4233 + $0x5d0] sm:$0xff]
    %v4421 = vld [vmem:[%s4233 + $0x5d8] sm:$0xff]
    %v4422 = vld [vmem:[%s4233 + $0x5e0] sm:$0xff]
    %v4423 = vld [vmem:[%s4233 + $0x5e8] sm:$0xff]
    %v4424 = vld [vmem:[%s4233 + $0x5f0] sm:$0xff]
    %v4425 = vld [vmem:[%s4233 + $0x5f8] sm:$0xff]
    %v4426 = vld [vmem:[%s4233 + $0x600] sm:$0xff]
    %v4427 = vld [vmem:[%s4233 + $0x608] sm:$0xff]
    %v4428 = vld [vmem:[%s4233 + $0x610] sm:$0xff]
    %v4429 = vld [vmem:[%s4233 + $0x618] sm:$0xff]
    %v4430 = vld [vmem:[%s4233 + $0x620] sm:$0xff]
    %v4431 = vld [vmem:[%s4233 + $0x628] sm:$0xff]
    %v4432 = vld [vmem:[%s4233 + $0x630] sm:$0xff]
    %v4433 = vld [vmem:[%s4233 + $0x638] sm:$0xff]
    %v4434 = vld [vmem:[%s4233 + $0x640] sm:$0xff]
    %v4435 = vld [vmem:[%s4233 + $0x648] sm:$0xff]
    %v4436 = vld [vmem:[%s4233 + $0x650] sm:$0xff]
    %v4437 = vld [vmem:[%s4233 + $0x658] sm:$0xff]
    %v4438 = vld [vmem:[%s4233 + $0x660] sm:$0xff]
    %v4439 = vld [vmem:[%s4233 + $0x668] sm:$0xff]
    %v4440 = vld [vmem:[%s4233 + $0x670] sm:$0xff]
    %v4441 = vld [vmem:[%s4233 + $0x678] sm:$0xff]
    %v4442 = vld [vmem:[%s4233 + $0x680] sm:$0xff]
    %v4443 = vld [vmem:[%s4233 + $0x688] sm:$0xff]
    %v4444 = vld [vmem:[%s4233 + $0x690] sm:$0xff]
    %v4445 = vld [vmem:[%s4233 + $0x698] sm:$0xff]
    %v4446 = vld [vmem:[%s4233 + $0x6a0] sm:$0xff]
    %v4447 = vld [vmem:[%s4233 + $0x6a8] sm:$0xff]
    %v4448 = vld [vmem:[%s4233 + $0x6b0] sm:$0xff]
    %v4449 = vld [vmem:[%s4233 + $0x6b8] sm:$0xff]
    %v4450 = vld [vmem:[%s4233 + $0x6c0] sm:$0xff]
    %v4451 = vld [vmem:[%s4233 + $0x6c8] sm:$0xff]
    %v4452 = vld [vmem:[%s4233 + $0x6d0] sm:$0xff]
    %v4453 = vld [vmem:[%s4233 + $0x6d8] sm:$0xff]
    %v4454 = vld [vmem:[%s4233 + $0x6e0] sm:$0xff]
    %v4455 = vld [vmem:[%s4233 + $0x6e8] sm:$0xff]
    %v4456 = vld [vmem:[%s4233 + $0x6f0] sm:$0xff]
    %v4457 = vld [vmem:[%s4233 + $0x6f8] sm:$0xff]
    %v4458 = vld [vmem:[%s4233 + $0x700] sm:$0xff]
    %v4459 = vld [vmem:[%s4233 + $0x708] sm:$0xff]
    %v4460 = vld [vmem:[%s4233 + $0x710] sm:$0xff]
    %v4461 = vld [vmem:[%s4233 + $0x718] sm:$0xff]
    %v4462 = vld [vmem:[%s4233 + $0x720] sm:$0xff]
    %v4463 = vld [vmem:[%s4233 + $0x728] sm:$0xff]
    %v4464 = vld [vmem:[%s4233 + $0x730] sm:$0xff]
    %v4465 = vld [vmem:[%s4233 + $0x738] sm:$0xff]
    %v4466 = vld [vmem:[%s4233 + $0x740] sm:$0xff]
    %v4467 = vld [vmem:[%s4233 + $0x748] sm:$0xff]
    %v4468 = vld [vmem:[%s4233 + $0x750] sm:$0xff]
    %v4469 = vld [vmem:[%s4233 + $0x758] sm:$0xff]
    %v4470 = vld [vmem:[%s4233 + $0x760] sm:$0xff]
    %v4471 = vld [vmem:[%s4233 + $0x768] sm:$0xff]
    %v4472 = vld [vmem:[%s4233 + $0x770] sm:$0xff]
    %v4473 = vld [vmem:[%s4233 + $0x778] sm:$0xff]
    %v4474 = vld [vmem:[%s4233 + $0x780] sm:$0xff]
    %v4475 = vld [vmem:[%s4233 + $0x788] sm:$0xff]
    %v4476 = vld [vmem:[%s4233 + $0x790] sm:$0xff]
    %v4477 = vld [vmem:[%s4233 + $0x798] sm:$0xff]
    %v4478 = vld [vmem:[%s4233 + $0x7a0] sm:$0xff]
    %v4479 = vld [vmem:[%s4233 + $0x7a8] sm:$0xff]
    %v4480 = vld [vmem:[%s4233 + $0x7b0] sm:$0xff]
    %v4481 = vld [vmem:[%s4233 + $0x7b8] sm:$0xff]
    %v4482 = vld [vmem:[%s4233 + $0x7c0] sm:$0xff]
    %v4483 = vld [vmem:[%s4233 + $0x7c8] sm:$0xff]
    %v4484 = vld [vmem:[%s4233 + $0x7d0] sm:$0xff]
    %v4485 = vld [vmem:[%s4233 + $0x7d8] sm:$0xff]
    %v4486 = vld [vmem:[%s4233 + $0x7e0] sm:$0xff]
    %v4487 = vld [vmem:[%s4233 + $0x7e8] sm:$0xff]
    %v4488 = vld [vmem:[%s4233 + $0x7f0] sm:$0xff]
    %v4489 = vld [vmem:[%s4233 + $0x7f8] sm:$0xff]
    %v4490 = vld [vmem:[%s4233 + $0x800] sm:$0xff]
    %v4491 = vld [vmem:[%s4233 + $0x808] sm:$0xff]
    %v4492 = vld [vmem:[%s4233 + $0x810] sm:$0xff]
    %v4493 = vld [vmem:[%s4233 + $0x818] sm:$0xff]
    %v4494 = vld [vmem:[%s4233 + $0x820] sm:$0xff]
    %v4495 = vld [vmem:[%s4233 + $0x828] sm:$0xff]
    %v4496 = vld [vmem:[%s4233 + $0x830] sm:$0xff]
    %v4497 = vld [vmem:[%s4233 + $0x838] sm:$0xff]
    %v4498 = vld [vmem:[%s4233 + $0x840] sm:$0xff]
    %v4499 = vld [vmem:[%s4233 + $0x848] sm:$0xff]
    %v4500 = vld [vmem:[%s4233 + $0x850] sm:$0xff]
    %v4501 = vld [vmem:[%s4233 + $0x858] sm:$0xff]
    %v4502 = vld [vmem:[%s4233 + $0x860] sm:$0xff]
    %v4503 = vld [vmem:[%s4233 + $0x868] sm:$0xff]
    %v4504 = vld [vmem:[%s4233 + $0x870] sm:$0xff]
    %v4505 = vld [vmem:[%s4233 + $0x878] sm:$0xff]
    %v4506 = vld [vmem:[%s4233 + $0x880] sm:$0xff]
    %v4507 = vld [vmem:[%s4233 + $0x888] sm:$0xff]
    %v4508 = vld [vmem:[%s4233 + $0x890] sm:$0xff]
    %v4509 = vld [vmem:[%s4233 + $0x898] sm:$0xff]
    %v4510 = vld [vmem:[%s4233 + $0x8a0] sm:$0xff]
    %v4511 = vld [vmem:[%s4233 + $0x8a8] sm:$0xff]
    %v4512 = vld [vmem:[%s4233 + $0x8b0] sm:$0xff]
    %v4513 = vld [vmem:[%s4233 + $0x8b8] sm:$0xff]
    %v4514 = vld [vmem:[%s4233 + $0x8c0] sm:$0xff]
    %v4515 = vld [vmem:[%s4233 + $0x8c8] sm:$0xff]
    %v4516 = vld [vmem:[%s4233 + $0x8d0] sm:$0xff]
    %v4517 = vld [vmem:[%s4233 + $0x8d8] sm:$0xff]
    %v4518 = vld [vmem:[%s4233 + $0x8e0] sm:$0xff]
    %v4519 = vld [vmem:[%s4233 + $0x8e8] sm:$0xff]
    %v4520 = vld [vmem:[%s4233 + $0x8f0] sm:$0xff]
    %v4521 = vld [vmem:[%s4233 + $0x8f8] sm:$0xff]
    %vm4531 = vcmask 1045504
    %v4532 = vrot.slane %v2812, 2
    %v4533 = vrot.slane %v2803, 2
    %v4534 = vsel %vm4531, %v4532, %v4533
    %v4535 = vrot.slane %v2813, 2
    %v4536 = vrot.slane %v2804, 2
    %v4537 = vsel %vm4531, %v4535, %v4536
    %v4538 = vrot.slane %v2814, 2
    %v4539 = vrot.slane %v2805, 2
    %v4540 = vsel %vm4531, %v4538, %v4539
    %v4541 = vrot.slane %v2815, 2
    %v4542 = vsel %vm4531, %v4533, %v4541
    %v4543 = vrot.slane %v2816, 2
    %v4544 = vsel %vm4531, %v4536, %v4543
    %v4545 = vrot.slane %v2817, 2
    %v4546 = vsel %vm4531, %v4539, %v4545
    %4553 = vmatpush.msra.mxu0 %v4324
    %4554 = vmatpush.msra.mxu0 %v4318
    %4555 = vmatpush.msra.mxu0 %v4312
    %4556 = vmatpush.msra.mxu0 %v4306
    %4557 = vmatpush.msra.mxu0 %v4300
    %4558 = vmatpush.msra.mxu0 %v4294
    %4559 = vmatpush.msra.mxu0 %v4288
    %4560 = vmatpush.msra.mxu0 %v4282
    %4561 = vmatpush.msra.mxu0 %v4276
    %4562 = vmatpush.msra.mxu0 %v4270
    %4563 = vmatpush.msra.mxu0 %v4264
    %4564 = vmatpush.msra.mxu0 %v4258
    %4565 = vmatpush.msra.mxu0 %v4252
    %4566 = vmatpush.msra.mxu0 %v4246
    %4567 = vmatpush.msra.mxu0 %v4240
    %4568 = vmatpush.msra.mxu0 %v4234
    %4569 = vmatmul.f32.gmra.mxu0 %v4534
    %v4570 = vpop.f32.mrf.mxu0
    %v4571 = vadd.f32 0.0, %v4570
    %4572 = vmatmul.f32.gmra.mxu0 %v4542
    %v4573 = vpop.f32.mrf.mxu0
    %v4574 = vadd.f32 0.0, %v4573
    %4575 = vdwg.mxu0
    %4576 = vmatpush.msra.mxu0 %v4420
    %4577 = vmatpush.msra.mxu0 %v4414
    %4578 = vmatpush.msra.mxu0 %v4408
    %4579 = vmatpush.msra.mxu0 %v4402
    %4580 = vmatpush.msra.mxu0 %v4396
    %4581 = vmatpush.msra.mxu0 %v4390
    %4582 = vmatpush.msra.mxu0 %v4384
    %4583 = vmatpush.msra.mxu0 %v4378
    %4584 = vmatpush.msra.mxu0 %v4372
    %4585 = vmatpush.msra.mxu0 %v4366
    %4586 = vmatpush.msra.mxu0 %v4360
    %4587 = vmatpush.msra.mxu0 %v4354
    %4588 = vmatpush.msra.mxu0 %v4348
    %4589 = vmatpush.msra.mxu0 %v4342
    %4590 = vmatpush.msra.mxu0 %v4336
    %4591 = vmatpush.msra.mxu0 %v4330
    %4592 = vmatmul.f32.gmra.mxu0 %v4537
    %v4593 = vpop.f32.mrf.mxu0
    %v4594 = vadd.f32 %v4571, %v4593
    %4595 = vmatmul.f32.gmra.mxu0 %v4544
    %v4596 = vpop.f32.mrf.mxu0
    %v4597 = vadd.f32 %v4574, %v4596
    %4598 = vdwg.mxu0
    %4599 = vmatpush.msra.mxu0 %v4516
    %4600 = vmatpush.msra.mxu0 %v4510
    %4601 = vmatpush.msra.mxu0 %v4504
    %4602 = vmatpush.msra.mxu0 %v4498
    %4603 = vmatpush.msra.mxu0 %v4492
    %4604 = vmatpush.msra.mxu0 %v4486
    %4605 = vmatpush.msra.mxu0 %v4480
    %4606 = vmatpush.msra.mxu0 %v4474
    %4607 = vmatpush.msra.mxu0 %v4468
    %4608 = vmatpush.msra.mxu0 %v4462
    %4609 = vmatpush.msra.mxu0 %v4456
    %4610 = vmatpush.msra.mxu0 %v4450
    %4611 = vmatpush.msra.mxu0 %v4444
    %4612 = vmatpush.msra.mxu0 %v4438
    %4613 = vmatpush.msra.mxu0 %v4432
    %4614 = vmatpush.msra.mxu0 %v4426
    %4615 = vmatmul.f32.gmra.mxu0 %v4540
    %v4616 = vpop.f32.mrf.mxu0
    %v4617 = vadd.f32 %v4594, %v4616
    %4618 = vmatmul.f32.gmra.mxu0 %v4546
    %v4619 = vpop.f32.mrf.mxu0
    %v4620 = vadd.f32 %v4597, %v4619
    %4621 = vdwg.mxu0
    %4622 = vmatpush.msra.mxu0 %v4325
    %4623 = vmatpush.msra.mxu0 %v4319
    %4624 = vmatpush.msra.mxu0 %v4313
    %4625 = vmatpush.msra.mxu0 %v4307
    %4626 = vmatpush.msra.mxu0 %v4301
    %4627 = vmatpush.msra.mxu0 %v4295
    %4628 = vmatpush.msra.mxu0 %v4289
    %4629 = vmatpush.msra.mxu0 %v4283
    %4630 = vmatpush.msra.mxu0 %v4277
    %4631 = vmatpush.msra.mxu0 %v4271
    %4632 = vmatpush.msra.mxu0 %v4265
    %4633 = vmatpush.msra.mxu0 %v4259
    %4634 = vmatpush.msra.mxu0 %v4253
    %4635 = vmatpush.msra.mxu0 %v4247
    %4636 = vmatpush.msra.mxu0 %v4241
    %4637 = vmatpush.msra.mxu0 %v4235
    %4638 = vmatmul.f32.gmra.mxu0 %v4534
    %v4639 = vpop.f32.mrf.mxu0
    %v4640 = vadd.f32 0.0, %v4639
    %4641 = vmatmul.f32.gmra.mxu0 %v4542
    %v4642 = vpop.f32.mrf.mxu0
    %v4643 = vadd.f32 0.0, %v4642
    %4644 = vdwg.mxu0
    %4645 = vmatpush.msra.mxu0 %v4421
    %4646 = vmatpush.msra.mxu0 %v4415
    %4647 = vmatpush.msra.mxu0 %v4409
    %4648 = vmatpush.msra.mxu0 %v4403
    %4649 = vmatpush.msra.mxu0 %v4397
    %4650 = vmatpush.msra.mxu0 %v4391
    %4651 = vmatpush.msra.mxu0 %v4385
    %4652 = vmatpush.msra.mxu0 %v4379
    %4653 = vmatpush.msra.mxu0 %v4373
    %4654 = vmatpush.msra.mxu0 %v4367
    %4655 = vmatpush.msra.mxu0 %v4361
    %4656 = vmatpush.msra.mxu0 %v4355
    %4657 = vmatpush.msra.mxu0 %v4349
    %4658 = vmatpush.msra.mxu0 %v4343
    %4659 = vmatpush.msra.mxu0 %v4337
    %4660 = vmatpush.msra.mxu0 %v4331
    %4661 = vmatmul.f32.gmra.mxu0 %v4537
    %v4662 = vpop.f32.mrf.mxu0
    %v4663 = vadd.f32 %v4640, %v4662
    %4664 = vmatmul.f32.gmra.mxu0 %v4544
    %v4665 = vpop.f32.mrf.mxu0
    %v4666 = vadd.f32 %v4643, %v4665
    %4667 = vdwg.mxu0
    %4668 = vmatpush.msra.mxu0 %v4517
    %4669 = vmatpush.msra.mxu0 %v4511
    %4670 = vmatpush.msra.mxu0 %v4505
    %4671 = vmatpush.msra.mxu0 %v4499
    %4672 = vmatpush.msra.mxu0 %v4493
    %4673 = vmatpush.msra.mxu0 %v4487
    %4674 = vmatpush.msra.mxu0 %v4481
    %4675 = vmatpush.msra.mxu0 %v4475
    %4676 = vmatpush.msra.mxu0 %v4469
    %4677 = vmatpush.msra.mxu0 %v4463
    %4678 = vmatpush.msra.mxu0 %v4457
    %4679 = vmatpush.msra.mxu0 %v4451
    %4680 = vmatpush.msra.mxu0 %v4445
    %4681 = vmatpush.msra.mxu0 %v4439
    %4682 = vmatpush.msra.mxu0 %v4433
    %4683 = vmatpush.msra.mxu0 %v4427
    %4684 = vmatmul.f32.gmra.mxu0 %v4540
    %v4685 = vpop.f32.mrf.mxu0
    %v4686 = vadd.f32 %v4663, %v4685
    %4687 = vmatmul.f32.gmra.mxu0 %v4546
    %v4688 = vpop.f32.mrf.mxu0
    %v4689 = vadd.f32 %v4666, %v4688
    %4690 = vdwg.mxu0
    %4691 = vmatpush.msra.mxu0 %v4326
    %4692 = vmatpush.msra.mxu0 %v4320
    %4693 = vmatpush.msra.mxu0 %v4314
    %4694 = vmatpush.msra.mxu0 %v4308
    %4695 = vmatpush.msra.mxu0 %v4302
    %4696 = vmatpush.msra.mxu0 %v4296
    %4697 = vmatpush.msra.mxu0 %v4290
    %4698 = vmatpush.msra.mxu0 %v4284
    %4699 = vmatpush.msra.mxu0 %v4278
    %4700 = vmatpush.msra.mxu0 %v4272
    %4701 = vmatpush.msra.mxu0 %v4266
    %4702 = vmatpush.msra.mxu0 %v4260
    %4703 = vmatpush.msra.mxu0 %v4254
    %4704 = vmatpush.msra.mxu0 %v4248
    %4705 = vmatpush.msra.mxu0 %v4242
    %4706 = vmatpush.msra.mxu0 %v4236
    %4707 = vmatmul.f32.gmra.mxu0 %v4534
    %v4708 = vpop.f32.mrf.mxu0
    %v4709 = vadd.f32 0.0, %v4708
    %4710 = vmatmul.f32.gmra.mxu0 %v4542
    %v4711 = vpop.f32.mrf.mxu0
    %v4712 = vadd.f32 0.0, %v4711
    %4713 = vdwg.mxu0
    %4714 = vmatpush.msra.mxu0 %v4422
    %4715 = vmatpush.msra.mxu0 %v4416
    %4716 = vmatpush.msra.mxu0 %v4410
    %4717 = vmatpush.msra.mxu0 %v4404
    %4718 = vmatpush.msra.mxu0 %v4398
    %4719 = vmatpush.msra.mxu0 %v4392
    %4720 = vmatpush.msra.mxu0 %v4386
    %4721 = vmatpush.msra.mxu0 %v4380
    %4722 = vmatpush.msra.mxu0 %v4374
    %4723 = vmatpush.msra.mxu0 %v4368
    %4724 = vmatpush.msra.mxu0 %v4362
    %4725 = vmatpush.msra.mxu0 %v4356
    %4726 = vmatpush.msra.mxu0 %v4350
    %4727 = vmatpush.msra.mxu0 %v4344
    %4728 = vmatpush.msra.mxu0 %v4338
    %4729 = vmatpush.msra.mxu0 %v4332
    %4730 = vmatmul.f32.gmra.mxu0 %v4537
    %v4731 = vpop.f32.mrf.mxu0
    %v4732 = vadd.f32 %v4709, %v4731
    %4733 = vmatmul.f32.gmra.mxu0 %v4544
    %v4734 = vpop.f32.mrf.mxu0
    %v4735 = vadd.f32 %v4712, %v4734
    %4736 = vdwg.mxu0
    %4737 = vmatpush.msra.mxu0 %v4518
    %4738 = vmatpush.msra.mxu0 %v4512
    %4739 = vmatpush.msra.mxu0 %v4506
    %4740 = vmatpush.msra.mxu0 %v4500
    %4741 = vmatpush.msra.mxu0 %v4494
    %4742 = vmatpush.msra.mxu0 %v4488
    %4743 = vmatpush.msra.mxu0 %v4482
    %4744 = vmatpush.msra.mxu0 %v4476
    %4745 = vmatpush.msra.mxu0 %v4470
    %4746 = vmatpush.msra.mxu0 %v4464
    %4747 = vmatpush.msra.mxu0 %v4458
    %4748 = vmatpush.msra.mxu0 %v4452
    %4749 = vmatpush.msra.mxu0 %v4446
    %4750 = vmatpush.msra.mxu0 %v4440
    %4751 = vmatpush.msra.mxu0 %v4434
    %4752 = vmatpush.msra.mxu0 %v4428
    %4753 = vmatmul.f32.gmra.mxu0 %v4540
    %v4754 = vpop.f32.mrf.mxu0
    %v4755 = vadd.f32 %v4732, %v4754
    %4756 = vmatmul.f32.gmra.mxu0 %v4546
    %v4757 = vpop.f32.mrf.mxu0
    %v4758 = vadd.f32 %v4735, %v4757
    %4759 = vdwg.mxu0
    %4760 = vmatpush.msra.mxu0 %v4327
    %4761 = vmatpush.msra.mxu0 %v4321
    %4762 = vmatpush.msra.mxu0 %v4315
    %4763 = vmatpush.msra.mxu0 %v4309
    %4764 = vmatpush.msra.mxu0 %v4303
    %4765 = vmatpush.msra.mxu0 %v4297
    %4766 = vmatpush.msra.mxu0 %v4291
    %4767 = vmatpush.msra.mxu0 %v4285
    %4768 = vmatpush.msra.mxu0 %v4279
    %4769 = vmatpush.msra.mxu0 %v4273
    %4770 = vmatpush.msra.mxu0 %v4267
    %4771 = vmatpush.msra.mxu0 %v4261
    %4772 = vmatpush.msra.mxu0 %v4255
    %4773 = vmatpush.msra.mxu0 %v4249
    %4774 = vmatpush.msra.mxu0 %v4243
    %4775 = vmatpush.msra.mxu0 %v4237
    %4776 = vmatmul.f32.gmra.mxu0 %v4534
    %v4777 = vpop.f32.mrf.mxu0
    %v4778 = vadd.f32 0.0, %v4777
    %4779 = vmatmul.f32.gmra.mxu0 %v4542
    %v4780 = vpop.f32.mrf.mxu0
    %v4781 = vadd.f32 0.0, %v4780
    %4782 = vdwg.mxu0
    %4783 = vmatpush.msra.mxu0 %v4423
    %4784 = vmatpush.msra.mxu0 %v4417
    %4785 = vmatpush.msra.mxu0 %v4411
    %4786 = vmatpush.msra.mxu0 %v4405
    %4787 = vmatpush.msra.mxu0 %v4399
    %4788 = vmatpush.msra.mxu0 %v4393
    %4789 = vmatpush.msra.mxu0 %v4387
    %4790 = vmatpush.msra.mxu0 %v4381
    %4791 = vmatpush.msra.mxu0 %v4375
    %4792 = vmatpush.msra.mxu0 %v4369
    %4793 = vmatpush.msra.mxu0 %v4363
    %4794 = vmatpush.msra.mxu0 %v4357
    %4795 = vmatpush.msra.mxu0 %v4351
    %4796 = vmatpush.msra.mxu0 %v4345
    %4797 = vmatpush.msra.mxu0 %v4339
    %4798 = vmatpush.msra.mxu0 %v4333
    %4799 = vmatmul.f32.gmra.mxu0 %v4537
    %v4800 = vpop.f32.mrf.mxu0
    %v4801 = vadd.f32 %v4778, %v4800
    %4802 = vmatmul.f32.gmra.mxu0 %v4544
    %v4803 = vpop.f32.mrf.mxu0
    %v4804 = vadd.f32 %v4781, %v4803
    %4805 = vdwg.mxu0
    %4806 = vmatpush.msra.mxu0 %v4519
    %4807 = vmatpush.msra.mxu0 %v4513
    %4808 = vmatpush.msra.mxu0 %v4507
    %4809 = vmatpush.msra.mxu0 %v4501
    %4810 = vmatpush.msra.mxu0 %v4495
    %4811 = vmatpush.msra.mxu0 %v4489
    %4812 = vmatpush.msra.mxu0 %v4483
    %4813 = vmatpush.msra.mxu0 %v4477
    %4814 = vmatpush.msra.mxu0 %v4471
    %4815 = vmatpush.msra.mxu0 %v4465
    %4816 = vmatpush.msra.mxu0 %v4459
    %4817 = vmatpush.msra.mxu0 %v4453
    %4818 = vmatpush.msra.mxu0 %v4447
    %4819 = vmatpush.msra.mxu0 %v4441
    %4820 = vmatpush.msra.mxu0 %v4435
    %4821 = vmatpush.msra.mxu0 %v4429
    %4822 = vmatmul.f32.gmra.mxu0 %v4540
    %v4823 = vpop.f32.mrf.mxu0
    %v4824 = vadd.f32 %v4801, %v4823
    %4825 = vmatmul.f32.gmra.mxu0 %v4546
    %v4826 = vpop.f32.mrf.mxu0
    %v4827 = vadd.f32 %v4804, %v4826
    %4828 = vdwg.mxu0
    %4829 = vmatpush.msra.mxu0 %v4328
    %4830 = vmatpush.msra.mxu0 %v4322
    %4831 = vmatpush.msra.mxu0 %v4316
    %4832 = vmatpush.msra.mxu0 %v4310
    %4833 = vmatpush.msra.mxu0 %v4304
    %4834 = vmatpush.msra.mxu0 %v4298
    %4835 = vmatpush.msra.mxu0 %v4292
    %4836 = vmatpush.msra.mxu0 %v4286
    %4837 = vmatpush.msra.mxu0 %v4280
    %4838 = vmatpush.msra.mxu0 %v4274
    %4839 = vmatpush.msra.mxu0 %v4268
    %4840 = vmatpush.msra.mxu0 %v4262
    %4841 = vmatpush.msra.mxu0 %v4256
    %4842 = vmatpush.msra.mxu0 %v4250
    %4843 = vmatpush.msra.mxu0 %v4244
    %4844 = vmatpush.msra.mxu0 %v4238
    %4845 = vmatmul.f32.gmra.mxu0 %v4534
    %v4846 = vpop.f32.mrf.mxu0
    %v4847 = vadd.f32 0.0, %v4846
    %4848 = vmatmul.f32.gmra.mxu0 %v4542
    %v4849 = vpop.f32.mrf.mxu0
    %v4850 = vadd.f32 0.0, %v4849
    %4851 = vdwg.mxu0
    %4852 = vmatpush.msra.mxu0 %v4424
    %4853 = vmatpush.msra.mxu0 %v4418
    %4854 = vmatpush.msra.mxu0 %v4412
    %4855 = vmatpush.msra.mxu0 %v4406
    %4856 = vmatpush.msra.mxu0 %v4400
    %4857 = vmatpush.msra.mxu0 %v4394
    %4858 = vmatpush.msra.mxu0 %v4388
    %4859 = vmatpush.msra.mxu0 %v4382
    %4860 = vmatpush.msra.mxu0 %v4376
    %4861 = vmatpush.msra.mxu0 %v4370
    %4862 = vmatpush.msra.mxu0 %v4364
    %4863 = vmatpush.msra.mxu0 %v4358
    %4864 = vmatpush.msra.mxu0 %v4352
    %4865 = vmatpush.msra.mxu0 %v4346
    %4866 = vmatpush.msra.mxu0 %v4340
    %4867 = vmatpush.msra.mxu0 %v4334
    %4868 = vmatmul.f32.gmra.mxu0 %v4537
    %v4869 = vpop.f32.mrf.mxu0
    %v4870 = vadd.f32 %v4847, %v4869
    %4871 = vmatmul.f32.gmra.mxu0 %v4544
    %v4872 = vpop.f32.mrf.mxu0
    %v4873 = vadd.f32 %v4850, %v4872
    %4874 = vdwg.mxu0
    %4875 = vmatpush.msra.mxu0 %v4520
    %4876 = vmatpush.msra.mxu0 %v4514
    %4877 = vmatpush.msra.mxu0 %v4508
    %4878 = vmatpush.msra.mxu0 %v4502
    %4879 = vmatpush.msra.mxu0 %v4496
    %4880 = vmatpush.msra.mxu0 %v4490
    %4881 = vmatpush.msra.mxu0 %v4484
    %4882 = vmatpush.msra.mxu0 %v4478
    %4883 = vmatpush.msra.mxu0 %v4472
    %4884 = vmatpush.msra.mxu0 %v4466
    %4885 = vmatpush.msra.mxu0 %v4460
    %4886 = vmatpush.msra.mxu0 %v4454
    %4887 = vmatpush.msra.mxu0 %v4448
    %4888 = vmatpush.msra.mxu0 %v4442
    %4889 = vmatpush.msra.mxu0 %v4436
    %4890 = vmatpush.msra.mxu0 %v4430
    %4891 = vmatmul.f32.gmra.mxu0 %v4540
    %v4892 = vpop.f32.mrf.mxu0
    %v4893 = vadd.f32 %v4870, %v4892
    %4894 = vmatmul.f32.gmra.mxu0 %v4546
    %v4895 = vpop.f32.mrf.mxu0
    %v4896 = vadd.f32 %v4873, %v4895
    %4897 = vdwg.mxu0
    %4898 = vmatpush.msra.mxu0 %v4329
    %4899 = vmatpush.msra.mxu0 %v4323
    %4900 = vmatpush.msra.mxu0 %v4317
    %4901 = vmatpush.msra.mxu0 %v4311
    %4902 = vmatpush.msra.mxu0 %v4305
    %4903 = vmatpush.msra.mxu0 %v4299
    %4904 = vmatpush.msra.mxu0 %v4293
    %4905 = vmatpush.msra.mxu0 %v4287
    %4906 = vmatpush.msra.mxu0 %v4281
    %4907 = vmatpush.msra.mxu0 %v4275
    %4908 = vmatpush.msra.mxu0 %v4269
    %4909 = vmatpush.msra.mxu0 %v4263
    %4910 = vmatpush.msra.mxu0 %v4257
    %4911 = vmatpush.msra.mxu0 %v4251
    %4912 = vmatpush.msra.mxu0 %v4245
    %4913 = vmatpush.msra.mxu0 %v4239
    %4914 = vmatmul.f32.gmra.mxu0 %v4534
    %v4915 = vpop.f32.mrf.mxu0
    %v4916 = vadd.f32 0.0, %v4915
    %4917 = vmatmul.f32.gmra.mxu0 %v4542
    %v4918 = vpop.f32.mrf.mxu0
    %v4919 = vadd.f32 0.0, %v4918
    %4920 = vdwg.mxu0
    %4921 = vmatpush.msra.mxu0 %v4425
    %4922 = vmatpush.msra.mxu0 %v4419
    %4923 = vmatpush.msra.mxu0 %v4413
    %4924 = vmatpush.msra.mxu0 %v4407
    %4925 = vmatpush.msra.mxu0 %v4401
    %4926 = vmatpush.msra.mxu0 %v4395
    %4927 = vmatpush.msra.mxu0 %v4389
    %4928 = vmatpush.msra.mxu0 %v4383
    %4929 = vmatpush.msra.mxu0 %v4377
    %4930 = vmatpush.msra.mxu0 %v4371
    %4931 = vmatpush.msra.mxu0 %v4365
    %4932 = vmatpush.msra.mxu0 %v4359
    %4933 = vmatpush.msra.mxu0 %v4353
    %4934 = vmatpush.msra.mxu0 %v4347
    %4935 = vmatpush.msra.mxu0 %v4341
    %4936 = vmatpush.msra.mxu0 %v4335
    %4937 = vmatmul.f32.gmra.mxu0 %v4537
    %v4938 = vpop.f32.mrf.mxu0
    %v4939 = vadd.f32 %v4916, %v4938
    %4940 = vmatmul.f32.gmra.mxu0 %v4544
    %v4941 = vpop.f32.mrf.mxu0
    %v4942 = vadd.f32 %v4919, %v4941
    %4943 = vdwg.mxu0
    %4944 = vmatpush.msra.mxu0 %v4521
    %4945 = vmatpush.msra.mxu0 %v4515
    %4946 = vmatpush.msra.mxu0 %v4509
    %4947 = vmatpush.msra.mxu0 %v4503
    %4948 = vmatpush.msra.mxu0 %v4497
    %4949 = vmatpush.msra.mxu0 %v4491
    %4950 = vmatpush.msra.mxu0 %v4485
    %4951 = vmatpush.msra.mxu0 %v4479
    %4952 = vmatpush.msra.mxu0 %v4473
    %4953 = vmatpush.msra.mxu0 %v4467
    %4954 = vmatpush.msra.mxu0 %v4461
    %4955 = vmatpush.msra.mxu0 %v4455
    %4956 = vmatpush.msra.mxu0 %v4449
    %4957 = vmatpush.msra.mxu0 %v4443
    %4958 = vmatpush.msra.mxu0 %v4437
    %4959 = vmatpush.msra.mxu0 %v4431
    %4960 = vmatmul.f32.gmra.mxu0 %v4540
    %v4961 = vpop.f32.mrf.mxu0
    %v4962 = vadd.f32 %v4939, %v4961
    %4963 = vmatmul.f32.gmra.mxu0 %v4546
    %v4964 = vpop.f32.mrf.mxu0
    %v4965 = vadd.f32 %v4942, %v4964
    %4966 = vdwg.mxu0
    %v4967 = vadd.f32 %v3883, %v4617
    %v4968 = vadd.f32 %v3952, %v4686
    %v4969 = vadd.f32 %v4021, %v4755
    %v4970 = vadd.f32 %v4090, %v4824
    %v4971 = vadd.f32 %v4159, %v4893
    %v4972 = vadd.f32 %v4228, %v4962
    %v4973 = vadd.f32 %v3886, %v4620
    %v4974 = vadd.f32 %v3955, %v4689
    %v4975 = vadd.f32 %v4024, %v4758
    %v4976 = vadd.f32 %v4093, %v4827
    %v4977 = vadd.f32 %v4162, %v4896
    %v4978 = vadd.f32 %v4231, %v4965
    %v4980 = vperm.slane %v2827, 0
    %v4981 = vperm.slane %v2827, 1
    %v4982 = vperm.slane %v2827, 2
    %v4983 = vperm.slane %v2827, 3
    %v4984 = vperm.slane %v2827, 4
    %v4985 = vperm.slane %v2827, 5
    %v4992 = vadd.f32 %v4967, %v4980
    %v4993 = vadd.f32 %v4968, %v4981
    %v4994 = vadd.f32 %v4969, %v4982
    %v4995 = vadd.f32 %v4970, %v4983
    %v4996 = vadd.f32 %v4971, %v4984
    %v4997 = vadd.f32 %v4972, %v4985
    %v4998 = vadd.f32 %v4973, %v4980
    %v4999 = vadd.f32 %v4974, %v4981
    %v5000 = vadd.f32 %v4975, %v4982
    %v5001 = vadd.f32 %v4976, %v4983
    %v5002 = vadd.f32 %v4977, %v4984
    %v5003 = vadd.f32 %v4978, %v4985
    %v5004 = vmax.f32 %v4992, 0.0
    %v5005 = vmax.f32 %v4993, 0.0
    %v5006 = vmax.f32 %v4994, 0.0
    %v5007 = vmax.f32 %v4995, 0.0
    %v5008 = vmax.f32 %v4996, 0.0
    %v5009 = vmax.f32 %v4997, 0.0
    %v5010 = vmax.f32 %v4998, 0.0
    %v5011 = vmax.f32 %v4999, 0.0
    %v5012 = vmax.f32 %v5000, 0.0
    %v5013 = vmax.f32 %v5001, 0.0
    %v5014 = vmax.f32 %v5002, 0.0
    %v5015 = vmax.f32 %v5003, 0.0
    %5016 = vmatpush.msra.mxu0 %v3207
    %5017 = vmatpush.msra.mxu0 %v3201
    %5018 = vmatpush.msra.mxu0 %v3195
    %5019 = vmatpush.msra.mxu0 %v3189
    %5020 = vmatpush.msra.mxu0 %v3183
    %5021 = vmatpush.msra.mxu0 %v3177
    %5022 = vmatpush.msra.mxu0 %v3171
    %5023 = vmatpush.msra.mxu0 %v3165
    %5024 = vmatpush.msra.mxu0 %v3159
    %5025 = vmatpush.msra.mxu0 %v3153
    %5026 = vmatpush.msra.mxu0 %v3147
    %5027 = vmatpush.msra.mxu0 %v3141
    %5028 = vmatpush.msra.mxu0 %v3135
    %5029 = vmatpush.msra.mxu0 %v3129
    %5030 = vmatpush.msra.mxu0 %v3123
    %5031 = vmatpush.msra.mxu0 %v3117
    %5032 = vmatmul.f32.gmra.mxu0 %v4534
    %v5033 = vpop.f32.mrf.mxu0
    %v5034 = vadd.f32 0.0, %v5033
    %5035 = vmatmul.f32.gmra.mxu0 %v4542
    %v5036 = vpop.f32.mrf.mxu0
    %v5037 = vadd.f32 0.0, %v5036
    %5038 = vdwg.mxu0
    %5039 = vmatpush.msra.mxu0 %v3303
    %5040 = vmatpush.msra.mxu0 %v3297
    %5041 = vmatpush.msra.mxu0 %v3291
    %5042 = vmatpush.msra.mxu0 %v3285
    %5043 = vmatpush.msra.mxu0 %v3279
    %5044 = vmatpush.msra.mxu0 %v3273
    %5045 = vmatpush.msra.mxu0 %v3267
    %5046 = vmatpush.msra.mxu0 %v3261
    %5047 = vmatpush.msra.mxu0 %v3255
    %5048 = vmatpush.msra.mxu0 %v3249
    %5049 = vmatpush.msra.mxu0 %v3243
    %5050 = vmatpush.msra.mxu0 %v3237
    %5051 = vmatpush.msra.mxu0 %v3231
    %5052 = vmatpush.msra.mxu0 %v3225
    %5053 = vmatpush.msra.mxu0 %v3219
    %5054 = vmatpush.msra.mxu0 %v3213
    %5055 = vmatmul.f32.gmra.mxu0 %v4537
    %v5056 = vpop.f32.mrf.mxu0
    %v5057 = vadd.f32 %v5034, %v5056
    %5058 = vmatmul.f32.gmra.mxu0 %v4544
    %v5059 = vpop.f32.mrf.mxu0
    %v5060 = vadd.f32 %v5037, %v5059
    %5061 = vdwg.mxu0
    %5062 = vmatpush.msra.mxu0 %v3399
    %5063 = vmatpush.msra.mxu0 %v3393
    %5064 = vmatpush.msra.mxu0 %v3387
    %5065 = vmatpush.msra.mxu0 %v3381
    %5066 = vmatpush.msra.mxu0 %v3375
    %5067 = vmatpush.msra.mxu0 %v3369
    %5068 = vmatpush.msra.mxu0 %v3363
    %5069 = vmatpush.msra.mxu0 %v3357
    %5070 = vmatpush.msra.mxu0 %v3351
    %5071 = vmatpush.msra.mxu0 %v3345
    %5072 = vmatpush.msra.mxu0 %v3339
    %5073 = vmatpush.msra.mxu0 %v3333
    %5074 = vmatpush.msra.mxu0 %v3327
    %5075 = vmatpush.msra.mxu0 %v3321
    %5076 = vmatpush.msra.mxu0 %v3315
    %5077 = vmatpush.msra.mxu0 %v3309
    %5078 = vmatmul.f32.gmra.mxu0 %v4540
    %v5079 = vpop.f32.mrf.mxu0
    %v5080 = vadd.f32 %v5057, %v5079
    %5081 = vmatmul.f32.gmra.mxu0 %v4546
    %v5082 = vpop.f32.mrf.mxu0
    %v5083 = vadd.f32 %v5060, %v5082
    %5084 = vdwg.mxu0
    %5085 = vmatpush.msra.mxu0 %v3208
    %5086 = vmatpush.msra.mxu0 %v3202
    %5087 = vmatpush.msra.mxu0 %v3196
    %5088 = vmatpush.msra.mxu0 %v3190
    %5089 = vmatpush.msra.mxu0 %v3184
    %5090 = vmatpush.msra.mxu0 %v3178
    %5091 = vmatpush.msra.mxu0 %v3172
    %5092 = vmatpush.msra.mxu0 %v3166
    %5093 = vmatpush.msra.mxu0 %v3160
    %5094 = vmatpush.msra.mxu0 %v3154
    %5095 = vmatpush.msra.mxu0 %v3148
    %5096 = vmatpush.msra.mxu0 %v3142
    %5097 = vmatpush.msra.mxu0 %v3136
    %5098 = vmatpush.msra.mxu0 %v3130
    %5099 = vmatpush.msra.mxu0 %v3124
    %5100 = vmatpush.msra.mxu0 %v3118
    %5101 = vmatmul.f32.gmra.mxu0 %v4534
    %v5102 = vpop.f32.mrf.mxu0
    %v5103 = vadd.f32 0.0, %v5102
    %5104 = vmatmul.f32.gmra.mxu0 %v4542
    %v5105 = vpop.f32.mrf.mxu0
    %v5106 = vadd.f32 0.0, %v5105
    %5107 = vdwg.mxu0
    %5108 = vmatpush.msra.mxu0 %v3304
    %5109 = vmatpush.msra.mxu0 %v3298
    %5110 = vmatpush.msra.mxu0 %v3292
    %5111 = vmatpush.msra.mxu0 %v3286
    %5112 = vmatpush.msra.mxu0 %v3280
    %5113 = vmatpush.msra.mxu0 %v3274
    %5114 = vmatpush.msra.mxu0 %v3268
    %5115 = vmatpush.msra.mxu0 %v3262
    %5116 = vmatpush.msra.mxu0 %v3256
    %5117 = vmatpush.msra.mxu0 %v3250
    %5118 = vmatpush.msra.mxu0 %v3244
    %5119 = vmatpush.msra.mxu0 %v3238
    %5120 = vmatpush.msra.mxu0 %v3232
    %5121 = vmatpush.msra.mxu0 %v3226
    %5122 = vmatpush.msra.mxu0 %v3220
    %5123 = vmatpush.msra.mxu0 %v3214
    %5124 = vmatmul.f32.gmra.mxu0 %v4537
    %v5125 = vpop.f32.mrf.mxu0
    %v5126 = vadd.f32 %v5103, %v5125
    %5127 = vmatmul.f32.gmra.mxu0 %v4544
    %v5128 = vpop.f32.mrf.mxu0
    %v5129 = vadd.f32 %v5106, %v5128
    %5130 = vdwg.mxu0
    %5131 = vmatpush.msra.mxu0 %v3400
    %5132 = vmatpush.msra.mxu0 %v3394
    %5133 = vmatpush.msra.mxu0 %v3388
    %5134 = vmatpush.msra.mxu0 %v3382
    %5135 = vmatpush.msra.mxu0 %v3376
    %5136 = vmatpush.msra.mxu0 %v3370
    %5137 = vmatpush.msra.mxu0 %v3364
    %5138 = vmatpush.msra.mxu0 %v3358
    %5139 = vmatpush.msra.mxu0 %v3352
    %5140 = vmatpush.msra.mxu0 %v3346
    %5141 = vmatpush.msra.mxu0 %v3340
    %5142 = vmatpush.msra.mxu0 %v3334
    %5143 = vmatpush.msra.mxu0 %v3328
    %5144 = vmatpush.msra.mxu0 %v3322
    %5145 = vmatpush.msra.mxu0 %v3316
    %5146 = vmatpush.msra.mxu0 %v3310
    %5147 = vmatmul.f32.gmra.mxu0 %v4540
    %v5148 = vpop.f32.mrf.mxu0
    %v5149 = vadd.f32 %v5126, %v5148
    %5150 = vmatmul.f32.gmra.mxu0 %v4546
    %v5151 = vpop.f32.mrf.mxu0
    %v5152 = vadd.f32 %v5129, %v5151
    %5153 = vdwg.mxu0
    %5154 = vmatpush.msra.mxu0 %v3209
    %5155 = vmatpush.msra.mxu0 %v3203
    %5156 = vmatpush.msra.mxu0 %v3197
    %5157 = vmatpush.msra.mxu0 %v3191
    %5158 = vmatpush.msra.mxu0 %v3185
    %5159 = vmatpush.msra.mxu0 %v3179
    %5160 = vmatpush.msra.mxu0 %v3173
    %5161 = vmatpush.msra.mxu0 %v3167
    %5162 = vmatpush.msra.mxu0 %v3161
    %5163 = vmatpush.msra.mxu0 %v3155
    %5164 = vmatpush.msra.mxu0 %v3149
    %5165 = vmatpush.msra.mxu0 %v3143
    %5166 = vmatpush.msra.mxu0 %v3137
    %5167 = vmatpush.msra.mxu0 %v3131
    %5168 = vmatpush.msra.mxu0 %v3125
    %5169 = vmatpush.msra.mxu0 %v3119
    %5170 = vmatmul.f32.gmra.mxu0 %v4534
    %v5171 = vpop.f32.mrf.mxu0
    %v5172 = vadd.f32 0.0, %v5171
    %5173 = vmatmul.f32.gmra.mxu0 %v4542
    %v5174 = vpop.f32.mrf.mxu0
    %v5175 = vadd.f32 0.0, %v5174
    %5176 = vdwg.mxu0
    %5177 = vmatpush.msra.mxu0 %v3305
    %5178 = vmatpush.msra.mxu0 %v3299
    %5179 = vmatpush.msra.mxu0 %v3293
    %5180 = vmatpush.msra.mxu0 %v3287
    %5181 = vmatpush.msra.mxu0 %v3281
    %5182 = vmatpush.msra.mxu0 %v3275
    %5183 = vmatpush.msra.mxu0 %v3269
    %5184 = vmatpush.msra.mxu0 %v3263
    %5185 = vmatpush.msra.mxu0 %v3257
    %5186 = vmatpush.msra.mxu0 %v3251
    %5187 = vmatpush.msra.mxu0 %v3245
    %5188 = vmatpush.msra.mxu0 %v3239
    %5189 = vmatpush.msra.mxu0 %v3233
    %5190 = vmatpush.msra.mxu0 %v3227
    %5191 = vmatpush.msra.mxu0 %v3221
    %5192 = vmatpush.msra.mxu0 %v3215
    %5193 = vmatmul.f32.gmra.mxu0 %v4537
    %v5194 = vpop.f32.mrf.mxu0
    %v5195 = vadd.f32 %v5172, %v5194
    %5196 = vmatmul.f32.gmra.mxu0 %v4544
    %v5197 = vpop.f32.mrf.mxu0
    %v5198 = vadd.f32 %v5175, %v5197
    %5199 = vdwg.mxu0
    %5200 = vmatpush.msra.mxu0 %v3401
    %5201 = vmatpush.msra.mxu0 %v3395
    %5202 = vmatpush.msra.mxu0 %v3389
    %5203 = vmatpush.msra.mxu0 %v3383
    %5204 = vmatpush.msra.mxu0 %v3377
    %5205 = vmatpush.msra.mxu0 %v3371
    %5206 = vmatpush.msra.mxu0 %v3365
    %5207 = vmatpush.msra.mxu0 %v3359
    %5208 = vmatpush.msra.mxu0 %v3353
    %5209 = vmatpush.msra.mxu0 %v3347
    %5210 = vmatpush.msra.mxu0 %v3341
    %5211 = vmatpush.msra.mxu0 %v3335
    %5212 = vmatpush.msra.mxu0 %v3329
    %5213 = vmatpush.msra.mxu0 %v3323
    %5214 = vmatpush.msra.mxu0 %v3317
    %5215 = vmatpush.msra.mxu0 %v3311
    %5216 = vmatmul.f32.gmra.mxu0 %v4540
    %v5217 = vpop.f32.mrf.mxu0
    %v5218 = vadd.f32 %v5195, %v5217
    %5219 = vmatmul.f32.gmra.mxu0 %v4546
    %v5220 = vpop.f32.mrf.mxu0
    %v5221 = vadd.f32 %v5198, %v5220
    %5222 = vdwg.mxu0
    %5223 = vmatpush.msra.mxu0 %v3210
    %5224 = vmatpush.msra.mxu0 %v3204
    %5225 = vmatpush.msra.mxu0 %v3198
    %5226 = vmatpush.msra.mxu0 %v3192
    %5227 = vmatpush.msra.mxu0 %v3186
    %5228 = vmatpush.msra.mxu0 %v3180
    %5229 = vmatpush.msra.mxu0 %v3174
    %5230 = vmatpush.msra.mxu0 %v3168
    %5231 = vmatpush.msra.mxu0 %v3162
    %5232 = vmatpush.msra.mxu0 %v3156
    %5233 = vmatpush.msra.mxu0 %v3150
    %5234 = vmatpush.msra.mxu0 %v3144
    %5235 = vmatpush.msra.mxu0 %v3138
    %5236 = vmatpush.msra.mxu0 %v3132
    %5237 = vmatpush.msra.mxu0 %v3126
    %5238 = vmatpush.msra.mxu0 %v3120
    %5239 = vmatmul.f32.gmra.mxu0 %v4534
    %v5240 = vpop.f32.mrf.mxu0
    %v5241 = vadd.f32 0.0, %v5240
    %5242 = vmatmul.f32.gmra.mxu0 %v4542
    %v5243 = vpop.f32.mrf.mxu0
    %v5244 = vadd.f32 0.0, %v5243
    %5245 = vdwg.mxu0
    %5246 = vmatpush.msra.mxu0 %v3306
    %5247 = vmatpush.msra.mxu0 %v3300
    %5248 = vmatpush.msra.mxu0 %v3294
    %5249 = vmatpush.msra.mxu0 %v3288
    %5250 = vmatpush.msra.mxu0 %v3282
    %5251 = vmatpush.msra.mxu0 %v3276
    %5252 = vmatpush.msra.mxu0 %v3270
    %5253 = vmatpush.msra.mxu0 %v3264
    %5254 = vmatpush.msra.mxu0 %v3258
    %5255 = vmatpush.msra.mxu0 %v3252
    %5256 = vmatpush.msra.mxu0 %v3246
    %5257 = vmatpush.msra.mxu0 %v3240
    %5258 = vmatpush.msra.mxu0 %v3234
    %5259 = vmatpush.msra.mxu0 %v3228
    %5260 = vmatpush.msra.mxu0 %v3222
    %5261 = vmatpush.msra.mxu0 %v3216
    %5262 = vmatmul.f32.gmra.mxu0 %v4537
    %v5263 = vpop.f32.mrf.mxu0
    %v5264 = vadd.f32 %v5241, %v5263
    %5265 = vmatmul.f32.gmra.mxu0 %v4544
    %v5266 = vpop.f32.mrf.mxu0
    %v5267 = vadd.f32 %v5244, %v5266
    %5268 = vdwg.mxu0
    %5269 = vmatpush.msra.mxu0 %v3402
    %5270 = vmatpush.msra.mxu0 %v3396
    %5271 = vmatpush.msra.mxu0 %v3390
    %5272 = vmatpush.msra.mxu0 %v3384
    %5273 = vmatpush.msra.mxu0 %v3378
    %5274 = vmatpush.msra.mxu0 %v3372
    %5275 = vmatpush.msra.mxu0 %v3366
    %5276 = vmatpush.msra.mxu0 %v3360
    %5277 = vmatpush.msra.mxu0 %v3354
    %5278 = vmatpush.msra.mxu0 %v3348
    %5279 = vmatpush.msra.mxu0 %v3342
    %5280 = vmatpush.msra.mxu0 %v3336
    %5281 = vmatpush.msra.mxu0 %v3330
    %5282 = vmatpush.msra.mxu0 %v3324
    %5283 = vmatpush.msra.mxu0 %v3318
    %5284 = vmatpush.msra.mxu0 %v3312
    %5285 = vmatmul.f32.gmra.mxu0 %v4540
    %v5286 = vpop.f32.mrf.mxu0
    %v5287 = vadd.f32 %v5264, %v5286
    %5288 = vmatmul.f32.gmra.mxu0 %v4546
    %v5289 = vpop.f32.mrf.mxu0
    %v5290 = vadd.f32 %v5267, %v5289
    %5291 = vdwg.mxu0
    %5292 = vmatpush.msra.mxu0 %v3211
    %5293 = vmatpush.msra.mxu0 %v3205
    %5294 = vmatpush.msra.mxu0 %v3199
    %5295 = vmatpush.msra.mxu0 %v3193
    %5296 = vmatpush.msra.mxu0 %v3187
    %5297 = vmatpush.msra.mxu0 %v3181
    %5298 = vmatpush.msra.mxu0 %v3175
    %5299 = vmatpush.msra.mxu0 %v3169
    %5300 = vmatpush.msra.mxu0 %v3163
    %5301 = vmatpush.msra.mxu0 %v3157
    %5302 = vmatpush.msra.mxu0 %v3151
    %5303 = vmatpush.msra.mxu0 %v3145
    %5304 = vmatpush.msra.mxu0 %v3139
    %5305 = vmatpush.msra.mxu0 %v3133
    %5306 = vmatpush.msra.mxu0 %v3127
    %5307 = vmatpush.msra.mxu0 %v3121
    %5308 = vmatmul.f32.gmra.mxu0 %v4534
    %v5309 = vpop.f32.mrf.mxu0
    %v5310 = vadd.f32 0.0, %v5309
    %5311 = vmatmul.f32.gmra.mxu0 %v4542
    %v5312 = vpop.f32.mrf.mxu0
    %v5313 = vadd.f32 0.0, %v5312
    %5314 = vdwg.mxu0
    %5315 = vmatpush.msra.mxu0 %v3307
    %5316 = vmatpush.msra.mxu0 %v3301
    %5317 = vmatpush.msra.mxu0 %v3295
    %5318 = vmatpush.msra.mxu0 %v3289
    %5319 = vmatpush.msra.mxu0 %v3283
    %5320 = vmatpush.msra.mxu0 %v3277
    %5321 = vmatpush.msra.mxu0 %v3271
    %5322 = vmatpush.msra.mxu0 %v3265
    %5323 = vmatpush.msra.mxu0 %v3259
    %5324 = vmatpush.msra.mxu0 %v3253
    %5325 = vmatpush.msra.mxu0 %v3247
    %5326 = vmatpush.msra.mxu0 %v3241
    %5327 = vmatpush.msra.mxu0 %v3235
    %5328 = vmatpush.msra.mxu0 %v3229
    %5329 = vmatpush.msra.mxu0 %v3223
    %5330 = vmatpush.msra.mxu0 %v3217
    %5331 = vmatmul.f32.gmra.mxu0 %v4537
    %v5332 = vpop.f32.mrf.mxu0
    %v5333 = vadd.f32 %v5310, %v5332
    %5334 = vmatmul.f32.gmra.mxu0 %v4544
    %v5335 = vpop.f32.mrf.mxu0
    %v5336 = vadd.f32 %v5313, %v5335
    %5337 = vdwg.mxu0
    %5338 = vmatpush.msra.mxu0 %v3403
    %5339 = vmatpush.msra.mxu0 %v3397
    %5340 = vmatpush.msra.mxu0 %v3391
    %5341 = vmatpush.msra.mxu0 %v3385
    %5342 = vmatpush.msra.mxu0 %v3379
    %5343 = vmatpush.msra.mxu0 %v3373
    %5344 = vmatpush.msra.mxu0 %v3367
    %5345 = vmatpush.msra.mxu0 %v3361
    %5346 = vmatpush.msra.mxu0 %v3355
    %5347 = vmatpush.msra.mxu0 %v3349
    %5348 = vmatpush.msra.mxu0 %v3343
    %5349 = vmatpush.msra.mxu0 %v3337
    %5350 = vmatpush.msra.mxu0 %v3331
    %5351 = vmatpush.msra.mxu0 %v3325
    %5352 = vmatpush.msra.mxu0 %v3319
    %5353 = vmatpush.msra.mxu0 %v3313
    %5354 = vmatmul.f32.gmra.mxu0 %v4540
    %v5355 = vpop.f32.mrf.mxu0
    %v5356 = vadd.f32 %v5333, %v5355
    %5357 = vmatmul.f32.gmra.mxu0 %v4546
    %v5358 = vpop.f32.mrf.mxu0
    %v5359 = vadd.f32 %v5336, %v5358
    %5360 = vdwg.mxu0
    %5361 = vmatpush.msra.mxu0 %v3212
    %5362 = vmatpush.msra.mxu0 %v3206
    %5363 = vmatpush.msra.mxu0 %v3200
    %5364 = vmatpush.msra.mxu0 %v3194
    %5365 = vmatpush.msra.mxu0 %v3188
    %5366 = vmatpush.msra.mxu0 %v3182
    %5367 = vmatpush.msra.mxu0 %v3176
    %5368 = vmatpush.msra.mxu0 %v3170
    %5369 = vmatpush.msra.mxu0 %v3164
    %5370 = vmatpush.msra.mxu0 %v3158
    %5371 = vmatpush.msra.mxu0 %v3152
    %5372 = vmatpush.msra.mxu0 %v3146
    %5373 = vmatpush.msra.mxu0 %v3140
    %5374 = vmatpush.msra.mxu0 %v3134
    %5375 = vmatpush.msra.mxu0 %v3128
    %5376 = vmatpush.msra.mxu0 %v3122
    %5377 = vmatmul.f32.gmra.mxu0 %v4534
    %v5378 = vpop.f32.mrf.mxu0
    %v5379 = vadd.f32 0.0, %v5378
    %5380 = vmatmul.f32.gmra.mxu0 %v4542
    %v5381 = vpop.f32.mrf.mxu0
    %v5382 = vadd.f32 0.0, %v5381
    %5383 = vdwg.mxu0
    %5384 = vmatpush.msra.mxu0 %v3308
    %5385 = vmatpush.msra.mxu0 %v3302
    %5386 = vmatpush.msra.mxu0 %v3296
    %5387 = vmatpush.msra.mxu0 %v3290
    %5388 = vmatpush.msra.mxu0 %v3284
    %5389 = vmatpush.msra.mxu0 %v3278
    %5390 = vmatpush.msra.mxu0 %v3272
    %5391 = vmatpush.msra.mxu0 %v3266
    %5392 = vmatpush.msra.mxu0 %v3260
    %5393 = vmatpush.msra.mxu0 %v3254
    %5394 = vmatpush.msra.mxu0 %v3248
    %5395 = vmatpush.msra.mxu0 %v3242
    %5396 = vmatpush.msra.mxu0 %v3236
    %5397 = vmatpush.msra.mxu0 %v3230
    %5398 = vmatpush.msra.mxu0 %v3224
    %5399 = vmatpush.msra.mxu0 %v3218
    %5400 = vmatmul.f32.gmra.mxu0 %v4537
    %v5401 = vpop.f32.mrf.mxu0
    %v5402 = vadd.f32 %v5379, %v5401
    %5403 = vmatmul.f32.gmra.mxu0 %v4544
    %v5404 = vpop.f32.mrf.mxu0
    %v5405 = vadd.f32 %v5382, %v5404
    %5406 = vdwg.mxu0
    %5407 = vmatpush.msra.mxu0 %v3404
    %5408 = vmatpush.msra.mxu0 %v3398
    %5409 = vmatpush.msra.mxu0 %v3392
    %5410 = vmatpush.msra.mxu0 %v3386
    %5411 = vmatpush.msra.mxu0 %v3380
    %5412 = vmatpush.msra.mxu0 %v3374
    %5413 = vmatpush.msra.mxu0 %v3368
    %5414 = vmatpush.msra.mxu0 %v3362
    %5415 = vmatpush.msra.mxu0 %v3356
    %5416 = vmatpush.msra.mxu0 %v3350
    %5417 = vmatpush.msra.mxu0 %v3344
    %5418 = vmatpush.msra.mxu0 %v3338
    %5419 = vmatpush.msra.mxu0 %v3332
    %5420 = vmatpush.msra.mxu0 %v3326
    %5421 = vmatpush.msra.mxu0 %v3320
    %5422 = vmatpush.msra.mxu0 %v3314
    %5423 = vmatmul.f32.gmra.mxu0 %v4540
    %v5424 = vpop.f32.mrf.mxu0
    %v5425 = vadd.f32 %v5402, %v5424
    %5426 = vmatmul.f32.gmra.mxu0 %v4546
    %v5427 = vpop.f32.mrf.mxu0
    %v5428 = vadd.f32 %v5405, %v5427
    %5429 = vdwg.mxu0
    %5430 = vmatpush.msra.mxu0 %v2918
    %5431 = vmatpush.msra.mxu0 %v2912
    %5432 = vmatpush.msra.mxu0 %v2906
    %5433 = vmatpush.msra.mxu0 %v2900
    %5434 = vmatpush.msra.mxu0 %v2894
    %5435 = vmatpush.msra.mxu0 %v2888
    %5436 = vmatpush.msra.mxu0 %v2882
    %5437 = vmatpush.msra.mxu0 %v2876
    %5438 = vmatpush.msra.mxu0 %v2870
    %5439 = vmatpush.msra.mxu0 %v2864
    %5440 = vmatpush.msra.mxu0 %v2858
    %5441 = vmatpush.msra.mxu0 %v2852
    %5442 = vmatpush.msra.mxu0 %v2846
    %5443 = vmatpush.msra.mxu0 %v2840
    %5444 = vmatpush.msra.mxu0 %v2834
    %5445 = vmatpush.msra.mxu0 %v2828
    %5446 = vmatmul.f32.gmra.mxu0 %v2806
    %v5447 = vpop.f32.mrf.mxu0
    %v5448 = vadd.f32 %v5080, %v5447
    %5449 = vmatmul.f32.gmra.mxu0 %v2809
    %v5450 = vpop.f32.mrf.mxu0
    %v5451 = vadd.f32 %v5083, %v5450
    %5452 = vdwg.mxu0
    %5453 = vmatpush.msra.mxu0 %v3014
    %5454 = vmatpush.msra.mxu0 %v3008
    %5455 = vmatpush.msra.mxu0 %v3002
    %5456 = vmatpush.msra.mxu0 %v2996
    %5457 = vmatpush.msra.mxu0 %v2990
    %5458 = vmatpush.msra.mxu0 %v2984
    %5459 = vmatpush.msra.mxu0 %v2978
    %5460 = vmatpush.msra.mxu0 %v2972
    %5461 = vmatpush.msra.mxu0 %v2966
    %5462 = vmatpush.msra.mxu0 %v2960
    %5463 = vmatpush.msra.mxu0 %v2954
    %5464 = vmatpush.msra.mxu0 %v2948
    %5465 = vmatpush.msra.mxu0 %v2942
    %5466 = vmatpush.msra.mxu0 %v2936
    %5467 = vmatpush.msra.mxu0 %v2930
    %5468 = vmatpush.msra.mxu0 %v2924
    %5469 = vmatmul.f32.gmra.mxu0 %v2807
    %v5470 = vpop.f32.mrf.mxu0
    %v5471 = vadd.f32 %v5448, %v5470
    %5472 = vmatmul.f32.gmra.mxu0 %v2810
    %v5473 = vpop.f32.mrf.mxu0
    %v5474 = vadd.f32 %v5451, %v5473
    %5475 = vdwg.mxu0
    %5476 = vmatpush.msra.mxu0 %v3110
    %5477 = vmatpush.msra.mxu0 %v3104
    %5478 = vmatpush.msra.mxu0 %v3098
    %5479 = vmatpush.msra.mxu0 %v3092
    %5480 = vmatpush.msra.mxu0 %v3086
    %5481 = vmatpush.msra.mxu0 %v3080
    %5482 = vmatpush.msra.mxu0 %v3074
    %5483 = vmatpush.msra.mxu0 %v3068
    %5484 = vmatpush.msra.mxu0 %v3062
    %5485 = vmatpush.msra.mxu0 %v3056
    %5486 = vmatpush.msra.mxu0 %v3050
    %5487 = vmatpush.msra.mxu0 %v3044
    %5488 = vmatpush.msra.mxu0 %v3038
    %5489 = vmatpush.msra.mxu0 %v3032
    %5490 = vmatpush.msra.mxu0 %v3026
    %5491 = vmatpush.msra.mxu0 %v3020
    %5492 = vmatmul.f32.gmra.mxu0 %v2808
    %v5493 = vpop.f32.mrf.mxu0
    %v5494 = vadd.f32 %v5471, %v5493
    %5495 = vmatmul.f32.gmra.mxu0 %v2811
    %v5496 = vpop.f32.mrf.mxu0
    %v5497 = vadd.f32 %v5474, %v5496
    %5498 = vdwg.mxu0
    %5499 = vmatpush.msra.mxu0 %v2919
    %5500 = vmatpush.msra.mxu0 %v2913
    %5501 = vmatpush.msra.mxu0 %v2907
    %5502 = vmatpush.msra.mxu0 %v2901
    %5503 = vmatpush.msra.mxu0 %v2895
    %5504 = vmatpush.msra.mxu0 %v2889
    %5505 = vmatpush.msra.mxu0 %v2883
    %5506 = vmatpush.msra.mxu0 %v2877
    %5507 = vmatpush.msra.mxu0 %v2871
    %5508 = vmatpush.msra.mxu0 %v2865
    %5509 = vmatpush.msra.mxu0 %v2859
    %5510 = vmatpush.msra.mxu0 %v2853
    %5511 = vmatpush.msra.mxu0 %v2847
    %5512 = vmatpush.msra.mxu0 %v2841
    %5513 = vmatpush.msra.mxu0 %v2835
    %5514 = vmatpush.msra.mxu0 %v2829
    %5515 = vmatmul.f32.gmra.mxu0 %v2806
    %v5516 = vpop.f32.mrf.mxu0
    %v5517 = vadd.f32 %v5149, %v5516
    %5518 = vmatmul.f32.gmra.mxu0 %v2809
    %v5519 = vpop.f32.mrf.mxu0
    %v5520 = vadd.f32 %v5152, %v5519
    %5521 = vdwg.mxu0
    %5522 = vmatpush.msra.mxu0 %v3015
    %5523 = vmatpush.msra.mxu0 %v3009
    %5524 = vmatpush.msra.mxu0 %v3003
    %5525 = vmatpush.msra.mxu0 %v2997
    %5526 = vmatpush.msra.mxu0 %v2991
    %5527 = vmatpush.msra.mxu0 %v2985
    %5528 = vmatpush.msra.mxu0 %v2979
    %5529 = vmatpush.msra.mxu0 %v2973
    %5530 = vmatpush.msra.mxu0 %v2967
    %5531 = vmatpush.msra.mxu0 %v2961
    %5532 = vmatpush.msra.mxu0 %v2955
    %5533 = vmatpush.msra.mxu0 %v2949
    %5534 = vmatpush.msra.mxu0 %v2943
    %5535 = vmatpush.msra.mxu0 %v2937
    %5536 = vmatpush.msra.mxu0 %v2931
    %5537 = vmatpush.msra.mxu0 %v2925
    %5538 = vmatmul.f32.gmra.mxu0 %v2807
    %v5539 = vpop.f32.mrf.mxu0
    %v5540 = vadd.f32 %v5517, %v5539
    %5541 = vmatmul.f32.gmra.mxu0 %v2810
    %v5542 = vpop.f32.mrf.mxu0
    %v5543 = vadd.f32 %v5520, %v5542
    %5544 = vdwg.mxu0
    %5545 = vmatpush.msra.mxu0 %v3111
    %5546 = vmatpush.msra.mxu0 %v3105
    %5547 = vmatpush.msra.mxu0 %v3099
    %5548 = vmatpush.msra.mxu0 %v3093
    %5549 = vmatpush.msra.mxu0 %v3087
    %5550 = vmatpush.msra.mxu0 %v3081
    %5551 = vmatpush.msra.mxu0 %v3075
    %5552 = vmatpush.msra.mxu0 %v3069
    %5553 = vmatpush.msra.mxu0 %v3063
    %5554 = vmatpush.msra.mxu0 %v3057
    %5555 = vmatpush.msra.mxu0 %v3051
    %5556 = vmatpush.msra.mxu0 %v3045
    %5557 = vmatpush.msra.mxu0 %v3039
    %5558 = vmatpush.msra.mxu0 %v3033
    %5559 = vmatpush.msra.mxu0 %v3027
    %5560 = vmatpush.msra.mxu0 %v3021
    %5561 = vmatmul.f32.gmra.mxu0 %v2808
    %v5562 = vpop.f32.mrf.mxu0
    %v5563 = vadd.f32 %v5540, %v5562
    %5564 = vmatmul.f32.gmra.mxu0 %v2811
    %v5565 = vpop.f32.mrf.mxu0
    %v5566 = vadd.f32 %v5543, %v5565
    %5567 = vdwg.mxu0
    %5568 = vmatpush.msra.mxu0 %v2920
    %5569 = vmatpush.msra.mxu0 %v2914
    %5570 = vmatpush.msra.mxu0 %v2908
    %5571 = vmatpush.msra.mxu0 %v2902
    %5572 = vmatpush.msra.mxu0 %v2896
    %5573 = vmatpush.msra.mxu0 %v2890
    %5574 = vmatpush.msra.mxu0 %v2884
    %5575 = vmatpush.msra.mxu0 %v2878
    %5576 = vmatpush.msra.mxu0 %v2872
    %5577 = vmatpush.msra.mxu0 %v2866
    %5578 = vmatpush.msra.mxu0 %v2860
    %5579 = vmatpush.msra.mxu0 %v2854
    %5580 = vmatpush.msra.mxu0 %v2848
    %5581 = vmatpush.msra.mxu0 %v2842
    %5582 = vmatpush.msra.mxu0 %v2836
    %5583 = vmatpush.msra.mxu0 %v2830
    %5584 = vmatmul.f32.gmra.mxu0 %v2806
    %v5585 = vpop.f32.mrf.mxu0
    %v5586 = vadd.f32 %v5218, %v5585
    %5587 = vmatmul.f32.gmra.mxu0 %v2809
    %v5588 = vpop.f32.mrf.mxu0
    %v5589 = vadd.f32 %v5221, %v5588
    %5590 = vdwg.mxu0
    %5591 = vmatpush.msra.mxu0 %v3016
    %5592 = vmatpush.msra.mxu0 %v3010
    %5593 = vmatpush.msra.mxu0 %v3004
    %5594 = vmatpush.msra.mxu0 %v2998
    %5595 = vmatpush.msra.mxu0 %v2992
    %5596 = vmatpush.msra.mxu0 %v2986
    %5597 = vmatpush.msra.mxu0 %v2980
    %5598 = vmatpush.msra.mxu0 %v2974
    %5599 = vmatpush.msra.mxu0 %v2968
    %5600 = vmatpush.msra.mxu0 %v2962
    %5601 = vmatpush.msra.mxu0 %v2956
    %5602 = vmatpush.msra.mxu0 %v2950
    %5603 = vmatpush.msra.mxu0 %v2944
    %5604 = vmatpush.msra.mxu0 %v2938
    %5605 = vmatpush.msra.mxu0 %v2932
    %5606 = vmatpush.msra.mxu0 %v2926
    %5607 = vmatmul.f32.gmra.mxu0 %v2807
    %v5608 = vpop.f32.mrf.mxu0
    %v5609 = vadd.f32 %v5586, %v5608
    %5610 = vmatmul.f32.gmra.mxu0 %v2810
    %v5611 = vpop.f32.mrf.mxu0
    %v5612 = vadd.f32 %v5589, %v5611
    %5613 = vdwg.mxu0
    %5614 = vmatpush.msra.mxu0 %v3112
    %5615 = vmatpush.msra.mxu0 %v3106
    %5616 = vmatpush.msra.mxu0 %v3100
    %5617 = vmatpush.msra.mxu0 %v3094
    %5618 = vmatpush.msra.mxu0 %v3088
    %5619 = vmatpush.msra.mxu0 %v3082
    %5620 = vmatpush.msra.mxu0 %v3076
    %5621 = vmatpush.msra.mxu0 %v3070
    %5622 = vmatpush.msra.mxu0 %v3064
    %5623 = vmatpush.msra.mxu0 %v3058
    %5624 = vmatpush.msra.mxu0 %v3052
    %5625 = vmatpush.msra.mxu0 %v3046
    %5626 = vmatpush.msra.mxu0 %v3040
    %5627 = vmatpush.msra.mxu0 %v3034
    %5628 = vmatpush.msra.mxu0 %v3028
    %5629 = vmatpush.msra.mxu0 %v3022
    %5630 = vmatmul.f32.gmra.mxu0 %v2808
    %v5631 = vpop.f32.mrf.mxu0
    %v5632 = vadd.f32 %v5609, %v5631
    %5633 = vmatmul.f32.gmra.mxu0 %v2811
    %v5634 = vpop.f32.mrf.mxu0
    %v5635 = vadd.f32 %v5612, %v5634
    %5636 = vdwg.mxu0
    %5637 = vmatpush.msra.mxu0 %v2921
    %5638 = vmatpush.msra.mxu0 %v2915
    %5639 = vmatpush.msra.mxu0 %v2909
    %5640 = vmatpush.msra.mxu0 %v2903
    %5641 = vmatpush.msra.mxu0 %v2897
    %5642 = vmatpush.msra.mxu0 %v2891
    %5643 = vmatpush.msra.mxu0 %v2885
    %5644 = vmatpush.msra.mxu0 %v2879
    %5645 = vmatpush.msra.mxu0 %v2873
    %5646 = vmatpush.msra.mxu0 %v2867
    %5647 = vmatpush.msra.mxu0 %v2861
    %5648 = vmatpush.msra.mxu0 %v2855
    %5649 = vmatpush.msra.mxu0 %v2849
    %5650 = vmatpush.msra.mxu0 %v2843
    %5651 = vmatpush.msra.mxu0 %v2837
    %5652 = vmatpush.msra.mxu0 %v2831
    %5653 = vmatmul.f32.gmra.mxu0 %v2806
    %v5654 = vpop.f32.mrf.mxu0
    %v5655 = vadd.f32 %v5287, %v5654
    %5656 = vmatmul.f32.gmra.mxu0 %v2809
    %v5657 = vpop.f32.mrf.mxu0
    %v5658 = vadd.f32 %v5290, %v5657
    %5659 = vdwg.mxu0
    %5660 = vmatpush.msra.mxu0 %v3017
    %5661 = vmatpush.msra.mxu0 %v3011
    %5662 = vmatpush.msra.mxu0 %v3005
    %5663 = vmatpush.msra.mxu0 %v2999
    %5664 = vmatpush.msra.mxu0 %v2993
    %5665 = vmatpush.msra.mxu0 %v2987
    %5666 = vmatpush.msra.mxu0 %v2981
    %5667 = vmatpush.msra.mxu0 %v2975
    %5668 = vmatpush.msra.mxu0 %v2969
    %5669 = vmatpush.msra.mxu0 %v2963
    %5670 = vmatpush.msra.mxu0 %v2957
    %5671 = vmatpush.msra.mxu0 %v2951
    %5672 = vmatpush.msra.mxu0 %v2945
    %5673 = vmatpush.msra.mxu0 %v2939
    %5674 = vmatpush.msra.mxu0 %v2933
    %5675 = vmatpush.msra.mxu0 %v2927
    %5676 = vmatmul.f32.gmra.mxu0 %v2807
    %v5677 = vpop.f32.mrf.mxu0
    %v5678 = vadd.f32 %v5655, %v5677
    %5679 = vmatmul.f32.gmra.mxu0 %v2810
    %v5680 = vpop.f32.mrf.mxu0
    %v5681 = vadd.f32 %v5658, %v5680
    %5682 = vdwg.mxu0
    %5683 = vmatpush.msra.mxu0 %v3113
    %5684 = vmatpush.msra.mxu0 %v3107
    %5685 = vmatpush.msra.mxu0 %v3101
    %5686 = vmatpush.msra.mxu0 %v3095
    %5687 = vmatpush.msra.mxu0 %v3089
    %5688 = vmatpush.msra.mxu0 %v3083
    %5689 = vmatpush.msra.mxu0 %v3077
    %5690 = vmatpush.msra.mxu0 %v3071
    %5691 = vmatpush.msra.mxu0 %v3065
    %5692 = vmatpush.msra.mxu0 %v3059
    %5693 = vmatpush.msra.mxu0 %v3053
    %5694 = vmatpush.msra.mxu0 %v3047
    %5695 = vmatpush.msra.mxu0 %v3041
    %5696 = vmatpush.msra.mxu0 %v3035
    %5697 = vmatpush.msra.mxu0 %v3029
    %5698 = vmatpush.msra.mxu0 %v3023
    %5699 = vmatmul.f32.gmra.mxu0 %v2808
    %v5700 = vpop.f32.mrf.mxu0
    %v5701 = vadd.f32 %v5678, %v5700
    %5702 = vmatmul.f32.gmra.mxu0 %v2811
    %v5703 = vpop.f32.mrf.mxu0
    %v5704 = vadd.f32 %v5681, %v5703
    %5705 = vdwg.mxu0
    %5706 = vmatpush.msra.mxu0 %v2922
    %5707 = vmatpush.msra.mxu0 %v2916
    %5708 = vmatpush.msra.mxu0 %v2910
    %5709 = vmatpush.msra.mxu0 %v2904
    %5710 = vmatpush.msra.mxu0 %v2898
    %5711 = vmatpush.msra.mxu0 %v2892
    %5712 = vmatpush.msra.mxu0 %v2886
    %5713 = vmatpush.msra.mxu0 %v2880
    %5714 = vmatpush.msra.mxu0 %v2874
    %5715 = vmatpush.msra.mxu0 %v2868
    %5716 = vmatpush.msra.mxu0 %v2862
    %5717 = vmatpush.msra.mxu0 %v2856
    %5718 = vmatpush.msra.mxu0 %v2850
    %5719 = vmatpush.msra.mxu0 %v2844
    %5720 = vmatpush.msra.mxu0 %v2838
    %5721 = vmatpush.msra.mxu0 %v2832
    %5722 = vmatmul.f32.gmra.mxu0 %v2806
    %v5723 = vpop.f32.mrf.mxu0
    %v5724 = vadd.f32 %v5356, %v5723
    %5725 = vmatmul.f32.gmra.mxu0 %v2809
    %v5726 = vpop.f32.mrf.mxu0
    %v5727 = vadd.f32 %v5359, %v5726
    %5728 = vdwg.mxu0
    %5729 = vmatpush.msra.mxu0 %v3018
    %5730 = vmatpush.msra.mxu0 %v3012
    %5731 = vmatpush.msra.mxu0 %v3006
    %5732 = vmatpush.msra.mxu0 %v3000
    %5733 = vmatpush.msra.mxu0 %v2994
    %5734 = vmatpush.msra.mxu0 %v2988
    %5735 = vmatpush.msra.mxu0 %v2982
    %5736 = vmatpush.msra.mxu0 %v2976
    %5737 = vmatpush.msra.mxu0 %v2970
    %5738 = vmatpush.msra.mxu0 %v2964
    %5739 = vmatpush.msra.mxu0 %v2958
    %5740 = vmatpush.msra.mxu0 %v2952
    %5741 = vmatpush.msra.mxu0 %v2946
    %5742 = vmatpush.msra.mxu0 %v2940
    %5743 = vmatpush.msra.mxu0 %v2934
    %5744 = vmatpush.msra.mxu0 %v2928
    %5745 = vmatmul.f32.gmra.mxu0 %v2807
    %v5746 = vpop.f32.mrf.mxu0
    %v5747 = vadd.f32 %v5724, %v5746
    %5748 = vmatmul.f32.gmra.mxu0 %v2810
    %v5749 = vpop.f32.mrf.mxu0
    %v5750 = vadd.f32 %v5727, %v5749
    %5751 = vdwg.mxu0
    %5752 = vmatpush.msra.mxu0 %v3114
    %5753 = vmatpush.msra.mxu0 %v3108
    %5754 = vmatpush.msra.mxu0 %v3102
    %5755 = vmatpush.msra.mxu0 %v3096
    %5756 = vmatpush.msra.mxu0 %v3090
    %5757 = vmatpush.msra.mxu0 %v3084
    %5758 = vmatpush.msra.mxu0 %v3078
    %5759 = vmatpush.msra.mxu0 %v3072
    %5760 = vmatpush.msra.mxu0 %v3066
    %5761 = vmatpush.msra.mxu0 %v3060
    %5762 = vmatpush.msra.mxu0 %v3054
    %5763 = vmatpush.msra.mxu0 %v3048
    %5764 = vmatpush.msra.mxu0 %v3042
    %5765 = vmatpush.msra.mxu0 %v3036
    %5766 = vmatpush.msra.mxu0 %v3030
    %5767 = vmatpush.msra.mxu0 %v3024
    %5768 = vmatmul.f32.gmra.mxu0 %v2808
    %v5769 = vpop.f32.mrf.mxu0
    %v5770 = vadd.f32 %v5747, %v5769
    %5771 = vmatmul.f32.gmra.mxu0 %v2811
    %v5772 = vpop.f32.mrf.mxu0
    %v5773 = vadd.f32 %v5750, %v5772
    %5774 = vdwg.mxu0
    %5775 = vmatpush.msra.mxu0 %v2923
    %5776 = vmatpush.msra.mxu0 %v2917
    %5777 = vmatpush.msra.mxu0 %v2911
    %5778 = vmatpush.msra.mxu0 %v2905
    %5779 = vmatpush.msra.mxu0 %v2899
    %5780 = vmatpush.msra.mxu0 %v2893
    %5781 = vmatpush.msra.mxu0 %v2887
    %5782 = vmatpush.msra.mxu0 %v2881
    %5783 = vmatpush.msra.mxu0 %v2875
    %5784 = vmatpush.msra.mxu0 %v2869
    %5785 = vmatpush.msra.mxu0 %v2863
    %5786 = vmatpush.msra.mxu0 %v2857
    %5787 = vmatpush.msra.mxu0 %v2851
    %5788 = vmatpush.msra.mxu0 %v2845
    %5789 = vmatpush.msra.mxu0 %v2839
    %5790 = vmatpush.msra.mxu0 %v2833
    %5791 = vmatmul.f32.gmra.mxu0 %v2806
    %v5792 = vpop.f32.mrf.mxu0
    %v5793 = vadd.f32 %v5425, %v5792
    %5794 = vmatmul.f32.gmra.mxu0 %v2809
    %v5795 = vpop.f32.mrf.mxu0
    %v5796 = vadd.f32 %v5428, %v5795
    %5797 = vdwg.mxu0
    %5798 = vmatpush.msra.mxu0 %v3019
    %5799 = vmatpush.msra.mxu0 %v3013
    %5800 = vmatpush.msra.mxu0 %v3007
    %5801 = vmatpush.msra.mxu0 %v3001
    %5802 = vmatpush.msra.mxu0 %v2995
    %5803 = vmatpush.msra.mxu0 %v2989
    %5804 = vmatpush.msra.mxu0 %v2983
    %5805 = vmatpush.msra.mxu0 %v2977
    %5806 = vmatpush.msra.mxu0 %v2971
    %5807 = vmatpush.msra.mxu0 %v2965
    %5808 = vmatpush.msra.mxu0 %v2959
    %5809 = vmatpush.msra.mxu0 %v2953
    %5810 = vmatpush.msra.mxu0 %v2947
    %5811 = vmatpush.msra.mxu0 %v2941
    %5812 = vmatpush.msra.mxu0 %v2935
    %5813 = vmatpush.msra.mxu0 %v2929
    %5814 = vmatmul.f32.gmra.mxu0 %v2807
    %v5815 = vpop.f32.mrf.mxu0
    %v5816 = vadd.f32 %v5793, %v5815
    %5817 = vmatmul.f32.gmra.mxu0 %v2810
    %v5818 = vpop.f32.mrf.mxu0
    %v5819 = vadd.f32 %v5796, %v5818
    %5820 = vdwg.mxu0
    %5821 = vmatpush.msra.mxu0 %v3115
    %5822 = vmatpush.msra.mxu0 %v3109
    %5823 = vmatpush.msra.mxu0 %v3103
    %5824 = vmatpush.msra.mxu0 %v3097
    %5825 = vmatpush.msra.mxu0 %v3091
    %5826 = vmatpush.msra.mxu0 %v3085
    %5827 = vmatpush.msra.mxu0 %v3079
    %5828 = vmatpush.msra.mxu0 %v3073
    %5829 = vmatpush.msra.mxu0 %v3067
    %5830 = vmatpush.msra.mxu0 %v3061
    %5831 = vmatpush.msra.mxu0 %v3055
    %5832 = vmatpush.msra.mxu0 %v3049
    %5833 = vmatpush.msra.mxu0 %v3043
    %5834 = vmatpush.msra.mxu0 %v3037
    %5835 = vmatpush.msra.mxu0 %v3031
    %5836 = vmatpush.msra.mxu0 %v3025
    %5837 = vmatmul.f32.gmra.mxu0 %v2808
    %v5838 = vpop.f32.mrf.mxu0
    %v5839 = vadd.f32 %v5816, %v5838
    %5840 = vmatmul.f32.gmra.mxu0 %v2811
    %v5841 = vpop.f32.mrf.mxu0
    %v5842 = vadd.f32 %v5819, %v5841
    %5843 = vdwg.mxu0
    %v5853 = vrot.slane %v2818, 2
    %v5854 = vrot.slane %v2821, 2
    %v5855 = vsel %vm4531, %v5853, %v5854
    %v5856 = vrot.slane %v2819, 2
    %v5857 = vrot.slane %v2822, 2
    %v5858 = vsel %vm4531, %v5856, %v5857
    %v5859 = vrot.slane %v2820, 2
    %v5860 = vrot.slane %v2823, 2
    %v5861 = vsel %vm4531, %v5859, %v5860
    %v5862 = vrot.slane %v2824, 2
    %v5863 = vsel %vm4531, %v5854, %v5862
    %v5864 = vrot.slane %v2825, 2
    %v5865 = vsel %vm4531, %v5857, %v5864
    %v5866 = vrot.slane %v2826, 2
    %v5867 = vsel %vm4531, %v5860, %v5866
    %5874 = vmatpush.msra.mxu0 %v4324
    %5875 = vmatpush.msra.mxu0 %v4318
    %5876 = vmatpush.msra.mxu0 %v4312
    %5877 = vmatpush.msra.mxu0 %v4306
    %5878 = vmatpush.msra.mxu0 %v4300
    %5879 = vmatpush.msra.mxu0 %v4294
    %5880 = vmatpush.msra.mxu0 %v4288
    %5881 = vmatpush.msra.mxu0 %v4282
    %5882 = vmatpush.msra.mxu0 %v4276
    %5883 = vmatpush.msra.mxu0 %v4270
    %5884 = vmatpush.msra.mxu0 %v4264
    %5885 = vmatpush.msra.mxu0 %v4258
    %5886 = vmatpush.msra.mxu0 %v4252
    %5887 = vmatpush.msra.mxu0 %v4246
    %5888 = vmatpush.msra.mxu0 %v4240
    %5889 = vmatpush.msra.mxu0 %v4234
    %5890 = vmatmul.f32.gmra.mxu0 %v5855
    %v5891 = vpop.f32.mrf.mxu0
    %v5892 = vadd.f32 0.0, %v5891
    %5893 = vmatmul.f32.gmra.mxu0 %v5863
    %v5894 = vpop.f32.mrf.mxu0
    %v5895 = vadd.f32 0.0, %v5894
    %5896 = vdwg.mxu0
    %5897 = vmatpush.msra.mxu0 %v4420
    %5898 = vmatpush.msra.mxu0 %v4414
    %5899 = vmatpush.msra.mxu0 %v4408
    %5900 = vmatpush.msra.mxu0 %v4402
    %5901 = vmatpush.msra.mxu0 %v4396
    %5902 = vmatpush.msra.mxu0 %v4390
    %5903 = vmatpush.msra.mxu0 %v4384
    %5904 = vmatpush.msra.mxu0 %v4378
    %5905 = vmatpush.msra.mxu0 %v4372
    %5906 = vmatpush.msra.mxu0 %v4366
    %5907 = vmatpush.msra.mxu0 %v4360
    %5908 = vmatpush.msra.mxu0 %v4354
    %5909 = vmatpush.msra.mxu0 %v4348
    %5910 = vmatpush.msra.mxu0 %v4342
    %5911 = vmatpush.msra.mxu0 %v4336
    %5912 = vmatpush.msra.mxu0 %v4330
    %5913 = vmatmul.f32.gmra.mxu0 %v5858
    %v5914 = vpop.f32.mrf.mxu0
    %v5915 = vadd.f32 %v5892, %v5914
    %5916 = vmatmul.f32.gmra.mxu0 %v5865
    %v5917 = vpop.f32.mrf.mxu0
    %v5918 = vadd.f32 %v5895, %v5917
    %5919 = vdwg.mxu0
    %5920 = vmatpush.msra.mxu0 %v4516
    %5921 = vmatpush.msra.mxu0 %v4510
    %5922 = vmatpush.msra.mxu0 %v4504
    %5923 = vmatpush.msra.mxu0 %v4498
    %5924 = vmatpush.msra.mxu0 %v4492
    %5925 = vmatpush.msra.mxu0 %v4486
    %5926 = vmatpush.msra.mxu0 %v4480
    %5927 = vmatpush.msra.mxu0 %v4474
    %5928 = vmatpush.msra.mxu0 %v4468
    %5929 = vmatpush.msra.mxu0 %v4462
    %5930 = vmatpush.msra.mxu0 %v4456
    %5931 = vmatpush.msra.mxu0 %v4450
    %5932 = vmatpush.msra.mxu0 %v4444
    %5933 = vmatpush.msra.mxu0 %v4438
    %5934 = vmatpush.msra.mxu0 %v4432
    %5935 = vmatpush.msra.mxu0 %v4426
    %5936 = vmatmul.f32.gmra.mxu0 %v5861
    %v5937 = vpop.f32.mrf.mxu0
    %v5938 = vadd.f32 %v5915, %v5937
    %5939 = vmatmul.f32.gmra.mxu0 %v5867
    %v5940 = vpop.f32.mrf.mxu0
    %v5941 = vadd.f32 %v5918, %v5940
    %5942 = vdwg.mxu0
    %5943 = vmatpush.msra.mxu0 %v4325
    %5944 = vmatpush.msra.mxu0 %v4319
    %5945 = vmatpush.msra.mxu0 %v4313
    %5946 = vmatpush.msra.mxu0 %v4307
    %5947 = vmatpush.msra.mxu0 %v4301
    %5948 = vmatpush.msra.mxu0 %v4295
    %5949 = vmatpush.msra.mxu0 %v4289
    %5950 = vmatpush.msra.mxu0 %v4283
    %5951 = vmatpush.msra.mxu0 %v4277
    %5952 = vmatpush.msra.mxu0 %v4271
    %5953 = vmatpush.msra.mxu0 %v4265
    %5954 = vmatpush.msra.mxu0 %v4259
    %5955 = vmatpush.msra.mxu0 %v4253
    %5956 = vmatpush.msra.mxu0 %v4247
    %5957 = vmatpush.msra.mxu0 %v4241
    %5958 = vmatpush.msra.mxu0 %v4235
    %5959 = vmatmul.f32.gmra.mxu0 %v5855
    %v5960 = vpop.f32.mrf.mxu0
    %v5961 = vadd.f32 0.0, %v5960
    %5962 = vmatmul.f32.gmra.mxu0 %v5863
    %v5963 = vpop.f32.mrf.mxu0
    %v5964 = vadd.f32 0.0, %v5963
    %5965 = vdwg.mxu0
    %5966 = vmatpush.msra.mxu0 %v4421
    %5967 = vmatpush.msra.mxu0 %v4415
    %5968 = vmatpush.msra.mxu0 %v4409
    %5969 = vmatpush.msra.mxu0 %v4403
    %5970 = vmatpush.msra.mxu0 %v4397
    %5971 = vmatpush.msra.mxu0 %v4391
    %5972 = vmatpush.msra.mxu0 %v4385
    %5973 = vmatpush.msra.mxu0 %v4379
    %5974 = vmatpush.msra.mxu0 %v4373
    %5975 = vmatpush.msra.mxu0 %v4367
    %5976 = vmatpush.msra.mxu0 %v4361
    %5977 = vmatpush.msra.mxu0 %v4355
    %5978 = vmatpush.msra.mxu0 %v4349
    %5979 = vmatpush.msra.mxu0 %v4343
    %5980 = vmatpush.msra.mxu0 %v4337
    %5981 = vmatpush.msra.mxu0 %v4331
    %5982 = vmatmul.f32.gmra.mxu0 %v5858
    %v5983 = vpop.f32.mrf.mxu0
    %v5984 = vadd.f32 %v5961, %v5983
    %5985 = vmatmul.f32.gmra.mxu0 %v5865
    %v5986 = vpop.f32.mrf.mxu0
    %v5987 = vadd.f32 %v5964, %v5986
    %5988 = vdwg.mxu0
    %5989 = vmatpush.msra.mxu0 %v4517
    %5990 = vmatpush.msra.mxu0 %v4511
    %5991 = vmatpush.msra.mxu0 %v4505
    %5992 = vmatpush.msra.mxu0 %v4499
    %5993 = vmatpush.msra.mxu0 %v4493
    %5994 = vmatpush.msra.mxu0 %v4487
    %5995 = vmatpush.msra.mxu0 %v4481
    %5996 = vmatpush.msra.mxu0 %v4475
    %5997 = vmatpush.msra.mxu0 %v4469
    %5998 = vmatpush.msra.mxu0 %v4463
    %5999 = vmatpush.msra.mxu0 %v4457
    %6000 = vmatpush.msra.mxu0 %v4451
    %6001 = vmatpush.msra.mxu0 %v4445
    %6002 = vmatpush.msra.mxu0 %v4439
    %6003 = vmatpush.msra.mxu0 %v4433
    %6004 = vmatpush.msra.mxu0 %v4427
    %6005 = vmatmul.f32.gmra.mxu0 %v5861
    %v6006 = vpop.f32.mrf.mxu0
    %v6007 = vadd.f32 %v5984, %v6006
    %6008 = vmatmul.f32.gmra.mxu0 %v5867
    %v6009 = vpop.f32.mrf.mxu0
    %v6010 = vadd.f32 %v5987, %v6009
    %6011 = vdwg.mxu0
    %6012 = vmatpush.msra.mxu0 %v4326
    %6013 = vmatpush.msra.mxu0 %v4320
    %6014 = vmatpush.msra.mxu0 %v4314
    %6015 = vmatpush.msra.mxu0 %v4308
    %6016 = vmatpush.msra.mxu0 %v4302
    %6017 = vmatpush.msra.mxu0 %v4296
    %6018 = vmatpush.msra.mxu0 %v4290
    %6019 = vmatpush.msra.mxu0 %v4284
    %6020 = vmatpush.msra.mxu0 %v4278
    %6021 = vmatpush.msra.mxu0 %v4272
    %6022 = vmatpush.msra.mxu0 %v4266
    %6023 = vmatpush.msra.mxu0 %v4260
    %6024 = vmatpush.msra.mxu0 %v4254
    %6025 = vmatpush.msra.mxu0 %v4248
    %6026 = vmatpush.msra.mxu0 %v4242
    %6027 = vmatpush.msra.mxu0 %v4236
    %6028 = vmatmul.f32.gmra.mxu0 %v5855
    %v6029 = vpop.f32.mrf.mxu0
    %v6030 = vadd.f32 0.0, %v6029
    %6031 = vmatmul.f32.gmra.mxu0 %v5863
    %v6032 = vpop.f32.mrf.mxu0
    %v6033 = vadd.f32 0.0, %v6032
    %6034 = vdwg.mxu0
    %6035 = vmatpush.msra.mxu0 %v4422
    %6036 = vmatpush.msra.mxu0 %v4416
    %6037 = vmatpush.msra.mxu0 %v4410
    %6038 = vmatpush.msra.mxu0 %v4404
    %6039 = vmatpush.msra.mxu0 %v4398
    %6040 = vmatpush.msra.mxu0 %v4392
    %6041 = vmatpush.msra.mxu0 %v4386
    %6042 = vmatpush.msra.mxu0 %v4380
    %6043 = vmatpush.msra.mxu0 %v4374
    %6044 = vmatpush.msra.mxu0 %v4368
    %6045 = vmatpush.msra.mxu0 %v4362
    %6046 = vmatpush.msra.mxu0 %v4356
    %6047 = vmatpush.msra.mxu0 %v4350
    %6048 = vmatpush.msra.mxu0 %v4344
    %6049 = vmatpush.msra.mxu0 %v4338
    %6050 = vmatpush.msra.mxu0 %v4332
    %6051 = vmatmul.f32.gmra.mxu0 %v5858
    %v6052 = vpop.f32.mrf.mxu0
    %v6053 = vadd.f32 %v6030, %v6052
    %6054 = vmatmul.f32.gmra.mxu0 %v5865
    %v6055 = vpop.f32.mrf.mxu0
    %v6056 = vadd.f32 %v6033, %v6055
    %6057 = vdwg.mxu0
    %6058 = vmatpush.msra.mxu0 %v4518
    %6059 = vmatpush.msra.mxu0 %v4512
    %6060 = vmatpush.msra.mxu0 %v4506
    %6061 = vmatpush.msra.mxu0 %v4500
    %6062 = vmatpush.msra.mxu0 %v4494
    %6063 = vmatpush.msra.mxu0 %v4488
    %6064 = vmatpush.msra.mxu0 %v4482
    %6065 = vmatpush.msra.mxu0 %v4476
    %6066 = vmatpush.msra.mxu0 %v4470
    %6067 = vmatpush.msra.mxu0 %v4464
    %6068 = vmatpush.msra.mxu0 %v4458
    %6069 = vmatpush.msra.mxu0 %v4452
    %6070 = vmatpush.msra.mxu0 %v4446
    %6071 = vmatpush.msra.mxu0 %v4440
    %6072 = vmatpush.msra.mxu0 %v4434
    %6073 = vmatpush.msra.mxu0 %v4428
    %6074 = vmatmul.f32.gmra.mxu0 %v5861
    %v6075 = vpop.f32.mrf.mxu0
    %v6076 = vadd.f32 %v6053, %v6075
    %6077 = vmatmul.f32.gmra.mxu0 %v5867
    %v6078 = vpop.f32.mrf.mxu0
    %v6079 = vadd.f32 %v6056, %v6078
    %6080 = vdwg.mxu0
    %6081 = vmatpush.msra.mxu0 %v4327
    %6082 = vmatpush.msra.mxu0 %v4321
    %6083 = vmatpush.msra.mxu0 %v4315
    %6084 = vmatpush.msra.mxu0 %v4309
    %6085 = vmatpush.msra.mxu0 %v4303
    %6086 = vmatpush.msra.mxu0 %v4297
    %6087 = vmatpush.msra.mxu0 %v4291
    %6088 = vmatpush.msra.mxu0 %v4285
    %6089 = vmatpush.msra.mxu0 %v4279
    %6090 = vmatpush.msra.mxu0 %v4273
    %6091 = vmatpush.msra.mxu0 %v4267
    %6092 = vmatpush.msra.mxu0 %v4261
    %6093 = vmatpush.msra.mxu0 %v4255
    %6094 = vmatpush.msra.mxu0 %v4249
    %6095 = vmatpush.msra.mxu0 %v4243
    %6096 = vmatpush.msra.mxu0 %v4237
    %6097 = vmatmul.f32.gmra.mxu0 %v5855
    %v6098 = vpop.f32.mrf.mxu0
    %v6099 = vadd.f32 0.0, %v6098
    %6100 = vmatmul.f32.gmra.mxu0 %v5863
    %v6101 = vpop.f32.mrf.mxu0
    %v6102 = vadd.f32 0.0, %v6101
    %6103 = vdwg.mxu0
    %6104 = vmatpush.msra.mxu0 %v4423
    %6105 = vmatpush.msra.mxu0 %v4417
    %6106 = vmatpush.msra.mxu0 %v4411
    %6107 = vmatpush.msra.mxu0 %v4405
    %6108 = vmatpush.msra.mxu0 %v4399
    %6109 = vmatpush.msra.mxu0 %v4393
    %6110 = vmatpush.msra.mxu0 %v4387
    %6111 = vmatpush.msra.mxu0 %v4381
    %6112 = vmatpush.msra.mxu0 %v4375
    %6113 = vmatpush.msra.mxu0 %v4369
    %6114 = vmatpush.msra.mxu0 %v4363
    %6115 = vmatpush.msra.mxu0 %v4357
    %6116 = vmatpush.msra.mxu0 %v4351
    %6117 = vmatpush.msra.mxu0 %v4345
    %6118 = vmatpush.msra.mxu0 %v4339
    %6119 = vmatpush.msra.mxu0 %v4333
    %6120 = vmatmul.f32.gmra.mxu0 %v5858
    %v6121 = vpop.f32.mrf.mxu0
    %v6122 = vadd.f32 %v6099, %v6121
    %6123 = vmatmul.f32.gmra.mxu0 %v5865
    %v6124 = vpop.f32.mrf.mxu0
    %v6125 = vadd.f32 %v6102, %v6124
    %6126 = vdwg.mxu0
    %6127 = vmatpush.msra.mxu0 %v4519
    %6128 = vmatpush.msra.mxu0 %v4513
    %6129 = vmatpush.msra.mxu0 %v4507
    %6130 = vmatpush.msra.mxu0 %v4501
    %6131 = vmatpush.msra.mxu0 %v4495
    %6132 = vmatpush.msra.mxu0 %v4489
    %6133 = vmatpush.msra.mxu0 %v4483
    %6134 = vmatpush.msra.mxu0 %v4477
    %6135 = vmatpush.msra.mxu0 %v4471
    %6136 = vmatpush.msra.mxu0 %v4465
    %6137 = vmatpush.msra.mxu0 %v4459
    %6138 = vmatpush.msra.mxu0 %v4453
    %6139 = vmatpush.msra.mxu0 %v4447
    %6140 = vmatpush.msra.mxu0 %v4441
    %6141 = vmatpush.msra.mxu0 %v4435
    %6142 = vmatpush.msra.mxu0 %v4429
    %6143 = vmatmul.f32.gmra.mxu0 %v5861
    %v6144 = vpop.f32.mrf.mxu0
    %v6145 = vadd.f32 %v6122, %v6144
    %6146 = vmatmul.f32.gmra.mxu0 %v5867
    %v6147 = vpop.f32.mrf.mxu0
    %v6148 = vadd.f32 %v6125, %v6147
    %6149 = vdwg.mxu0
    %6150 = vmatpush.msra.mxu0 %v4328
    %6151 = vmatpush.msra.mxu0 %v4322
    %6152 = vmatpush.msra.mxu0 %v4316
    %6153 = vmatpush.msra.mxu0 %v4310
    %6154 = vmatpush.msra.mxu0 %v4304
    %6155 = vmatpush.msra.mxu0 %v4298
    %6156 = vmatpush.msra.mxu0 %v4292
    %6157 = vmatpush.msra.mxu0 %v4286
    %6158 = vmatpush.msra.mxu0 %v4280
    %6159 = vmatpush.msra.mxu0 %v4274
    %6160 = vmatpush.msra.mxu0 %v4268
    %6161 = vmatpush.msra.mxu0 %v4262
    %6162 = vmatpush.msra.mxu0 %v4256
    %6163 = vmatpush.msra.mxu0 %v4250
    %6164 = vmatpush.msra.mxu0 %v4244
    %6165 = vmatpush.msra.mxu0 %v4238
    %6166 = vmatmul.f32.gmra.mxu0 %v5855
    %v6167 = vpop.f32.mrf.mxu0
    %v6168 = vadd.f32 0.0, %v6167
    %6169 = vmatmul.f32.gmra.mxu0 %v5863
    %v6170 = vpop.f32.mrf.mxu0
    %v6171 = vadd.f32 0.0, %v6170
    %6172 = vdwg.mxu0
    %6173 = vmatpush.msra.mxu0 %v4424
    %6174 = vmatpush.msra.mxu0 %v4418
    %6175 = vmatpush.msra.mxu0 %v4412
    %6176 = vmatpush.msra.mxu0 %v4406
    %6177 = vmatpush.msra.mxu0 %v4400
    %6178 = vmatpush.msra.mxu0 %v4394
    %6179 = vmatpush.msra.mxu0 %v4388
    %6180 = vmatpush.msra.mxu0 %v4382
    %6181 = vmatpush.msra.mxu0 %v4376
    %6182 = vmatpush.msra.mxu0 %v4370
    %6183 = vmatpush.msra.mxu0 %v4364
    %6184 = vmatpush.msra.mxu0 %v4358
    %6185 = vmatpush.msra.mxu0 %v4352
    %6186 = vmatpush.msra.mxu0 %v4346
    %6187 = vmatpush.msra.mxu0 %v4340
    %6188 = vmatpush.msra.mxu0 %v4334
    %6189 = vmatmul.f32.gmra.mxu0 %v5858
    %v6190 = vpop.f32.mrf.mxu0
    %v6191 = vadd.f32 %v6168, %v6190
    %6192 = vmatmul.f32.gmra.mxu0 %v5865
    %v6193 = vpop.f32.mrf.mxu0
    %v6194 = vadd.f32 %v6171, %v6193
    %6195 = vdwg.mxu0
    %6196 = vmatpush.msra.mxu0 %v4520
    %6197 = vmatpush.msra.mxu0 %v4514
    %6198 = vmatpush.msra.mxu0 %v4508
    %6199 = vmatpush.msra.mxu0 %v4502
    %6200 = vmatpush.msra.mxu0 %v4496
    %6201 = vmatpush.msra.mxu0 %v4490
    %6202 = vmatpush.msra.mxu0 %v4484
    %6203 = vmatpush.msra.mxu0 %v4478
    %6204 = vmatpush.msra.mxu0 %v4472
    %6205 = vmatpush.msra.mxu0 %v4466
    %6206 = vmatpush.msra.mxu0 %v4460
    %6207 = vmatpush.msra.mxu0 %v4454
    %6208 = vmatpush.msra.mxu0 %v4448
    %6209 = vmatpush.msra.mxu0 %v4442
    %6210 = vmatpush.msra.mxu0 %v4436
    %6211 = vmatpush.msra.mxu0 %v4430
    %6212 = vmatmul.f32.gmra.mxu0 %v5861
    %v6213 = vpop.f32.mrf.mxu0
    %v6214 = vadd.f32 %v6191, %v6213
    %6215 = vmatmul.f32.gmra.mxu0 %v5867
    %v6216 = vpop.f32.mrf.mxu0
    %v6217 = vadd.f32 %v6194, %v6216
    %6218 = vdwg.mxu0
    %6219 = vmatpush.msra.mxu0 %v4329
    %6220 = vmatpush.msra.mxu0 %v4323
    %6221 = vmatpush.msra.mxu0 %v4317
    %6222 = vmatpush.msra.mxu0 %v4311
    %6223 = vmatpush.msra.mxu0 %v4305
    %6224 = vmatpush.msra.mxu0 %v4299
    %6225 = vmatpush.msra.mxu0 %v4293
    %6226 = vmatpush.msra.mxu0 %v4287
    %6227 = vmatpush.msra.mxu0 %v4281
    %6228 = vmatpush.msra.mxu0 %v4275
    %6229 = vmatpush.msra.mxu0 %v4269
    %6230 = vmatpush.msra.mxu0 %v4263
    %6231 = vmatpush.msra.mxu0 %v4257
    %6232 = vmatpush.msra.mxu0 %v4251
    %6233 = vmatpush.msra.mxu0 %v4245
    %6234 = vmatpush.msra.mxu0 %v4239
    %6235 = vmatmul.f32.gmra.mxu0 %v5855
    %v6236 = vpop.f32.mrf.mxu0
    %v6237 = vadd.f32 0.0, %v6236
    %6238 = vmatmul.f32.gmra.mxu0 %v5863
    %v6239 = vpop.f32.mrf.mxu0
    %v6240 = vadd.f32 0.0, %v6239
    %6241 = vdwg.mxu0
    %6242 = vmatpush.msra.mxu0 %v4425
    %6243 = vmatpush.msra.mxu0 %v4419
    %6244 = vmatpush.msra.mxu0 %v4413
    %6245 = vmatpush.msra.mxu0 %v4407
    %6246 = vmatpush.msra.mxu0 %v4401
    %6247 = vmatpush.msra.mxu0 %v4395
    %6248 = vmatpush.msra.mxu0 %v4389
    %6249 = vmatpush.msra.mxu0 %v4383
    %6250 = vmatpush.msra.mxu0 %v4377
    %6251 = vmatpush.msra.mxu0 %v4371
    %6252 = vmatpush.msra.mxu0 %v4365
    %6253 = vmatpush.msra.mxu0 %v4359
    %6254 = vmatpush.msra.mxu0 %v4353
    %6255 = vmatpush.msra.mxu0 %v4347
    %6256 = vmatpush.msra.mxu0 %v4341
    %6257 = vmatpush.msra.mxu0 %v4335
    %6258 = vmatmul.f32.gmra.mxu0 %v5858
    %v6259 = vpop.f32.mrf.mxu0
    %v6260 = vadd.f32 %v6237, %v6259
    %6261 = vmatmul.f32.gmra.mxu0 %v5865
    %v6262 = vpop.f32.mrf.mxu0
    %v6263 = vadd.f32 %v6240, %v6262
    %6264 = vdwg.mxu0
    %6265 = vmatpush.msra.mxu0 %v4521
    %6266 = vmatpush.msra.mxu0 %v4515
    %6267 = vmatpush.msra.mxu0 %v4509
    %6268 = vmatpush.msra.mxu0 %v4503
    %6269 = vmatpush.msra.mxu0 %v4497
    %6270 = vmatpush.msra.mxu0 %v4491
    %6271 = vmatpush.msra.mxu0 %v4485
    %6272 = vmatpush.msra.mxu0 %v4479
    %6273 = vmatpush.msra.mxu0 %v4473
    %6274 = vmatpush.msra.mxu0 %v4467
    %6275 = vmatpush.msra.mxu0 %v4461
    %6276 = vmatpush.msra.mxu0 %v4455
    %6277 = vmatpush.msra.mxu0 %v4449
    %6278 = vmatpush.msra.mxu0 %v4443
    %6279 = vmatpush.msra.mxu0 %v4437
    %6280 = vmatpush.msra.mxu0 %v4431
    %6281 = vmatmul.f32.gmra.mxu0 %v5861
    %v6282 = vpop.f32.mrf.mxu0
    %v6283 = vadd.f32 %v6260, %v6282
    %6284 = vmatmul.f32.gmra.mxu0 %v5867
    %v6285 = vpop.f32.mrf.mxu0
    %v6286 = vadd.f32 %v6263, %v6285
    %6287 = vdwg.mxu0
    %v6288 = vadd.f32 %v5494, %v5938
    %v6289 = vadd.f32 %v5563, %v6007
    %v6290 = vadd.f32 %v5632, %v6076
    %v6291 = vadd.f32 %v5701, %v6145
    %v6292 = vadd.f32 %v5770, %v6214
    %v6293 = vadd.f32 %v5839, %v6283
    %v6294 = vadd.f32 %v5497, %v5941
    %v6295 = vadd.f32 %v5566, %v6010
    %v6296 = vadd.f32 %v5635, %v6079
    %v6297 = vadd.f32 %v5704, %v6148
    %v6298 = vadd.f32 %v5773, %v6217
    %v6299 = vadd.f32 %v5842, %v6286
    %v6300 = vadd.f32 %v6288, %v4980
    %v6301 = vadd.f32 %v6289, %v4981
    %v6302 = vadd.f32 %v6290, %v4982
    %v6303 = vadd.f32 %v6291, %v4983
    %v6304 = vadd.f32 %v6292, %v4984
    %v6305 = vadd.f32 %v6293, %v4985
    %v6306 = vadd.f32 %v6294, %v4980
    %v6307 = vadd.f32 %v6295, %v4981
    %v6308 = vadd.f32 %v6296, %v4982
    %v6309 = vadd.f32 %v6297, %v4983
    %v6310 = vadd.f32 %v6298, %v4984
    %v6311 = vadd.f32 %v6299, %v4985
    %v6312 = vmax.f32 %v6300, 0.0
    %v6313 = vmax.f32 %v6301, 0.0
    %v6314 = vmax.f32 %v6302, 0.0
    %v6315 = vmax.f32 %v6303, 0.0
    %v6316 = vmax.f32 %v6304, 0.0
    %v6317 = vmax.f32 %v6305, 0.0
    %v6318 = vmax.f32 %v6306, 0.0
    %v6319 = vmax.f32 %v6307, 0.0
    %v6320 = vmax.f32 %v6308, 0.0
    %v6321 = vmax.f32 %v6309, 0.0
    %v6322 = vmax.f32 %v6310, 0.0
    %v6323 = vmax.f32 %v6311, 0.0
    %v6324 = vmax.f32 %v5004, %v6312
    %v6325 = vmax.f32 %v5005, %v6313
    %v6326 = vmax.f32 %v5006, %v6314
    %v6327 = vmax.f32 %v5007, %v6315
    %v6328 = vmax.f32 %v5008, %v6316
    %v6329 = vmax.f32 %v5009, %v6317
    %v6330 = vmax.f32 %v5010, %v6318
    %v6331 = vmax.f32 %v5011, %v6319
    %v6332 = vmax.f32 %v5012, %v6320
    %v6333 = vmax.f32 %v5013, %v6321
    %v6334 = vmax.f32 %v5014, %v6322
    %v6335 = vmax.f32 %v5015, %v6323
    %v6336 = vmax.f32 %v6324, %v6327
    %v6337 = vmax.f32 %v6325, %v6328
    %v6338 = vmax.f32 %v6326, %v6329
    %v6339 = vmax.f32 %v6330, %v6333
    %v6340 = vmax.f32 %v6331, %v6334
    %v6341 = vmax.f32 %v6332, %v6335
    %6342 = vst [vmem:[#allocation3] sm:$0xff] %v6336
    %6343 = vst [vmem:[#allocation3 + $0x8] sm:$0xff] %v6337
    %6344 = vst [vmem:[#allocation3 + $0x10] sm:$0xff] %v6338
    %6345 = vst [vmem:[#allocation3 + $0x18] sm:$0xff] %v6339
    %6346 = vst [vmem:[#allocation3 + $0x20] sm:$0xff] %v6340
    %6347 = vst [vmem:[#allocation3 + $0x28] sm:$0xff] %v6341
    %v6348 = vld [vmem:[#allocation3] sm:$0x3]
    %v6349 = vld [vmem:[#allocation3 + $0x8] sm:$0x3]
    %v6350 = vld [vmem:[#allocation3 + $0x10] sm:$0x3]
    %v6351 = vld [vmem:[#allocation13] sm:$0xff]
    %v6352 = vld [vmem:[#allocation13 + $0x8] sm:$0xff]
    %v6353 = vld [vmem:[#allocation13 + $0x10] sm:$0xff]
    %v6354 = vld [vmem:[#allocation13 + $0x18] sm:$0xff]
    %v6355 = vld [vmem:[#allocation13 + $0x20] sm:$0xff]
    %v6356 = vld [vmem:[#allocation13 + $0x28] sm:$0xff]
    %v6357 = vld [vmem:[#allocation13 + $0x30] sm:$0xff]
    %v6358 = vld [vmem:[#allocation13 + $0x38] sm:$0xff]
    %v6359 = vld [vmem:[#allocation13 + $0x40] sm:$0xff]
    %v6360 = vld [vmem:[#allocation13 + $0x48] sm:$0xff]
    %v6361 = vld [vmem:[#allocation13 + $0x50] sm:$0xff]
    %v6362 = vld [vmem:[#allocation13 + $0x58] sm:$0xff]
    %v6363 = vld [vmem:[#allocation13 + $0x60] sm:$0xff]
    %v6364 = vld [vmem:[#allocation13 + $0x68] sm:$0xff]
    %v6365 = vld [vmem:[#allocation13 + $0x70] sm:$0xff]
    %v6366 = vld [vmem:[#allocation13 + $0x78] sm:$0xff]
    %v6367 = vld [vmem:[#allocation13 + $0x80] sm:$0xff]
    %v6368 = vld [vmem:[#allocation13 + $0x88] sm:$0xff]
    %v6369 = vld [vmem:[#allocation13 + $0x90] sm:$0xff]
    %v6370 = vld [vmem:[#allocation13 + $0x98] sm:$0xff]
    %v6371 = vld [vmem:[#allocation13 + $0xa0] sm:$0xff]
    %v6372 = vld [vmem:[#allocation13 + $0xa8] sm:$0xff]
    %v6373 = vld [vmem:[#allocation13 + $0xb0] sm:$0xff]
    %v6374 = vld [vmem:[#allocation13 + $0xb8] sm:$0xff]
    %v6375 = vld [vmem:[#allocation13 + $0xc0] sm:$0xff]
    %v6376 = vld [vmem:[#allocation13 + $0xc8] sm:$0xff]
    %v6377 = vld [vmem:[#allocation13 + $0xd0] sm:$0xff]
    %v6378 = vld [vmem:[#allocation13 + $0xd8] sm:$0xff]
    %v6379 = vld [vmem:[#allocation13 + $0xe0] sm:$0xff]
    %v6380 = vld [vmem:[#allocation13 + $0xe8] sm:$0xff]
    %v6381 = vld [vmem:[#allocation13 + $0xf0] sm:$0xff]
    %v6382 = vld [vmem:[#allocation13 + $0xf8] sm:$0xff]
    %v6383 = vld [vmem:[#allocation13 + $0x100] sm:$0xff]
    %v6384 = vld [vmem:[#allocation13 + $0x108] sm:$0xff]
    %v6385 = vld [vmem:[#allocation13 + $0x110] sm:$0xff]
    %v6386 = vld [vmem:[#allocation13 + $0x118] sm:$0xff]
    %v6387 = vld [vmem:[#allocation13 + $0x120] sm:$0xff]
    %v6388 = vld [vmem:[#allocation13 + $0x128] sm:$0xff]
    %v6389 = vld [vmem:[#allocation13 + $0x130] sm:$0xff]
    %v6390 = vld [vmem:[#allocation13 + $0x138] sm:$0xff]
    %v6391 = vld [vmem:[#allocation13 + $0x140] sm:$0xff]
    %v6392 = vld [vmem:[#allocation13 + $0x148] sm:$0xff]
    %v6393 = vld [vmem:[#allocation13 + $0x150] sm:$0xff]
    %v6394 = vld [vmem:[#allocation13 + $0x158] sm:$0xff]
    %v6395 = vld [vmem:[#allocation13 + $0x160] sm:$0xff]
    %v6396 = vld [vmem:[#allocation13 + $0x168] sm:$0xff]
    %v6397 = vld [vmem:[#allocation13 + $0x170] sm:$0xff]
    %v6398 = vld [vmem:[#allocation13 + $0x178] sm:$0xff]
    %v6399 = vld [vmem:[#allocation13 + $0x180] sm:$0xff]
    %v6400 = vld [vmem:[#allocation13 + $0x188] sm:$0xff]
    %v6401 = vld [vmem:[#allocation13 + $0x190] sm:$0xff]
    %v6402 = vld [vmem:[#allocation13 + $0x198] sm:$0xff]
    %v6403 = vld [vmem:[#allocation13 + $0x1a0] sm:$0xff]
    %v6404 = vld [vmem:[#allocation13 + $0x1a8] sm:$0xff]
    %v6405 = vld [vmem:[#allocation13 + $0x1b0] sm:$0xff]
    %v6406 = vld [vmem:[#allocation13 + $0x1b8] sm:$0xff]
    %v6407 = vld [vmem:[#allocation13 + $0x1c0] sm:$0xff]
    %v6408 = vld [vmem:[#allocation13 + $0x1c8] sm:$0xff]
    %v6409 = vld [vmem:[#allocation13 + $0x1d0] sm:$0xff]
    %v6410 = vld [vmem:[#allocation13 + $0x1d8] sm:$0xff]
    %v6411 = vld [vmem:[#allocation13 + $0x1e0] sm:$0xff]
    %v6412 = vld [vmem:[#allocation13 + $0x1e8] sm:$0xff]
    %v6413 = vld [vmem:[#allocation13 + $0x1f0] sm:$0xff]
    %v6414 = vld [vmem:[#allocation13 + $0x1f8] sm:$0xff]
    %v6415 = vld [vmem:[#allocation13 + $0x200] sm:$0xff]
    %v6416 = vld [vmem:[#allocation13 + $0x208] sm:$0xff]
    %v6417 = vld [vmem:[#allocation13 + $0x210] sm:$0xff]
    %v6418 = vld [vmem:[#allocation13 + $0x218] sm:$0xff]
    %v6419 = vld [vmem:[#allocation13 + $0x220] sm:$0xff]
    %v6420 = vld [vmem:[#allocation13 + $0x228] sm:$0xff]
    %v6421 = vld [vmem:[#allocation13 + $0x230] sm:$0xff]
    %v6422 = vld [vmem:[#allocation13 + $0x238] sm:$0xff]
    %v6423 = vld [vmem:[#allocation13 + $0x240] sm:$0xff]
    %v6424 = vld [vmem:[#allocation13 + $0x248] sm:$0xff]
    %v6425 = vld [vmem:[#allocation13 + $0x250] sm:$0xff]
    %v6426 = vld [vmem:[#allocation13 + $0x258] sm:$0xff]
    %v6427 = vld [vmem:[#allocation13 + $0x260] sm:$0xff]
    %v6428 = vld [vmem:[#allocation13 + $0x268] sm:$0xff]
    %v6429 = vld [vmem:[#allocation13 + $0x270] sm:$0xff]
    %v6430 = vld [vmem:[#allocation13 + $0x278] sm:$0xff]
    %v6431 = vld [vmem:[#allocation13 + $0x280] sm:$0xff]
    %v6432 = vld [vmem:[#allocation13 + $0x288] sm:$0xff]
    %v6433 = vld [vmem:[#allocation13 + $0x290] sm:$0xff]
    %v6434 = vld [vmem:[#allocation13 + $0x298] sm:$0xff]
    %v6435 = vld [vmem:[#allocation13 + $0x2a0] sm:$0xff]
    %v6436 = vld [vmem:[#allocation13 + $0x2a8] sm:$0xff]
    %v6437 = vld [vmem:[#allocation13 + $0x2b0] sm:$0xff]
    %v6438 = vld [vmem:[#allocation13 + $0x2b8] sm:$0xff]
    %v6439 = vld [vmem:[#allocation13 + $0x2c0] sm:$0xff]
    %v6440 = vld [vmem:[#allocation13 + $0x2c8] sm:$0xff]
    %v6441 = vld [vmem:[#allocation13 + $0x2d0] sm:$0xff]
    %v6442 = vld [vmem:[#allocation13 + $0x2d8] sm:$0xff]
    %v6443 = vld [vmem:[#allocation13 + $0x2e0] sm:$0xff]
    %v6444 = vld [vmem:[#allocation13 + $0x2e8] sm:$0xff]
    %v6445 = vld [vmem:[#allocation13 + $0x2f0] sm:$0xff]
    %v6446 = vld [vmem:[#allocation13 + $0x2f8] sm:$0xff]
    %v6447 = vld [vmem:[#allocation3] sm:$0xc]
    %v6448 = vld [vmem:[#allocation3 + $0x8] sm:$0xc]
    %v6449 = vld [vmem:[#allocation3 + $0x10] sm:$0xc]
    %s6450 = scalar_lea.vmem [#allocation13], 768
    %v6451 = vld [vmem:[%s6450] sm:$0xff]
    %v6452 = vld [vmem:[%s6450 + $0x8] sm:$0xff]
    %v6453 = vld [vmem:[%s6450 + $0x10] sm:$0xff]
    %v6454 = vld [vmem:[%s6450 + $0x18] sm:$0xff]
    %v6455 = vld [vmem:[%s6450 + $0x20] sm:$0xff]
    %v6456 = vld [vmem:[%s6450 + $0x28] sm:$0xff]
    %v6457 = vld [vmem:[%s6450 + $0x30] sm:$0xff]
    %v6458 = vld [vmem:[%s6450 + $0x38] sm:$0xff]
    %v6459 = vld [vmem:[%s6450 + $0x40] sm:$0xff]
    %v6460 = vld [vmem:[%s6450 + $0x48] sm:$0xff]
    %v6461 = vld [vmem:[%s6450 + $0x50] sm:$0xff]
    %v6462 = vld [vmem:[%s6450 + $0x58] sm:$0xff]
    %v6463 = vld [vmem:[%s6450 + $0x60] sm:$0xff]
    %v6464 = vld [vmem:[%s6450 + $0x68] sm:$0xff]
    %v6465 = vld [vmem:[%s6450 + $0x70] sm:$0xff]
    %v6466 = vld [vmem:[%s6450 + $0x78] sm:$0xff]
    %v6467 = vld [vmem:[%s6450 + $0x80] sm:$0xff]
    %v6468 = vld [vmem:[%s6450 + $0x88] sm:$0xff]
    %v6469 = vld [vmem:[%s6450 + $0x90] sm:$0xff]
    %v6470 = vld [vmem:[%s6450 + $0x98] sm:$0xff]
    %v6471 = vld [vmem:[%s6450 + $0xa0] sm:$0xff]
    %v6472 = vld [vmem:[%s6450 + $0xa8] sm:$0xff]
    %v6473 = vld [vmem:[%s6450 + $0xb0] sm:$0xff]
    %v6474 = vld [vmem:[%s6450 + $0xb8] sm:$0xff]
    %v6475 = vld [vmem:[%s6450 + $0xc0] sm:$0xff]
    %v6476 = vld [vmem:[%s6450 + $0xc8] sm:$0xff]
    %v6477 = vld [vmem:[%s6450 + $0xd0] sm:$0xff]
    %v6478 = vld [vmem:[%s6450 + $0xd8] sm:$0xff]
    %v6479 = vld [vmem:[%s6450 + $0xe0] sm:$0xff]
    %v6480 = vld [vmem:[%s6450 + $0xe8] sm:$0xff]
    %v6481 = vld [vmem:[%s6450 + $0xf0] sm:$0xff]
    %v6482 = vld [vmem:[%s6450 + $0xf8] sm:$0xff]
    %v6483 = vld [vmem:[%s6450 + $0x100] sm:$0xff]
    %v6484 = vld [vmem:[%s6450 + $0x108] sm:$0xff]
    %v6485 = vld [vmem:[%s6450 + $0x110] sm:$0xff]
    %v6486 = vld [vmem:[%s6450 + $0x118] sm:$0xff]
    %v6487 = vld [vmem:[%s6450 + $0x120] sm:$0xff]
    %v6488 = vld [vmem:[%s6450 + $0x128] sm:$0xff]
    %v6489 = vld [vmem:[%s6450 + $0x130] sm:$0xff]
    %v6490 = vld [vmem:[%s6450 + $0x138] sm:$0xff]
    %v6491 = vld [vmem:[%s6450 + $0x140] sm:$0xff]
    %v6492 = vld [vmem:[%s6450 + $0x148] sm:$0xff]
    %v6493 = vld [vmem:[%s6450 + $0x150] sm:$0xff]
    %v6494 = vld [vmem:[%s6450 + $0x158] sm:$0xff]
    %v6495 = vld [vmem:[%s6450 + $0x160] sm:$0xff]
    %v6496 = vld [vmem:[%s6450 + $0x168] sm:$0xff]
    %v6497 = vld [vmem:[%s6450 + $0x170] sm:$0xff]
    %v6498 = vld [vmem:[%s6450 + $0x178] sm:$0xff]
    %v6499 = vld [vmem:[%s6450 + $0x180] sm:$0xff]
    %v6500 = vld [vmem:[%s6450 + $0x188] sm:$0xff]
    %v6501 = vld [vmem:[%s6450 + $0x190] sm:$0xff]
    %v6502 = vld [vmem:[%s6450 + $0x198] sm:$0xff]
    %v6503 = vld [vmem:[%s6450 + $0x1a0] sm:$0xff]
    %v6504 = vld [vmem:[%s6450 + $0x1a8] sm:$0xff]
    %v6505 = vld [vmem:[%s6450 + $0x1b0] sm:$0xff]
    %v6506 = vld [vmem:[%s6450 + $0x1b8] sm:$0xff]
    %v6507 = vld [vmem:[%s6450 + $0x1c0] sm:$0xff]
    %v6508 = vld [vmem:[%s6450 + $0x1c8] sm:$0xff]
    %v6509 = vld [vmem:[%s6450 + $0x1d0] sm:$0xff]
    %v6510 = vld [vmem:[%s6450 + $0x1d8] sm:$0xff]
    %v6511 = vld [vmem:[%s6450 + $0x1e0] sm:$0xff]
    %v6512 = vld [vmem:[%s6450 + $0x1e8] sm:$0xff]
    %v6513 = vld [vmem:[%s6450 + $0x1f0] sm:$0xff]
    %v6514 = vld [vmem:[%s6450 + $0x1f8] sm:$0xff]
    %v6515 = vld [vmem:[%s6450 + $0x200] sm:$0xff]
    %v6516 = vld [vmem:[%s6450 + $0x208] sm:$0xff]
    %v6517 = vld [vmem:[%s6450 + $0x210] sm:$0xff]
    %v6518 = vld [vmem:[%s6450 + $0x218] sm:$0xff]
    %v6519 = vld [vmem:[%s6450 + $0x220] sm:$0xff]
    %v6520 = vld [vmem:[%s6450 + $0x228] sm:$0xff]
    %v6521 = vld [vmem:[%s6450 + $0x230] sm:$0xff]
    %v6522 = vld [vmem:[%s6450 + $0x238] sm:$0xff]
    %v6523 = vld [vmem:[%s6450 + $0x240] sm:$0xff]
    %v6524 = vld [vmem:[%s6450 + $0x248] sm:$0xff]
    %v6525 = vld [vmem:[%s6450 + $0x250] sm:$0xff]
    %v6526 = vld [vmem:[%s6450 + $0x258] sm:$0xff]
    %v6527 = vld [vmem:[%s6450 + $0x260] sm:$0xff]
    %v6528 = vld [vmem:[%s6450 + $0x268] sm:$0xff]
    %v6529 = vld [vmem:[%s6450 + $0x270] sm:$0xff]
    %v6530 = vld [vmem:[%s6450 + $0x278] sm:$0xff]
    %v6531 = vld [vmem:[%s6450 + $0x280] sm:$0xff]
    %v6532 = vld [vmem:[%s6450 + $0x288] sm:$0xff]
    %v6533 = vld [vmem:[%s6450 + $0x290] sm:$0xff]
    %v6534 = vld [vmem:[%s6450 + $0x298] sm:$0xff]
    %v6535 = vld [vmem:[%s6450 + $0x2a0] sm:$0xff]
    %v6536 = vld [vmem:[%s6450 + $0x2a8] sm:$0xff]
    %v6537 = vld [vmem:[%s6450 + $0x2b0] sm:$0xff]
    %v6538 = vld [vmem:[%s6450 + $0x2b8] sm:$0xff]
    %v6539 = vld [vmem:[%s6450 + $0x2c0] sm:$0xff]
    %v6540 = vld [vmem:[%s6450 + $0x2c8] sm:$0xff]
    %v6541 = vld [vmem:[%s6450 + $0x2d0] sm:$0xff]
    %v6542 = vld [vmem:[%s6450 + $0x2d8] sm:$0xff]
    %v6543 = vld [vmem:[%s6450 + $0x2e0] sm:$0xff]
    %v6544 = vld [vmem:[%s6450 + $0x2e8] sm:$0xff]
    %v6545 = vld [vmem:[%s6450 + $0x2f0] sm:$0xff]
    %v6546 = vld [vmem:[%s6450 + $0x2f8] sm:$0xff]
    %v6550 = vrot.slane %v6447, 2
    %v6551 = vrot.slane %v6448, 2
    %v6552 = vrot.slane %v6449, 2
    %6556 = vmatpush.msra.mxu0 %v6481
    %6557 = vmatpush.msra.mxu0 %v6479
    %6558 = vmatpush.msra.mxu0 %v6477
    %6559 = vmatpush.msra.mxu0 %v6475
    %6560 = vmatpush.msra.mxu0 %v6473
    %6561 = vmatpush.msra.mxu0 %v6471
    %6562 = vmatpush.msra.mxu0 %v6469
    %6563 = vmatpush.msra.mxu0 %v6467
    %6564 = vmatpush.msra.mxu0 %v6465
    %6565 = vmatpush.msra.mxu0 %v6463
    %6566 = vmatpush.msra.mxu0 %v6461
    %6567 = vmatpush.msra.mxu0 %v6459
    %6568 = vmatpush.msra.mxu0 %v6457
    %6569 = vmatpush.msra.mxu0 %v6455
    %6570 = vmatpush.msra.mxu0 %v6453
    %6571 = vmatpush.msra.mxu0 %v6451
    %6572 = vmatmul.f32.gmra.mxu0 %v6550
    %v6573 = vpop.f32.mrf.mxu0
    %v6574 = vadd.f32 0.0, %v6573
    %6575 = vdwg.mxu0
    %6576 = vmatpush.msra.mxu0 %v6513
    %6577 = vmatpush.msra.mxu0 %v6511
    %6578 = vmatpush.msra.mxu0 %v6509
    %6579 = vmatpush.msra.mxu0 %v6507
    %6580 = vmatpush.msra.mxu0 %v6505
    %6581 = vmatpush.msra.mxu0 %v6503
    %6582 = vmatpush.msra.mxu0 %v6501
    %6583 = vmatpush.msra.mxu0 %v6499
    %6584 = vmatpush.msra.mxu0 %v6497
    %6585 = vmatpush.msra.mxu0 %v6495
    %6586 = vmatpush.msra.mxu0 %v6493
    %6587 = vmatpush.msra.mxu0 %v6491
    %6588 = vmatpush.msra.mxu0 %v6489
    %6589 = vmatpush.msra.mxu0 %v6487
    %6590 = vmatpush.msra.mxu0 %v6485
    %6591 = vmatpush.msra.mxu0 %v6483
    %6592 = vmatmul.f32.gmra.mxu0 %v6551
    %v6593 = vpop.f32.mrf.mxu0
    %v6594 = vadd.f32 %v6574, %v6593
    %6595 = vdwg.mxu0
    %6596 = vmatpush.msra.mxu0 %v6545
    %6597 = vmatpush.msra.mxu0 %v6543
    %6598 = vmatpush.msra.mxu0 %v6541
    %6599 = vmatpush.msra.mxu0 %v6539
    %6600 = vmatpush.msra.mxu0 %v6537
    %6601 = vmatpush.msra.mxu0 %v6535
    %6602 = vmatpush.msra.mxu0 %v6533
    %6603 = vmatpush.msra.mxu0 %v6531
    %6604 = vmatpush.msra.mxu0 %v6529
    %6605 = vmatpush.msra.mxu0 %v6527
    %6606 = vmatpush.msra.mxu0 %v6525
    %6607 = vmatpush.msra.mxu0 %v6523
    %6608 = vmatpush.msra.mxu0 %v6521
    %6609 = vmatpush.msra.mxu0 %v6519
    %6610 = vmatpush.msra.mxu0 %v6517
    %6611 = vmatpush.msra.mxu0 %v6515
    %6612 = vmatmul.f32.gmra.mxu0 %v6552
    %v6613 = vpop.f32.mrf.mxu0
    %v6614 = vadd.f32 %v6594, %v6613
    %6615 = vdwg.mxu0
    %6616 = vmatpush.msra.mxu0 %v6482
    %6617 = vmatpush.msra.mxu0 %v6480
    %6618 = vmatpush.msra.mxu0 %v6478
    %6619 = vmatpush.msra.mxu0 %v6476
    %6620 = vmatpush.msra.mxu0 %v6474
    %6621 = vmatpush.msra.mxu0 %v6472
    %6622 = vmatpush.msra.mxu0 %v6470
    %6623 = vmatpush.msra.mxu0 %v6468
    %6624 = vmatpush.msra.mxu0 %v6466
    %6625 = vmatpush.msra.mxu0 %v6464
    %6626 = vmatpush.msra.mxu0 %v6462
    %6627 = vmatpush.msra.mxu0 %v6460
    %6628 = vmatpush.msra.mxu0 %v6458
    %6629 = vmatpush.msra.mxu0 %v6456
    %6630 = vmatpush.msra.mxu0 %v6454
    %6631 = vmatpush.msra.mxu0 %v6452
    %6632 = vmatmul.f32.gmra.mxu0 %v6550
    %v6633 = vpop.f32.mrf.mxu0
    %v6634 = vadd.f32 0.0, %v6633
    %6635 = vdwg.mxu0
    %6636 = vmatpush.msra.mxu0 %v6514
    %6637 = vmatpush.msra.mxu0 %v6512
    %6638 = vmatpush.msra.mxu0 %v6510
    %6639 = vmatpush.msra.mxu0 %v6508
    %6640 = vmatpush.msra.mxu0 %v6506
    %6641 = vmatpush.msra.mxu0 %v6504
    %6642 = vmatpush.msra.mxu0 %v6502
    %6643 = vmatpush.msra.mxu0 %v6500
    %6644 = vmatpush.msra.mxu0 %v6498
    %6645 = vmatpush.msra.mxu0 %v6496
    %6646 = vmatpush.msra.mxu0 %v6494
    %6647 = vmatpush.msra.mxu0 %v6492
    %6648 = vmatpush.msra.mxu0 %v6490
    %6649 = vmatpush.msra.mxu0 %v6488
    %6650 = vmatpush.msra.mxu0 %v6486
    %6651 = vmatpush.msra.mxu0 %v6484
    %6652 = vmatmul.f32.gmra.mxu0 %v6551
    %v6653 = vpop.f32.mrf.mxu0
    %v6654 = vadd.f32 %v6634, %v6653
    %6655 = vdwg.mxu0
    %6656 = vmatpush.msra.mxu0 %v6546
    %6657 = vmatpush.msra.mxu0 %v6544
    %6658 = vmatpush.msra.mxu0 %v6542
    %6659 = vmatpush.msra.mxu0 %v6540
    %6660 = vmatpush.msra.mxu0 %v6538
    %6661 = vmatpush.msra.mxu0 %v6536
    %6662 = vmatpush.msra.mxu0 %v6534
    %6663 = vmatpush.msra.mxu0 %v6532
    %6664 = vmatpush.msra.mxu0 %v6530
    %6665 = vmatpush.msra.mxu0 %v6528
    %6666 = vmatpush.msra.mxu0 %v6526
    %6667 = vmatpush.msra.mxu0 %v6524
    %6668 = vmatpush.msra.mxu0 %v6522
    %6669 = vmatpush.msra.mxu0 %v6520
    %6670 = vmatpush.msra.mxu0 %v6518
    %6671 = vmatpush.msra.mxu0 %v6516
    %6672 = vmatmul.f32.gmra.mxu0 %v6552
    %v6673 = vpop.f32.mrf.mxu0
    %v6674 = vadd.f32 %v6654, %v6673
    %6675 = vdwg.mxu0
    %6676 = vmatpush.msra.mxu0 %v6381
    %6677 = vmatpush.msra.mxu0 %v6379
    %6678 = vmatpush.msra.mxu0 %v6377
    %6679 = vmatpush.msra.mxu0 %v6375
    %6680 = vmatpush.msra.mxu0 %v6373
    %6681 = vmatpush.msra.mxu0 %v6371
    %6682 = vmatpush.msra.mxu0 %v6369
    %6683 = vmatpush.msra.mxu0 %v6367
    %6684 = vmatpush.msra.mxu0 %v6365
    %6685 = vmatpush.msra.mxu0 %v6363
    %6686 = vmatpush.msra.mxu0 %v6361
    %6687 = vmatpush.msra.mxu0 %v6359
    %6688 = vmatpush.msra.mxu0 %v6357
    %6689 = vmatpush.msra.mxu0 %v6355
    %6690 = vmatpush.msra.mxu0 %v6353
    %6691 = vmatpush.msra.mxu0 %v6351
    %6692 = vmatmul.f32.gmra.mxu0 %v6348
    %v6693 = vpop.f32.mrf.mxu0
    %v6694 = vadd.f32 %v6614, %v6693
    %6695 = vdwg.mxu0
    %6696 = vmatpush.msra.mxu0 %v6413
    %6697 = vmatpush.msra.mxu0 %v6411
    %6698 = vmatpush.msra.mxu0 %v6409
    %6699 = vmatpush.msra.mxu0 %v6407
    %6700 = vmatpush.msra.mxu0 %v6405
    %6701 = vmatpush.msra.mxu0 %v6403
    %6702 = vmatpush.msra.mxu0 %v6401
    %6703 = vmatpush.msra.mxu0 %v6399
    %6704 = vmatpush.msra.mxu0 %v6397
    %6705 = vmatpush.msra.mxu0 %v6395
    %6706 = vmatpush.msra.mxu0 %v6393
    %6707 = vmatpush.msra.mxu0 %v6391
    %6708 = vmatpush.msra.mxu0 %v6389
    %6709 = vmatpush.msra.mxu0 %v6387
    %6710 = vmatpush.msra.mxu0 %v6385
    %6711 = vmatpush.msra.mxu0 %v6383
    %6712 = vmatmul.f32.gmra.mxu0 %v6349
    %v6713 = vpop.f32.mrf.mxu0
    %v6714 = vadd.f32 %v6694, %v6713
    %6715 = vdwg.mxu0
    %6716 = vmatpush.msra.mxu0 %v6445
    %6717 = vmatpush.msra.mxu0 %v6443
    %6718 = vmatpush.msra.mxu0 %v6441
    %6719 = vmatpush.msra.mxu0 %v6439
    %6720 = vmatpush.msra.mxu0 %v6437
    %6721 = vmatpush.msra.mxu0 %v6435
    %6722 = vmatpush.msra.mxu0 %v6433
    %6723 = vmatpush.msra.mxu0 %v6431
    %6724 = vmatpush.msra.mxu0 %v6429
    %6725 = vmatpush.msra.mxu0 %v6427
    %6726 = vmatpush.msra.mxu0 %v6425
    %6727 = vmatpush.msra.mxu0 %v6423
    %6728 = vmatpush.msra.mxu0 %v6421
    %6729 = vmatpush.msra.mxu0 %v6419
    %6730 = vmatpush.msra.mxu0 %v6417
    %6731 = vmatpush.msra.mxu0 %v6415
    %6732 = vmatmul.f32.gmra.mxu0 %v6350
    %v6733 = vpop.f32.mrf.mxu0
    %v6734 = vadd.f32 %v6714, %v6733
    %6735 = vdwg.mxu0
    %6736 = vmatpush.msra.mxu0 %v6382
    %6737 = vmatpush.msra.mxu0 %v6380
    %6738 = vmatpush.msra.mxu0 %v6378
    %6739 = vmatpush.msra.mxu0 %v6376
    %6740 = vmatpush.msra.mxu0 %v6374
    %6741 = vmatpush.msra.mxu0 %v6372
    %6742 = vmatpush.msra.mxu0 %v6370
    %6743 = vmatpush.msra.mxu0 %v6368
    %6744 = vmatpush.msra.mxu0 %v6366
    %6745 = vmatpush.msra.mxu0 %v6364
    %6746 = vmatpush.msra.mxu0 %v6362
    %6747 = vmatpush.msra.mxu0 %v6360
    %6748 = vmatpush.msra.mxu0 %v6358
    %6749 = vmatpush.msra.mxu0 %v6356
    %6750 = vmatpush.msra.mxu0 %v6354
    %6751 = vmatpush.msra.mxu0 %v6352
    %6752 = vmatmul.f32.gmra.mxu0 %v6348
    %v6753 = vpop.f32.mrf.mxu0
    %v6754 = vadd.f32 %v6674, %v6753
    %6755 = vdwg.mxu0
    %6756 = vmatpush.msra.mxu0 %v6414
    %6757 = vmatpush.msra.mxu0 %v6412
    %6758 = vmatpush.msra.mxu0 %v6410
    %6759 = vmatpush.msra.mxu0 %v6408
    %6760 = vmatpush.msra.mxu0 %v6406
    %6761 = vmatpush.msra.mxu0 %v6404
    %6762 = vmatpush.msra.mxu0 %v6402
    %6763 = vmatpush.msra.mxu0 %v6400
    %6764 = vmatpush.msra.mxu0 %v6398
    %6765 = vmatpush.msra.mxu0 %v6396
    %6766 = vmatpush.msra.mxu0 %v6394
    %6767 = vmatpush.msra.mxu0 %v6392
    %6768 = vmatpush.msra.mxu0 %v6390
    %6769 = vmatpush.msra.mxu0 %v6388
    %6770 = vmatpush.msra.mxu0 %v6386
    %6771 = vmatpush.msra.mxu0 %v6384
    %6772 = vmatmul.f32.gmra.mxu0 %v6349
    %v6773 = vpop.f32.mrf.mxu0
    %v6774 = vadd.f32 %v6754, %v6773
    %6775 = vdwg.mxu0
    %6776 = vmatpush.msra.mxu0 %v6446
    %6777 = vmatpush.msra.mxu0 %v6444
    %6778 = vmatpush.msra.mxu0 %v6442
    %6779 = vmatpush.msra.mxu0 %v6440
    %6780 = vmatpush.msra.mxu0 %v6438
    %6781 = vmatpush.msra.mxu0 %v6436
    %6782 = vmatpush.msra.mxu0 %v6434
    %6783 = vmatpush.msra.mxu0 %v6432
    %6784 = vmatpush.msra.mxu0 %v6430
    %6785 = vmatpush.msra.mxu0 %v6428
    %6786 = vmatpush.msra.mxu0 %v6426
    %6787 = vmatpush.msra.mxu0 %v6424
    %6788 = vmatpush.msra.mxu0 %v6422
    %6789 = vmatpush.msra.mxu0 %v6420
    %6790 = vmatpush.msra.mxu0 %v6418
    %6791 = vmatpush.msra.mxu0 %v6416
    %6792 = vmatmul.f32.gmra.mxu0 %v6350
    %v6793 = vpop.f32.mrf.mxu0
    %v6794 = vadd.f32 %v6774, %v6793
    %6795 = vdwg.mxu0
    %v6796 = vld [vmem:[#allocation3] sm:$0x30]
    %v6797 = vld [vmem:[#allocation3 + $0x8] sm:$0x30]
    %v6798 = vld [vmem:[#allocation3 + $0x10] sm:$0x30]
    %s6799 = scalar_lea.vmem [#allocation13], 1536
    %v6800 = vld [vmem:[%s6799] sm:$0xff]
    %v6801 = vld [vmem:[%s6799 + $0x8] sm:$0xff]
    %v6802 = vld [vmem:[%s6799 + $0x10] sm:$0xff]
    %v6803 = vld [vmem:[%s6799 + $0x18] sm:$0xff]
    %v6804 = vld [vmem:[%s6799 + $0x20] sm:$0xff]
    %v6805 = vld [vmem:[%s6799 + $0x28] sm:$0xff]
    %v6806 = vld [vmem:[%s6799 + $0x30] sm:$0xff]
    %v6807 = vld [vmem:[%s6799 + $0x38] sm:$0xff]
    %v6808 = vld [vmem:[%s6799 + $0x40] sm:$0xff]
    %v6809 = vld [vmem:[%s6799 + $0x48] sm:$0xff]
    %v6810 = vld [vmem:[%s6799 + $0x50] sm:$0xff]
    %v6811 = vld [vmem:[%s6799 + $0x58] sm:$0xff]
    %v6812 = vld [vmem:[%s6799 + $0x60] sm:$0xff]
    %v6813 = vld [vmem:[%s6799 + $0x68] sm:$0xff]
    %v6814 = vld [vmem:[%s6799 + $0x70] sm:$0xff]
    %v6815 = vld [vmem:[%s6799 + $0x78] sm:$0xff]
    %v6816 = vld [vmem:[%s6799 + $0x80] sm:$0xff]
    %v6817 = vld [vmem:[%s6799 + $0x88] sm:$0xff]
    %v6818 = vld [vmem:[%s6799 + $0x90] sm:$0xff]
    %v6819 = vld [vmem:[%s6799 + $0x98] sm:$0xff]
    %v6820 = vld [vmem:[%s6799 + $0xa0] sm:$0xff]
    %v6821 = vld [vmem:[%s6799 + $0xa8] sm:$0xff]
    %v6822 = vld [vmem:[%s6799 + $0xb0] sm:$0xff]
    %v6823 = vld [vmem:[%s6799 + $0xb8] sm:$0xff]
    %v6824 = vld [vmem:[%s6799 + $0xc0] sm:$0xff]
    %v6825 = vld [vmem:[%s6799 + $0xc8] sm:$0xff]
    %v6826 = vld [vmem:[%s6799 + $0xd0] sm:$0xff]
    %v6827 = vld [vmem:[%s6799 + $0xd8] sm:$0xff]
    %v6828 = vld [vmem:[%s6799 + $0xe0] sm:$0xff]
    %v6829 = vld [vmem:[%s6799 + $0xe8] sm:$0xff]
    %v6830 = vld [vmem:[%s6799 + $0xf0] sm:$0xff]
    %v6831 = vld [vmem:[%s6799 + $0xf8] sm:$0xff]
    %v6832 = vld [vmem:[%s6799 + $0x100] sm:$0xff]
    %v6833 = vld [vmem:[%s6799 + $0x108] sm:$0xff]
    %v6834 = vld [vmem:[%s6799 + $0x110] sm:$0xff]
    %v6835 = vld [vmem:[%s6799 + $0x118] sm:$0xff]
    %v6836 = vld [vmem:[%s6799 + $0x120] sm:$0xff]
    %v6837 = vld [vmem:[%s6799 + $0x128] sm:$0xff]
    %v6838 = vld [vmem:[%s6799 + $0x130] sm:$0xff]
    %v6839 = vld [vmem:[%s6799 + $0x138] sm:$0xff]
    %v6840 = vld [vmem:[%s6799 + $0x140] sm:$0xff]
    %v6841 = vld [vmem:[%s6799 + $0x148] sm:$0xff]
    %v6842 = vld [vmem:[%s6799 + $0x150] sm:$0xff]
    %v6843 = vld [vmem:[%s6799 + $0x158] sm:$0xff]
    %v6844 = vld [vmem:[%s6799 + $0x160] sm:$0xff]
    %v6845 = vld [vmem:[%s6799 + $0x168] sm:$0xff]
    %v6846 = vld [vmem:[%s6799 + $0x170] sm:$0xff]
    %v6847 = vld [vmem:[%s6799 + $0x178] sm:$0xff]
    %v6848 = vld [vmem:[%s6799 + $0x180] sm:$0xff]
    %v6849 = vld [vmem:[%s6799 + $0x188] sm:$0xff]
    %v6850 = vld [vmem:[%s6799 + $0x190] sm:$0xff]
    %v6851 = vld [vmem:[%s6799 + $0x198] sm:$0xff]
    %v6852 = vld [vmem:[%s6799 + $0x1a0] sm:$0xff]
    %v6853 = vld [vmem:[%s6799 + $0x1a8] sm:$0xff]
    %v6854 = vld [vmem:[%s6799 + $0x1b0] sm:$0xff]
    %v6855 = vld [vmem:[%s6799 + $0x1b8] sm:$0xff]
    %v6856 = vld [vmem:[%s6799 + $0x1c0] sm:$0xff]
    %v6857 = vld [vmem:[%s6799 + $0x1c8] sm:$0xff]
    %v6858 = vld [vmem:[%s6799 + $0x1d0] sm:$0xff]
    %v6859 = vld [vmem:[%s6799 + $0x1d8] sm:$0xff]
    %v6860 = vld [vmem:[%s6799 + $0x1e0] sm:$0xff]
    %v6861 = vld [vmem:[%s6799 + $0x1e8] sm:$0xff]
    %v6862 = vld [vmem:[%s6799 + $0x1f0] sm:$0xff]
    %v6863 = vld [vmem:[%s6799 + $0x1f8] sm:$0xff]
    %v6864 = vld [vmem:[%s6799 + $0x200] sm:$0xff]
    %v6865 = vld [vmem:[%s6799 + $0x208] sm:$0xff]
    %v6866 = vld [vmem:[%s6799 + $0x210] sm:$0xff]
    %v6867 = vld [vmem:[%s6799 + $0x218] sm:$0xff]
    %v6868 = vld [vmem:[%s6799 + $0x220] sm:$0xff]
    %v6869 = vld [vmem:[%s6799 + $0x228] sm:$0xff]
    %v6870 = vld [vmem:[%s6799 + $0x230] sm:$0xff]
    %v6871 = vld [vmem:[%s6799 + $0x238] sm:$0xff]
    %v6872 = vld [vmem:[%s6799 + $0x240] sm:$0xff]
    %v6873 = vld [vmem:[%s6799 + $0x248] sm:$0xff]
    %v6874 = vld [vmem:[%s6799 + $0x250] sm:$0xff]
    %v6875 = vld [vmem:[%s6799 + $0x258] sm:$0xff]
    %v6876 = vld [vmem:[%s6799 + $0x260] sm:$0xff]
    %v6877 = vld [vmem:[%s6799 + $0x268] sm:$0xff]
    %v6878 = vld [vmem:[%s6799 + $0x270] sm:$0xff]
    %v6879 = vld [vmem:[%s6799 + $0x278] sm:$0xff]
    %v6880 = vld [vmem:[%s6799 + $0x280] sm:$0xff]
    %v6881 = vld [vmem:[%s6799 + $0x288] sm:$0xff]
    %v6882 = vld [vmem:[%s6799 + $0x290] sm:$0xff]
    %v6883 = vld [vmem:[%s6799 + $0x298] sm:$0xff]
    %v6884 = vld [vmem:[%s6799 + $0x2a0] sm:$0xff]
    %v6885 = vld [vmem:[%s6799 + $0x2a8] sm:$0xff]
    %v6886 = vld [vmem:[%s6799 + $0x2b0] sm:$0xff]
    %v6887 = vld [vmem:[%s6799 + $0x2b8] sm:$0xff]
    %v6888 = vld [vmem:[%s6799 + $0x2c0] sm:$0xff]
    %v6889 = vld [vmem:[%s6799 + $0x2c8] sm:$0xff]
    %v6890 = vld [vmem:[%s6799 + $0x2d0] sm:$0xff]
    %v6891 = vld [vmem:[%s6799 + $0x2d8] sm:$0xff]
    %v6892 = vld [vmem:[%s6799 + $0x2e0] sm:$0xff]
    %v6893 = vld [vmem:[%s6799 + $0x2e8] sm:$0xff]
    %v6894 = vld [vmem:[%s6799 + $0x2f0] sm:$0xff]
    %v6895 = vld [vmem:[%s6799 + $0x2f8] sm:$0xff]
    %v6899 = vrot.slane %v6796, 4
    %v6900 = vrot.slane %v6797, 4
    %v6901 = vrot.slane %v6798, 4
    %6905 = vmatpush.msra.mxu0 %v6830
    %6906 = vmatpush.msra.mxu0 %v6828
    %6907 = vmatpush.msra.mxu0 %v6826
    %6908 = vmatpush.msra.mxu0 %v6824
    %6909 = vmatpush.msra.mxu0 %v6822
    %6910 = vmatpush.msra.mxu0 %v6820
    %6911 = vmatpush.msra.mxu0 %v6818
    %6912 = vmatpush.msra.mxu0 %v6816
    %6913 = vmatpush.msra.mxu0 %v6814
    %6914 = vmatpush.msra.mxu0 %v6812
    %6915 = vmatpush.msra.mxu0 %v6810
    %6916 = vmatpush.msra.mxu0 %v6808
    %6917 = vmatpush.msra.mxu0 %v6806
    %6918 = vmatpush.msra.mxu0 %v6804
    %6919 = vmatpush.msra.mxu0 %v6802
    %6920 = vmatpush.msra.mxu0 %v6800
    %6921 = vmatmul.f32.gmra.mxu0 %v6899
    %v6922 = vpop.f32.mrf.mxu0
    %v6923 = vadd.f32 0.0, %v6922
    %6924 = vdwg.mxu0
    %6925 = vmatpush.msra.mxu0 %v6862
    %6926 = vmatpush.msra.mxu0 %v6860
    %6927 = vmatpush.msra.mxu0 %v6858
    %6928 = vmatpush.msra.mxu0 %v6856
    %6929 = vmatpush.msra.mxu0 %v6854
    %6930 = vmatpush.msra.mxu0 %v6852
    %6931 = vmatpush.msra.mxu0 %v6850
    %6932 = vmatpush.msra.mxu0 %v6848
    %6933 = vmatpush.msra.mxu0 %v6846
    %6934 = vmatpush.msra.mxu0 %v6844
    %6935 = vmatpush.msra.mxu0 %v6842
    %6936 = vmatpush.msra.mxu0 %v6840
    %6937 = vmatpush.msra.mxu0 %v6838
    %6938 = vmatpush.msra.mxu0 %v6836
    %6939 = vmatpush.msra.mxu0 %v6834
    %6940 = vmatpush.msra.mxu0 %v6832
    %6941 = vmatmul.f32.gmra.mxu0 %v6900
    %v6942 = vpop.f32.mrf.mxu0
    %v6943 = vadd.f32 %v6923, %v6942
    %6944 = vdwg.mxu0
    %6945 = vmatpush.msra.mxu0 %v6894
    %6946 = vmatpush.msra.mxu0 %v6892
    %6947 = vmatpush.msra.mxu0 %v6890
    %6948 = vmatpush.msra.mxu0 %v6888
    %6949 = vmatpush.msra.mxu0 %v6886
    %6950 = vmatpush.msra.mxu0 %v6884
    %6951 = vmatpush.msra.mxu0 %v6882
    %6952 = vmatpush.msra.mxu0 %v6880
    %6953 = vmatpush.msra.mxu0 %v6878
    %6954 = vmatpush.msra.mxu0 %v6876
    %6955 = vmatpush.msra.mxu0 %v6874
    %6956 = vmatpush.msra.mxu0 %v6872
    %6957 = vmatpush.msra.mxu0 %v6870
    %6958 = vmatpush.msra.mxu0 %v6868
    %6959 = vmatpush.msra.mxu0 %v6866
    %6960 = vmatpush.msra.mxu0 %v6864
    %6961 = vmatmul.f32.gmra.mxu0 %v6901
    %v6962 = vpop.f32.mrf.mxu0
    %v6963 = vadd.f32 %v6943, %v6962
    %6964 = vdwg.mxu0
    %6965 = vmatpush.msra.mxu0 %v6831
    %6966 = vmatpush.msra.mxu0 %v6829
    %6967 = vmatpush.msra.mxu0 %v6827
    %6968 = vmatpush.msra.mxu0 %v6825
    %6969 = vmatpush.msra.mxu0 %v6823
    %6970 = vmatpush.msra.mxu0 %v6821
    %6971 = vmatpush.msra.mxu0 %v6819
    %6972 = vmatpush.msra.mxu0 %v6817
    %6973 = vmatpush.msra.mxu0 %v6815
    %6974 = vmatpush.msra.mxu0 %v6813
    %6975 = vmatpush.msra.mxu0 %v6811
    %6976 = vmatpush.msra.mxu0 %v6809
    %6977 = vmatpush.msra.mxu0 %v6807
    %6978 = vmatpush.msra.mxu0 %v6805
    %6979 = vmatpush.msra.mxu0 %v6803
    %6980 = vmatpush.msra.mxu0 %v6801
    %6981 = vmatmul.f32.gmra.mxu0 %v6899
    %v6982 = vpop.f32.mrf.mxu0
    %v6983 = vadd.f32 0.0, %v6982
    %6984 = vdwg.mxu0
    %6985 = vmatpush.msra.mxu0 %v6863
    %6986 = vmatpush.msra.mxu0 %v6861
    %6987 = vmatpush.msra.mxu0 %v6859
    %6988 = vmatpush.msra.mxu0 %v6857
    %6989 = vmatpush.msra.mxu0 %v6855
    %6990 = vmatpush.msra.mxu0 %v6853
    %6991 = vmatpush.msra.mxu0 %v6851
    %6992 = vmatpush.msra.mxu0 %v6849
    %6993 = vmatpush.msra.mxu0 %v6847
    %6994 = vmatpush.msra.mxu0 %v6845
    %6995 = vmatpush.msra.mxu0 %v6843
    %6996 = vmatpush.msra.mxu0 %v6841
    %6997 = vmatpush.msra.mxu0 %v6839
    %6998 = vmatpush.msra.mxu0 %v6837
    %6999 = vmatpush.msra.mxu0 %v6835
    %7000 = vmatpush.msra.mxu0 %v6833
    %7001 = vmatmul.f32.gmra.mxu0 %v6900
    %v7002 = vpop.f32.mrf.mxu0
    %v7003 = vadd.f32 %v6983, %v7002
    %7004 = vdwg.mxu0
    %7005 = vmatpush.msra.mxu0 %v6895
    %7006 = vmatpush.msra.mxu0 %v6893
    %7007 = vmatpush.msra.mxu0 %v6891
    %7008 = vmatpush.msra.mxu0 %v6889
    %7009 = vmatpush.msra.mxu0 %v6887
    %7010 = vmatpush.msra.mxu0 %v6885
    %7011 = vmatpush.msra.mxu0 %v6883
    %7012 = vmatpush.msra.mxu0 %v6881
    %7013 = vmatpush.msra.mxu0 %v6879
    %7014 = vmatpush.msra.mxu0 %v6877
    %7015 = vmatpush.msra.mxu0 %v6875
    %7016 = vmatpush.msra.mxu0 %v6873
    %7017 = vmatpush.msra.mxu0 %v6871
    %7018 = vmatpush.msra.mxu0 %v6869
    %7019 = vmatpush.msra.mxu0 %v6867
    %7020 = vmatpush.msra.mxu0 %v6865
    %7021 = vmatmul.f32.gmra.mxu0 %v6901
    %v7022 = vpop.f32.mrf.mxu0
    %v7023 = vadd.f32 %v7003, %v7022
    %7024 = vdwg.mxu0
    %v7025 = vadd.f32 %v6734, %v6963
    %v7026 = vadd.f32 %v6794, %v7023
    %v7027 = vld [vmem:[#allocation3] sm:$0xc0]
    %v7028 = vld [vmem:[#allocation3 + $0x8] sm:$0xc0]
    %v7029 = vld [vmem:[#allocation3 + $0x10] sm:$0xc0]
    %s7030 = scalar_lea.vmem [#allocation13], 2304
    %v7031 = vld [vmem:[%s7030] sm:$0xff]
    %v7032 = vld [vmem:[%s7030 + $0x8] sm:$0xff]
    %v7033 = vld [vmem:[%s7030 + $0x10] sm:$0xff]
    %v7034 = vld [vmem:[%s7030 + $0x18] sm:$0xff]
    %v7035 = vld [vmem:[%s7030 + $0x20] sm:$0xff]
    %v7036 = vld [vmem:[%s7030 + $0x28] sm:$0xff]
    %v7037 = vld [vmem:[%s7030 + $0x30] sm:$0xff]
    %v7038 = vld [vmem:[%s7030 + $0x38] sm:$0xff]
    %v7039 = vld [vmem:[%s7030 + $0x40] sm:$0xff]
    %v7040 = vld [vmem:[%s7030 + $0x48] sm:$0xff]
    %v7041 = vld [vmem:[%s7030 + $0x50] sm:$0xff]
    %v7042 = vld [vmem:[%s7030 + $0x58] sm:$0xff]
    %v7043 = vld [vmem:[%s7030 + $0x60] sm:$0xff]
    %v7044 = vld [vmem:[%s7030 + $0x68] sm:$0xff]
    %v7045 = vld [vmem:[%s7030 + $0x70] sm:$0xff]
    %v7046 = vld [vmem:[%s7030 + $0x78] sm:$0xff]
    %v7047 = vld [vmem:[%s7030 + $0x80] sm:$0xff]
    %v7048 = vld [vmem:[%s7030 + $0x88] sm:$0xff]
    %v7049 = vld [vmem:[%s7030 + $0x90] sm:$0xff]
    %v7050 = vld [vmem:[%s7030 + $0x98] sm:$0xff]
    %v7051 = vld [vmem:[%s7030 + $0xa0] sm:$0xff]
    %v7052 = vld [vmem:[%s7030 + $0xa8] sm:$0xff]
    %v7053 = vld [vmem:[%s7030 + $0xb0] sm:$0xff]
    %v7054 = vld [vmem:[%s7030 + $0xb8] sm:$0xff]
    %v7055 = vld [vmem:[%s7030 + $0xc0] sm:$0xff]
    %v7056 = vld [vmem:[%s7030 + $0xc8] sm:$0xff]
    %v7057 = vld [vmem:[%s7030 + $0xd0] sm:$0xff]
    %v7058 = vld [vmem:[%s7030 + $0xd8] sm:$0xff]
    %v7059 = vld [vmem:[%s7030 + $0xe0] sm:$0xff]
    %v7060 = vld [vmem:[%s7030 + $0xe8] sm:$0xff]
    %v7061 = vld [vmem:[%s7030 + $0xf0] sm:$0xff]
    %v7062 = vld [vmem:[%s7030 + $0xf8] sm:$0xff]
    %v7063 = vld [vmem:[%s7030 + $0x100] sm:$0xff]
    %v7064 = vld [vmem:[%s7030 + $0x108] sm:$0xff]
    %v7065 = vld [vmem:[%s7030 + $0x110] sm:$0xff]
    %v7066 = vld [vmem:[%s7030 + $0x118] sm:$0xff]
    %v7067 = vld [vmem:[%s7030 + $0x120] sm:$0xff]
    %v7068 = vld [vmem:[%s7030 + $0x128] sm:$0xff]
    %v7069 = vld [vmem:[%s7030 + $0x130] sm:$0xff]
    %v7070 = vld [vmem:[%s7030 + $0x138] sm:$0xff]
    %v7071 = vld [vmem:[%s7030 + $0x140] sm:$0xff]
    %v7072 = vld [vmem:[%s7030 + $0x148] sm:$0xff]
    %v7073 = vld [vmem:[%s7030 + $0x150] sm:$0xff]
    %v7074 = vld [vmem:[%s7030 + $0x158] sm:$0xff]
    %v7075 = vld [vmem:[%s7030 + $0x160] sm:$0xff]
    %v7076 = vld [vmem:[%s7030 + $0x168] sm:$0xff]
    %v7077 = vld [vmem:[%s7030 + $0x170] sm:$0xff]
    %v7078 = vld [vmem:[%s7030 + $0x178] sm:$0xff]
    %v7079 = vld [vmem:[%s7030 + $0x180] sm:$0xff]
    %v7080 = vld [vmem:[%s7030 + $0x188] sm:$0xff]
    %v7081 = vld [vmem:[%s7030 + $0x190] sm:$0xff]
    %v7082 = vld [vmem:[%s7030 + $0x198] sm:$0xff]
    %v7083 = vld [vmem:[%s7030 + $0x1a0] sm:$0xff]
    %v7084 = vld [vmem:[%s7030 + $0x1a8] sm:$0xff]
    %v7085 = vld [vmem:[%s7030 + $0x1b0] sm:$0xff]
    %v7086 = vld [vmem:[%s7030 + $0x1b8] sm:$0xff]
    %v7087 = vld [vmem:[%s7030 + $0x1c0] sm:$0xff]
    %v7088 = vld [vmem:[%s7030 + $0x1c8] sm:$0xff]
    %v7089 = vld [vmem:[%s7030 + $0x1d0] sm:$0xff]
    %v7090 = vld [vmem:[%s7030 + $0x1d8] sm:$0xff]
    %v7091 = vld [vmem:[%s7030 + $0x1e0] sm:$0xff]
    %v7092 = vld [vmem:[%s7030 + $0x1e8] sm:$0xff]
    %v7093 = vld [vmem:[%s7030 + $0x1f0] sm:$0xff]
    %v7094 = vld [vmem:[%s7030 + $0x1f8] sm:$0xff]
    %v7095 = vld [vmem:[%s7030 + $0x200] sm:$0xff]
    %v7096 = vld [vmem:[%s7030 + $0x208] sm:$0xff]
    %v7097 = vld [vmem:[%s7030 + $0x210] sm:$0xff]
    %v7098 = vld [vmem:[%s7030 + $0x218] sm:$0xff]
    %v7099 = vld [vmem:[%s7030 + $0x220] sm:$0xff]
    %v7100 = vld [vmem:[%s7030 + $0x228] sm:$0xff]
    %v7101 = vld [vmem:[%s7030 + $0x230] sm:$0xff]
    %v7102 = vld [vmem:[%s7030 + $0x238] sm:$0xff]
    %v7103 = vld [vmem:[%s7030 + $0x240] sm:$0xff]
    %v7104 = vld [vmem:[%s7030 + $0x248] sm:$0xff]
    %v7105 = vld [vmem:[%s7030 + $0x250] sm:$0xff]
    %v7106 = vld [vmem:[%s7030 + $0x258] sm:$0xff]
    %v7107 = vld [vmem:[%s7030 + $0x260] sm:$0xff]
    %v7108 = vld [vmem:[%s7030 + $0x268] sm:$0xff]
    %v7109 = vld [vmem:[%s7030 + $0x270] sm:$0xff]
    %v7110 = vld [vmem:[%s7030 + $0x278] sm:$0xff]
    %v7111 = vld [vmem:[%s7030 + $0x280] sm:$0xff]
    %v7112 = vld [vmem:[%s7030 + $0x288] sm:$0xff]
    %v7113 = vld [vmem:[%s7030 + $0x290] sm:$0xff]
    %v7114 = vld [vmem:[%s7030 + $0x298] sm:$0xff]
    %v7115 = vld [vmem:[%s7030 + $0x2a0] sm:$0xff]
    %v7116 = vld [vmem:[%s7030 + $0x2a8] sm:$0xff]
    %v7117 = vld [vmem:[%s7030 + $0x2b0] sm:$0xff]
    %v7118 = vld [vmem:[%s7030 + $0x2b8] sm:$0xff]
    %v7119 = vld [vmem:[%s7030 + $0x2c0] sm:$0xff]
    %v7120 = vld [vmem:[%s7030 + $0x2c8] sm:$0xff]
    %v7121 = vld [vmem:[%s7030 + $0x2d0] sm:$0xff]
    %v7122 = vld [vmem:[%s7030 + $0x2d8] sm:$0xff]
    %v7123 = vld [vmem:[%s7030 + $0x2e0] sm:$0xff]
    %v7124 = vld [vmem:[%s7030 + $0x2e8] sm:$0xff]
    %v7125 = vld [vmem:[%s7030 + $0x2f0] sm:$0xff]
    %v7126 = vld [vmem:[%s7030 + $0x2f8] sm:$0xff]
    %v7130 = vrot.slane %v7027, 6
    %v7131 = vrot.slane %v7028, 6
    %v7132 = vrot.slane %v7029, 6
    %7136 = vmatpush.msra.mxu0 %v7061
    %7137 = vmatpush.msra.mxu0 %v7059
    %7138 = vmatpush.msra.mxu0 %v7057
    %7139 = vmatpush.msra.mxu0 %v7055
    %7140 = vmatpush.msra.mxu0 %v7053
    %7141 = vmatpush.msra.mxu0 %v7051
    %7142 = vmatpush.msra.mxu0 %v7049
    %7143 = vmatpush.msra.mxu0 %v7047
    %7144 = vmatpush.msra.mxu0 %v7045
    %7145 = vmatpush.msra.mxu0 %v7043
    %7146 = vmatpush.msra.mxu0 %v7041
    %7147 = vmatpush.msra.mxu0 %v7039
    %7148 = vmatpush.msra.mxu0 %v7037
    %7149 = vmatpush.msra.mxu0 %v7035
    %7150 = vmatpush.msra.mxu0 %v7033
    %7151 = vmatpush.msra.mxu0 %v7031
    %7152 = vmatmul.f32.gmra.mxu0 %v7130
    %v7153 = vpop.f32.mrf.mxu0
    %v7154 = vadd.f32 0.0, %v7153
    %7155 = vdwg.mxu0
    %7156 = vmatpush.msra.mxu0 %v7093
    %7157 = vmatpush.msra.mxu0 %v7091
    %7158 = vmatpush.msra.mxu0 %v7089
    %7159 = vmatpush.msra.mxu0 %v7087
    %7160 = vmatpush.msra.mxu0 %v7085
    %7161 = vmatpush.msra.mxu0 %v7083
    %7162 = vmatpush.msra.mxu0 %v7081
    %7163 = vmatpush.msra.mxu0 %v7079
    %7164 = vmatpush.msra.mxu0 %v7077
    %7165 = vmatpush.msra.mxu0 %v7075
    %7166 = vmatpush.msra.mxu0 %v7073
    %7167 = vmatpush.msra.mxu0 %v7071
    %7168 = vmatpush.msra.mxu0 %v7069
    %7169 = vmatpush.msra.mxu0 %v7067
    %7170 = vmatpush.msra.mxu0 %v7065
    %7171 = vmatpush.msra.mxu0 %v7063
    %7172 = vmatmul.f32.gmra.mxu0 %v7131
    %v7173 = vpop.f32.mrf.mxu0
    %v7174 = vadd.f32 %v7154, %v7173
    %7175 = vdwg.mxu0
    %7176 = vmatpush.msra.mxu0 %v7125
    %7177 = vmatpush.msra.mxu0 %v7123
    %7178 = vmatpush.msra.mxu0 %v7121
    %7179 = vmatpush.msra.mxu0 %v7119
    %7180 = vmatpush.msra.mxu0 %v7117
    %7181 = vmatpush.msra.mxu0 %v7115
    %7182 = vmatpush.msra.mxu0 %v7113
    %7183 = vmatpush.msra.mxu0 %v7111
    %7184 = vmatpush.msra.mxu0 %v7109
    %7185 = vmatpush.msra.mxu0 %v7107
    %7186 = vmatpush.msra.mxu0 %v7105
    %7187 = vmatpush.msra.mxu0 %v7103
    %7188 = vmatpush.msra.mxu0 %v7101
    %7189 = vmatpush.msra.mxu0 %v7099
    %7190 = vmatpush.msra.mxu0 %v7097
    %7191 = vmatpush.msra.mxu0 %v7095
    %7192 = vmatmul.f32.gmra.mxu0 %v7132
    %v7193 = vpop.f32.mrf.mxu0
    %v7194 = vadd.f32 %v7174, %v7193
    %7195 = vdwg.mxu0
    %7196 = vmatpush.msra.mxu0 %v7062
    %7197 = vmatpush.msra.mxu0 %v7060
    %7198 = vmatpush.msra.mxu0 %v7058
    %7199 = vmatpush.msra.mxu0 %v7056
    %7200 = vmatpush.msra.mxu0 %v7054
    %7201 = vmatpush.msra.mxu0 %v7052
    %7202 = vmatpush.msra.mxu0 %v7050
    %7203 = vmatpush.msra.mxu0 %v7048
    %7204 = vmatpush.msra.mxu0 %v7046
    %7205 = vmatpush.msra.mxu0 %v7044
    %7206 = vmatpush.msra.mxu0 %v7042
    %7207 = vmatpush.msra.mxu0 %v7040
    %7208 = vmatpush.msra.mxu0 %v7038
    %7209 = vmatpush.msra.mxu0 %v7036
    %7210 = vmatpush.msra.mxu0 %v7034
    %7211 = vmatpush.msra.mxu0 %v7032
    %7212 = vmatmul.f32.gmra.mxu0 %v7130
    %v7213 = vpop.f32.mrf.mxu0
    %v7214 = vadd.f32 0.0, %v7213
    %7215 = vdwg.mxu0
    %7216 = vmatpush.msra.mxu0 %v7094
    %7217 = vmatpush.msra.mxu0 %v7092
    %7218 = vmatpush.msra.mxu0 %v7090
    %7219 = vmatpush.msra.mxu0 %v7088
    %7220 = vmatpush.msra.mxu0 %v7086
    %7221 = vmatpush.msra.mxu0 %v7084
    %7222 = vmatpush.msra.mxu0 %v7082
    %7223 = vmatpush.msra.mxu0 %v7080
    %7224 = vmatpush.msra.mxu0 %v7078
    %7225 = vmatpush.msra.mxu0 %v7076
    %7226 = vmatpush.msra.mxu0 %v7074
    %7227 = vmatpush.msra.mxu0 %v7072
    %7228 = vmatpush.msra.mxu0 %v7070
    %7229 = vmatpush.msra.mxu0 %v7068
    %7230 = vmatpush.msra.mxu0 %v7066
    %7231 = vmatpush.msra.mxu0 %v7064
    %7232 = vmatmul.f32.gmra.mxu0 %v7131
    %v7233 = vpop.f32.mrf.mxu0
    %v7234 = vadd.f32 %v7214, %v7233
    %7235 = vdwg.mxu0
    %7236 = vmatpush.msra.mxu0 %v7126
    %7237 = vmatpush.msra.mxu0 %v7124
    %7238 = vmatpush.msra.mxu0 %v7122
    %7239 = vmatpush.msra.mxu0 %v7120
    %7240 = vmatpush.msra.mxu0 %v7118
    %7241 = vmatpush.msra.mxu0 %v7116
    %7242 = vmatpush.msra.mxu0 %v7114
    %7243 = vmatpush.msra.mxu0 %v7112
    %7244 = vmatpush.msra.mxu0 %v7110
    %7245 = vmatpush.msra.mxu0 %v7108
    %7246 = vmatpush.msra.mxu0 %v7106
    %7247 = vmatpush.msra.mxu0 %v7104
    %7248 = vmatpush.msra.mxu0 %v7102
    %7249 = vmatpush.msra.mxu0 %v7100
    %7250 = vmatpush.msra.mxu0 %v7098
    %7251 = vmatpush.msra.mxu0 %v7096
    %7252 = vmatmul.f32.gmra.mxu0 %v7132
    %v7253 = vpop.f32.mrf.mxu0
    %v7254 = vadd.f32 %v7234, %v7253
    %7255 = vdwg.mxu0
    %v7256 = vadd.f32 %v7025, %v7194
    %v7257 = vadd.f32 %v7026, %v7254
    %v7258 = vld [vmem:[#allocation3 + $0x18] sm:$0x3]
    %v7259 = vld [vmem:[#allocation3 + $0x20] sm:$0x3]
    %v7260 = vld [vmem:[#allocation3 + $0x28] sm:$0x3]
    %s7261 = scalar_lea.vmem [#allocation13], 3072
    %v7262 = vld [vmem:[%s7261] sm:$0xff]
    %v7263 = vld [vmem:[%s7261 + $0x8] sm:$0xff]
    %v7264 = vld [vmem:[%s7261 + $0x10] sm:$0xff]
    %v7265 = vld [vmem:[%s7261 + $0x18] sm:$0xff]
    %v7266 = vld [vmem:[%s7261 + $0x20] sm:$0xff]
    %v7267 = vld [vmem:[%s7261 + $0x28] sm:$0xff]
    %v7268 = vld [vmem:[%s7261 + $0x30] sm:$0xff]
    %v7269 = vld [vmem:[%s7261 + $0x38] sm:$0xff]
    %v7270 = vld [vmem:[%s7261 + $0x40] sm:$0xff]
    %v7271 = vld [vmem:[%s7261 + $0x48] sm:$0xff]
    %v7272 = vld [vmem:[%s7261 + $0x50] sm:$0xff]
    %v7273 = vld [vmem:[%s7261 + $0x58] sm:$0xff]
    %v7274 = vld [vmem:[%s7261 + $0x60] sm:$0xff]
    %v7275 = vld [vmem:[%s7261 + $0x68] sm:$0xff]
    %v7276 = vld [vmem:[%s7261 + $0x70] sm:$0xff]
    %v7277 = vld [vmem:[%s7261 + $0x78] sm:$0xff]
    %v7278 = vld [vmem:[%s7261 + $0x80] sm:$0xff]
    %v7279 = vld [vmem:[%s7261 + $0x88] sm:$0xff]
    %v7280 = vld [vmem:[%s7261 + $0x90] sm:$0xff]
    %v7281 = vld [vmem:[%s7261 + $0x98] sm:$0xff]
    %v7282 = vld [vmem:[%s7261 + $0xa0] sm:$0xff]
    %v7283 = vld [vmem:[%s7261 + $0xa8] sm:$0xff]
    %v7284 = vld [vmem:[%s7261 + $0xb0] sm:$0xff]
    %v7285 = vld [vmem:[%s7261 + $0xb8] sm:$0xff]
    %v7286 = vld [vmem:[%s7261 + $0xc0] sm:$0xff]
    %v7287 = vld [vmem:[%s7261 + $0xc8] sm:$0xff]
    %v7288 = vld [vmem:[%s7261 + $0xd0] sm:$0xff]
    %v7289 = vld [vmem:[%s7261 + $0xd8] sm:$0xff]
    %v7290 = vld [vmem:[%s7261 + $0xe0] sm:$0xff]
    %v7291 = vld [vmem:[%s7261 + $0xe8] sm:$0xff]
    %v7292 = vld [vmem:[%s7261 + $0xf0] sm:$0xff]
    %v7293 = vld [vmem:[%s7261 + $0xf8] sm:$0xff]
    %v7294 = vld [vmem:[%s7261 + $0x100] sm:$0xff]
    %v7295 = vld [vmem:[%s7261 + $0x108] sm:$0xff]
    %v7296 = vld [vmem:[%s7261 + $0x110] sm:$0xff]
    %v7297 = vld [vmem:[%s7261 + $0x118] sm:$0xff]
    %v7298 = vld [vmem:[%s7261 + $0x120] sm:$0xff]
    %v7299 = vld [vmem:[%s7261 + $0x128] sm:$0xff]
    %v7300 = vld [vmem:[%s7261 + $0x130] sm:$0xff]
    %v7301 = vld [vmem:[%s7261 + $0x138] sm:$0xff]
    %v7302 = vld [vmem:[%s7261 + $0x140] sm:$0xff]
    %v7303 = vld [vmem:[%s7261 + $0x148] sm:$0xff]
    %v7304 = vld [vmem:[%s7261 + $0x150] sm:$0xff]
    %v7305 = vld [vmem:[%s7261 + $0x158] sm:$0xff]
    %v7306 = vld [vmem:[%s7261 + $0x160] sm:$0xff]
    %v7307 = vld [vmem:[%s7261 + $0x168] sm:$0xff]
    %v7308 = vld [vmem:[%s7261 + $0x170] sm:$0xff]
    %v7309 = vld [vmem:[%s7261 + $0x178] sm:$0xff]
    %v7310 = vld [vmem:[%s7261 + $0x180] sm:$0xff]
    %v7311 = vld [vmem:[%s7261 + $0x188] sm:$0xff]
    %v7312 = vld [vmem:[%s7261 + $0x190] sm:$0xff]
    %v7313 = vld [vmem:[%s7261 + $0x198] sm:$0xff]
    %v7314 = vld [vmem:[%s7261 + $0x1a0] sm:$0xff]
    %v7315 = vld [vmem:[%s7261 + $0x1a8] sm:$0xff]
    %v7316 = vld [vmem:[%s7261 + $0x1b0] sm:$0xff]
    %v7317 = vld [vmem:[%s7261 + $0x1b8] sm:$0xff]
    %v7318 = vld [vmem:[%s7261 + $0x1c0] sm:$0xff]
    %v7319 = vld [vmem:[%s7261 + $0x1c8] sm:$0xff]
    %v7320 = vld [vmem:[%s7261 + $0x1d0] sm:$0xff]
    %v7321 = vld [vmem:[%s7261 + $0x1d8] sm:$0xff]
    %v7322 = vld [vmem:[%s7261 + $0x1e0] sm:$0xff]
    %v7323 = vld [vmem:[%s7261 + $0x1e8] sm:$0xff]
    %v7324 = vld [vmem:[%s7261 + $0x1f0] sm:$0xff]
    %v7325 = vld [vmem:[%s7261 + $0x1f8] sm:$0xff]
    %v7326 = vld [vmem:[%s7261 + $0x200] sm:$0xff]
    %v7327 = vld [vmem:[%s7261 + $0x208] sm:$0xff]
    %v7328 = vld [vmem:[%s7261 + $0x210] sm:$0xff]
    %v7329 = vld [vmem:[%s7261 + $0x218] sm:$0xff]
    %v7330 = vld [vmem:[%s7261 + $0x220] sm:$0xff]
    %v7331 = vld [vmem:[%s7261 + $0x228] sm:$0xff]
    %v7332 = vld [vmem:[%s7261 + $0x230] sm:$0xff]
    %v7333 = vld [vmem:[%s7261 + $0x238] sm:$0xff]
    %v7334 = vld [vmem:[%s7261 + $0x240] sm:$0xff]
    %v7335 = vld [vmem:[%s7261 + $0x248] sm:$0xff]
    %v7336 = vld [vmem:[%s7261 + $0x250] sm:$0xff]
    %v7337 = vld [vmem:[%s7261 + $0x258] sm:$0xff]
    %v7338 = vld [vmem:[%s7261 + $0x260] sm:$0xff]
    %v7339 = vld [vmem:[%s7261 + $0x268] sm:$0xff]
    %v7340 = vld [vmem:[%s7261 + $0x270] sm:$0xff]
    %v7341 = vld [vmem:[%s7261 + $0x278] sm:$0xff]
    %v7342 = vld [vmem:[%s7261 + $0x280] sm:$0xff]
    %v7343 = vld [vmem:[%s7261 + $0x288] sm:$0xff]
    %v7344 = vld [vmem:[%s7261 + $0x290] sm:$0xff]
    %v7345 = vld [vmem:[%s7261 + $0x298] sm:$0xff]
    %v7346 = vld [vmem:[%s7261 + $0x2a0] sm:$0xff]
    %v7347 = vld [vmem:[%s7261 + $0x2a8] sm:$0xff]
    %v7348 = vld [vmem:[%s7261 + $0x2b0] sm:$0xff]
    %v7349 = vld [vmem:[%s7261 + $0x2b8] sm:$0xff]
    %v7350 = vld [vmem:[%s7261 + $0x2c0] sm:$0xff]
    %v7351 = vld [vmem:[%s7261 + $0x2c8] sm:$0xff]
    %v7352 = vld [vmem:[%s7261 + $0x2d0] sm:$0xff]
    %v7353 = vld [vmem:[%s7261 + $0x2d8] sm:$0xff]
    %v7354 = vld [vmem:[%s7261 + $0x2e0] sm:$0xff]
    %v7355 = vld [vmem:[%s7261 + $0x2e8] sm:$0xff]
    %v7356 = vld [vmem:[%s7261 + $0x2f0] sm:$0xff]
    %v7357 = vld [vmem:[%s7261 + $0x2f8] sm:$0xff]
    %7358 = vmatpush.msra.mxu0 %v7292
    %7359 = vmatpush.msra.mxu0 %v7290
    %7360 = vmatpush.msra.mxu0 %v7288
    %7361 = vmatpush.msra.mxu0 %v7286
    %7362 = vmatpush.msra.mxu0 %v7284
    %7363 = vmatpush.msra.mxu0 %v7282
    %7364 = vmatpush.msra.mxu0 %v7280
    %7365 = vmatpush.msra.mxu0 %v7278
    %7366 = vmatpush.msra.mxu0 %v7276
    %7367 = vmatpush.msra.mxu0 %v7274
    %7368 = vmatpush.msra.mxu0 %v7272
    %7369 = vmatpush.msra.mxu0 %v7270
    %7370 = vmatpush.msra.mxu0 %v7268
    %7371 = vmatpush.msra.mxu0 %v7266
    %7372 = vmatpush.msra.mxu0 %v7264
    %7373 = vmatpush.msra.mxu0 %v7262
    %7374 = vmatmul.f32.gmra.mxu0 %v7258
    %v7375 = vpop.f32.mrf.mxu0
    %v7376 = vadd.f32 0.0, %v7375
    %7377 = vdwg.mxu0
    %7378 = vmatpush.msra.mxu0 %v7324
    %7379 = vmatpush.msra.mxu0 %v7322
    %7380 = vmatpush.msra.mxu0 %v7320
    %7381 = vmatpush.msra.mxu0 %v7318
    %7382 = vmatpush.msra.mxu0 %v7316
    %7383 = vmatpush.msra.mxu0 %v7314
    %7384 = vmatpush.msra.mxu0 %v7312
    %7385 = vmatpush.msra.mxu0 %v7310
    %7386 = vmatpush.msra.mxu0 %v7308
    %7387 = vmatpush.msra.mxu0 %v7306
    %7388 = vmatpush.msra.mxu0 %v7304
    %7389 = vmatpush.msra.mxu0 %v7302
    %7390 = vmatpush.msra.mxu0 %v7300
    %7391 = vmatpush.msra.mxu0 %v7298
    %7392 = vmatpush.msra.mxu0 %v7296
    %7393 = vmatpush.msra.mxu0 %v7294
    %7394 = vmatmul.f32.gmra.mxu0 %v7259
    %v7395 = vpop.f32.mrf.mxu0
    %v7396 = vadd.f32 %v7376, %v7395
    %7397 = vdwg.mxu0
    %7398 = vmatpush.msra.mxu0 %v7356
    %7399 = vmatpush.msra.mxu0 %v7354
    %7400 = vmatpush.msra.mxu0 %v7352
    %7401 = vmatpush.msra.mxu0 %v7350
    %7402 = vmatpush.msra.mxu0 %v7348
    %7403 = vmatpush.msra.mxu0 %v7346
    %7404 = vmatpush.msra.mxu0 %v7344
    %7405 = vmatpush.msra.mxu0 %v7342
    %7406 = vmatpush.msra.mxu0 %v7340
    %7407 = vmatpush.msra.mxu0 %v7338
    %7408 = vmatpush.msra.mxu0 %v7336
    %7409 = vmatpush.msra.mxu0 %v7334
    %7410 = vmatpush.msra.mxu0 %v7332
    %7411 = vmatpush.msra.mxu0 %v7330
    %7412 = vmatpush.msra.mxu0 %v7328
    %7413 = vmatpush.msra.mxu0 %v7326
    %7414 = vmatmul.f32.gmra.mxu0 %v7260
    %v7415 = vpop.f32.mrf.mxu0
    %v7416 = vadd.f32 %v7396, %v7415
    %7417 = vdwg.mxu0
    %7418 = vmatpush.msra.mxu0 %v7293
    %7419 = vmatpush.msra.mxu0 %v7291
    %7420 = vmatpush.msra.mxu0 %v7289
    %7421 = vmatpush.msra.mxu0 %v7287
    %7422 = vmatpush.msra.mxu0 %v7285
    %7423 = vmatpush.msra.mxu0 %v7283
    %7424 = vmatpush.msra.mxu0 %v7281
    %7425 = vmatpush.msra.mxu0 %v7279
    %7426 = vmatpush.msra.mxu0 %v7277
    %7427 = vmatpush.msra.mxu0 %v7275
    %7428 = vmatpush.msra.mxu0 %v7273
    %7429 = vmatpush.msra.mxu0 %v7271
    %7430 = vmatpush.msra.mxu0 %v7269
    %7431 = vmatpush.msra.mxu0 %v7267
    %7432 = vmatpush.msra.mxu0 %v7265
    %7433 = vmatpush.msra.mxu0 %v7263
    %7434 = vmatmul.f32.gmra.mxu0 %v7258
    %v7435 = vpop.f32.mrf.mxu0
    %v7436 = vadd.f32 0.0, %v7435
    %7437 = vdwg.mxu0
    %7438 = vmatpush.msra.mxu0 %v7325
    %7439 = vmatpush.msra.mxu0 %v7323
    %7440 = vmatpush.msra.mxu0 %v7321
    %7441 = vmatpush.msra.mxu0 %v7319
    %7442 = vmatpush.msra.mxu0 %v7317
    %7443 = vmatpush.msra.mxu0 %v7315
    %7444 = vmatpush.msra.mxu0 %v7313
    %7445 = vmatpush.msra.mxu0 %v7311
    %7446 = vmatpush.msra.mxu0 %v7309
    %7447 = vmatpush.msra.mxu0 %v7307
    %7448 = vmatpush.msra.mxu0 %v7305
    %7449 = vmatpush.msra.mxu0 %v7303
    %7450 = vmatpush.msra.mxu0 %v7301
    %7451 = vmatpush.msra.mxu0 %v7299
    %7452 = vmatpush.msra.mxu0 %v7297
    %7453 = vmatpush.msra.mxu0 %v7295
    %7454 = vmatmul.f32.gmra.mxu0 %v7259
    %v7455 = vpop.f32.mrf.mxu0
    %v7456 = vadd.f32 %v7436, %v7455
    %7457 = vdwg.mxu0
    %7458 = vmatpush.msra.mxu0 %v7357
    %7459 = vmatpush.msra.mxu0 %v7355
    %7460 = vmatpush.msra.mxu0 %v7353
    %7461 = vmatpush.msra.mxu0 %v7351
    %7462 = vmatpush.msra.mxu0 %v7349
    %7463 = vmatpush.msra.mxu0 %v7347
    %7464 = vmatpush.msra.mxu0 %v7345
    %7465 = vmatpush.msra.mxu0 %v7343
    %7466 = vmatpush.msra.mxu0 %v7341
    %7467 = vmatpush.msra.mxu0 %v7339
    %7468 = vmatpush.msra.mxu0 %v7337
    %7469 = vmatpush.msra.mxu0 %v7335
    %7470 = vmatpush.msra.mxu0 %v7333
    %7471 = vmatpush.msra.mxu0 %v7331
    %7472 = vmatpush.msra.mxu0 %v7329
    %7473 = vmatpush.msra.mxu0 %v7327
    %7474 = vmatmul.f32.gmra.mxu0 %v7260
    %v7475 = vpop.f32.mrf.mxu0
    %v7476 = vadd.f32 %v7456, %v7475
    %7477 = vdwg.mxu0
    %v7478 = vadd.f32 %v7256, %v7416
    %v7479 = vadd.f32 %v7257, %v7476
    %v7480 = vld [vmem:[#allocation15] sm:$0x3]
    %v7482 = vperm.slane %v7480, 0
    %v7483 = vperm.slane %v7480, 1
    %v7486 = vadd.f32 %v7478, %v7482
    %v7487 = vadd.f32 %v7479, %v7483
    %v7488 = vmax.f32 %v7486, 0.0
    %v7489 = vmax.f32 %v7487, 0.0
    %v7490 = vld [vmem:[#allocation16] sm:$0xff]
    %v7491 = vld [vmem:[#allocation16 + $0x8] sm:$0xff]
    %v7492 = vld [vmem:[#allocation16 + $0x10] sm:$0xff]
    %v7493 = vld [vmem:[#allocation16 + $0x18] sm:$0xff]
    %v7494 = vld [vmem:[#allocation16 + $0x20] sm:$0xff]
    %v7495 = vld [vmem:[#allocation16 + $0x28] sm:$0xff]
    %v7496 = vld [vmem:[#allocation16 + $0x30] sm:$0xff]
    %v7497 = vld [vmem:[#allocation16 + $0x38] sm:$0xff]
    %v7498 = vld [vmem:[#allocation16 + $0x40] sm:$0xff]
    %v7499 = vld [vmem:[#allocation16 + $0x48] sm:$0xff]
    %v7500 = vld [vmem:[#allocation16 + $0x50] sm:$0xff]
    %v7501 = vld [vmem:[#allocation16 + $0x58] sm:$0xff]
    %v7502 = vld [vmem:[#allocation16 + $0x60] sm:$0xff]
    %v7503 = vld [vmem:[#allocation16 + $0x68] sm:$0xff]
    %v7504 = vld [vmem:[#allocation16 + $0x70] sm:$0xff]
    %v7505 = vld [vmem:[#allocation16 + $0x78] sm:$0xff]
    %v7506 = vld [vmem:[#allocation16 + $0x80] sm:$0xff]
    %v7507 = vld [vmem:[#allocation16 + $0x88] sm:$0xff]
    %v7508 = vld [vmem:[#allocation16 + $0x90] sm:$0xff]
    %v7509 = vld [vmem:[#allocation16 + $0x98] sm:$0xff]
    %v7510 = vld [vmem:[#allocation16 + $0xa0] sm:$0xff]
    %v7511 = vld [vmem:[#allocation16 + $0xa8] sm:$0xff]
    %v7512 = vld [vmem:[#allocation16 + $0xb0] sm:$0xff]
    %v7513 = vld [vmem:[#allocation16 + $0xb8] sm:$0xff]
    %v7514 = vld [vmem:[#allocation16 + $0xc0] sm:$0xff]
    %v7515 = vld [vmem:[#allocation16 + $0xc8] sm:$0xff]
    %v7516 = vld [vmem:[#allocation16 + $0xd0] sm:$0xff]
    %v7517 = vld [vmem:[#allocation16 + $0xd8] sm:$0xff]
    %v7518 = vld [vmem:[#allocation16 + $0xe0] sm:$0xff]
    %v7519 = vld [vmem:[#allocation16 + $0xe8] sm:$0xff]
    %v7520 = vld [vmem:[#allocation16 + $0xf0] sm:$0xff]
    %v7521 = vld [vmem:[#allocation16 + $0xf8] sm:$0xff]
    %v7522 = vld [vmem:[#allocation18] sm:$0x1]
    %v7524 = vperm.slane %v7522, 0
    %7526 = vmatpush.msra.mxu0 %v7505
    %7527 = vmatpush.msra.mxu0 %v7504
    %7528 = vmatpush.msra.mxu0 %v7503
    %7529 = vmatpush.msra.mxu0 %v7502
    %7530 = vmatpush.msra.mxu0 %v7501
    %7531 = vmatpush.msra.mxu0 %v7500
    %7532 = vmatpush.msra.mxu0 %v7499
    %7533 = vmatpush.msra.mxu0 %v7498
    %7534 = vmatpush.msra.mxu0 %v7497
    %7535 = vmatpush.msra.mxu0 %v7496
    %7536 = vmatpush.msra.mxu0 %v7495
    %7537 = vmatpush.msra.mxu0 %v7494
    %7538 = vmatpush.msra.mxu0 %v7493
    %7539 = vmatpush.msra.mxu0 %v7492
    %7540 = vmatpush.msra.mxu0 %v7491
    %7541 = vmatpush.msra.mxu0 %v7490
    %7542 = vmatmul.f32.gmra.mxu0 %v7488
    %v7543 = vpop.f32.mrf.mxu0
    %v7544 = vadd.f32 %v7524, %v7543
    %7545 = vdwg.mxu0
    %7546 = vmatpush.msra.mxu0 %v7521
    %7547 = vmatpush.msra.mxu0 %v7520
    %7548 = vmatpush.msra.mxu0 %v7519
    %7549 = vmatpush.msra.mxu0 %v7518
    %7550 = vmatpush.msra.mxu0 %v7517
    %7551 = vmatpush.msra.mxu0 %v7516
    %7552 = vmatpush.msra.mxu0 %v7515
    %7553 = vmatpush.msra.mxu0 %v7514
    %7554 = vmatpush.msra.mxu0 %v7513
    %7555 = vmatpush.msra.mxu0 %v7512
    %7556 = vmatpush.msra.mxu0 %v7511
    %7557 = vmatpush.msra.mxu0 %v7510
    %7558 = vmatpush.msra.mxu0 %v7509
    %7559 = vmatpush.msra.mxu0 %v7508
    %7560 = vmatpush.msra.mxu0 %v7507
    %7561 = vmatpush.msra.mxu0 %v7506
    %7562 = vmatmul.f32.gmra.mxu0 %v7489
    %v7563 = vpop.f32.mrf.mxu0
    %v7564 = vadd.f32 %v7544, %v7563
    %7565 = vdwg.mxu0
    %v7566 = vmax.f32 %v7564, 0.0
    %v7567 = vld [vmem:[#allocation19] sm:$0xff]
    %v7568 = vld [vmem:[#allocation19 + $0x8] sm:$0xff]
    %v7569 = vld [vmem:[#allocation19 + $0x10] sm:$0xff]
    %v7570 = vld [vmem:[#allocation19 + $0x18] sm:$0xff]
    %v7571 = vld [vmem:[#allocation19 + $0x20] sm:$0xff]
    %v7572 = vld [vmem:[#allocation19 + $0x28] sm:$0xff]
    %v7573 = vld [vmem:[#allocation19 + $0x30] sm:$0xff]
    %v7574 = vld [vmem:[#allocation19 + $0x38] sm:$0xff]
    %v7575 = vld [vmem:[#allocation19 + $0x40] sm:$0xff]
    %v7576 = vld [vmem:[#allocation19 + $0x48] sm:$0xff]
    %v7577 = vld [vmem:[#allocation19 + $0x50] sm:$0xff]
    %v7578 = vld [vmem:[#allocation19 + $0x58] sm:$0xff]
    %v7579 = vld [vmem:[#allocation19 + $0x60] sm:$0xff]
    %v7580 = vld [vmem:[#allocation19 + $0x68] sm:$0xff]
    %v7581 = vld [vmem:[#allocation19 + $0x70] sm:$0xff]
    %v7582 = vld [vmem:[#allocation19 + $0x78] sm:$0xff]
    %v7583 = vld [vmem:[#allocation21] sm:$0x1]
    %v7585 = vperm.slane %v7583, 0
    %7587 = vmatpush.msra.mxu0 %v7582
    %7588 = vmatpush.msra.mxu0 %v7581
    %7589 = vmatpush.msra.mxu0 %v7580
    %7590 = vmatpush.msra.mxu0 %v7579
    %7591 = vmatpush.msra.mxu0 %v7578
    %7592 = vmatpush.msra.mxu0 %v7577
    %7593 = vmatpush.msra.mxu0 %v7576
    %7594 = vmatpush.msra.mxu0 %v7575
    %7595 = vmatpush.msra.mxu0 %v7574
    %7596 = vmatpush.msra.mxu0 %v7573
    %7597 = vmatpush.msra.mxu0 %v7572
    %7598 = vmatpush.msra.mxu0 %v7571
    %7599 = vmatpush.msra.mxu0 %v7570
    %7600 = vmatpush.msra.mxu0 %v7569
    %7601 = vmatpush.msra.mxu0 %v7568
    %7602 = vmatpush.msra.mxu0 %v7567
    %7603 = vmatmul.f32.gmra.mxu0 %v7566
    %v7604 = vpop.f32.mrf.mxu0
    %v7605 = vadd.f32 %v7585, %v7604
    %7606 = vdwg.mxu0
    %vm7607 = vcmask 1041408
    %v7608 = vsel %vm7607, %v7605, -inf
    %7609 = vmax.xlane.f32.xlu0 %v7608
    %v7610 = vpop.xlane.xlu0 %7609
    %v7611 = vsub.f32 %v7605, %v7610
    %v7612 = vmul.f32 %v7611, 1.442695
    %v7613 = vpow.pop %v7612
    %v7614 = vsel %vm7607, %v7613, 0.0
    %7615 = vadd.xlane.f32.xlu0 %v7614
    %v7616 = vpop.xlane.xlu0 %7615
    %v7617 = vlog2.pop %v7616
    %v7618 = vmul.f32 %v7617, 0.6931472
    %v7619 = vsub.f32 %v7611, %v7618
    %vm7620 = vcmask 74752
    %7621 = vst.msk [vmem:[#allocation22] sm:$0x3] %vm7620, %v7619
    // Predicated region
    $region94: #{lenet5_forward.1} parent=1 // pred_check
      _
    $region95: #{lenet5_forward.1} parent=1 // pred_check_branch
      %7623 = sbr.rel (0) target = $region97
    $region96: #{lenet5_forward.1} parent=1 // pred_region
      %7625 = vsyncadd [#allocation6], 0
      %s7627 = sshll.u32 [#allocation22], 4
      %s7628 = int_to_ptr.vmem [resolvable:$true] %s7627
      %s7629 = sshll.u32 %s12, 4
      %s7630 = int_to_ptr.hbm [resolvable:$true] %s7629
      %7632 = dma.vmem_to_hbm [thread:$0]  %s7628, 32, %s7630, [#allocation6]
    $region97: #{lenet5_forward.1} parent=1 // pred_fallthru
      _
    // Predicated region
    $region98: #{lenet5_forward.1} parent=1 // pred_check
      _
    $region99: #{lenet5_forward.1} parent=1 // pred_check_branch
      %7634 = sbr.rel (0) target = $region101
    $region100: #{lenet5_forward.1} parent=1 // pred_region
      %7636 = dma.done [#allocation6], 32
    $region101: #{lenet5_forward.1} parent=1 // pred_fallthru
      _
    %7637 = vsyncpa [#allocation5], 1
    %7638 = vsyncpa [#allocation8], 1
    %7639 = vsyncpa [#allocation11], 1
    %7640 = vsyncpa [#allocation14], 1
    %7641 = vsyncpa [#allocation17], 1
    %7642 = vsyncpa [#allocation20], 1
    %7643 = vsyncpa [#allocation6], 1

</llo_original>
